<compile_context>
chip_gen: v5e
topology: v5e:2x2
jax: 0.10.0
libtpu: 0.0.40
codegen_flags: <defaults>
</compile_context>

<pallas_src>
import numpy as np
import jax
import jax.numpy as jnp
from jax.experimental import pallas as pl
from jax.experimental.pallas import tpu as pltpu

# ---- model constants (from the PyTorch module) ----
d_k = d_v = 64
d_model = 512
n_heads = 8
d_ff = 2048
n_layers = 6

MXU_DTYPE = jnp.bfloat16           # MXU operand dtype (accumulation is always f32)
VMEM_LIMIT = 48 * 1024 * 1024      # under v7x's 64 MiB VMEM with headroom; fine on v5e/v6e


def _m_tile(M):
    # full array when small (block == full dim is always legal), else 256-row tiles
    return M if M <= 256 else 256


def _compiler_params(n_axes=1):
    return pltpu.CompilerParams(
        dimension_semantics=("parallel",) * n_axes,
        vmem_limit_bytes=VMEM_LIMIT,
    )


# ----------------------------------------------------------------------------
# Pallas kernels
# ----------------------------------------------------------------------------
def _qkv_proj_kernel(x_ref, w_ref, b_ref, o_ref):
    # o = x @ [Wq|Wk|Wv] + [bq|bk|bv]   -- single wide MXU matmul, bf16 operands, f32 accum
    y = jnp.dot(x_ref[...].astype(MXU_DTYPE), w_ref[...],
                preferred_element_type=jnp.float32)
    o_ref[...] = y + b_ref[...]


def _attn_kernel(qkv_ref, pad_ref, o_ref):
    # one batch element, all n_heads heads per grid step
    # qkv_ref: (1, S, 3*H*d) f32, pad_ref: (1, 1, S) f32 (1.0 where key token is pad)
    qkv = qkv_ref[0]                       # (S, 3*H*d)
    pad = pad_ref[0]                       # (1, S) -> broadcasts over query rows
    hd = n_heads * d_k
    q = qkv[:, :hd]
    k = qkv[:, hd:2 * hd]
    v = qkv[:, 2 * hd:]
    scale = jnp.float32(1.0 / np.sqrt(d_k))
    ctx_heads = []
    for h in range(n_heads):               # static unroll; lane-offset slices, no extra HBM traffic
        q_h = q[:, h * d_k:(h + 1) * d_k].astype(MXU_DTYPE)
        k_h = k[:, h * d_k:(h + 1) * d_k].astype(MXU_DTYPE)
        v_h = v[:, h * d_v:(h + 1) * d_v].astype(MXU_DTYPE)
        # contract feature dims directly: no explicit K transpose in the kernel
        s = jax.lax.dot_general(q_h, k_h, (((1,), (1,)), ((), ())),
                                preferred_element_type=jnp.float32) * scale
        s = jnp.where(pad > 0.5, jnp.float32(-1e9), s)     # masked_fill_(pad, -1e9)
        s = s - jnp.max(s, axis=-1, keepdims=True)          # stable softmax in f32
        e = jnp.exp(s)
        p = e / jnp.sum(e, axis=-1, keepdims=True)
        ctx_heads.append(jnp.dot(p.astype(MXU_DTYPE), v_h,
                                 preferred_element_type=jnp.float32))
    # lane-dense (S, H*d_v) = (S, 512) store; heads already laid out for the W_O matmul
    o_ref[0] = jnp.concatenate(ctx_heads, axis=-1)


def _add_layernorm(y, g, b):
    mean = jnp.mean(y, axis=-1, keepdims=True)
    var = jnp.mean((y - mean) ** 2, axis=-1, keepdims=True)
    return (y - mean) * jax.lax.rsqrt(var + 1e-5) * g + b


def _proj_res_ln_kernel(ctx_ref, w_ref, b_ref, res_ref, g_ref, be_ref, o_ref):
    # o = LayerNorm(ctx @ Wo + bo + residual)  -- fused, projection output never hits HBM
    y = jnp.dot(ctx_ref[...].astype(MXU_DTYPE), w_ref[...],
                preferred_element_type=jnp.float32)
    y = y + b_ref[...] + res_ref[...]
    o_ref[...] = _add_layernorm(y, g_ref[...], be_ref[...])


def _ffn_kernel(x_ref, w1_ref, b1_ref, w2_ref, b2_ref, g_ref, be_ref, o_ref):
    # o = LayerNorm(relu(x @ W1 + b1) @ W2 + b2 + x)  -- (tm, d_ff) hidden stays in VMEM
    x = x_ref[...]
    h = jnp.dot(x.astype(MXU_DTYPE), w1_ref[...], preferred_element_type=jnp.float32)
    h = jnp.maximum(h + b1_ref[...], 0.0)
    y = jnp.dot(h.astype(MXU_DTYPE), w2_ref[...], preferred_element_type=jnp.float32)
    y = y + b2_ref[...] + x
    o_ref[...] = _add_layernorm(y, g_ref[...], be_ref[...])


# ----------------------------------------------------------------------------
# Pallas wrappers (M / B tiled grids, parallel dimension_semantics)
# ----------------------------------------------------------------------------
def pallas_qkv_proj(x, w, b):
    # x: (M, d_model) f32, w: (d_model, 3*H*d) bf16, b: (3*H*d,) f32 -> (M, 3*H*d) f32
    M, K = x.shape
    N = w.shape[1]
    tm = _m_tile(M)
    return pl.pallas_call(
        _qkv_proj_kernel,
        out_shape=jax.ShapeDtypeStruct((M, N), jnp.float32),
        grid=(pl.cdiv(M, tm),),
        in_specs=[
            pl.BlockSpec((tm, K), lambda i: (i, 0)),
            pl.BlockSpec((K, N), lambda i: (0, 0)),
            pl.BlockSpec((1, N), lambda i: (0, 0)),
        ],
        out_specs=pl.BlockSpec((tm, N), lambda i: (i, 0)),
        compiler_params=_compiler_params(),
    )(x, w, b.reshape(1, N))


def pallas_attention(qkv, pad):
    # qkv: (B, S, 3*H*d) f32, pad: (B, 1, S) f32 key-pad row -> (B, S, H*d_v) f32 (lane-dense)
    B, S, W3 = qkv.shape
    N = n_heads * d_v
    return pl.pallas_call(
        _attn_kernel,
        out_shape=jax.ShapeDtypeStruct((B, S, N), jnp.float32),
        grid=(B,),
        in_specs=[
            pl.BlockSpec((1, S, W3), lambda b: (b, 0, 0)),
            pl.BlockSpec((1, 1, S), lambda b: (b, 0, 0)),
        ],
        out_specs=pl.BlockSpec((1, S, N), lambda b: (b, 0, 0)),
        compiler_params=_compiler_params(),
    )(qkv, pad)


def pallas_out_proj_ln(ctx, w, b, residual, gamma, beta):
    # LayerNorm(ctx @ w + b + residual); residual buffer is aliased to the output (in-place)
    M, _ = ctx.shape
    N = w.shape[1]
    tm = _m_tile(M)
    return pl.pallas_call(
        _proj_res_ln_kernel,
        out_shape=jax.ShapeDtypeStruct((M, N), jnp.float32),
        grid=(pl.cdiv(M, tm),),
        in_specs=[
            pl.BlockSpec((tm, w.shape[0]), lambda i: (i, 0)),
            pl.BlockSpec((w.shape[0], N), lambda i: (0, 0)),
            pl.BlockSpec((1, N), lambda i: (0, 0)),
            pl.BlockSpec((tm, N), lambda i: (i, 0)),
            pl.BlockSpec((1, N), lambda i: (0, 0)),
            pl.BlockSpec((1, N), lambda i: (0, 0)),
        ],
        out_specs=pl.BlockSpec((tm, N), lambda i: (i, 0)),
        input_output_aliases={3: 0},
        compiler_params=_compiler_params(),
    )(ctx, w, b.reshape(1, N), residual, gamma.reshape(1, N), beta.reshape(1, N))


def pallas_ffn_ln(x, w1, b1, w2, b2, gamma, beta):
    # LayerNorm(relu(x@W1+b1)@W2+b2 + x); x buffer aliased to the output (in-place residual)
    M, D = x.shape
    F = w1.shape[1]
    tm = _m_tile(M)
    return pl.pallas_call(
        _ffn_kernel,
        out_shape=jax.ShapeDtypeStruct((M, D), jnp.float32),
        grid=(pl.cdiv(M, tm),),
        in_specs=[
            pl.BlockSpec((tm, D), lambda i: (i, 0)),
            pl.BlockSpec((D, F), lambda i: (0, 0)),
            pl.BlockSpec((1, F), lambda i: (0, 0)),
            pl.BlockSpec((F, D), lambda i: (0, 0)),
            pl.BlockSpec((1, D), lambda i: (0, 0)),
            pl.BlockSpec((1, D), lambda i: (0, 0)),
            pl.BlockSpec((1, D), lambda i: (0, 0)),
        ],
        out_specs=pl.BlockSpec((tm, D), lambda i: (i, 0)),
        input_output_aliases={0: 0},
        compiler_params=_compiler_params(),
    )(x, w1, b1.reshape(1, F), w2, b2.reshape(1, D), gamma.reshape(1, D), beta.reshape(1, D))


# ----------------------------------------------------------------------------
# Encoder forward (glue in plain JAX, hot paths in Pallas)
# ----------------------------------------------------------------------------
def encoder_layer(x2, pad, lp):
    # x2: (B*S, d_model) f32 residual stream;  pad: (B, 1, S) f32 key-pad mask row
    B, _, S = pad.shape
    qkv = pallas_qkv_proj(x2, lp["w_qkv"], lp["b_qkv"])            # (B*S, 3*H*d)
    qkv = qkv.reshape(B, S, 3 * n_heads * d_k)                     # leading-dim split only
    ctx = pallas_attention(qkv, pad)                               # (B, S, H*d_v), lane-dense
    ctx = ctx.reshape(B * S, n_heads * d_v)                        # no head transposes needed
    x2 = pallas_out_proj_ln(ctx, lp["wo"], lp["bo"], x2, lp["ln1_g"], lp["ln1_b"])
    x2 = pallas_ffn_ln(x2, lp["w1"], lp["b1"], lp["w2"], lp["b2"], lp["ln2_g"], lp["ln2_b"])
    return x2


def encoder_forward(enc_inputs, params):
    B, S = enc_inputs.shape
    # TODO(synk): embedding-table gathers stay in plain JAX glue (irregular gather, not the hot path)
    emb = params["src_emb"][enc_inputs] + params["pos_table"][enc_inputs]
    # get_attn_pad_mask reduced to a (B, 1, S) key-pad row; broadcast over queries in-kernel
    pad = (enc_inputs == 0).astype(jnp.float32).reshape(B, 1, S)
    x2 = emb.reshape(B * S, d_model)
    for lp in params["layers"]:
        x2 = encoder_layer(x2, pad, lp)
    return x2.reshape(B, S, d_model)


# ----------------------------------------------------------------------------
# Deterministic parameter init (matches the PyTorch module's layer structure)
# ----------------------------------------------------------------------------
def get_sinusoid_encoding_table(n_position, dm):
    def cal_angle(position, hid_idx):
        return position / np.power(10000, 2 * (hid_idx // 2) / dm)

    table = np.array([[cal_angle(p, j) for j in range(dm)] for p in range(n_position)])
    table[:, 0::2] = np.sin(table[:, 0::2])
    table[:, 1::2] = np.cos(table[:, 1::2])
    return jnp.asarray(table, dtype=jnp.float32)


def _linear_params(key, fan_in, fan_out):
    kw, kb = jax.random.split(key)
    bound = 1.0 / np.sqrt(fan_in)
    w = jax.random.uniform(kw, (fan_in, fan_out), jnp.float32, -bound, bound)
    b = jax.random.uniform(kb, (fan_out,), jnp.float32, -bound, bound)
    return w, b


def init_params(key, vocab_size):
    keys = iter(jax.random.split(key, 2 + n_layers * 6))
    params = {
        "src_emb": jax.random.normal(next(keys), (vocab_size, d_model), jnp.float32),
        "pos_table": get_sinusoid_encoding_table(vocab_size + 1, d_model),
        "layers": [],
    }
    for _ in range(n_layers):
        wq, bq = _linear_params(next(keys), d_model, d_k * n_heads)
        wk, bk = _linear_params(next(keys), d_model, d_k * n_heads)
        wv, bv = _linear_params(next(keys), d_model, d_v * n_heads)
        wo, bo = _linear_params(next(keys), n_heads * d_v, d_model)
        w1, b1 = _linear_params(next(keys), d_model, d_ff)    # Conv1d(k=1) == channel linear
        w2, b2 = _linear_params(next(keys), d_ff, d_model)
        params["layers"].append({
            # QKV fused into one (d_model, 3*H*d_k) weight; matmul weights stored bf16 in HBM
            "w_qkv": jnp.concatenate([wq, wk, wv], axis=1).astype(MXU_DTYPE),
            "b_qkv": jnp.concatenate([bq, bk, bv], axis=0),
            "wo": wo.astype(MXU_DTYPE), "bo": bo,
            "ln1_g": jnp.ones((d_model,), jnp.float32),
            "ln1_b": jnp.zeros((d_model,), jnp.float32),
            "w1": w1.astype(MXU_DTYPE), "b1": b1,
            "w2": w2.astype(MXU_DTYPE), "b2": b2,
            "ln2_g": jnp.ones((d_model,), jnp.float32),
            "ln2_b": jnp.zeros((d_model,), jnp.float32),
        })
    return params


# ----------------------------------------------------------------------------
if __name__ == "__main__":
    B, S, VOCAB = 2, 8, 16
    key = jax.random.PRNGKey(0)
    k_tok, k_par = jax.random.split(key)
    enc_inputs = jax.random.randint(k_tok, (B, S), 0, VOCAB, dtype=jnp.int32)
    params = init_params(k_par, VOCAB)

    fwd = jax.jit(encoder_forward)
    out = fwd(enc_inputs, params)
    jax.block_until_ready(out)
    assert out.shape == (B, S, d_model)
    assert bool(jnp.all(jnp.isfinite(out)))
    print("KERNEL_OK")
</pallas_src>

<mosaic_0001>
module attributes {stable_mosaic.version = 11 : i64} {
  func.func @_qkv_proj_kernel(%arg0: i32, %arg1: memref<16x512xf32, #tpu.memory_space<vmem>>, %arg2: memref<512x1536xbf16, #tpu.memory_space<vmem>>, %arg3: memref<1x1536xf32, #tpu.memory_space<vmem>>, %arg4: memref<16x1536xf32, #tpu.memory_space<vmem>>) attributes {dimension_semantics = [#tpu.dimension_semantics<parallel>], iteration_bounds = array<i64: 1>, scalar_prefetch = 0 : i64, scratch_operands = 0 : i64, tpu.core_type = #tpu.core_type<tc>, window_params = [{transform_indices = @transform_0, window_bounds = array<i64: 16, 512>}, {pipeline_mode = #tpu.pipeline_mode<synchronous>, transform_indices = @transform_1, window_bounds = array<i64: 512, 1536>}, {pipeline_mode = #tpu.pipeline_mode<synchronous>, transform_indices = @transform_2, window_bounds = array<i64: 1, 1536>}, {transform_indices = @transform_3, window_bounds = array<i64: 16, 1536>}]} {
    %c0 = arith.constant 0 : index
    %c0_0 = arith.constant 0 : index
    %0 = vector.load %arg1[%c0, %c0_0] : memref<16x512xf32, #tpu.memory_space<vmem>>, vector<16x512xf32>
    %1 = arith.truncf %0 : vector<16x512xf32> to vector<16x512xbf16>
    %c0_1 = arith.constant 0 : index
    %c0_2 = arith.constant 0 : index
    %2 = vector.load %arg2[%c0_1, %c0_2] : memref<512x1536xbf16, #tpu.memory_space<vmem>>, vector<512x1536xbf16>
    %cst = arith.constant dense<0.000000e+00> : vector<16x1536xf32>
    %3 = tpu.matmul %1, %2, %cst {dimension_numbers = #tpu.dot_dimension_numbers<[1], [0], [0], [1], [0, 0, 1, 1], [], []>} : vector<16x512xbf16>, vector<512x1536xbf16>, vector<16x1536xf32> -> vector<16x1536xf32>
    %c0_3 = arith.constant 0 : index
    %c0_4 = arith.constant 0 : index
    %4 = vector.load %arg3[%c0_3, %c0_4] : memref<1x1536xf32, #tpu.memory_space<vmem>>, vector<1x1536xf32>
    %5 = vector.broadcast %4 : vector<1x1536xf32> to vector<16x1536xf32>
    %6 = arith.addf %3, %5 : vector<16x1536xf32>
    %c0_5 = arith.constant 0 : index
    %c0_6 = arith.constant 0 : index
    %7 = vector.load %arg4[%c0_5, %c0_6] : memref<16x1536xf32, #tpu.memory_space<vmem>>, vector<16x1536xf32>
    tpu.vector_store %arg4[%c0_5, %c0_6], %6 {strides = array<i32>} : memref<16x1536xf32, #tpu.memory_space<vmem>>, vector<16x1536xf32>,
    return
  }
  func.func @transform_0(%arg0: i32) -> (i32, i32) {
    %c0_i32 = arith.constant 0 : i32
    %c0_i32_0 = arith.constant 0 : i32
    return %arg0, %c0_i32 : i32, i32
  }
  func.func @transform_1(%arg0: i32) -> (i32, i32) {
    %c0_i32 = arith.constant 0 : i32
    %c0_i32_0 = arith.constant 0 : i32
    %c0_i32_1 = arith.constant 0 : i32
    return %c0_i32, %c0_i32_0 : i32, i32
  }
  func.func @transform_2(%arg0: i32) -> (i32, i32) {
    %c0_i32 = arith.constant 0 : i32
    %c0_i32_0 = arith.constant 0 : i32
    %c0_i32_1 = arith.constant 0 : i32
    return %c0_i32, %c0_i32_0 : i32, i32
  }
  func.func @transform_3(%arg0: i32) -> (i32, i32) {
    %c0_i32 = arith.constant 0 : i32
    %c0_i32_0 = arith.constant 0 : i32
    return %arg0, %c0_i32 : i32, i32
  }
}

module attributes {stable_mosaic.version = 11 : i64} {
  func.func @_attn_kernel(%arg0: i32, %arg1: memref<1x8x1536xf32, #tpu.memory_space<vmem>>, %arg2: memref<1x1x8xf32, #tpu.memory_space<vmem>>, %arg3: memref<1x8x512xf32, #tpu.memory_space<vmem>>) attributes {dimension_semantics = [#tpu.dimension_semantics<parallel>], iteration_bounds = array<i64: 2>, scalar_prefetch = 0 : i64, scratch_operands = 0 : i64, tpu.core_type = #tpu.core_type<tc>, window_params = [{transform_indices = @transform_0, window_bounds = array<i64: 1, 8, 1536>}, {transform_indices = @transform_1, window_bounds = array<i64: 1, 1, 8>}, {transform_indices = @transform_2, window_bounds = array<i64: 1, 8, 512>}]} {
    %c0 = arith.constant 0 : index
    %c0_0 = arith.constant 0 : index
    %c0_1 = arith.constant 0 : index
    %0 = vector.load %arg1[%c0, %c0_0, %c0_1] : memref<1x8x1536xf32, #tpu.memory_space<vmem>>, vector<1x8x1536xf32>
    %1 = vector.shape_cast %0 : vector<1x8x1536xf32> to vector<8x1536xf32>
    %c0_2 = arith.constant 0 : index
    %c0_3 = arith.constant 0 : index
    %c0_4 = arith.constant 0 : index
    %2 = vector.load %arg2[%c0_2, %c0_3, %c0_4] : memref<1x1x8xf32, #tpu.memory_space<vmem>>, vector<1x1x8xf32>
    %3 = vector.shape_cast %2 : vector<1x1x8xf32> to vector<1x8xf32>
    %4 = vector.extract_strided_slice %1 {offsets = [0, 0], sizes = [8, 512], strides = [1, 1]} : vector<8x1536xf32> to vector<8x512xf32>
    %5 = vector.extract_strided_slice %1 {offsets = [0, 512], sizes = [8, 512], strides = [1, 1]} : vector<8x1536xf32> to vector<8x512xf32>
    %6 = vector.extract_strided_slice %1 {offsets = [0, 1024], sizes = [8, 512], strides = [1, 1]} : vector<8x1536xf32> to vector<8x512xf32>
    %7 = vector.extract_strided_slice %4 {offsets = [0, 0], sizes = [8, 64], strides = [1, 1]} : vector<8x512xf32> to vector<8x64xf32>
    %8 = arith.truncf %7 : vector<8x64xf32> to vector<8x64xbf16>
    %9 = vector.extract_strided_slice %5 {offsets = [0, 0], sizes = [8, 64], strides = [1, 1]} : vector<8x512xf32> to vector<8x64xf32>
    %10 = arith.truncf %9 : vector<8x64xf32> to vector<8x64xbf16>
    %11 = vector.extract_strided_slice %6 {offsets = [0, 0], sizes = [8, 64], strides = [1, 1]} : vector<8x512xf32> to vector<8x64xf32>
    %12 = arith.truncf %11 : vector<8x64xf32> to vector<8x64xbf16>
    %cst = arith.constant dense<0.000000e+00> : vector<8x8xf32>
    %13 = tpu.matmul %8, %10, %cst {dimension_numbers = #tpu.dot_dimension_numbers<[1], [1], [0], [0], [0, 0, 1, 0], [], []>} : vector<8x64xbf16>, vector<8x64xbf16>, vector<8x8xf32> -> vector<8x8xf32>
    %cst_5 = arith.constant 1.250000e-01 : f32
    %14 = vector.broadcast %cst_5 : f32 to vector<8x8xf32>
    %15 = arith.mulf %13, %14 : vector<8x8xf32>
    %cst_6 = arith.constant 5.000000e-01 : f32
    %16 = vector.broadcast %cst_6 : f32 to vector<1x8xf32>
    %17 = arith.cmpf ogt, %3, %16 : vector<1x8xf32>
    %cst_7 = arith.constant -1.000000e+09 : f32
    %18 = vector.shape_cast %17 : vector<1x8xi1> to vector<1x8xi1>
    %19 = vector.broadcast %18 : vector<1x8xi1> to vector<8x8xi1>
    %20 = vector.broadcast %cst_7 : f32 to vector<8x8xf32>
    %21 = arith.select %19, %20, %15 : vector<8x8xi1>, vector<8x8xf32>
    %cst_8 = arith.constant dense<0xFF800000> : vector<8xf32>
    %22 = vector.multi_reduction <maximumf>, %21, %cst_8 [1] : vector<8x8xf32> to vector<8xf32>
    %23 = vector.shape_cast %22 : vector<8xf32> to vector<8x1xf32>
    %24 = vector.broadcast %23 : vector<8x1xf32> to vector<8x8xf32>
    %25 = arith.subf %21, %24 : vector<8x8xf32>
    %26 = math.exp %25 : vector<8x8xf32>
    %cst_9 = arith.constant dense<0.000000e+00> : vector<8xf32>
    %27 = vector.multi_reduction <add>, %26, %cst_9 [1] : vector<8x8xf32> to vector<8xf32>
    %28 = vector.shape_cast %27 : vector<8xf32> to vector<8x1xf32>
    %29 = vector.broadcast %28 : vector<8x1xf32> to vector<8x8xf32>
    %30 = arith.divf %26, %29 : vector<8x8xf32>
    %31 = arith.truncf %30 : vector<8x8xf32> to vector<8x8xbf16>
    %cst_10 = arith.constant dense<0.000000e+00> : vector<8x64xf32>
    %32 = tpu.matmul %31, %12, %cst_10 {dimension_numbers = #tpu.dot_dimension_numbers<[1], [0], [0], [1], [0, 0, 1, 1], [], []>} : vector<8x8xbf16>, vector<8x64xbf16>, vector<8x64xf32> -> vector<8x64xf32>
    %33 = vector.extract_strided_slice %4 {offsets = [0, 64], sizes = [8, 64], strides = [1, 1]} : vector<8x512xf32> to vector<8x64xf32>
    %34 = arith.truncf %33 : vector<8x64xf32> to vector<8x64xbf16>
    %35 = vector.extract_strided_slice %5 {offsets = [0, 64], sizes = [8, 64], strides = [1, 1]} : vector<8x512xf32> to vector<8x64xf32>
    %36 = arith.truncf %35 : vector<8x64xf32> to vector<8x64xbf16>
    %37 = vector.extract_strided_slice %6 {offsets = [0, 64], sizes = [8, 64], strides = [1, 1]} : vector<8x512xf32> to vector<8x64xf32>
    %38 = arith.truncf %37 : vector<8x64xf32> to vector<8x64xbf16>
    %cst_11 = arith.constant dense<0.000000e+00> : vector<8x8xf32>
    %39 = tpu.matmul %34, %36, %cst_11 {dimension_numbers = #tpu.dot_dimension_numbers<[1], [1], [0], [0], [0, 0, 1, 0], [], []>} : vector<8x64xbf16>, vector<8x64xbf16>, vector<8x8xf32> -> vector<8x8xf32>
    %cst_12 = arith.constant 1.250000e-01 : f32
    %40 = vector.broadcast %cst_12 : f32 to vector<8x8xf32>
    %41 = arith.mulf %39, %40 : vector<8x8xf32>
    %cst_13 = arith.constant 5.000000e-01 : f32
    %42 = vector.broadcast %cst_13 : f32 to vector<1x8xf32>
    %43 = arith.cmpf ogt, %3, %42 : vector<1x8xf32>
    %cst_14 = arith.constant -1.000000e+09 : f32
    %44 = vector.shape_cast %43 : vector<1x8xi1> to vector<1x8xi1>
    %45 = vector.broadcast %44 : vector<1x8xi1> to vector<8x8xi1>
    %46 = vector.broadcast %cst_14 : f32 to vector<8x8xf32>
    %47 = arith.select %45, %46, %41 : vector<8x8xi1>, vector<8x8xf32>
    %cst_15 = arith.constant dense<0xFF800000> : vector<8xf32>
    %48 = vector.multi_reduction <maximumf>, %47, %cst_15 [1] : vector<8x8xf32> to vector<8xf32>
    %49 = vector.shape_cast %48 : vector<8xf32> to vector<8x1xf32>
    %50 = vector.broadcast %49 : vector<8x1xf32> to vector<8x8xf32>
    %51 = arith.subf %47, %50 : vector<8x8xf32>
    %52 = math.exp %51 : vector<8x8xf32>
    %cst_16 = arith.constant dense<0.000000e+00> : vector<8xf32>
    %53 = vector.multi_reduction <add>, %52, %cst_16 [1] : vector<8x8xf32> to vector<8xf32>
    %54 = vector.shape_cast %53 : vector<8xf32> to vector<8x1xf32>
    %55 = vector.broadcast %54 : vector<8x1xf32> to vector<8x8xf32>
    %56 = arith.divf %52, %55 : vector<8x8xf32>
    %57 = arith.truncf %56 : vector<8x8xf32> to vector<8x8xbf16>
    %cst_17 = arith.constant dense<0.000000e+00> : vector<8x64xf32>
    %58 = tpu.matmul %57, %38, %cst_17 {dimension_numbers = #tpu.dot_dimension_numbers<[1], [0], [0], [1], [0, 0, 1, 1], [], []>} : vector<8x8xbf16>, vector<8x64xbf16>, vector<8x64xf32> -> vector<8x64xf32>
    %59 = vector.extract_strided_slice %4 {offsets = [0, 128], sizes = [8, 64], strides = [1, 1]} : vector<8x512xf32> to vector<8x64xf32>
    %60 = arith.truncf %59 : vector<8x64xf32> to vector<8x64xbf16>
    %61 = vector.extract_strided_slice %5 {offsets = [0, 128], sizes = [8, 64], strides = [1, 1]} : vector<8x512xf32> to vector<8x64xf32>
    %62 = arith.truncf %61 : vector<8x64xf32> to vector<8x64xbf16>
    %63 = vector.extract_strided_slice %6 {offsets = [0, 128], sizes = [8, 64], strides = [1, 1]} : vector<8x512xf32> to vector<8x64xf32>
    %64 = arith.truncf %63 : vector<8x64xf32> to vector<8x64xbf16>
    %cst_18 = arith.constant dense<0.000000e+00> : vector<8x8xf32>
    %65 = tpu.matmul %60, %62, %cst_18 {dimension_numbers = #tpu.dot_dimension_numbers<[1], [1], [0], [0], [0, 0, 1, 0], [], []>} : vector<8x64xbf16>, vector<8x64xbf16>, vector<8x8xf32> -> vector<8x8xf32>
    %cst_19 = arith.constant 1.250000e-01 : f32
    %66 = vector.broadcast %cst_19 : f32 to vector<8x8xf32>
    %67 = arith.mulf %65, %66 : vector<8x8xf32>
    %cst_20 = arith.constant 5.000000e-01 : f32
    %68 = vector.broadcast %cst_20 : f32 to vector<1x8xf32>
    %69 = arith.cmpf ogt, %3, %68 : vector<1x8xf32>
    %cst_21 = arith.constant -1.000000e+09 : f32
    %70 = vector.shape_cast %69 : vector<1x8xi1> to vector<1x8xi1>
    %71 = vector.broadcast %70 : vector<1x8xi1> to vector<8x8xi1>
    %72 = vector.broadcast %cst_21 : f32 to vector<8x8xf32>
    %73 = arith.select %71, %72, %67 : vector<8x8xi1>, vector<8x8xf32>
    %cst_22 = arith.constant dense<0xFF800000> : vector<8xf32>
    %74 = vector.multi_reduction <maximumf>, %73, %cst_22 [1] : vector<8x8xf32> to vector<8xf32>
    %75 = vector.shape_cast %74 : vector<8xf32> to vector<8x1xf32>
    %76 = vector.broadcast %75 : vector<8x1xf32> to vector<8x8xf32>
    %77 = arith.subf %73, %76 : vector<8x8xf32>
    %78 = math.exp %77 : vector<8x8xf32>
    %cst_23 = arith.constant dense<0.000000e+00> : vector<8xf32>
    %79 = vector.multi_reduction <add>, %78, %cst_23 [1] : vector<8x8xf32> to vector<8xf32>
    %80 = vector.shape_cast %79 : vector<8xf32> to vector<8x1xf32>
    %81 = vector.broadcast %80 : vector<8x1xf32> to vector<8x8xf32>
    %82 = arith.divf %78, %81 : vector<8x8xf32>
    %83 = arith.truncf %82 : vector<8x8xf32> to vector<8x8xbf16>
    %cst_24 = arith.constant dense<0.000000e+00> : vector<8x64xf32>
    %84 = tpu.matmul %83, %64, %cst_24 {dimension_numbers = #tpu.dot_dimension_numbers<[1], [0], [0], [1], [0, 0, 1, 1], [], []>} : vector<8x8xbf16>, vector<8x64xbf16>, vector<8x64xf32> -> vector<8x64xf32>
    %85 = vector.extract_strided_slice %4 {offsets = [0, 192], sizes = [8, 64], strides = [1, 1]} : vector<8x512xf32> to vector<8x64xf32>
    %86 = arith.truncf %85 : vector<8x64xf32> to vector<8x64xbf16>
    %87 = vector.extract_strided_slice %5 {offsets = [0, 192], sizes = [8, 64], strides = [1, 1]} : vector<8x512xf32> to vector<8x64xf32>
    %88 = arith.truncf %87 : vector<8x64xf32> to vector<8x64xbf16>
    %89 = vector.extract_strided_slice %6 {offsets = [0, 192], sizes = [8, 64], strides = [1, 1]} : vector<8x512xf32> to vector<8x64xf32>
    %90 = arith.truncf %89 : vector<8x64xf32> to vector<8x64xbf16>
    %cst_25 = arith.constant dense<0.000000e+00> : vector<8x8xf32>
    %91 = tpu.matmul %86, %88, %cst_25 {dimension_numbers = #tpu.dot_dimension_numbers<[1], [1], [0], [0], [0, 0, 1, 0], [], []>} : vector<8x64xbf16>, vector<8x64xbf16>, vector<8x8xf32> -> vector<8x8xf32>
    %cst_26 = arith.constant 1.250000e-01 : f32
    %92 = vector.broadcast %cst_26 : f32 to vector<8x8xf32>
    %93 = arith.mulf %91, %92 : vector<8x8xf32>
    %cst_27 = arith.constant 5.000000e-01 : f32
    %94 = vector.broadcast %cst_27 : f32 to vector<1x8xf32>
    %95 = arith.cmpf ogt, %3, %94 : vector<1x8xf32>
    %cst_28 = arith.constant -1.000000e+09 : f32
    %96 = vector.shape_cast %95 : vector<1x8xi1> to vector<1x8xi1>
    %97 = vector.broadcast %96 : vector<1x8xi1> to vector<8x8xi1>
    %98 = vector.broadcast %cst_28 : f32 to vector<8x8xf32>
    %99 = arith.select %97, %98, %93 : vector<8x8xi1>, vector<8x8xf32>
    %cst_29 = arith.constant dense<0xFF800000> : vector<8xf32>
    %100 = vector.multi_reduction <maximumf>, %99, %cst_29 [1] : vector<8x8xf32> to vector<8xf32>
    %101 = vector.shape_cast %100 : vector<8xf32> to vector<8x1xf32>
    %102 = vector.broadcast %101 : vector<8x1xf32> to vector<8x8xf32>
    %103 = arith.subf %99, %102 : vector<8x8xf32>
    %104 = math.exp %103 : vector<8x8xf32>
    %cst_30 = arith.constant dense<0.000000e+00> : vector<8xf32>
    %105 = vector.multi_reduction <add>, %104, %cst_30 [1] : vector<8x8xf32> to vector<8xf32>
    %106 = vector.shape_cast %105 : vector<8xf32> to vector<8x1xf32>
    %107 = vector.broadcast %106 : vector<8x1xf32> to vector<8x8xf32>
    %108 = arith.divf %104, %107 : vector<8x8xf32>
    %109 = arith.truncf %108 : vector<8x8xf32> to vector<8x8xbf16>
    %cst_31 = arith.constant dense<0.000000e+00> : vector<8x64xf32>
    %110 = tpu.matmul %109, %90, %cst_31 {dimension_numbers = #tpu.dot_dimension_numbers<[1], [0], [0], [1], [0, 0, 1, 1], [], []>} : vector<8x8xbf16>, vector<8x64xbf16>, vector<8x64xf32> -> vector<8x64xf32>
    %111 = vector.extract_strided_slice %4 {offsets = [0, 256], sizes = [8, 64], strides = [1, 1]} : vector<8x512xf32> to vector<8x64xf32>
    %112 = arith.truncf %111 : vector<8x64xf32> to vector<8x64xbf16>
    %113 = vector.extract_strided_slice %5 {offsets = [0, 256], sizes = [8, 64], strides = [1, 1]} : vector<8x512xf32> to vector<8x64xf32>
    %114 = arith.truncf %113 : vector<8x64xf32> to vector<8x64xbf16>
    %115 = vector.extract_strided_slice %6 {offsets = [0, 256], sizes = [8, 64], strides = [1, 1]} : vector<8x512xf32> to vector<8x64xf32>
    %116 = arith.truncf %115 : vector<8x64xf32> to vector<8x64xbf16>
    %cst_32 = arith.constant dense<0.000000e+00> : vector<8x8xf32>
    %117 = tpu.matmul %112, %114, %cst_32 {dimension_numbers = #tpu.dot_dimension_numbers<[1], [1], [0], [0], [0, 0, 1, 0], [], []>} : vector<8x64xbf16>, vector<8x64xbf16>, vector<8x8xf32> -> vector<8x8xf32>
    %cst_33 = arith.constant 1.250000e-01 : f32
    %118 = vector.broadcast %cst_33 : f32 to vector<8x8xf32>
    %119 = arith.mulf %117, %118 : vector<8x8xf32>
    %cst_34 = arith.constant 5.000000e-01 : f32
    %120 = vector.broadcast %cst_34 : f32 to vector<1x8xf32>
    %121 = arith.cmpf ogt, %3, %120 : vector<1x8xf32>
    %cst_35 = arith.constant -1.000000e+09 : f32
    %122 = vector.shape_cast %121 : vector<1x8xi1> to vector<1x8xi1>
    %123 = vector.broadcast %122 : vector<1x8xi1> to vector<8x8xi1>
    %124 = vector.broadcast %cst_35 : f32 to vector<8x8xf32>
    %125 = arith.select %123, %124, %119 : vector<8x8xi1>, vector<8x8xf32>
    %cst_36 = arith.constant dense<0xFF800000> : vector<8xf32>
    %126 = vector.multi_reduction <maximumf>, %125, %cst_36 [1] : vector<8x8xf32> to vector<8xf32>
    %127 = vector.shape_cast %126 : vector<8xf32> to vector<8x1xf32>
    %128 = vector.broadcast %127 : vector<8x1xf32> to vector<8x8xf32>
    %129 = arith.subf %125, %128 : vector<8x8xf32>
    %130 = math.exp %129 : vector<8x8xf32>
    %cst_37 = arith.constant dense<0.000000e+00> : vector<8xf32>
    %131 = vector.multi_reduction <add>, %130, %cst_37 [1] : vector<8x8xf32> to vector<8xf32>
    %132 = vector.shape_cast %131 : vector<8xf32> to vector<8x1xf32>
    %133 = vector.broadcast %132 : vector<8x1xf32> to vector<8x8xf32>
    %134 = arith.divf %130, %133 : vector<8x8xf32>
    %135 = arith.truncf %134 : vector<8x8xf32> to vector<8x8xbf16>
    %cst_38 = arith.constant dense<0.000000e+00> : vector<8x64xf32>
    %136 = tpu.matmul %135, %116, %cst_38 {dimension_numbers = #tpu.dot_dimension_numbers<[1], [0], [0], [1], [0, 0, 1, 1], [], []>} : vector<8x8xbf16>, vector<8x64xbf16>, vector<8x64xf32> -> vector<8x64xf32>
    %137 = vector.extract_strided_slice %4 {offsets = [0, 320], sizes = [8, 64], strides = [1, 1]} : vector<8x512xf32> to vector<8x64xf32>
    %138 = arith.truncf %137 : vector<8x64xf32> to vector<8x64xbf16>
    %139 = vector.extract_strided_slice %5 {offsets = [0, 320], sizes = [8, 64], strides = [1, 1]} : vector<8x512xf32> to vector<8x64xf32>
    %140 = arith.truncf %139 : vector<8x64xf32> to vector<8x64xbf16>
    %141 = vector.extract_strided_slice %6 {offsets = [0, 320], sizes = [8, 64], strides = [1, 1]} : vector<8x512xf32> to vector<8x64xf32>
    %142 = arith.truncf %141 : vector<8x64xf32> to vector<8x64xbf16>
    %cst_39 = arith.constant dense<0.000000e+00> : vector<8x8xf32>
    %143 = tpu.matmul %138, %140, %cst_39 {dimension_numbers = #tpu.dot_dimension_numbers<[1], [1], [0], [0], [0, 0, 1, 0], [], []>} : vector<8x64xbf16>, vector<8x64xbf16>, vector<8x8xf32> -> vector<8x8xf32>
    %cst_40 = arith.constant 1.250000e-01 : f32
    %144 = vector.broadcast %cst_40 : f32 to vector<8x8xf32>
    %145 = arith.mulf %143, %144 : vector<8x8xf32>
    %cst_41 = arith.constant 5.000000e-01 : f32
    %146 = vector.broadcast %cst_41 : f32 to vector<1x8xf32>
    %147 = arith.cmpf ogt, %3, %146 : vector<1x8xf32>
    %cst_42 = arith.constant -1.000000e+09 : f32
    %148 = vector.shape_cast %147 : vector<1x8xi1> to vector<1x8xi1>
    %149 = vector.broadcast %148 : vector<1x8xi1> to vector<8x8xi1>
    %150 = vector.broadcast %cst_42 : f32 to vector<8x8xf32>
    %151 = arith.select %149, %150, %145 : vector<8x8xi1>, vector<8x8xf32>
    %cst_43 = arith.constant dense<0xFF800000> : vector<8xf32>
    %152 = vector.multi_reduction <maximumf>, %151, %cst_43 [1] : vector<8x8xf32> to vector<8xf32>
    %153 = vector.shape_cast %152 : vector<8xf32> to vector<8x1xf32>
    %154 = vector.broadcast %153 : vector<8x1xf32> to vector<8x8xf32>
    %155 = arith.subf %151, %154 : vector<8x8xf32>
    %156 = math.exp %155 : vector<8x8xf32>
    %cst_44 = arith.constant dense<0.000000e+00> : vector<8xf32>
    %157 = vector.multi_reduction <add>, %156, %cst_44 [1] : vector<8x8xf32> to vector<8xf32>
    %158 = vector.shape_cast %157 : vector<8xf32> to vector<8x1xf32>
    %159 = vector.broadcast %158 : vector<8x1xf32> to vector<8x8xf32>
    %160 = arith.divf %156, %159 : vector<8x8xf32>
    %161 = arith.truncf %160 : vector<8x8xf32> to vector<8x8xbf16>
    %cst_45 = arith.constant dense<0.000000e+00> : vector<8x64xf32>
    %162 = tpu.matmul %161, %142, %cst_45 {dimension_numbers = #tpu.dot_dimension_numbers<[1], [0], [0], [1], [0, 0, 1, 1], [], []>} : vector<8x8xbf16>, vector<8x64xbf16>, vector<8x64xf32> -> vector<8x64xf32>
    %163 = vector.extract_strided_slice %4 {offsets = [0, 384], sizes = [8, 64], strides = [1, 1]} : vector<8x512xf32> to vector<8x64xf32>
    %164 = arith.truncf %163 : vector<8x64xf32> to vector<8x64xbf16>
    %165 = vector.extract_strided_slice %5 {offsets = [0, 384], sizes = [8, 64], strides = [1, 1]} : vector<8x512xf32> to vector<8x64xf32>
    %166 = arith.truncf %165 : vector<8x64xf32> to vector<8x64xbf16>
    %167 = vector.extract_strided_slice %6 {offsets = [0, 384], sizes = [8, 64], strides = [1, 1]} : vector<8x512xf32> to vector<8x64xf32>
    %168 = arith.truncf %167 : vector<8x64xf32> to vector<8x64xbf16>
    %cst_46 = arith.constant dense<0.000000e+00> : vector<8x8xf32>
    %169 = tpu.matmul %164, %166, %cst_46 {dimension_numbers = #tpu.dot_dimension_numbers<[1], [1], [0], [0], [0, 0, 1, 0], [], []>} : vector<8x64xbf16>, vector<8x64xbf16>, vector<8x8xf32> -> vector<8x8xf32>
    %cst_47 = arith.constant 1.250000e-01 : f32
    %170 = vector.broadcast %cst_47 : f32 to vector<8x8xf32>
    %171 = arith.mulf %169, %170 : vector<8x8xf32>
    %cst_48 = arith.constant 5.000000e-01 : f32
    %172 = vector.broadcast %cst_48 : f32 to vector<1x8xf32>
    %173 = arith.cmpf ogt, %3, %172 : vector<1x8xf32>
    %cst_49 = arith.constant -1.000000e+09 : f32
    %174 = vector.shape_cast %173 : vector<1x8xi1> to vector<1x8xi1>
    %175 = vector.broadcast %174 : vector<1x8xi1> to vector<8x8xi1>
    %176 = vector.broadcast %cst_49 : f32 to vector<8x8xf32>
    %177 = arith.select %175, %176, %171 : vector<8x8xi1>, vector<8x8xf32>
    %cst_50 = arith.constant dense<0xFF800000> : vector<8xf32>
    %178 = vector.multi_reduction <maximumf>, %177, %cst_50 [1] : vector<8x8xf32> to vector<8xf32>
    %179 = vector.shape_cast %178 : vector<8xf32> to vector<8x1xf32>
    %180 = vector.broadcast %179 : vector<8x1xf32> to vector<8x8xf32>
    %181 = arith.subf %177, %180 : vector<8x8xf32>
    %182 = math.exp %181 : vector<8x8xf32>
    %cst_51 = arith.constant dense<0.000000e+00> : vector<8xf32>
    %183 = vector.multi_reduction <add>, %182, %cst_51 [1] : vector<8x8xf32> to vector<8xf32>
    %184 = vector.shape_cast %183 : vector<8xf32> to vector<8x1xf32>
    %185 = vector.broadcast %184 : vector<8x1xf32> to vector<8x8xf32>
    %186 = arith.divf %182, %185 : vector<8x8xf32>
    %187 = arith.truncf %186 : vector<8x8xf32> to vector<8x8xbf16>
    %cst_52 = arith.constant dense<0.000000e+00> : vector<8x64xf32>
    %188 = tpu.matmul %187, %168, %cst_52 {dimension_numbers = #tpu.dot_dimension_numbers<[1], [0], [0], [1], [0, 0, 1, 1], [], []>} : vector<8x8xbf16>, vector<8x64xbf16>, vector<8x64xf32> -> vector<8x64xf32>
    %189 = vector.extract_strided_slice %4 {offsets = [0, 448], sizes = [8, 64], strides = [1, 1]} : vector<8x512xf32> to vector<8x64xf32>
    %190 = arith.truncf %189 : vector<8x64xf32> to vector<8x64xbf16>
    %191 = vector.extract_strided_slice %5 {offsets = [0, 448], sizes = [8, 64], strides = [1, 1]} : vector<8x512xf32> to vector<8x64xf32>
    %192 = arith.truncf %191 : vector<8x64xf32> to vector<8x64xbf16>
    %193 = vector.extract_strided_slice %6 {offsets = [0, 448], sizes = [8, 64], strides = [1, 1]} : vector<8x512xf32> to vector<8x64xf32>
    %194 = arith.truncf %193 : vector<8x64xf32> to vector<8x64xbf16>
    %cst_53 = arith.constant dense<0.000000e+00> : vector<8x8xf32>
    %195 = tpu.matmul %190, %192, %cst_53 {dimension_numbers = #tpu.dot_dimension_numbers<[1], [1], [0], [0], [0, 0, 1, 0], [], []>} : vector<8x64xbf16>, vector<8x64xbf16>, vector<8x8xf32> -> vector<8x8xf32>
    %cst_54 = arith.constant 1.250000e-01 : f32
    %196 = vector.broadcast %cst_54 : f32 to vector<8x8xf32>
    %197 = arith.mulf %195, %196 : vector<8x8xf32>
    %cst_55 = arith.constant 5.000000e-01 : f32
    %198 = vector.broadcast %cst_55 : f32 to vector<1x8xf32>
    %199 = arith.cmpf ogt, %3, %198 : vector<1x8xf32>
    %cst_56 = arith.constant -1.000000e+09 : f32
    %200 = vector.shape_cast %199 : vector<1x8xi1> to vector<1x8xi1>
    %201 = vector.broadcast %200 : vector<1x8xi1> to vector<8x8xi1>
    %202 = vector.broadcast %cst_56 : f32 to vector<8x8xf32>
    %203 = arith.select %201, %202, %197 : vector<8x8xi1>, vector<8x8xf32>
    %cst_57 = arith.constant dense<0xFF800000> : vector<8xf32>
    %204 = vector.multi_reduction <maximumf>, %203, %cst_57 [1] : vector<8x8xf32> to vector<8xf32>
    %205 = vector.shape_cast %204 : vector<8xf32> to vector<8x1xf32>
    %206 = vector.broadcast %205 : vector<8x1xf32> to vector<8x8xf32>
    %207 = arith.subf %203, %206 : vector<8x8xf32>
    %208 = math.exp %207 : vector<8x8xf32>
    %cst_58 = arith.constant dense<0.000000e+00> : vector<8xf32>
    %209 = vector.multi_reduction <add>, %208, %cst_58 [1] : vector<8x8xf32> to vector<8xf32>
    %210 = vector.shape_cast %209 : vector<8xf32> to vector<8x1xf32>
    %211 = vector.broadcast %210 : vector<8x1xf32> to vector<8x8xf32>
    %212 = arith.divf %208, %211 : vector<8x8xf32>
    %213 = arith.truncf %212 : vector<8x8xf32> to vector<8x8xbf16>
    %cst_59 = arith.constant dense<0.000000e+00> : vector<8x64xf32>
    %214 = tpu.matmul %213, %194, %cst_59 {dimension_numbers = #tpu.dot_dimension_numbers<[1], [0], [0], [1], [0, 0, 1, 1], [], []>} : vector<8x8xbf16>, vector<8x64xbf16>, vector<8x64xf32> -> vector<8x64xf32>
    %215 = tpu.concatenate %32, %58, %84, %110, %136, %162, %188, %214 in 1 : vector<8x64xf32>, vector<8x64xf32>, vector<8x64xf32>, vector<8x64xf32>, vector<8x64xf32>, vector<8x64xf32>, vector<8x64xf32>, vector<8x64xf32> -> vector<8x512xf32>
    %c0_60 = arith.constant 0 : index
    %c0_61 = arith.constant 0 : index
    %c0_62 = arith.constant 0 : index
    %216 = vector.load %arg3[%c0_60, %c0_61, %c0_62] : memref<1x8x512xf32, #tpu.memory_space<vmem>>, vector<1x8x512xf32>
    %217 = vector.shape_cast %216 : vector<1x8x512xf32> to vector<8x512xf32>
    %218 = vector.shape_cast %215 : vector<8x512xf32> to vector<1x8x512xf32>
    tpu.vector_store %arg3[%c0_60, %c0_61, %c0_62], %218 {strides = array<i32>} : memref<1x8x512xf32, #tpu.memory_space<vmem>>, vector<1x8x512xf32>,
    return
  }
  func.func @transform_0(%arg0: i32) -> (i32, i32, i32) {
    %c0_i32 = arith.constant 0 : i32
    %c0_i32_0 = arith.constant 0 : i32
    %c0_i32_1 = arith.constant 0 : i32
    return %arg0, %c0_i32, %c0_i32_0 : i32, i32, i32
  }
  func.func @transform_1(%arg0: i32) -> (i32, i32, i32) {
    %c0_i32 = arith.constant 0 : i32
    %c0_i32_0 = arith.constant 0 : i32
    %c0_i32_1 = arith.constant 0 : i32
    return %arg0, %c0_i32, %c0_i32_0 : i32, i32, i32
  }
  func.func @transform_2(%arg0: i32) -> (i32, i32, i32) {
    %c0_i32 = arith.constant 0 : i32
    %c0_i32_0 = arith.constant 0 : i32
    %c0_i32_1 = arith.constant 0 : i32
    return %arg0, %c0_i32, %c0_i32_0 : i32, i32, i32
  }
}

module attributes {stable_mosaic.version = 11 : i64} {
  func.func @_proj_res_ln_kernel(%arg0: i32, %arg1: memref<16x512xf32, #tpu.memory_space<vmem>>, %arg2: memref<512x512xbf16, #tpu.memory_space<vmem>>, %arg3: memref<1x512xf32, #tpu.memory_space<vmem>>, %arg4: memref<16x512xf32, #tpu.memory_space<vmem>>, %arg5: memref<1x512xf32, #tpu.memory_space<vmem>>, %arg6: memref<1x512xf32, #tpu.memory_space<vmem>>, %arg7: memref<16x512xf32, #tpu.memory_space<vmem>>) attributes {dimension_semantics = [#tpu.dimension_semantics<parallel>], iteration_bounds = array<i64: 1>, scalar_prefetch = 0 : i64, scratch_operands = 0 : i64, tpu.core_type = #tpu.core_type<tc>, window_params = [{transform_indices = @transform_0, window_bounds = array<i64: 16, 512>}, {pipeline_mode = #tpu.pipeline_mode<synchronous>, transform_indices = @transform_1, window_bounds = array<i64: 512, 512>}, {pipeline_mode = #tpu.pipeline_mode<synchronous>, transform_indices = @transform_2, window_bounds = array<i64: 1, 512>}, {transform_indices = @transform_3, window_bounds = array<i64: 16, 512>}, {pipeline_mode = #tpu.pipeline_mode<synchronous>, transform_indices = @transform_4, window_bounds = array<i64: 1, 512>}, {pipeline_mode = #tpu.pipeline_mode<synchronous>, transform_indices = @transform_5, window_bounds = array<i64: 1, 512>}, {transform_indices = @transform_6, window_bounds = array<i64: 16, 512>}]} {
    %c0 = arith.constant 0 : index
    %c0_0 = arith.constant 0 : index
    %0 = vector.load %arg1[%c0, %c0_0] : memref<16x512xf32, #tpu.memory_space<vmem>>, vector<16x512xf32>
    %1 = arith.truncf %0 : vector<16x512xf32> to vector<16x512xbf16>
    %c0_1 = arith.constant 0 : index
    %c0_2 = arith.constant 0 : index
    %2 = vector.load %arg2[%c0_1, %c0_2] : memref<512x512xbf16, #tpu.memory_space<vmem>>, vector<512x512xbf16>
    %cst = arith.constant dense<0.000000e+00> : vector<16x512xf32>
    %3 = tpu.matmul %1, %2, %cst {dimension_numbers = #tpu.dot_dimension_numbers<[1], [0], [0], [1], [0, 0, 1, 1], [], []>} : vector<16x512xbf16>, vector<512x512xbf16>, vector<16x512xf32> -> vector<16x512xf32>
    %c0_3 = arith.constant 0 : index
    %c0_4 = arith.constant 0 : index
    %4 = vector.load %arg3[%c0_3, %c0_4] : memref<1x512xf32, #tpu.memory_space<vmem>>, vector<1x512xf32>
    %5 = vector.broadcast %4 : vector<1x512xf32> to vector<16x512xf32>
    %6 = arith.addf %3, %5 : vector<16x512xf32>
    %c0_5 = arith.constant 0 : index
    %c0_6 = arith.constant 0 : index
    %7 = vector.load %arg4[%c0_5, %c0_6] : memref<16x512xf32, #tpu.memory_space<vmem>>, vector<16x512xf32>
    %8 = arith.addf %6, %7 : vector<16x512xf32>
    %c0_7 = arith.constant 0 : index
    %c0_8 = arith.constant 0 : index
    %9 = vector.load %arg5[%c0_7, %c0_8] : memref<1x512xf32, #tpu.memory_space<vmem>>, vector<1x512xf32>
    %c0_9 = arith.constant 0 : index
    %c0_10 = arith.constant 0 : index
    %10 = vector.load %arg6[%c0_9, %c0_10] : memref<1x512xf32, #tpu.memory_space<vmem>>, vector<1x512xf32>
    %cst_11 = arith.constant dense<0.000000e+00> : vector<16xf32>
    %11 = vector.multi_reduction <add>, %8, %cst_11 [1] : vector<16x512xf32> to vector<16xf32>
    %12 = vector.shape_cast %11 : vector<16xf32> to vector<16x1xf32>
    %cst_12 = arith.constant 5.120000e+02 : f32
    %13 = vector.broadcast %cst_12 : f32 to vector<16x1xf32>
    %14 = arith.divf %12, %13 : vector<16x1xf32>
    %15 = vector.broadcast %14 : vector<16x1xf32> to vector<16x512xf32>
    %16 = arith.subf %8, %15 : vector<16x512xf32>
    %17 = arith.mulf %16, %16 : vector<16x512xf32>
    %cst_13 = arith.constant dense<0.000000e+00> : vector<16xf32>
    %18 = vector.multi_reduction <add>, %17, %cst_13 [1] : vector<16x512xf32> to vector<16xf32>
    %19 = vector.shape_cast %18 : vector<16xf32> to vector<16x1xf32>
    %cst_14 = arith.constant 5.120000e+02 : f32
    %20 = vector.broadcast %cst_14 : f32 to vector<16x1xf32>
    %21 = arith.divf %19, %20 : vector<16x1xf32>
    %22 = vector.broadcast %14 : vector<16x1xf32> to vector<16x512xf32>
    %23 = arith.subf %8, %22 : vector<16x512xf32>
    %cst_15 = arith.constant 9.99999974E-6 : f32
    %24 = vector.broadcast %cst_15 : f32 to vector<16x1xf32>
    %25 = arith.addf %21, %24 : vector<16x1xf32>
    %26 = math.rsqrt %25 : vector<16x1xf32>
    %27 = vector.broadcast %26 : vector<16x1xf32> to vector<16x512xf32>
    %28 = arith.mulf %23, %27 : vector<16x512xf32>
    %29 = vector.broadcast %9 : vector<1x512xf32> to vector<16x512xf32>
    %30 = arith.mulf %28, %29 : vector<16x512xf32>
    %31 = vector.broadcast %10 : vector<1x512xf32> to vector<16x512xf32>
    %32 = arith.addf %30, %31 : vector<16x512xf32>
    %c0_16 = arith.constant 0 : index
    %c0_17 = arith.constant 0 : index
    %33 = vector.load %arg7[%c0_16, %c0_17] : memref<16x512xf32, #tpu.memory_space<vmem>>, vector<16x512xf32>
    tpu.vector_store %arg7[%c0_16, %c0_17], %32 {strides = array<i32>} : memref<16x512xf32, #tpu.memory_space<vmem>>, vector<16x512xf32>,
    return
  }
  func.func @transform_0(%arg0: i32) -> (i32, i32) {
    %c0_i32 = arith.constant 0 : i32
    %c0_i32_0 = arith.constant 0 : i32
    return %arg0, %c0_i32 : i32, i32
  }
  func.func @transform_1(%arg0: i32) -> (i32, i32) {
    %c0_i32 = arith.constant 0 : i32
    %c0_i32_0 = arith.constant 0 : i32
    %c0_i32_1 = arith.constant 0 : i32
    return %c0_i32, %c0_i32_0 : i32, i32
  }
  func.func @transform_2(%arg0: i32) -> (i32, i32) {
    %c0_i32 = arith.constant 0 : i32
    %c0_i32_0 = arith.constant 0 : i32
    %c0_i32_1 = arith.constant 0 : i32
    return %c0_i32, %c0_i32_0 : i32, i32
  }
  func.func @transform_3(%arg0: i32) -> (i32, i32) {
    %c0_i32 = arith.constant 0 : i32
    %c0_i32_0 = arith.constant 0 : i32
    return %arg0, %c0_i32 : i32, i32
  }
  func.func @transform_4(%arg0: i32) -> (i32, i32) {
    %c0_i32 = arith.constant 0 : i32
    %c0_i32_0 = arith.constant 0 : i32
    %c0_i32_1 = arith.constant 0 : i32
    return %c0_i32, %c0_i32_0 : i32, i32
  }
  func.func @transform_5(%arg0: i32) -> (i32, i32) {
    %c0_i32 = arith.constant 0 : i32
    %c0_i32_0 = arith.constant 0 : i32
    %c0_i32_1 = arith.constant 0 : i32
    return %c0_i32, %c0_i32_0 : i32, i32
  }
  func.func @transform_6(%arg0: i32) -> (i32, i32) {
    %c0_i32 = arith.constant 0 : i32
    %c0_i32_0 = arith.constant 0 : i32
    return %arg0, %c0_i32 : i32, i32
  }
}

module attributes {stable_mosaic.version = 11 : i64} {
  func.func @_ffn_kernel(%arg0: i32, %arg1: memref<16x512xf32, #tpu.memory_space<vmem>>, %arg2: memref<512x2048xbf16, #tpu.memory_space<vmem>>, %arg3: memref<1x2048xf32, #tpu.memory_space<vmem>>, %arg4: memref<2048x512xbf16, #tpu.memory_space<vmem>>, %arg5: memref<1x512xf32, #tpu.memory_space<vmem>>, %arg6: memref<1x512xf32, #tpu.memory_space<vmem>>, %arg7: memref<1x512xf32, #tpu.memory_space<vmem>>, %arg8: memref<16x512xf32, #tpu.memory_space<vmem>>) attributes {dimension_semantics = [#tpu.dimension_semantics<parallel>], iteration_bounds = array<i64: 1>, scalar_prefetch = 0 : i64, scratch_operands = 0 : i64, tpu.core_type = #tpu.core_type<tc>, window_params = [{transform_indices = @transform_0, window_bounds = array<i64: 16, 512>}, {pipeline_mode = #tpu.pipeline_mode<synchronous>, transform_indices = @transform_1, window_bounds = array<i64: 512, 2048>}, {pipeline_mode = #tpu.pipeline_mode<synchronous>, transform_indices = @transform_2, window_bounds = array<i64: 1, 2048>}, {pipeline_mode = #tpu.pipeline_mode<synchronous>, transform_indices = @transform_3, window_bounds = array<i64: 2048, 512>}, {pipeline_mode = #tpu.pipeline_mode<synchronous>, transform_indices = @transform_4, window_bounds = array<i64: 1, 512>}, {pipeline_mode = #tpu.pipeline_mode<synchronous>, transform_indices = @transform_5, window_bounds = array<i64: 1, 512>}, {pipeline_mode = #tpu.pipeline_mode<synchronous>, transform_indices = @transform_6, window_bounds = array<i64: 1, 512>}, {transform_indices = @transform_7, window_bounds = array<i64: 16, 512>}]} {
    %c0 = arith.constant 0 : index
    %c0_0 = arith.constant 0 : index
    %0 = vector.load %arg1[%c0, %c0_0] : memref<16x512xf32, #tpu.memory_space<vmem>>, vector<16x512xf32>
    %1 = arith.truncf %0 : vector<16x512xf32> to vector<16x512xbf16>
    %c0_1 = arith.constant 0 : index
    %c0_2 = arith.constant 0 : index
    %2 = vector.load %arg2[%c0_1, %c0_2] : memref<512x2048xbf16, #tpu.memory_space<vmem>>, vector<512x2048xbf16>
    %cst = arith.constant dense<0.000000e+00> : vector<16x2048xf32>
    %3 = tpu.matmul %1, %2, %cst {dimension_numbers = #tpu.dot_dimension_numbers<[1], [0], [0], [1], [0, 0, 1, 1], [], []>} : vector<16x512xbf16>, vector<512x2048xbf16>, vector<16x2048xf32> -> vector<16x2048xf32>
    %c0_3 = arith.constant 0 : index
    %c0_4 = arith.constant 0 : index
    %4 = vector.load %arg3[%c0_3, %c0_4] : memref<1x2048xf32, #tpu.memory_space<vmem>>, vector<1x2048xf32>
    %5 = vector.broadcast %4 : vector<1x2048xf32> to vector<16x2048xf32>
    %6 = arith.addf %3, %5 : vector<16x2048xf32>
    %cst_5 = arith.constant 0.000000e+00 : f32
    %7 = vector.broadcast %cst_5 : f32 to vector<16x2048xf32>
    %8 = arith.maximumf %6, %7 : vector<16x2048xf32>
    %9 = arith.truncf %8 : vector<16x2048xf32> to vector<16x2048xbf16>
    %c0_6 = arith.constant 0 : index
    %c0_7 = arith.constant 0 : index
    %10 = vector.load %arg4[%c0_6, %c0_7] : memref<2048x512xbf16, #tpu.memory_space<vmem>>, vector<2048x512xbf16>
    %cst_8 = arith.constant dense<0.000000e+00> : vector<16x512xf32>
    %11 = tpu.matmul %9, %10, %cst_8 {dimension_numbers = #tpu.dot_dimension_numbers<[1], [0], [0], [1], [0, 0, 1, 1], [], []>} : vector<16x2048xbf16>, vector<2048x512xbf16>, vector<16x512xf32> -> vector<16x512xf32>
    %c0_9 = arith.constant 0 : index
    %c0_10 = arith.constant 0 : index
    %12 = vector.load %arg5[%c0_9, %c0_10] : memref<1x512xf32, #tpu.memory_space<vmem>>, vector<1x512xf32>
    %13 = vector.broadcast %12 : vector<1x512xf32> to vector<16x512xf32>
    %14 = arith.addf %11, %13 : vector<16x512xf32>
    %15 = arith.addf %14, %0 : vector<16x512xf32>
    %c0_11 = arith.constant 0 : index
    %c0_12 = arith.constant 0 : index
    %16 = vector.load %arg6[%c0_11, %c0_12] : memref<1x512xf32, #tpu.memory_space<vmem>>, vector<1x512xf32>
    %c0_13 = arith.constant 0 : index
    %c0_14 = arith.constant 0 : index
    %17 = vector.load %arg7[%c0_13, %c0_14] : memref<1x512xf32, #tpu.memory_space<vmem>>, vector<1x512xf32>
    %cst_15 = arith.constant dense<0.000000e+00> : vector<16xf32>
    %18 = vector.multi_reduction <add>, %15, %cst_15 [1] : vector<16x512xf32> to vector<16xf32>
    %19 = vector.shape_cast %18 : vector<16xf32> to vector<16x1xf32>
    %cst_16 = arith.constant 5.120000e+02 : f32
    %20 = vector.broadcast %cst_16 : f32 to vector<16x1xf32>
    %21 = arith.divf %19, %20 : vector<16x1xf32>
    %22 = vector.broadcast %21 : vector<16x1xf32> to vector<16x512xf32>
    %23 = arith.subf %15, %22 : vector<16x512xf32>
    %24 = arith.mulf %23, %23 : vector<16x512xf32>
    %cst_17 = arith.constant dense<0.000000e+00> : vector<16xf32>
    %25 = vector.multi_reduction <add>, %24, %cst_17 [1] : vector<16x512xf32> to vector<16xf32>
    %26 = vector.shape_cast %25 : vector<16xf32> to vector<16x1xf32>
    %cst_18 = arith.constant 5.120000e+02 : f32
    %27 = vector.broadcast %cst_18 : f32 to vector<16x1xf32>
    %28 = arith.divf %26, %27 : vector<16x1xf32>
    %29 = vector.broadcast %21 : vector<16x1xf32> to vector<16x512xf32>
    %30 = arith.subf %15, %29 : vector<16x512xf32>
    %cst_19 = arith.constant 9.99999974E-6 : f32
    %31 = vector.broadcast %cst_19 : f32 to vector<16x1xf32>
    %32 = arith.addf %28, %31 : vector<16x1xf32>
    %33 = math.rsqrt %32 : vector<16x1xf32>
    %34 = vector.broadcast %33 : vector<16x1xf32> to vector<16x512xf32>
    %35 = arith.mulf %30, %34 : vector<16x512xf32>
    %36 = vector.broadcast %16 : vector<1x512xf32> to vector<16x512xf32>
    %37 = arith.mulf %35, %36 : vector<16x512xf32>
    %38 = vector.broadcast %17 : vector<1x512xf32> to vector<16x512xf32>
    %39 = arith.addf %37, %38 : vector<16x512xf32>
    %c0_20 = arith.constant 0 : index
    %c0_21 = arith.constant 0 : index
    %40 = vector.load %arg8[%c0_20, %c0_21] : memref<16x512xf32, #tpu.memory_space<vmem>>, vector<16x512xf32>
    tpu.vector_store %arg8[%c0_20, %c0_21], %39 {strides = array<i32>} : memref<16x512xf32, #tpu.memory_space<vmem>>, vector<16x512xf32>,
    return
  }
  func.func @transform_0(%arg0: i32) -> (i32, i32) {
    %c0_i32 = arith.constant 0 : i32
    %c0_i32_0 = arith.constant 0 : i32
    return %arg0, %c0_i32 : i32, i32
  }
  func.func @transform_1(%arg0: i32) -> (i32, i32) {
    %c0_i32 = arith.constant 0 : i32
    %c0_i32_0 = arith.constant 0 : i32
    %c0_i32_1 = arith.constant 0 : i32
    return %c0_i32, %c0_i32_0 : i32, i32
  }
  func.func @transform_2(%arg0: i32) -> (i32, i32) {
    %c0_i32 = arith.constant 0 : i32
    %c0_i32_0 = arith.constant 0 : i32
    %c0_i32_1 = arith.constant 0 : i32
    return %c0_i32, %c0_i32_0 : i32, i32
  }
  func.func @transform_3(%arg0: i32) -> (i32, i32) {
    %c0_i32 = arith.constant 0 : i32
    %c0_i32_0 = arith.constant 0 : i32
    %c0_i32_1 = arith.constant 0 : i32
    return %c0_i32, %c0_i32_0 : i32, i32
  }
  func.func @transform_4(%arg0: i32) -> (i32, i32) {
    %c0_i32 = arith.constant 0 : i32
    %c0_i32_0 = arith.constant 0 : i32
    %c0_i32_1 = arith.constant 0 : i32
    return %c0_i32, %c0_i32_0 : i32, i32
  }
  func.func @transform_5(%arg0: i32) -> (i32, i32) {
    %c0_i32 = arith.constant 0 : i32
    %c0_i32_0 = arith.constant 0 : i32
    %c0_i32_1 = arith.constant 0 : i32
    return %c0_i32, %c0_i32_0 : i32, i32
  }
  func.func @transform_6(%arg0: i32) -> (i32, i32) {
    %c0_i32 = arith.constant 0 : i32
    %c0_i32_0 = arith.constant 0 : i32
    %c0_i32_1 = arith.constant 0 : i32
    return %c0_i32, %c0_i32_0 : i32, i32
  }
  func.func @transform_7(%arg0: i32) -> (i32, i32) {
    %c0_i32 = arith.constant 0 : i32
    %c0_i32_0 = arith.constant 0 : i32
    return %arg0, %c0_i32 : i32, i32
  }
}

</mosaic_0001>

<llo_original>
// kernel: encoder_forward.25
$region0: #{encoder_forward.25}
  #allocation0 [shape = 'u32[]', space=smem, size = 0x4, offset = 0x4, fixed_abs, tag = 'smem constant byte address 0x4 - core index']
  #allocation1 [shape = 'u32[72,128]{1,0:T(1,128)}', space=vmem, size = 0x9000, scoped, tag = 'internal scratch']
  %s0 = inlined_call_operand.vmem [shape: f32[2,8,1536], index: 0, kind: input, shape index: {}]
  %s1 = inlined_call_operand.vmem [shape: f32[2,1,8], index: 1, kind: input, shape index: {}]
  %s2 = inlined_call_operand.vmem [shape: f32[2,8,512], index: 2, kind: output, shape index: {}]
  %s3 = sld [smem:[#allocation0]]
  $region41: #{encoder_forward.25} parent=0
    _
  %s5 = ssub.s32 1, %s3
  %s6 = scalar_select 0, %s5, %s3
  loop: start=0, step=1, limit=4
  $region2: #{encoder_forward.25} parent=0 // loop_pre_header
    _
  $region3: #{encoder_forward.25} parent=0 // loop_header
    %s8 = sphi 0, %s12
    %p9 = scmp.ge.s32.totalorder %s8, 4
    %s18 = sphi 0, %s20
    %s21 = sphi 0, %s18
    %s22 = sphi 0, %s21
    %s38 = sphi 0, %s22
    %s44 = sphi 0, %s46
    %s47 = sphi 0, %s44
    %s48 = sphi 0, %s47
    %s64 = sphi 0, %s48
    %s70 = sphi 0, %s72
    %s73 = sphi 0, %s70
    %s74 = sphi 0, %s73
    %s90 = sphi 0, %s74
  $region4: #{encoder_forward.25} parent=0 // loop_header_branch
    %11 = sbr.rel (%p9) target = $region8
  $region5: #{encoder_forward.25} parent=0 // loop_body
    %s13 = ssub.s32 %s8, 1
    %s14 = ssub.s32 %s8, 2
    %s15 = sadd.s32 %s8, 1
    %s16 = ssub.s32 %s8, %s15
    %p17 = scmp.eq.s32.totalorder %s16, 0
    %s19 = sadd.s32 %s18, 1
    %s20 = scalar_select %p17, %s18, %s19
    %p23 = pneg %p17
    %p24 = scmp.eq.s32.totalorder %s8, 1
    %p25 = por %p23, %p24
    %p26 = scmp.ne.s32.totalorder %s18, %s21
    %p27 = scmp.eq.s32.totalorder %s8, 0
    %p28 = por %p26, %p27
    %p29 = scmp.ne.s32.totalorder %s18, %s21
    %p30 = scmp.eq.s32.totalorder %s13, 1
    %p31 = por %p29, %p30
    %p32 = scmp.ne.s32.totalorder %s21, %s22
    %p33 = scmp.eq.s32.totalorder %s13, 0
    %p34 = por %p32, %p33
    %p35 = scmp.ne.s32.totalorder %s21, %s22
    %p36 = scmp.eq.s32.totalorder %s14, 1
    %p37 = por %p35, %p36
    %p39 = scmp.ne.s32.totalorder %s22, %s38
    %p40 = scmp.eq.s32.totalorder %s14, 0
    %p41 = por %p39, %p40
    %s42 = ssub.s32 %s8, %s15
    %p43 = scmp.eq.s32.totalorder %s42, 0
    %s45 = sadd.s32 %s44, 1
    %s46 = scalar_select %p43, %s44, %s45
    %p49 = pneg %p43
    %p50 = scmp.eq.s32.totalorder %s8, 1
    %p51 = por %p49, %p50
    %p52 = scmp.ne.s32.totalorder %s44, %s47
    %p53 = scmp.eq.s32.totalorder %s8, 0
    %p54 = por %p52, %p53
    %p55 = scmp.ne.s32.totalorder %s44, %s47
    %p56 = scmp.eq.s32.totalorder %s13, 1
    %p57 = por %p55, %p56
    %p58 = scmp.ne.s32.totalorder %s47, %s48
    %p59 = scmp.eq.s32.totalorder %s13, 0
    %p60 = por %p58, %p59
    %p61 = scmp.ne.s32.totalorder %s47, %s48
    %p62 = scmp.eq.s32.totalorder %s14, 1
    %p63 = por %p61, %p62
    %p65 = scmp.ne.s32.totalorder %s48, %s64
    %p66 = scmp.eq.s32.totalorder %s14, 0
    %p67 = por %p65, %p66
    %s68 = ssub.s32 %s8, %s15
    %p69 = scmp.eq.s32.totalorder %s68, 0
    %s71 = sadd.s32 %s70, 1
    %s72 = scalar_select %p69, %s70, %s71
    %p75 = pneg %p69
    %p76 = scmp.eq.s32.totalorder %s8, 1
    %p77 = por %p75, %p76
    %p78 = scmp.ne.s32.totalorder %s70, %s73
    %p79 = scmp.eq.s32.totalorder %s8, 0
    %p80 = por %p78, %p79
    %p81 = scmp.ne.s32.totalorder %s70, %s73
    %p82 = scmp.eq.s32.totalorder %s13, 1
    %p83 = por %p81, %p82
    %p84 = scmp.ne.s32.totalorder %s73, %s74
    %p85 = scmp.eq.s32.totalorder %s13, 0
    %p86 = por %p84, %p85
    %p87 = scmp.ne.s32.totalorder %s73, %s74
    %p88 = scmp.eq.s32.totalorder %s14, 1
    %p89 = por %p87, %p88
    %p91 = scmp.ne.s32.totalorder %s74, %s90
    %p92 = scmp.eq.s32.totalorder %s14, 0
    %p93 = por %p91, %p92
    %p94 = scmp.le.s32.totalorder 1, %s8
    %p95 = scmp.lt.s32.totalorder %s8, 3
    %p96 = pnand %p94, %p95
    %p97 = pneg %p96
    // Predicated region
    $region9: #{encoder_forward.25} parent=5 // pred_check
      _
    $region10: #{encoder_forward.25} parent=5 // pred_check_branch
      %99 = sbr.rel (%p96) target = $region12
    $region11: #{encoder_forward.25} parent=5 // pred_region
      %s100 = ssub.s32 %s8, 1
    $region12: #{encoder_forward.25} parent=5 // pred_fallthru
      _
    %p101 = scmp.lt.s32.totalorder %s8, 2
    // Predicated region
    $region13: #{encoder_forward.25} parent=5 // pred_check
      %p102 = pneg %p101
    $region14: #{encoder_forward.25} parent=5 // pred_check_branch
      %104 = sbr.rel (%p102) target = $region16
    $region15: #{encoder_forward.25} parent=5 // pred_region
      // Predicated region
      $region17: #{encoder_forward.25} parent=15 // pred_check
        %p105 = pneg %p28
      $region18: #{encoder_forward.25} parent=15 // pred_check_branch
        %107 = sbr.rel (%p105) target = $region20
      $region19: #{encoder_forward.25} parent=15 // pred_region
        %p108 = scmp.lt.s32.totalorder %s8, 1
        %s109 = scalar_select %p108, %s8, 1
        %s110 = smul.addr %s109, 12
        %s111 = smul.addr %s110, 8
        %s112 = scalar_lea.vmem %s0, %s111
      $region20: #{encoder_forward.25} parent=15 // pred_fallthru
        _
      // Predicated region
      $region21: #{encoder_forward.25} parent=15 // pred_check
        %p113 = pneg %p54
      $region22: #{encoder_forward.25} parent=15 // pred_check_branch
        %115 = sbr.rel (%p113) target = $region24
      $region23: #{encoder_forward.25} parent=15 // pred_region
        %p116 = scmp.lt.s32.totalorder %s8, 1
        %s117 = scalar_select %p116, %s8, 1
        %s118 = scalar_lea.vmem %s1, %s117
      $region24: #{encoder_forward.25} parent=15 // pred_fallthru
        _
    $region16: #{encoder_forward.25} parent=5 // pred_fallthru
      _
    %p119 = scmp.le.s32.totalorder 1, %s8
    %p120 = scmp.lt.s32.totalorder %s8, 3
    %p121 = pnand %p119, %p120
    %p122 = pneg %p121
    // Predicated region
    $region25: #{encoder_forward.25} parent=5 // pred_check
      _
    $region26: #{encoder_forward.25} parent=5 // pred_check_branch
      %124 = sbr.rel (%p121) target = $region28
    $region27: #{encoder_forward.25} parent=5 // pred_region
      %s125 = ssub.s32 %s8, 1
      %p126 = scmp.lt.s32.totalorder %s13, 1
      %s127 = scalar_select %p126, %s13, 1
      %s128 = smul.addr %s127, 12
      %s129 = smul.addr %s128, 8
      %s130 = scalar_lea.vmem %s0, %s129
      %p131 = pneg %p34
      %p132 = pneg %p31
      %p133 = scmp.lt.s32.totalorder %s13, 1
      %s134 = scalar_select %p133, %s13, 1
      %s135 = scalar_lea.vmem %s1, %s134
      %p136 = pneg %p60
      %p137 = pneg %p57
      %p138 = pneg %p86
      %p139 = pneg %p83
      %p140 = scmp.lt.s32.totalorder %s13, 1
      %s141 = scalar_select %p140, %s13, 1
      %s142 = smul.addr %s141, 4
      %s143 = smul.addr %s142, 8
      %s144 = scalar_lea.vmem %s2, %s143
      %p145 = scmp.lt.s32.totalorder %s13, 1
      %s146 = scalar_select %p145, %s13, 1
      %s147 = smul.addr %s146, 12
      %s148 = smul.addr %s147, 8
      %s149 = scalar_lea.vmem %s0, %s148
      %p150 = scmp.lt.s32.totalorder %s13, 1
      %s151 = scalar_select %p150, %s13, 1
      %s152 = scalar_lea.vmem %s1, %s151
      %p153 = scmp.lt.s32.totalorder %s13, 1
      %s154 = scalar_select %p153, %s13, 1
      %s155 = smul.addr %s154, 4
      %s156 = smul.addr %s155, 8
      %s157 = scalar_lea.vmem %s2, %s156
      %v159 = vld [vmem:[%s149] sm:$0xff]
      %v160 = vld [vmem:[%s149 + $0x8] sm:$0xff]
      %v161 = vld [vmem:[%s149 + $0x10] sm:$0xff]
      %v162 = vld [vmem:[%s149 + $0x18] sm:$0xff]
      %v163 = vld [vmem:[%s149 + $0x20] sm:$0xff]
      %v164 = vld [vmem:[%s149 + $0x28] sm:$0xff]
      %v165 = vld [vmem:[%s149 + $0x30] sm:$0xff]
      %v166 = vld [vmem:[%s149 + $0x38] sm:$0xff]
      %v167 = vld [vmem:[%s149 + $0x40] sm:$0xff]
      %v168 = vld [vmem:[%s149 + $0x48] sm:$0xff]
      %v169 = vld [vmem:[%s149 + $0x50] sm:$0xff]
      %v170 = vld [vmem:[%s149 + $0x58] sm:$0xff]
      %v171 = vld [vmem:[%s152] sm:$0x1]
      %v172 = vpack.c.bf16 %v159, %v159
      %v173 = vpack.c.bf16 %v163, %v163
      %v174 = vpack.c.bf16 %v167, %v167
      %vm175 = vcmask 523264
      %v177 = vsel %vm175, %v172, 0
      %v180 = vsel %vm175, %v173, 0
      %182 = vmatpush.bf16.xpose.msra.mxu0 0
      %183 = vmatpush.bf16.xpose.msra.mxu0 0
      %184 = vmatpush.bf16.xpose.msra.mxu0 0
      %185 = vmatpush.bf16.xpose.msra.mxu0 0
      %186 = vmatpush.bf16.xpose.msra.mxu0 0
      %187 = vmatpush.bf16.xpose.msra.mxu0 0
      %188 = vmatpush.bf16.xpose.msra.mxu0 0
      %189 = vmatpush.bf16.xpose.msra.mxu0 %v180
      %190 = vmatmul.bf16.gmra.mxu0 %v177
      %v191 = vpop.f32.mrf.mxu0
      %v192 = vadd.f32 0.0, %v191
      %v193 = vpop.f32.mrf.mxu0
      %194 = vdwg.mxu0
      %v195 = vmul.f32 %v192, 0.125
      %vm196 = vcmp.gt.f32.partialorder %v171, 0.5
      %v197 = vsel %vm196, 1, 0
      %v198 = vperm.slane %v197, 0
      %vm199 = vcmp.eq.s32.totalorder %v198, 1
      %v200 = vsel %vm199, -1e+09, %v195
      %vm201 = vcmask 64512
      %v202 = vsel %vm201, %v200, -inf
      %203 = vmax.xlane.f32.xlu0 %v202
      %v204 = vpop.xlane.xlu0 %203
      %v205 = vsub.f32 %v200, %v204
      %v206 = vmul.f32 %v205, 1.442695
      %v207 = vpow.pop %v206
      %v208 = vsel %vm201, %v207, 0.0
      %209 = vadd.xlane.f32.xlu0 %v208
      %v210 = vpop.xlane.xlu0 %209
      %v211 = vrcp.pop %v210
      %v212 = vmul.f32 %v210, %v211
      %v213 = vsub.f32 1.0, %v212
      %v214 = vmul.f32 %v211, %v213
      %v215 = vadd.f32 %v211, %v214
      %vm216 = vweird.f32 %v210
      %vm217 = vweird.f32 %v211
      %vm218 = vmor %vm216, %vm217
      %v219 = vsel %vm218, %v211, %v215
      %v220 = vand.u32 2147483647, %v210
      %vm221 = vcmp.eq.f32.partialorder %v220, 8.507059e+37
      %v222 = vand.u32 %v210, 2147483648
      %v223 = vor.u32 1.1754944e-38, %v222
      %v224 = vsel %vm221, %v223, %v219
      %v225 = vmul.f32 %v207, %v224
      %v226 = vpack.c.bf16 %v225, %v225
      %v228 = vsel %vm201, %v226, 0
      %vm230 = vcmask 1043456
      %v232 = vsel %vm230, %v174, 0
      %234 = vmatpush.bf16.msra.mxu0 0
      %235 = vmatpush.bf16.msra.mxu0 0
      %236 = vmatpush.bf16.msra.mxu0 0
      %237 = vmatpush.bf16.msra.mxu0 0
      %238 = vmatpush.bf16.msra.mxu0 0
      %239 = vmatpush.bf16.msra.mxu0 0
      %240 = vmatpush.bf16.msra.mxu0 0
      %241 = vmatpush.bf16.msra.mxu0 %v232
      %242 = vmatmul.bf16.gmra.mxu0 %v228
      %v243 = vpop.f32.mrf.mxu0
      %v244 = vadd.f32 0.0, %v243
      %v245 = vpop.f32.mrf.mxu0
      %246 = vdwg.mxu0
      %248 = vrot.lane.b32.xlu0 %v172, 64
      %v249 = vpop.permute.xlu0 %248
      %251 = vrot.lane.b32.xlu0 %v173, 64
      %v252 = vpop.permute.xlu0 %251
      %v254 = vsel %vm175, %v249, 0
      %v257 = vsel %vm175, %v252, 0
      %259 = vmatpush.bf16.xpose.msra.mxu0 0
      %260 = vmatpush.bf16.xpose.msra.mxu0 0
      %261 = vmatpush.bf16.xpose.msra.mxu0 0
      %262 = vmatpush.bf16.xpose.msra.mxu0 0
      %263 = vmatpush.bf16.xpose.msra.mxu0 0
      %264 = vmatpush.bf16.xpose.msra.mxu0 0
      %265 = vmatpush.bf16.xpose.msra.mxu0 0
      %266 = vmatpush.bf16.xpose.msra.mxu0 %v257
      %267 = vmatmul.bf16.gmra.mxu0 %v254
      %v268 = vpop.f32.mrf.mxu0
      %v269 = vadd.f32 0.0, %v268
      %v270 = vpop.f32.mrf.mxu0
      %271 = vdwg.mxu0
      %v272 = vmul.f32 %v269, 0.125
      %v273 = vsel %vm199, -1e+09, %v272
      %v274 = vsel %vm201, %v273, -inf
      %275 = vmax.xlane.f32.xlu0 %v274
      %v276 = vpop.xlane.xlu0 %275
      %v277 = vsub.f32 %v273, %v276
      %v278 = vmul.f32 %v277, 1.442695
      %v279 = vpow.pop %v278
      %v280 = vsel %vm201, %v279, 0.0
      %281 = vadd.xlane.f32.xlu0 %v280
      %v282 = vpop.xlane.xlu0 %281
      %v283 = vrcp.pop %v282
      %v284 = vmul.f32 %v282, %v283
      %v285 = vsub.f32 1.0, %v284
      %v286 = vmul.f32 %v283, %v285
      %v287 = vadd.f32 %v283, %v286
      %vm288 = vweird.f32 %v282
      %vm289 = vweird.f32 %v283
      %vm290 = vmor %vm288, %vm289
      %v291 = vsel %vm290, %v283, %v287
      %v292 = vand.u32 2147483647, %v282
      %vm293 = vcmp.eq.f32.partialorder %v292, 8.507059e+37
      %v294 = vand.u32 %v282, 2147483648
      %v295 = vor.u32 1.1754944e-38, %v294
      %v296 = vsel %vm293, %v295, %v291
      %v297 = vmul.f32 %v279, %v296
      %v298 = vpack.c.bf16 %v297, %v297
      %300 = vrot.lane.b32.xlu0 %v174, 64
      %v301 = vpop.permute.xlu0 %300
      %v303 = vsel %vm201, %v298, 0
      %v306 = vsel %vm230, %v301, 0
      %308 = vmatpush.bf16.msra.mxu0 0
      %309 = vmatpush.bf16.msra.mxu0 0
      %310 = vmatpush.bf16.msra.mxu0 0
      %311 = vmatpush.bf16.msra.mxu0 0
      %312 = vmatpush.bf16.msra.mxu0 0
      %313 = vmatpush.bf16.msra.mxu0 0
      %314 = vmatpush.bf16.msra.mxu0 0
      %315 = vmatpush.bf16.msra.mxu0 %v306
      %316 = vmatmul.bf16.gmra.mxu0 %v303
      %v317 = vpop.f32.mrf.mxu0
      %v318 = vadd.f32 0.0, %v317
      %v319 = vpop.f32.mrf.mxu0
      %320 = vdwg.mxu0
      %v321 = vpack.c.bf16 %v160, %v160
      %v322 = vpack.c.bf16 %v164, %v164
      %v323 = vpack.c.bf16 %v168, %v168
      %v325 = vsel %vm175, %v321, 0
      %v328 = vsel %vm175, %v322, 0
      %330 = vmatpush.bf16.xpose.msra.mxu0 0
      %331 = vmatpush.bf16.xpose.msra.mxu0 0
      %332 = vmatpush.bf16.xpose.msra.mxu0 0
      %333 = vmatpush.bf16.xpose.msra.mxu0 0
      %334 = vmatpush.bf16.xpose.msra.mxu0 0
      %335 = vmatpush.bf16.xpose.msra.mxu0 0
      %336 = vmatpush.bf16.xpose.msra.mxu0 0
      %337 = vmatpush.bf16.xpose.msra.mxu0 %v328
      %338 = vmatmul.bf16.gmra.mxu0 %v325
      %v339 = vpop.f32.mrf.mxu0
      %v340 = vadd.f32 0.0, %v339
      %v341 = vpop.f32.mrf.mxu0
      %342 = vdwg.mxu0
      %v343 = vmul.f32 %v340, 0.125
      %v344 = vsel %vm199, -1e+09, %v343
      %v345 = vsel %vm201, %v344, -inf
      %346 = vmax.xlane.f32.xlu0 %v345
      %v347 = vpop.xlane.xlu0 %346
      %v348 = vsub.f32 %v344, %v347
      %v349 = vmul.f32 %v348, 1.442695
      %v350 = vpow.pop %v349
      %v351 = vsel %vm201, %v350, 0.0
      %352 = vadd.xlane.f32.xlu0 %v351
      %v353 = vpop.xlane.xlu0 %352
      %v354 = vrcp.pop %v353
      %v355 = vmul.f32 %v353, %v354
      %v356 = vsub.f32 1.0, %v355
      %v357 = vmul.f32 %v354, %v356
      %v358 = vadd.f32 %v354, %v357
      %vm359 = vweird.f32 %v353
      %vm360 = vweird.f32 %v354
      %vm361 = vmor %vm359, %vm360
      %v362 = vsel %vm361, %v354, %v358
      %v363 = vand.u32 2147483647, %v353
      %vm364 = vcmp.eq.f32.partialorder %v363, 8.507059e+37
      %v365 = vand.u32 %v353, 2147483648
      %v366 = vor.u32 1.1754944e-38, %v365
      %v367 = vsel %vm364, %v366, %v362
      %v368 = vmul.f32 %v350, %v367
      %v369 = vpack.c.bf16 %v368, %v368
      %v371 = vsel %vm201, %v369, 0
      %v374 = vsel %vm230, %v323, 0
      %376 = vmatpush.bf16.msra.mxu0 0
      %377 = vmatpush.bf16.msra.mxu0 0
      %378 = vmatpush.bf16.msra.mxu0 0
      %379 = vmatpush.bf16.msra.mxu0 0
      %380 = vmatpush.bf16.msra.mxu0 0
      %381 = vmatpush.bf16.msra.mxu0 0
      %382 = vmatpush.bf16.msra.mxu0 0
      %383 = vmatpush.bf16.msra.mxu0 %v374
      %384 = vmatmul.bf16.gmra.mxu0 %v371
      %v385 = vpop.f32.mrf.mxu0
      %v386 = vadd.f32 0.0, %v385
      %v387 = vpop.f32.mrf.mxu0
      %388 = vdwg.mxu0
      %390 = vrot.lane.b32.xlu0 %v321, 64
      %v391 = vpop.permute.xlu0 %390
      %393 = vrot.lane.b32.xlu0 %v322, 64
      %v394 = vpop.permute.xlu0 %393
      %v396 = vsel %vm175, %v391, 0
      %v399 = vsel %vm175, %v394, 0
      %401 = vmatpush.bf16.xpose.msra.mxu0 0
      %402 = vmatpush.bf16.xpose.msra.mxu0 0
      %403 = vmatpush.bf16.xpose.msra.mxu0 0
      %404 = vmatpush.bf16.xpose.msra.mxu0 0
      %405 = vmatpush.bf16.xpose.msra.mxu0 0
      %406 = vmatpush.bf16.xpose.msra.mxu0 0
      %407 = vmatpush.bf16.xpose.msra.mxu0 0
      %408 = vmatpush.bf16.xpose.msra.mxu0 %v399
      %409 = vmatmul.bf16.gmra.mxu0 %v396
      %v410 = vpop.f32.mrf.mxu0
      %v411 = vadd.f32 0.0, %v410
      %v412 = vpop.f32.mrf.mxu0
      %413 = vdwg.mxu0
      %v414 = vmul.f32 %v411, 0.125
      %v415 = vsel %vm199, -1e+09, %v414
      %v416 = vsel %vm201, %v415, -inf
      %417 = vmax.xlane.f32.xlu0 %v416
      %v418 = vpop.xlane.xlu0 %417
      %v419 = vsub.f32 %v415, %v418
      %v420 = vmul.f32 %v419, 1.442695
      %v421 = vpow.pop %v420
      %v422 = vsel %vm201, %v421, 0.0
      %423 = vadd.xlane.f32.xlu0 %v422
      %v424 = vpop.xlane.xlu0 %423
      %v425 = vrcp.pop %v424
      %v426 = vmul.f32 %v424, %v425
      %v427 = vsub.f32 1.0, %v426
      %v428 = vmul.f32 %v425, %v427
      %v429 = vadd.f32 %v425, %v428
      %vm430 = vweird.f32 %v424
      %vm431 = vweird.f32 %v425
      %vm432 = vmor %vm430, %vm431
      %v433 = vsel %vm432, %v425, %v429
      %v434 = vand.u32 2147483647, %v424
      %vm435 = vcmp.eq.f32.partialorder %v434, 8.507059e+37
      %v436 = vand.u32 %v424, 2147483648
      %v437 = vor.u32 1.1754944e-38, %v436
      %v438 = vsel %vm435, %v437, %v433
      %v439 = vmul.f32 %v421, %v438
      %v440 = vpack.c.bf16 %v439, %v439
      %442 = vrot.lane.b32.xlu0 %v323, 64
      %v443 = vpop.permute.xlu0 %442
      %v445 = vsel %vm201, %v440, 0
      %v448 = vsel %vm230, %v443, 0
      %450 = vmatpush.bf16.msra.mxu0 0
      %451 = vmatpush.bf16.msra.mxu0 0
      %452 = vmatpush.bf16.msra.mxu0 0
      %453 = vmatpush.bf16.msra.mxu0 0
      %454 = vmatpush.bf16.msra.mxu0 0
      %455 = vmatpush.bf16.msra.mxu0 0
      %456 = vmatpush.bf16.msra.mxu0 0
      %457 = vmatpush.bf16.msra.mxu0 %v448
      %458 = vmatmul.bf16.gmra.mxu0 %v445
      %v459 = vpop.f32.mrf.mxu0
      %v460 = vadd.f32 0.0, %v459
      %v461 = vpop.f32.mrf.mxu0
      %462 = vdwg.mxu0
      %v463 = vpack.c.bf16 %v161, %v161
      %v464 = vpack.c.bf16 %v165, %v165
      %v465 = vpack.c.bf16 %v169, %v169
      %v467 = vsel %vm175, %v463, 0
      %v470 = vsel %vm175, %v464, 0
      %472 = vmatpush.bf16.xpose.msra.mxu0 0
      %473 = vmatpush.bf16.xpose.msra.mxu0 0
      %474 = vmatpush.bf16.xpose.msra.mxu0 0
      %475 = vmatpush.bf16.xpose.msra.mxu0 0
      %476 = vmatpush.bf16.xpose.msra.mxu0 0
      %477 = vmatpush.bf16.xpose.msra.mxu0 0
      %478 = vmatpush.bf16.xpose.msra.mxu0 0
      %479 = vmatpush.bf16.xpose.msra.mxu0 %v470
      %480 = vmatmul.bf16.gmra.mxu0 %v467
      %v481 = vpop.f32.mrf.mxu0
      %v482 = vadd.f32 0.0, %v481
      %v483 = vpop.f32.mrf.mxu0
      %484 = vdwg.mxu0
      %v485 = vmul.f32 %v482, 0.125
      %v486 = vsel %vm199, -1e+09, %v485
      %v487 = vsel %vm201, %v486, -inf
      %488 = vmax.xlane.f32.xlu0 %v487
      %v489 = vpop.xlane.xlu0 %488
      %v490 = vsub.f32 %v486, %v489
      %v491 = vmul.f32 %v490, 1.442695
      %v492 = vpow.pop %v491
      %v493 = vsel %vm201, %v492, 0.0
      %494 = vadd.xlane.f32.xlu0 %v493
      %v495 = vpop.xlane.xlu0 %494
      %v496 = vrcp.pop %v495
      %v497 = vmul.f32 %v495, %v496
      %v498 = vsub.f32 1.0, %v497
      %v499 = vmul.f32 %v496, %v498
      %v500 = vadd.f32 %v496, %v499
      %vm501 = vweird.f32 %v495
      %vm502 = vweird.f32 %v496
      %vm503 = vmor %vm501, %vm502
      %v504 = vsel %vm503, %v496, %v500
      %v505 = vand.u32 2147483647, %v495
      %vm506 = vcmp.eq.f32.partialorder %v505, 8.507059e+37
      %v507 = vand.u32 %v495, 2147483648
      %v508 = vor.u32 1.1754944e-38, %v507
      %v509 = vsel %vm506, %v508, %v504
      %v510 = vmul.f32 %v492, %v509
      %v511 = vpack.c.bf16 %v510, %v510
      %v513 = vsel %vm201, %v511, 0
      %v516 = vsel %vm230, %v465, 0
      %518 = vmatpush.bf16.msra.mxu0 0
      %519 = vmatpush.bf16.msra.mxu0 0
      %520 = vmatpush.bf16.msra.mxu0 0
      %521 = vmatpush.bf16.msra.mxu0 0
      %522 = vmatpush.bf16.msra.mxu0 0
      %523 = vmatpush.bf16.msra.mxu0 0
      %524 = vmatpush.bf16.msra.mxu0 0
      %525 = vmatpush.bf16.msra.mxu0 %v516
      %526 = vmatmul.bf16.gmra.mxu0 %v513
      %v527 = vpop.f32.mrf.mxu0
      %v528 = vadd.f32 0.0, %v527
      %v529 = vpop.f32.mrf.mxu0
      %530 = vdwg.mxu0
      %532 = vrot.lane.b32.xlu0 %v463, 64
      %v533 = vpop.permute.xlu0 %532
      %535 = vrot.lane.b32.xlu0 %v464, 64
      %v536 = vpop.permute.xlu0 %535
      %v538 = vsel %vm175, %v533, 0
      %v541 = vsel %vm175, %v536, 0
      %543 = vmatpush.bf16.xpose.msra.mxu0 0
      %544 = vmatpush.bf16.xpose.msra.mxu0 0
      %545 = vmatpush.bf16.xpose.msra.mxu0 0
      %546 = vmatpush.bf16.xpose.msra.mxu0 0
      %547 = vmatpush.bf16.xpose.msra.mxu0 0
      %548 = vmatpush.bf16.xpose.msra.mxu0 0
      %549 = vmatpush.bf16.xpose.msra.mxu0 0
      %550 = vmatpush.bf16.xpose.msra.mxu0 %v541
      %551 = vmatmul.bf16.gmra.mxu0 %v538
      %v552 = vpop.f32.mrf.mxu0
      %v553 = vadd.f32 0.0, %v552
      %v554 = vpop.f32.mrf.mxu0
      %555 = vdwg.mxu0
      %v556 = vmul.f32 %v553, 0.125
      %v557 = vsel %vm199, -1e+09, %v556
      %v558 = vsel %vm201, %v557, -inf
      %559 = vmax.xlane.f32.xlu0 %v558
      %v560 = vpop.xlane.xlu0 %559
      %v561 = vsub.f32 %v557, %v560
      %v562 = vmul.f32 %v561, 1.442695
      %v563 = vpow.pop %v562
      %v564 = vsel %vm201, %v563, 0.0
      %565 = vadd.xlane.f32.xlu0 %v564
      %v566 = vpop.xlane.xlu0 %565
      %v567 = vrcp.pop %v566
      %v568 = vmul.f32 %v566, %v567
      %v569 = vsub.f32 1.0, %v568
      %v570 = vmul.f32 %v567, %v569
      %v571 = vadd.f32 %v567, %v570
      %vm572 = vweird.f32 %v566
      %vm573 = vweird.f32 %v567
      %vm574 = vmor %vm572, %vm573
      %v575 = vsel %vm574, %v567, %v571
      %v576 = vand.u32 2147483647, %v566
      %vm577 = vcmp.eq.f32.partialorder %v576, 8.507059e+37
      %v578 = vand.u32 %v566, 2147483648
      %v579 = vor.u32 1.1754944e-38, %v578
      %v580 = vsel %vm577, %v579, %v575
      %v581 = vmul.f32 %v563, %v580
      %v582 = vpack.c.bf16 %v581, %v581
      %584 = vrot.lane.b32.xlu0 %v465, 64
      %v585 = vpop.permute.xlu0 %584
      %v587 = vsel %vm201, %v582, 0
      %v590 = vsel %vm230, %v585, 0
      %592 = vmatpush.bf16.msra.mxu0 0
      %593 = vmatpush.bf16.msra.mxu0 0
      %594 = vmatpush.bf16.msra.mxu0 0
      %595 = vmatpush.bf16.msra.mxu0 0
      %596 = vmatpush.bf16.msra.mxu0 0
      %597 = vmatpush.bf16.msra.mxu0 0
      %598 = vmatpush.bf16.msra.mxu0 0
      %599 = vmatpush.bf16.msra.mxu0 %v590
      %600 = vmatmul.bf16.gmra.mxu0 %v587
      %v601 = vpop.f32.mrf.mxu0
      %v602 = vadd.f32 0.0, %v601
      %v603 = vpop.f32.mrf.mxu0
      %604 = vdwg.mxu0
      %v605 = vpack.c.bf16 %v162, %v162
      %v606 = vpack.c.bf16 %v166, %v166
      %v607 = vpack.c.bf16 %v170, %v170
      %v609 = vsel %vm175, %v605, 0
      %v612 = vsel %vm175, %v606, 0
      %614 = vmatpush.bf16.xpose.msra.mxu0 0
      %615 = vmatpush.bf16.xpose.msra.mxu0 0
      %616 = vmatpush.bf16.xpose.msra.mxu0 0
      %617 = vmatpush.bf16.xpose.msra.mxu0 0
      %618 = vmatpush.bf16.xpose.msra.mxu0 0
      %619 = vmatpush.bf16.xpose.msra.mxu0 0
      %620 = vmatpush.bf16.xpose.msra.mxu0 0
      %621 = vmatpush.bf16.xpose.msra.mxu0 %v612
      %622 = vmatmul.bf16.gmra.mxu0 %v609
      %v623 = vpop.f32.mrf.mxu0
      %v624 = vadd.f32 0.0, %v623
      %v625 = vpop.f32.mrf.mxu0
      %626 = vdwg.mxu0
      %v627 = vmul.f32 %v624, 0.125
      %v628 = vsel %vm199, -1e+09, %v627
      %v629 = vsel %vm201, %v628, -inf
      %630 = vmax.xlane.f32.xlu0 %v629
      %v631 = vpop.xlane.xlu0 %630
      %v632 = vsub.f32 %v628, %v631
      %v633 = vmul.f32 %v632, 1.442695
      %v634 = vpow.pop %v633
      %v635 = vsel %vm201, %v634, 0.0
      %636 = vadd.xlane.f32.xlu0 %v635
      %v637 = vpop.xlane.xlu0 %636
      %v638 = vrcp.pop %v637
      %v639 = vmul.f32 %v637, %v638
      %v640 = vsub.f32 1.0, %v639
      %v641 = vmul.f32 %v638, %v640
      %v642 = vadd.f32 %v638, %v641
      %vm643 = vweird.f32 %v637
      %vm644 = vweird.f32 %v638
      %vm645 = vmor %vm643, %vm644
      %v646 = vsel %vm645, %v638, %v642
      %v647 = vand.u32 2147483647, %v637
      %vm648 = vcmp.eq.f32.partialorder %v647, 8.507059e+37
      %v649 = vand.u32 %v637, 2147483648
      %v650 = vor.u32 1.1754944e-38, %v649
      %v651 = vsel %vm648, %v650, %v646
      %v652 = vmul.f32 %v634, %v651
      %v653 = vpack.c.bf16 %v652, %v652
      %v655 = vsel %vm201, %v653, 0
      %v658 = vsel %vm230, %v607, 0
      %660 = vmatpush.bf16.msra.mxu0 0
      %661 = vmatpush.bf16.msra.mxu0 0
      %662 = vmatpush.bf16.msra.mxu0 0
      %663 = vmatpush.bf16.msra.mxu0 0
      %664 = vmatpush.bf16.msra.mxu0 0
      %665 = vmatpush.bf16.msra.mxu0 0
      %666 = vmatpush.bf16.msra.mxu0 0
      %667 = vmatpush.bf16.msra.mxu0 %v658
      %668 = vmatmul.bf16.gmra.mxu0 %v655
      %v669 = vpop.f32.mrf.mxu0
      %v670 = vadd.f32 0.0, %v669
      %v671 = vpop.f32.mrf.mxu0
      %672 = vdwg.mxu0
      %674 = vrot.lane.b32.xlu0 %v605, 64
      %v675 = vpop.permute.xlu0 %674
      %677 = vrot.lane.b32.xlu0 %v606, 64
      %v678 = vpop.permute.xlu0 %677
      %v680 = vsel %vm175, %v675, 0
      %v683 = vsel %vm175, %v678, 0
      %685 = vmatpush.bf16.xpose.msra.mxu0 0
      %686 = vmatpush.bf16.xpose.msra.mxu0 0
      %687 = vmatpush.bf16.xpose.msra.mxu0 0
      %688 = vmatpush.bf16.xpose.msra.mxu0 0
      %689 = vmatpush.bf16.xpose.msra.mxu0 0
      %690 = vmatpush.bf16.xpose.msra.mxu0 0
      %691 = vmatpush.bf16.xpose.msra.mxu0 0
      %692 = vmatpush.bf16.xpose.msra.mxu0 %v683
      %693 = vmatmul.bf16.gmra.mxu0 %v680
      %v694 = vpop.f32.mrf.mxu0
      %v695 = vadd.f32 0.0, %v694
      %v696 = vpop.f32.mrf.mxu0
      %697 = vdwg.mxu0
      %v698 = vmul.f32 %v695, 0.125
      %v699 = vsel %vm199, -1e+09, %v698
      %v700 = vsel %vm201, %v699, -inf
      %701 = vmax.xlane.f32.xlu0 %v700
      %v702 = vpop.xlane.xlu0 %701
      %v703 = vsub.f32 %v699, %v702
      %v704 = vmul.f32 %v703, 1.442695
      %v705 = vpow.pop %v704
      %v706 = vsel %vm201, %v705, 0.0
      %707 = vadd.xlane.f32.xlu0 %v706
      %v708 = vpop.xlane.xlu0 %707
      %v709 = vrcp.pop %v708
      %v710 = vmul.f32 %v708, %v709
      %v711 = vsub.f32 1.0, %v710
      %v712 = vmul.f32 %v709, %v711
      %v713 = vadd.f32 %v709, %v712
      %vm714 = vweird.f32 %v708
      %vm715 = vweird.f32 %v709
      %vm716 = vmor %vm714, %vm715
      %v717 = vsel %vm716, %v709, %v713
      %v718 = vand.u32 2147483647, %v708
      %vm719 = vcmp.eq.f32.partialorder %v718, 8.507059e+37
      %v720 = vand.u32 %v708, 2147483648
      %v721 = vor.u32 1.1754944e-38, %v720
      %v722 = vsel %vm719, %v721, %v717
      %v723 = vmul.f32 %v705, %v722
      %v724 = vpack.c.bf16 %v723, %v723
      %726 = vrot.lane.b32.xlu0 %v607, 64
      %v727 = vpop.permute.xlu0 %726
      %v729 = vsel %vm201, %v724, 0
      %v732 = vsel %vm230, %v727, 0
      %734 = vmatpush.bf16.msra.mxu0 0
      %735 = vmatpush.bf16.msra.mxu0 0
      %736 = vmatpush.bf16.msra.mxu0 0
      %737 = vmatpush.bf16.msra.mxu0 0
      %738 = vmatpush.bf16.msra.mxu0 0
      %739 = vmatpush.bf16.msra.mxu0 0
      %740 = vmatpush.bf16.msra.mxu0 0
      %741 = vmatpush.bf16.msra.mxu0 %v732
      %742 = vmatmul.bf16.gmra.mxu0 %v729
      %v743 = vpop.f32.mrf.mxu0
      %v744 = vadd.f32 0.0, %v743
      %v745 = vpop.f32.mrf.mxu0
      %746 = vdwg.mxu0
      %748 = vrot.lane.b32.xlu0 %v318, 64
      %v749 = vpop.permute.xlu0 %748
      %752 = vrot.lane.b32.xlu0 %v460, 64
      %v753 = vpop.permute.xlu0 %752
      %756 = vrot.lane.b32.xlu0 %v602, 64
      %v757 = vpop.permute.xlu0 %756
      %760 = vrot.lane.b32.xlu0 %v744, 64
      %v761 = vpop.permute.xlu0 %760
      %v763 = vsel %vm175, %v244, %v749
      %v764 = vsel %vm175, %v386, %v753
      %v765 = vsel %vm175, %v528, %v757
      %v766 = vsel %vm175, %v670, %v761
      %767 = vst [vmem:[%s157] sm:$0xff] %v763
      %768 = vst [vmem:[%s157 + $0x8] sm:$0xff] %v764
      %769 = vst [vmem:[%s157 + $0x10] sm:$0xff] %v765
      %770 = vst [vmem:[%s157 + $0x18] sm:$0xff] %v766
      %p771 = scmp.lt.s32.totalorder %s13, 1
      %s772 = scalar_select %p771, %s13, 1
      %s773 = smul.addr %s772, 4
      %s774 = smul.addr %s773, 8
      %s775 = scalar_lea.vmem %s2, %s774
      // Predicated region
      $region29: #{encoder_forward.25} parent=27 // pred_check
        %p776 = pneg %p83
      $region30: #{encoder_forward.25} parent=27 // pred_check_branch
        %778 = sbr.rel (%p776) target = $region32
      $region31: #{encoder_forward.25} parent=27 // pred_region
        _
      $region32: #{encoder_forward.25} parent=27 // pred_fallthru
        _
    $region28: #{encoder_forward.25} parent=5 // pred_fallthru
      _
    %p779 = scmp.le.s32.totalorder 2, %s8
    // Predicated region
    $region33: #{encoder_forward.25} parent=5 // pred_check
      %p780 = pneg %p779
    $region34: #{encoder_forward.25} parent=5 // pred_check_branch
      %782 = sbr.rel (%p780) target = $region36
    $region35: #{encoder_forward.25} parent=5 // pred_region
      %s783 = ssub.s32 %s8, 2
      // Predicated region
      $region37: #{encoder_forward.25} parent=35 // pred_check
        %p784 = pneg %p89
      $region38: #{encoder_forward.25} parent=35 // pred_check_branch
        %786 = sbr.rel (%p784) target = $region40
      $region39: #{encoder_forward.25} parent=35 // pred_region
        %p787 = scmp.lt.s32.totalorder %s14, 1
        %s788 = scalar_select %p787, %s14, 1
        %s789 = smul.addr %s788, 4
        %s790 = smul.addr %s789, 8
        %s791 = scalar_lea.vmem %s2, %s790
      $region40: #{encoder_forward.25} parent=35 // pred_fallthru
        _
    $region36: #{encoder_forward.25} parent=5 // pred_fallthru
      _
  $region6: #{encoder_forward.25} parent=0 // loop_footer
    %s12 = sadd.s32 1, %s8
  $region7: #{encoder_forward.25} parent=0 // loop_footer_branch
    %7 = sbr.rel target = $region3
  $region8: #{encoder_forward.25} parent=0 // loop_exit
    _

// kernel: encoder_forward.26
$region0: #{encoder_forward.26}
  #allocation0 [shape = 'u32[]', space=smem, size = 0x4, offset = 0x4, fixed_abs, tag = 'smem constant byte address 0x4 - core index']
  #allocation1 [shape = 'u32[72,128]{1,0:T(1,128)}', space=vmem, size = 0x9000, scoped, tag = 'internal scratch']
  %s0 = inlined_call_operand.vmem [shape: f32[16,512], index: 0, kind: input, shape index: {}]
  %s1 = inlined_call_operand.hbm [shape: bf16[512,512], index: 1, kind: input, shape index: {}]
  %s2 = inlined_call_operand.hbm [shape: f32[1,512], index: 2, kind: input, shape index: {}]
  %s3 = inlined_call_operand.vmem [shape: f32[16,512], index: 3, kind: input, shape index: {}, may-alias: {3,6}]
  %s4 = inlined_call_operand.hbm [shape: f32[1,512], index: 4, kind: input, shape index: {}]
  %s5 = inlined_call_operand.hbm [shape: f32[1,512], index: 5, kind: input, shape index: {}]
  %s6 = inlined_call_operand.vmem [shape: f32[16,512], index: 6, kind: output, shape index: {}, may-alias: {3,6}]
  %s7 = sld [smem:[#allocation0]]
  $region50: #{encoder_forward.26} parent=0
    _
  %s9 = ssub.s32 1, %s7
  %s10 = scalar_select 0, %s9, %s7
  $region1: #{encoder_forward.26} parent=0
    #allocation2 [shape = 'u8[524288]{0}', space=vmem, size = 0x80000, scoped, tag = 'input window, operand 1, single buffered']
    #allocation3 [shape = 's32[1]{0}', space=sflag, size = 0x4, scoped, tag = 'scoped memory for encoder_forward.26']
    #allocation4 [shape = 'u8[2048]{0}', space=vmem, size = 0x800, scoped, tag = 'input window, operand 2, single buffered']
    #allocation5 [shape = 's32[1]{0}', space=sflag, size = 0x4, scoped, tag = 'scoped memory for encoder_forward.26']
    #allocation6 [shape = 'u8[2048]{0}', space=vmem, size = 0x800, scoped, tag = 'input window, operand 4, single buffered']
    #allocation7 [shape = 'u8[2048]{0}', space=vmem, size = 0x800, scoped, tag = 'input window, operand 5, single buffered']
    #allocation8 [shape = 's32[1]{0}', space=sflag, size = 0x4, scoped, tag = 'scoped memory for encoder_forward.26']
    %11 = vsyncpa [#allocation3], 0
    %12 = vsyncpa [#allocation5], 0
    %13 = vsyncpa [#allocation8], 0
    // Predicated region
    $region2: #{encoder_forward.26} parent=1 // pred_check
      _
    $region3: #{encoder_forward.26} parent=1 // pred_check_branch
      %15 = sbr.rel (0) target = $region5
    $region4: #{encoder_forward.26} parent=1 // pred_region
      _
    $region5: #{encoder_forward.26} parent=1 // pred_fallthru
      _
    // Predicated region
    $region6: #{encoder_forward.26} parent=1 // pred_check
      _
    $region7: #{encoder_forward.26} parent=1 // pred_check_branch
      %17 = sbr.rel (0) target = $region9
    $region8: #{encoder_forward.26} parent=1 // pred_region
      %19 = vsyncadd [#allocation3], 0
      %s20 = sshll.u32 %s1, 4
      %s21 = int_to_ptr.hbm [resolvable:$true] %s20
      %s22 = sshll.u32 [#allocation2], 4
      %s23 = int_to_ptr.vmem [resolvable:$true] %s22
      %28 = dma.hbm_to_vmem [thread:$0]  %s21, 16384, %s23, [#allocation3], 256, 256, 16
    $region9: #{encoder_forward.26} parent=1 // pred_fallthru
      _
    // Predicated region
    $region10: #{encoder_forward.26} parent=1 // pred_check
      _
    $region11: #{encoder_forward.26} parent=1 // pred_check_branch
      %30 = sbr.rel (0) target = $region13
    $region12: #{encoder_forward.26} parent=1 // pred_region
      %32 = vsyncadd [#allocation5], 0
      %s34 = sshll.u32 %s2, 4
      %s35 = int_to_ptr.hbm [resolvable:$true] %s34
      %s36 = sshll.u32 [#allocation4], 4
      %s37 = int_to_ptr.vmem [resolvable:$true] %s36
      %39 = dma.hbm_to_vmem [thread:$0]  %s35, 64, %s37, [#allocation5]
    $region13: #{encoder_forward.26} parent=1 // pred_fallthru
      _
    // Predicated region
    $region14: #{encoder_forward.26} parent=1 // pred_check
      _
    $region15: #{encoder_forward.26} parent=1 // pred_check_branch
      %41 = sbr.rel (0) target = $region17
    $region16: #{encoder_forward.26} parent=1 // pred_region
      _
    $region17: #{encoder_forward.26} parent=1 // pred_fallthru
      _
    // Predicated region
    $region18: #{encoder_forward.26} parent=1 // pred_check
      _
    $region19: #{encoder_forward.26} parent=1 // pred_check_branch
      %43 = sbr.rel (0) target = $region21
    $region20: #{encoder_forward.26} parent=1 // pred_region
      %45 = vsyncadd [#allocation5], 0
      %s47 = sshll.u32 %s4, 4
      %s48 = int_to_ptr.hbm [resolvable:$true] %s47
      %s49 = sshll.u32 [#allocation6], 4
      %s50 = int_to_ptr.vmem [resolvable:$true] %s49
      %52 = dma.hbm_to_vmem [thread:$0]  %s48, 64, %s50, [#allocation5]
    $region21: #{encoder_forward.26} parent=1 // pred_fallthru
      _
    // Predicated region
    $region22: #{encoder_forward.26} parent=1 // pred_check
      _
    $region23: #{encoder_forward.26} parent=1 // pred_check_branch
      %54 = sbr.rel (0) target = $region25
    $region24: #{encoder_forward.26} parent=1 // pred_region
      %56 = vsyncadd [#allocation8], 0
      %s58 = sshll.u32 %s5, 4
      %s59 = int_to_ptr.hbm [resolvable:$true] %s58
      %s60 = sshll.u32 [#allocation7], 4
      %s61 = int_to_ptr.vmem [resolvable:$true] %s60
      %63 = dma.hbm_to_vmem [thread:$0]  %s59, 64, %s61, [#allocation8]
    $region25: #{encoder_forward.26} parent=1 // pred_fallthru
      _
    // Predicated region
    $region26: #{encoder_forward.26} parent=1 // pred_check
      _
    $region27: #{encoder_forward.26} parent=1 // pred_check_branch
      %65 = sbr.rel (0) target = $region29
    $region28: #{encoder_forward.26} parent=1 // pred_region
      %67 = dma.done [#allocation3], 16384
    $region29: #{encoder_forward.26} parent=1 // pred_fallthru
      _
    // Predicated region
    $region30: #{encoder_forward.26} parent=1 // pred_check
      _
    $region31: #{encoder_forward.26} parent=1 // pred_check_branch
      %69 = sbr.rel (0) target = $region33
    $region32: #{encoder_forward.26} parent=1 // pred_region
      %71 = dma.done [#allocation5], 64
    $region33: #{encoder_forward.26} parent=1 // pred_fallthru
      _
    // Predicated region
    $region34: #{encoder_forward.26} parent=1 // pred_check
      _
    $region35: #{encoder_forward.26} parent=1 // pred_check_branch
      %73 = sbr.rel (0) target = $region37
    $region36: #{encoder_forward.26} parent=1 // pred_region
      %75 = dma.done [#allocation5], 64
    $region37: #{encoder_forward.26} parent=1 // pred_fallthru
      _
    // Predicated region
    $region38: #{encoder_forward.26} parent=1 // pred_check
      _
    $region39: #{encoder_forward.26} parent=1 // pred_check_branch
      %77 = sbr.rel (0) target = $region41
    $region40: #{encoder_forward.26} parent=1 // pred_region
      %79 = dma.done [#allocation8], 64
    $region41: #{encoder_forward.26} parent=1 // pred_fallthru
      _
    %v80 = vld [vmem:[%s0] sm:$0xff]
    %v81 = vld [vmem:[%s0 + $0x8] sm:$0xff]
    %v82 = vld [vmem:[%s0 + $0x10] sm:$0xff]
    %v83 = vld [vmem:[%s0 + $0x18] sm:$0xff]
    %v84 = vld [vmem:[%s0 + $0x20] sm:$0xff]
    %v85 = vld [vmem:[%s0 + $0x28] sm:$0xff]
    %v86 = vld [vmem:[%s0 + $0x30] sm:$0xff]
    %v87 = vld [vmem:[%s0 + $0x38] sm:$0xff]
    %v88 = vpack.c.bf16 %v84, %v80
    %v89 = vpack.c.bf16 %v85, %v81
    %v90 = vpack.c.bf16 %v86, %v82
    %v91 = vpack.c.bf16 %v87, %v83
    %v92 = vld [vmem:[#allocation2] sm:$0xff]
    %v93 = vld [vmem:[#allocation2 + $0x8] sm:$0xff]
    %v94 = vld [vmem:[#allocation2 + $0x10] sm:$0xff]
    %v95 = vld [vmem:[#allocation2 + $0x18] sm:$0xff]
    %v96 = vld [vmem:[#allocation2 + $0x20] sm:$0xff]
    %v97 = vld [vmem:[#allocation2 + $0x28] sm:$0xff]
    %v98 = vld [vmem:[#allocation2 + $0x30] sm:$0xff]
    %v99 = vld [vmem:[#allocation2 + $0x38] sm:$0xff]
    %v100 = vld [vmem:[#allocation2 + $0x40] sm:$0xff]
    %v101 = vld [vmem:[#allocation2 + $0x48] sm:$0xff]
    %v102 = vld [vmem:[#allocation2 + $0x50] sm:$0xff]
    %v103 = vld [vmem:[#allocation2 + $0x58] sm:$0xff]
    %v104 = vld [vmem:[#allocation2 + $0x60] sm:$0xff]
    %v105 = vld [vmem:[#allocation2 + $0x68] sm:$0xff]
    %v106 = vld [vmem:[#allocation2 + $0x70] sm:$0xff]
    %v107 = vld [vmem:[#allocation2 + $0x78] sm:$0xff]
    %v108 = vld [vmem:[#allocation2 + $0x80] sm:$0xff]
    %v109 = vld [vmem:[#allocation2 + $0x88] sm:$0xff]
    %v110 = vld [vmem:[#allocation2 + $0x90] sm:$0xff]
    %v111 = vld [vmem:[#allocation2 + $0x98] sm:$0xff]
    %v112 = vld [vmem:[#allocation2 + $0xa0] sm:$0xff]
    %v113 = vld [vmem:[#allocation2 + $0xa8] sm:$0xff]
    %v114 = vld [vmem:[#allocation2 + $0xb0] sm:$0xff]
    %v115 = vld [vmem:[#allocation2 + $0xb8] sm:$0xff]
    %v116 = vld [vmem:[#allocation2 + $0xc0] sm:$0xff]
    %v117 = vld [vmem:[#allocation2 + $0xc8] sm:$0xff]
    %v118 = vld [vmem:[#allocation2 + $0xd0] sm:$0xff]
    %v119 = vld [vmem:[#allocation2 + $0xd8] sm:$0xff]
    %v120 = vld [vmem:[#allocation2 + $0xe0] sm:$0xff]
    %v121 = vld [vmem:[#allocation2 + $0xe8] sm:$0xff]
    %v122 = vld [vmem:[#allocation2 + $0xf0] sm:$0xff]
    %v123 = vld [vmem:[#allocation2 + $0xf8] sm:$0xff]
    %v124 = vld [vmem:[#allocation2 + $0x100] sm:$0xff]
    %v125 = vld [vmem:[#allocation2 + $0x108] sm:$0xff]
    %v126 = vld [vmem:[#allocation2 + $0x110] sm:$0xff]
    %v127 = vld [vmem:[#allocation2 + $0x118] sm:$0xff]
    %v128 = vld [vmem:[#allocation2 + $0x120] sm:$0xff]
    %v129 = vld [vmem:[#allocation2 + $0x128] sm:$0xff]
    %v130 = vld [vmem:[#allocation2 + $0x130] sm:$0xff]
    %v131 = vld [vmem:[#allocation2 + $0x138] sm:$0xff]
    %v132 = vld [vmem:[#allocation2 + $0x140] sm:$0xff]
    %v133 = vld [vmem:[#allocation2 + $0x148] sm:$0xff]
    %v134 = vld [vmem:[#allocation2 + $0x150] sm:$0xff]
    %v135 = vld [vmem:[#allocation2 + $0x158] sm:$0xff]
    %v136 = vld [vmem:[#allocation2 + $0x160] sm:$0xff]
    %v137 = vld [vmem:[#allocation2 + $0x168] sm:$0xff]
    %v138 = vld [vmem:[#allocation2 + $0x170] sm:$0xff]
    %v139 = vld [vmem:[#allocation2 + $0x178] sm:$0xff]
    %v140 = vld [vmem:[#allocation2 + $0x180] sm:$0xff]
    %v141 = vld [vmem:[#allocation2 + $0x188] sm:$0xff]
    %v142 = vld [vmem:[#allocation2 + $0x190] sm:$0xff]
    %v143 = vld [vmem:[#allocation2 + $0x198] sm:$0xff]
    %v144 = vld [vmem:[#allocation2 + $0x1a0] sm:$0xff]
    %v145 = vld [vmem:[#allocation2 + $0x1a8] sm:$0xff]
    %v146 = vld [vmem:[#allocation2 + $0x1b0] sm:$0xff]
    %v147 = vld [vmem:[#allocation2 + $0x1b8] sm:$0xff]
    %v148 = vld [vmem:[#allocation2 + $0x1c0] sm:$0xff]
    %v149 = vld [vmem:[#allocation2 + $0x1c8] sm:$0xff]
    %v150 = vld [vmem:[#allocation2 + $0x1d0] sm:$0xff]
    %v151 = vld [vmem:[#allocation2 + $0x1d8] sm:$0xff]
    %v152 = vld [vmem:[#allocation2 + $0x1e0] sm:$0xff]
    %v153 = vld [vmem:[#allocation2 + $0x1e8] sm:$0xff]
    %v154 = vld [vmem:[#allocation2 + $0x1f0] sm:$0xff]
    %v155 = vld [vmem:[#allocation2 + $0x1f8] sm:$0xff]
    %v156 = vld [vmem:[#allocation2 + $0x200] sm:$0xff]
    %v157 = vld [vmem:[#allocation2 + $0x208] sm:$0xff]
    %v158 = vld [vmem:[#allocation2 + $0x210] sm:$0xff]
    %v159 = vld [vmem:[#allocation2 + $0x218] sm:$0xff]
    %v160 = vld [vmem:[#allocation2 + $0x220] sm:$0xff]
    %v161 = vld [vmem:[#allocation2 + $0x228] sm:$0xff]
    %v162 = vld [vmem:[#allocation2 + $0x230] sm:$0xff]
    %v163 = vld [vmem:[#allocation2 + $0x238] sm:$0xff]
    %v164 = vld [vmem:[#allocation2 + $0x240] sm:$0xff]
    %v165 = vld [vmem:[#allocation2 + $0x248] sm:$0xff]
    %v166 = vld [vmem:[#allocation2 + $0x250] sm:$0xff]
    %v167 = vld [vmem:[#allocation2 + $0x258] sm:$0xff]
    %v168 = vld [vmem:[#allocation2 + $0x260] sm:$0xff]
    %v169 = vld [vmem:[#allocation2 + $0x268] sm:$0xff]
    %v170 = vld [vmem:[#allocation2 + $0x270] sm:$0xff]
    %v171 = vld [vmem:[#allocation2 + $0x278] sm:$0xff]
    %v172 = vld [vmem:[#allocation2 + $0x280] sm:$0xff]
    %v173 = vld [vmem:[#allocation2 + $0x288] sm:$0xff]
    %v174 = vld [vmem:[#allocation2 + $0x290] sm:$0xff]
    %v175 = vld [vmem:[#allocation2 + $0x298] sm:$0xff]
    %v176 = vld [vmem:[#allocation2 + $0x2a0] sm:$0xff]
    %v177 = vld [vmem:[#allocation2 + $0x2a8] sm:$0xff]
    %v178 = vld [vmem:[#allocation2 + $0x2b0] sm:$0xff]
    %v179 = vld [vmem:[#allocation2 + $0x2b8] sm:$0xff]
    %v180 = vld [vmem:[#allocation2 + $0x2c0] sm:$0xff]
    %v181 = vld [vmem:[#allocation2 + $0x2c8] sm:$0xff]
    %v182 = vld [vmem:[#allocation2 + $0x2d0] sm:$0xff]
    %v183 = vld [vmem:[#allocation2 + $0x2d8] sm:$0xff]
    %v184 = vld [vmem:[#allocation2 + $0x2e0] sm:$0xff]
    %v185 = vld [vmem:[#allocation2 + $0x2e8] sm:$0xff]
    %v186 = vld [vmem:[#allocation2 + $0x2f0] sm:$0xff]
    %v187 = vld [vmem:[#allocation2 + $0x2f8] sm:$0xff]
    %v188 = vld [vmem:[#allocation2 + $0x300] sm:$0xff]
    %v189 = vld [vmem:[#allocation2 + $0x308] sm:$0xff]
    %v190 = vld [vmem:[#allocation2 + $0x310] sm:$0xff]
    %v191 = vld [vmem:[#allocation2 + $0x318] sm:$0xff]
    %v192 = vld [vmem:[#allocation2 + $0x320] sm:$0xff]
    %v193 = vld [vmem:[#allocation2 + $0x328] sm:$0xff]
    %v194 = vld [vmem:[#allocation2 + $0x330] sm:$0xff]
    %v195 = vld [vmem:[#allocation2 + $0x338] sm:$0xff]
    %v196 = vld [vmem:[#allocation2 + $0x340] sm:$0xff]
    %v197 = vld [vmem:[#allocation2 + $0x348] sm:$0xff]
    %v198 = vld [vmem:[#allocation2 + $0x350] sm:$0xff]
    %v199 = vld [vmem:[#allocation2 + $0x358] sm:$0xff]
    %v200 = vld [vmem:[#allocation2 + $0x360] sm:$0xff]
    %v201 = vld [vmem:[#allocation2 + $0x368] sm:$0xff]
    %v202 = vld [vmem:[#allocation2 + $0x370] sm:$0xff]
    %v203 = vld [vmem:[#allocation2 + $0x378] sm:$0xff]
    %v204 = vld [vmem:[#allocation2 + $0x380] sm:$0xff]
    %v205 = vld [vmem:[#allocation2 + $0x388] sm:$0xff]
    %v206 = vld [vmem:[#allocation2 + $0x390] sm:$0xff]
    %v207 = vld [vmem:[#allocation2 + $0x398] sm:$0xff]
    %v208 = vld [vmem:[#allocation2 + $0x3a0] sm:$0xff]
    %v209 = vld [vmem:[#allocation2 + $0x3a8] sm:$0xff]
    %v210 = vld [vmem:[#allocation2 + $0x3b0] sm:$0xff]
    %v211 = vld [vmem:[#allocation2 + $0x3b8] sm:$0xff]
    %v212 = vld [vmem:[#allocation2 + $0x3c0] sm:$0xff]
    %v213 = vld [vmem:[#allocation2 + $0x3c8] sm:$0xff]
    %v214 = vld [vmem:[#allocation2 + $0x3d0] sm:$0xff]
    %v215 = vld [vmem:[#allocation2 + $0x3d8] sm:$0xff]
    %v216 = vld [vmem:[#allocation2 + $0x3e0] sm:$0xff]
    %v217 = vld [vmem:[#allocation2 + $0x3e8] sm:$0xff]
    %v218 = vld [vmem:[#allocation2 + $0x3f0] sm:$0xff]
    %v219 = vld [vmem:[#allocation2 + $0x3f8] sm:$0xff]
    %v220 = vld [vmem:[#allocation4] sm:$0xf]
    %v222 = vperm.slane %v220, 0
    %v223 = vperm.slane %v220, 1
    %v224 = vperm.slane %v220, 2
    %v225 = vperm.slane %v220, 3
    %v358 = vunpack.c.l.b16 %v92
    %v359 = vunpack.c.h.b16 %v92
    %v360 = vunpack.c.l.b16 %v93
    %v361 = vunpack.c.h.b16 %v93
    %v362 = vunpack.c.l.b16 %v94
    %v363 = vunpack.c.h.b16 %v94
    %v364 = vunpack.c.l.b16 %v95
    %v365 = vunpack.c.h.b16 %v95
    %v366 = vunpack.c.l.b16 %v96
    %v367 = vunpack.c.h.b16 %v96
    %v368 = vunpack.c.l.b16 %v97
    %v369 = vunpack.c.h.b16 %v97
    %v370 = vunpack.c.l.b16 %v98
    %v371 = vunpack.c.h.b16 %v98
    %v372 = vunpack.c.l.b16 %v99
    %v373 = vunpack.c.h.b16 %v99
    %v374 = vunpack.c.l.b16 %v100
    %v375 = vunpack.c.h.b16 %v100
    %v376 = vunpack.c.l.b16 %v101
    %v377 = vunpack.c.h.b16 %v101
    %v378 = vunpack.c.l.b16 %v102
    %v379 = vunpack.c.h.b16 %v102
    %v380 = vunpack.c.l.b16 %v103
    %v381 = vunpack.c.h.b16 %v103
    %v382 = vunpack.c.l.b16 %v104
    %v383 = vunpack.c.h.b16 %v104
    %v384 = vunpack.c.l.b16 %v105
    %v385 = vunpack.c.h.b16 %v105
    %v386 = vunpack.c.l.b16 %v106
    %v387 = vunpack.c.h.b16 %v106
    %v388 = vunpack.c.l.b16 %v107
    %v389 = vunpack.c.h.b16 %v107
    %v390 = vunpack.c.l.b16 %v108
    %v391 = vunpack.c.h.b16 %v108
    %v392 = vunpack.c.l.b16 %v109
    %v393 = vunpack.c.h.b16 %v109
    %v394 = vunpack.c.l.b16 %v110
    %v395 = vunpack.c.h.b16 %v110
    %v396 = vunpack.c.l.b16 %v111
    %v397 = vunpack.c.h.b16 %v111
    %v398 = vunpack.c.l.b16 %v112
    %v399 = vunpack.c.h.b16 %v112
    %v400 = vunpack.c.l.b16 %v113
    %v401 = vunpack.c.h.b16 %v113
    %v402 = vunpack.c.l.b16 %v114
    %v403 = vunpack.c.h.b16 %v114
    %v404 = vunpack.c.l.b16 %v115
    %v405 = vunpack.c.h.b16 %v115
    %v406 = vunpack.c.l.b16 %v116
    %v407 = vunpack.c.h.b16 %v116
    %v408 = vunpack.c.l.b16 %v117
    %v409 = vunpack.c.h.b16 %v117
    %v410 = vunpack.c.l.b16 %v118
    %v411 = vunpack.c.h.b16 %v118
    %v412 = vunpack.c.l.b16 %v119
    %v413 = vunpack.c.h.b16 %v119
    %v414 = vunpack.c.l.b16 %v120
    %v415 = vunpack.c.h.b16 %v120
    %v416 = vunpack.c.l.b16 %v121
    %v417 = vunpack.c.h.b16 %v121
    %v418 = vunpack.c.l.b16 %v122
    %v419 = vunpack.c.h.b16 %v122
    %v420 = vunpack.c.l.b16 %v123
    %v421 = vunpack.c.h.b16 %v123
    %v422 = vunpack.c.l.b16 %v124
    %v423 = vunpack.c.h.b16 %v124
    %v424 = vunpack.c.l.b16 %v125
    %v425 = vunpack.c.h.b16 %v125
    %v426 = vunpack.c.l.b16 %v126
    %v427 = vunpack.c.h.b16 %v126
    %v428 = vunpack.c.l.b16 %v127
    %v429 = vunpack.c.h.b16 %v127
    %v430 = vunpack.c.l.b16 %v128
    %v431 = vunpack.c.h.b16 %v128
    %v432 = vunpack.c.l.b16 %v129
    %v433 = vunpack.c.h.b16 %v129
    %v434 = vunpack.c.l.b16 %v130
    %v435 = vunpack.c.h.b16 %v130
    %v436 = vunpack.c.l.b16 %v131
    %v437 = vunpack.c.h.b16 %v131
    %v438 = vunpack.c.l.b16 %v132
    %v439 = vunpack.c.h.b16 %v132
    %v440 = vunpack.c.l.b16 %v133
    %v441 = vunpack.c.h.b16 %v133
    %v442 = vunpack.c.l.b16 %v134
    %v443 = vunpack.c.h.b16 %v134
    %v444 = vunpack.c.l.b16 %v135
    %v445 = vunpack.c.h.b16 %v135
    %v446 = vunpack.c.l.b16 %v136
    %v447 = vunpack.c.h.b16 %v136
    %v448 = vunpack.c.l.b16 %v137
    %v449 = vunpack.c.h.b16 %v137
    %v450 = vunpack.c.l.b16 %v138
    %v451 = vunpack.c.h.b16 %v138
    %v452 = vunpack.c.l.b16 %v139
    %v453 = vunpack.c.h.b16 %v139
    %v454 = vunpack.c.l.b16 %v140
    %v455 = vunpack.c.h.b16 %v140
    %v456 = vunpack.c.l.b16 %v141
    %v457 = vunpack.c.h.b16 %v141
    %v458 = vunpack.c.l.b16 %v142
    %v459 = vunpack.c.h.b16 %v142
    %v460 = vunpack.c.l.b16 %v143
    %v461 = vunpack.c.h.b16 %v143
    %v462 = vunpack.c.l.b16 %v144
    %v463 = vunpack.c.h.b16 %v144
    %v464 = vunpack.c.l.b16 %v145
    %v465 = vunpack.c.h.b16 %v145
    %v466 = vunpack.c.l.b16 %v146
    %v467 = vunpack.c.h.b16 %v146
    %v468 = vunpack.c.l.b16 %v147
    %v469 = vunpack.c.h.b16 %v147
    %v470 = vunpack.c.l.b16 %v148
    %v471 = vunpack.c.h.b16 %v148
    %v472 = vunpack.c.l.b16 %v149
    %v473 = vunpack.c.h.b16 %v149
    %v474 = vunpack.c.l.b16 %v150
    %v475 = vunpack.c.h.b16 %v150
    %v476 = vunpack.c.l.b16 %v151
    %v477 = vunpack.c.h.b16 %v151
    %v478 = vunpack.c.l.b16 %v152
    %v479 = vunpack.c.h.b16 %v152
    %v480 = vunpack.c.l.b16 %v153
    %v481 = vunpack.c.h.b16 %v153
    %v482 = vunpack.c.l.b16 %v154
    %v483 = vunpack.c.h.b16 %v154
    %v484 = vunpack.c.l.b16 %v155
    %v485 = vunpack.c.h.b16 %v155
    %v486 = vunpack.c.l.b16 %v156
    %v487 = vunpack.c.h.b16 %v156
    %v488 = vunpack.c.l.b16 %v157
    %v489 = vunpack.c.h.b16 %v157
    %v490 = vunpack.c.l.b16 %v158
    %v491 = vunpack.c.h.b16 %v158
    %v492 = vunpack.c.l.b16 %v159
    %v493 = vunpack.c.h.b16 %v159
    %v494 = vunpack.c.l.b16 %v160
    %v495 = vunpack.c.h.b16 %v160
    %v496 = vunpack.c.l.b16 %v161
    %v497 = vunpack.c.h.b16 %v161
    %v498 = vunpack.c.l.b16 %v162
    %v499 = vunpack.c.h.b16 %v162
    %v500 = vunpack.c.l.b16 %v163
    %v501 = vunpack.c.h.b16 %v163
    %v502 = vunpack.c.l.b16 %v164
    %v503 = vunpack.c.h.b16 %v164
    %v504 = vunpack.c.l.b16 %v165
    %v505 = vunpack.c.h.b16 %v165
    %v506 = vunpack.c.l.b16 %v166
    %v507 = vunpack.c.h.b16 %v166
    %v508 = vunpack.c.l.b16 %v167
    %v509 = vunpack.c.h.b16 %v167
    %v510 = vunpack.c.l.b16 %v168
    %v511 = vunpack.c.h.b16 %v168
    %v512 = vunpack.c.l.b16 %v169
    %v513 = vunpack.c.h.b16 %v169
    %v514 = vunpack.c.l.b16 %v170
    %v515 = vunpack.c.h.b16 %v170
    %v516 = vunpack.c.l.b16 %v171
    %v517 = vunpack.c.h.b16 %v171
    %v518 = vunpack.c.l.b16 %v172
    %v519 = vunpack.c.h.b16 %v172
    %v520 = vunpack.c.l.b16 %v173
    %v521 = vunpack.c.h.b16 %v173
    %v522 = vunpack.c.l.b16 %v174
    %v523 = vunpack.c.h.b16 %v174
    %v524 = vunpack.c.l.b16 %v175
    %v525 = vunpack.c.h.b16 %v175
    %v526 = vunpack.c.l.b16 %v176
    %v527 = vunpack.c.h.b16 %v176
    %v528 = vunpack.c.l.b16 %v177
    %v529 = vunpack.c.h.b16 %v177
    %v530 = vunpack.c.l.b16 %v178
    %v531 = vunpack.c.h.b16 %v178
    %v532 = vunpack.c.l.b16 %v179
    %v533 = vunpack.c.h.b16 %v179
    %v534 = vunpack.c.l.b16 %v180
    %v535 = vunpack.c.h.b16 %v180
    %v536 = vunpack.c.l.b16 %v181
    %v537 = vunpack.c.h.b16 %v181
    %v538 = vunpack.c.l.b16 %v182
    %v539 = vunpack.c.h.b16 %v182
    %v540 = vunpack.c.l.b16 %v183
    %v541 = vunpack.c.h.b16 %v183
    %v542 = vunpack.c.l.b16 %v184
    %v543 = vunpack.c.h.b16 %v184
    %v544 = vunpack.c.l.b16 %v185
    %v545 = vunpack.c.h.b16 %v185
    %v546 = vunpack.c.l.b16 %v186
    %v547 = vunpack.c.h.b16 %v186
    %v548 = vunpack.c.l.b16 %v187
    %v549 = vunpack.c.h.b16 %v187
    %v550 = vunpack.c.l.b16 %v188
    %v551 = vunpack.c.h.b16 %v188
    %v552 = vunpack.c.l.b16 %v189
    %v553 = vunpack.c.h.b16 %v189
    %v554 = vunpack.c.l.b16 %v190
    %v555 = vunpack.c.h.b16 %v190
    %v556 = vunpack.c.l.b16 %v191
    %v557 = vunpack.c.h.b16 %v191
    %v558 = vunpack.c.l.b16 %v192
    %v559 = vunpack.c.h.b16 %v192
    %v560 = vunpack.c.l.b16 %v193
    %v561 = vunpack.c.h.b16 %v193
    %v562 = vunpack.c.l.b16 %v194
    %v563 = vunpack.c.h.b16 %v194
    %v564 = vunpack.c.l.b16 %v195
    %v565 = vunpack.c.h.b16 %v195
    %v566 = vunpack.c.l.b16 %v196
    %v567 = vunpack.c.h.b16 %v196
    %v568 = vunpack.c.l.b16 %v197
    %v569 = vunpack.c.h.b16 %v197
    %v570 = vunpack.c.l.b16 %v198
    %v571 = vunpack.c.h.b16 %v198
    %v572 = vunpack.c.l.b16 %v199
    %v573 = vunpack.c.h.b16 %v199
    %v574 = vunpack.c.l.b16 %v200
    %v575 = vunpack.c.h.b16 %v200
    %v576 = vunpack.c.l.b16 %v201
    %v577 = vunpack.c.h.b16 %v201
    %v578 = vunpack.c.l.b16 %v202
    %v579 = vunpack.c.h.b16 %v202
    %v580 = vunpack.c.l.b16 %v203
    %v581 = vunpack.c.h.b16 %v203
    %v582 = vunpack.c.l.b16 %v204
    %v583 = vunpack.c.h.b16 %v204
    %v584 = vunpack.c.l.b16 %v205
    %v585 = vunpack.c.h.b16 %v205
    %v586 = vunpack.c.l.b16 %v206
    %v587 = vunpack.c.h.b16 %v206
    %v588 = vunpack.c.l.b16 %v207
    %v589 = vunpack.c.h.b16 %v207
    %v590 = vunpack.c.l.b16 %v208
    %v591 = vunpack.c.h.b16 %v208
    %v592 = vunpack.c.l.b16 %v209
    %v593 = vunpack.c.h.b16 %v209
    %v594 = vunpack.c.l.b16 %v210
    %v595 = vunpack.c.h.b16 %v210
    %v596 = vunpack.c.l.b16 %v211
    %v597 = vunpack.c.h.b16 %v211
    %v598 = vunpack.c.l.b16 %v212
    %v599 = vunpack.c.h.b16 %v212
    %v600 = vunpack.c.l.b16 %v213
    %v601 = vunpack.c.h.b16 %v213
    %v602 = vunpack.c.l.b16 %v214
    %v603 = vunpack.c.h.b16 %v214
    %v604 = vunpack.c.l.b16 %v215
    %v605 = vunpack.c.h.b16 %v215
    %v606 = vunpack.c.l.b16 %v216
    %v607 = vunpack.c.h.b16 %v216
    %v608 = vunpack.c.l.b16 %v217
    %v609 = vunpack.c.h.b16 %v217
    %v610 = vunpack.c.l.b16 %v218
    %v611 = vunpack.c.h.b16 %v218
    %v612 = vunpack.c.l.b16 %v219
    %v613 = vunpack.c.h.b16 %v219
    %v614 = vpack.c.b16 %v362, %v358
    %v615 = vpack.c.b16 %v363, %v359
    %v616 = vpack.c.b16 %v364, %v360
    %v617 = vpack.c.b16 %v365, %v361
    %v618 = vpack.c.b16 %v370, %v366
    %v619 = vpack.c.b16 %v371, %v367
    %v620 = vpack.c.b16 %v372, %v368
    %v621 = vpack.c.b16 %v373, %v369
    %v622 = vpack.c.b16 %v378, %v374
    %v623 = vpack.c.b16 %v379, %v375
    %v624 = vpack.c.b16 %v380, %v376
    %v625 = vpack.c.b16 %v381, %v377
    %v626 = vpack.c.b16 %v386, %v382
    %v627 = vpack.c.b16 %v387, %v383
    %v628 = vpack.c.b16 %v388, %v384
    %v629 = vpack.c.b16 %v389, %v385
    %v630 = vpack.c.b16 %v394, %v390
    %v631 = vpack.c.b16 %v395, %v391
    %v632 = vpack.c.b16 %v396, %v392
    %v633 = vpack.c.b16 %v397, %v393
    %v634 = vpack.c.b16 %v402, %v398
    %v635 = vpack.c.b16 %v403, %v399
    %v636 = vpack.c.b16 %v404, %v400
    %v637 = vpack.c.b16 %v405, %v401
    %v638 = vpack.c.b16 %v410, %v406
    %v639 = vpack.c.b16 %v411, %v407
    %v640 = vpack.c.b16 %v412, %v408
    %v641 = vpack.c.b16 %v413, %v409
    %v642 = vpack.c.b16 %v418, %v414
    %v643 = vpack.c.b16 %v419, %v415
    %v644 = vpack.c.b16 %v420, %v416
    %v645 = vpack.c.b16 %v421, %v417
    %v646 = vpack.c.b16 %v426, %v422
    %v647 = vpack.c.b16 %v427, %v423
    %v648 = vpack.c.b16 %v428, %v424
    %v649 = vpack.c.b16 %v429, %v425
    %v650 = vpack.c.b16 %v434, %v430
    %v651 = vpack.c.b16 %v435, %v431
    %v652 = vpack.c.b16 %v436, %v432
    %v653 = vpack.c.b16 %v437, %v433
    %v654 = vpack.c.b16 %v442, %v438
    %v655 = vpack.c.b16 %v443, %v439
    %v656 = vpack.c.b16 %v444, %v440
    %v657 = vpack.c.b16 %v445, %v441
    %v658 = vpack.c.b16 %v450, %v446
    %v659 = vpack.c.b16 %v451, %v447
    %v660 = vpack.c.b16 %v452, %v448
    %v661 = vpack.c.b16 %v453, %v449
    %v662 = vpack.c.b16 %v458, %v454
    %v663 = vpack.c.b16 %v459, %v455
    %v664 = vpack.c.b16 %v460, %v456
    %v665 = vpack.c.b16 %v461, %v457
    %v666 = vpack.c.b16 %v466, %v462
    %v667 = vpack.c.b16 %v467, %v463
    %v668 = vpack.c.b16 %v468, %v464
    %v669 = vpack.c.b16 %v469, %v465
    %v670 = vpack.c.b16 %v474, %v470
    %v671 = vpack.c.b16 %v475, %v471
    %v672 = vpack.c.b16 %v476, %v472
    %v673 = vpack.c.b16 %v477, %v473
    %v674 = vpack.c.b16 %v482, %v478
    %v675 = vpack.c.b16 %v483, %v479
    %v676 = vpack.c.b16 %v484, %v480
    %v677 = vpack.c.b16 %v485, %v481
    %v678 = vpack.c.b16 %v490, %v486
    %v679 = vpack.c.b16 %v491, %v487
    %v680 = vpack.c.b16 %v492, %v488
    %v681 = vpack.c.b16 %v493, %v489
    %v682 = vpack.c.b16 %v498, %v494
    %v683 = vpack.c.b16 %v499, %v495
    %v684 = vpack.c.b16 %v500, %v496
    %v685 = vpack.c.b16 %v501, %v497
    %v686 = vpack.c.b16 %v506, %v502
    %v687 = vpack.c.b16 %v507, %v503
    %v688 = vpack.c.b16 %v508, %v504
    %v689 = vpack.c.b16 %v509, %v505
    %v690 = vpack.c.b16 %v514, %v510
    %v691 = vpack.c.b16 %v515, %v511
    %v692 = vpack.c.b16 %v516, %v512
    %v693 = vpack.c.b16 %v517, %v513
    %v694 = vpack.c.b16 %v522, %v518
    %v695 = vpack.c.b16 %v523, %v519
    %v696 = vpack.c.b16 %v524, %v520
    %v697 = vpack.c.b16 %v525, %v521
    %v698 = vpack.c.b16 %v530, %v526
    %v699 = vpack.c.b16 %v531, %v527
    %v700 = vpack.c.b16 %v532, %v528
    %v701 = vpack.c.b16 %v533, %v529
    %v702 = vpack.c.b16 %v538, %v534
    %v703 = vpack.c.b16 %v539, %v535
    %v704 = vpack.c.b16 %v540, %v536
    %v705 = vpack.c.b16 %v541, %v537
    %v706 = vpack.c.b16 %v546, %v542
    %v707 = vpack.c.b16 %v547, %v543
    %v708 = vpack.c.b16 %v548, %v544
    %v709 = vpack.c.b16 %v549, %v545
    %v710 = vpack.c.b16 %v554, %v550
    %v711 = vpack.c.b16 %v555, %v551
    %v712 = vpack.c.b16 %v556, %v552
    %v713 = vpack.c.b16 %v557, %v553
    %v714 = vpack.c.b16 %v562, %v558
    %v715 = vpack.c.b16 %v563, %v559
    %v716 = vpack.c.b16 %v564, %v560
    %v717 = vpack.c.b16 %v565, %v561
    %v718 = vpack.c.b16 %v570, %v566
    %v719 = vpack.c.b16 %v571, %v567
    %v720 = vpack.c.b16 %v572, %v568
    %v721 = vpack.c.b16 %v573, %v569
    %v722 = vpack.c.b16 %v578, %v574
    %v723 = vpack.c.b16 %v579, %v575
    %v724 = vpack.c.b16 %v580, %v576
    %v725 = vpack.c.b16 %v581, %v577
    %v726 = vpack.c.b16 %v586, %v582
    %v727 = vpack.c.b16 %v587, %v583
    %v728 = vpack.c.b16 %v588, %v584
    %v729 = vpack.c.b16 %v589, %v585
    %v730 = vpack.c.b16 %v594, %v590
    %v731 = vpack.c.b16 %v595, %v591
    %v732 = vpack.c.b16 %v596, %v592
    %v733 = vpack.c.b16 %v597, %v593
    %v734 = vpack.c.b16 %v602, %v598
    %v735 = vpack.c.b16 %v603, %v599
    %v736 = vpack.c.b16 %v604, %v600
    %v737 = vpack.c.b16 %v605, %v601
    %v738 = vpack.c.b16 %v610, %v606
    %v739 = vpack.c.b16 %v611, %v607
    %v740 = vpack.c.b16 %v612, %v608
    %v741 = vpack.c.b16 %v613, %v609
    %870 = vmatpush.bf16.msra.mxu0 %v642
    %871 = vmatpush.bf16.msra.mxu0 %v638
    %872 = vmatpush.bf16.msra.mxu0 %v634
    %873 = vmatpush.bf16.msra.mxu0 %v630
    %874 = vmatpush.bf16.msra.mxu0 %v626
    %875 = vmatpush.bf16.msra.mxu0 %v622
    %876 = vmatpush.bf16.msra.mxu0 %v618
    %877 = vmatpush.bf16.msra.mxu0 %v614
    %878 = vmatmul.bf16.gmra.mxu0 %v88
    %v879 = vpop.f32.mrf.mxu0
    %v880 = vadd.f32 %v222, %v879
    %v881 = vpop.f32.mrf.mxu0
    %v882 = vadd.f32 %v222, %v881
    %883 = vdwg.mxu0
    %884 = vmatpush.bf16.msra.mxu0 %v674
    %885 = vmatpush.bf16.msra.mxu0 %v670
    %886 = vmatpush.bf16.msra.mxu0 %v666
    %887 = vmatpush.bf16.msra.mxu0 %v662
    %888 = vmatpush.bf16.msra.mxu0 %v658
    %889 = vmatpush.bf16.msra.mxu0 %v654
    %890 = vmatpush.bf16.msra.mxu0 %v650
    %891 = vmatpush.bf16.msra.mxu0 %v646
    %892 = vmatmul.bf16.gmra.mxu0 %v89
    %v893 = vpop.f32.mrf.mxu0
    %v894 = vadd.f32 %v880, %v893
    %v895 = vpop.f32.mrf.mxu0
    %v896 = vadd.f32 %v882, %v895
    %897 = vdwg.mxu0
    %898 = vmatpush.bf16.msra.mxu0 %v706
    %899 = vmatpush.bf16.msra.mxu0 %v702
    %900 = vmatpush.bf16.msra.mxu0 %v698
    %901 = vmatpush.bf16.msra.mxu0 %v694
    %902 = vmatpush.bf16.msra.mxu0 %v690
    %903 = vmatpush.bf16.msra.mxu0 %v686
    %904 = vmatpush.bf16.msra.mxu0 %v682
    %905 = vmatpush.bf16.msra.mxu0 %v678
    %906 = vmatmul.bf16.gmra.mxu0 %v90
    %v907 = vpop.f32.mrf.mxu0
    %v908 = vadd.f32 %v894, %v907
    %v909 = vpop.f32.mrf.mxu0
    %v910 = vadd.f32 %v896, %v909
    %911 = vdwg.mxu0
    %912 = vmatpush.bf16.msra.mxu0 %v738
    %913 = vmatpush.bf16.msra.mxu0 %v734
    %914 = vmatpush.bf16.msra.mxu0 %v730
    %915 = vmatpush.bf16.msra.mxu0 %v726
    %916 = vmatpush.bf16.msra.mxu0 %v722
    %917 = vmatpush.bf16.msra.mxu0 %v718
    %918 = vmatpush.bf16.msra.mxu0 %v714
    %919 = vmatpush.bf16.msra.mxu0 %v710
    %920 = vmatmul.bf16.gmra.mxu0 %v91
    %v921 = vpop.f32.mrf.mxu0
    %v922 = vadd.f32 %v908, %v921
    %v923 = vpop.f32.mrf.mxu0
    %v924 = vadd.f32 %v910, %v923
    %925 = vdwg.mxu0
    %926 = vmatpush.bf16.msra.mxu0 %v643
    %927 = vmatpush.bf16.msra.mxu0 %v639
    %928 = vmatpush.bf16.msra.mxu0 %v635
    %929 = vmatpush.bf16.msra.mxu0 %v631
    %930 = vmatpush.bf16.msra.mxu0 %v627
    %931 = vmatpush.bf16.msra.mxu0 %v623
    %932 = vmatpush.bf16.msra.mxu0 %v619
    %933 = vmatpush.bf16.msra.mxu0 %v615
    %934 = vmatmul.bf16.gmra.mxu0 %v88
    %v935 = vpop.f32.mrf.mxu0
    %v936 = vadd.f32 %v223, %v935
    %v937 = vpop.f32.mrf.mxu0
    %v938 = vadd.f32 %v223, %v937
    %939 = vdwg.mxu0
    %940 = vmatpush.bf16.msra.mxu0 %v675
    %941 = vmatpush.bf16.msra.mxu0 %v671
    %942 = vmatpush.bf16.msra.mxu0 %v667
    %943 = vmatpush.bf16.msra.mxu0 %v663
    %944 = vmatpush.bf16.msra.mxu0 %v659
    %945 = vmatpush.bf16.msra.mxu0 %v655
    %946 = vmatpush.bf16.msra.mxu0 %v651
    %947 = vmatpush.bf16.msra.mxu0 %v647
    %948 = vmatmul.bf16.gmra.mxu0 %v89
    %v949 = vpop.f32.mrf.mxu0
    %v950 = vadd.f32 %v936, %v949
    %v951 = vpop.f32.mrf.mxu0
    %v952 = vadd.f32 %v938, %v951
    %953 = vdwg.mxu0
    %954 = vmatpush.bf16.msra.mxu0 %v707
    %955 = vmatpush.bf16.msra.mxu0 %v703
    %956 = vmatpush.bf16.msra.mxu0 %v699
    %957 = vmatpush.bf16.msra.mxu0 %v695
    %958 = vmatpush.bf16.msra.mxu0 %v691
    %959 = vmatpush.bf16.msra.mxu0 %v687
    %960 = vmatpush.bf16.msra.mxu0 %v683
    %961 = vmatpush.bf16.msra.mxu0 %v679
    %962 = vmatmul.bf16.gmra.mxu0 %v90
    %v963 = vpop.f32.mrf.mxu0
    %v964 = vadd.f32 %v950, %v963
    %v965 = vpop.f32.mrf.mxu0
    %v966 = vadd.f32 %v952, %v965
    %967 = vdwg.mxu0
    %968 = vmatpush.bf16.msra.mxu0 %v739
    %969 = vmatpush.bf16.msra.mxu0 %v735
    %970 = vmatpush.bf16.msra.mxu0 %v731
    %971 = vmatpush.bf16.msra.mxu0 %v727
    %972 = vmatpush.bf16.msra.mxu0 %v723
    %973 = vmatpush.bf16.msra.mxu0 %v719
    %974 = vmatpush.bf16.msra.mxu0 %v715
    %975 = vmatpush.bf16.msra.mxu0 %v711
    %976 = vmatmul.bf16.gmra.mxu0 %v91
    %v977 = vpop.f32.mrf.mxu0
    %v978 = vadd.f32 %v964, %v977
    %v979 = vpop.f32.mrf.mxu0
    %v980 = vadd.f32 %v966, %v979
    %981 = vdwg.mxu0
    %982 = vmatpush.bf16.msra.mxu0 %v644
    %983 = vmatpush.bf16.msra.mxu0 %v640
    %984 = vmatpush.bf16.msra.mxu0 %v636
    %985 = vmatpush.bf16.msra.mxu0 %v632
    %986 = vmatpush.bf16.msra.mxu0 %v628
    %987 = vmatpush.bf16.msra.mxu0 %v624
    %988 = vmatpush.bf16.msra.mxu0 %v620
    %989 = vmatpush.bf16.msra.mxu0 %v616
    %990 = vmatmul.bf16.gmra.mxu0 %v88
    %v991 = vpop.f32.mrf.mxu0
    %v992 = vadd.f32 %v224, %v991
    %v993 = vpop.f32.mrf.mxu0
    %v994 = vadd.f32 %v224, %v993
    %995 = vdwg.mxu0
    %996 = vmatpush.bf16.msra.mxu0 %v676
    %997 = vmatpush.bf16.msra.mxu0 %v672
    %998 = vmatpush.bf16.msra.mxu0 %v668
    %999 = vmatpush.bf16.msra.mxu0 %v664
    %1000 = vmatpush.bf16.msra.mxu0 %v660
    %1001 = vmatpush.bf16.msra.mxu0 %v656
    %1002 = vmatpush.bf16.msra.mxu0 %v652
    %1003 = vmatpush.bf16.msra.mxu0 %v648
    %1004 = vmatmul.bf16.gmra.mxu0 %v89
    %v1005 = vpop.f32.mrf.mxu0
    %v1006 = vadd.f32 %v992, %v1005
    %v1007 = vpop.f32.mrf.mxu0
    %v1008 = vadd.f32 %v994, %v1007
    %1009 = vdwg.mxu0
    %1010 = vmatpush.bf16.msra.mxu0 %v708
    %1011 = vmatpush.bf16.msra.mxu0 %v704
    %1012 = vmatpush.bf16.msra.mxu0 %v700
    %1013 = vmatpush.bf16.msra.mxu0 %v696
    %1014 = vmatpush.bf16.msra.mxu0 %v692
    %1015 = vmatpush.bf16.msra.mxu0 %v688
    %1016 = vmatpush.bf16.msra.mxu0 %v684
    %1017 = vmatpush.bf16.msra.mxu0 %v680
    %1018 = vmatmul.bf16.gmra.mxu0 %v90
    %v1019 = vpop.f32.mrf.mxu0
    %v1020 = vadd.f32 %v1006, %v1019
    %v1021 = vpop.f32.mrf.mxu0
    %v1022 = vadd.f32 %v1008, %v1021
    %1023 = vdwg.mxu0
    %1024 = vmatpush.bf16.msra.mxu0 %v740
    %1025 = vmatpush.bf16.msra.mxu0 %v736
    %1026 = vmatpush.bf16.msra.mxu0 %v732
    %1027 = vmatpush.bf16.msra.mxu0 %v728
    %1028 = vmatpush.bf16.msra.mxu0 %v724
    %1029 = vmatpush.bf16.msra.mxu0 %v720
    %1030 = vmatpush.bf16.msra.mxu0 %v716
    %1031 = vmatpush.bf16.msra.mxu0 %v712
    %1032 = vmatmul.bf16.gmra.mxu0 %v91
    %v1033 = vpop.f32.mrf.mxu0
    %v1034 = vadd.f32 %v1020, %v1033
    %v1035 = vpop.f32.mrf.mxu0
    %v1036 = vadd.f32 %v1022, %v1035
    %1037 = vdwg.mxu0
    %1038 = vmatpush.bf16.msra.mxu0 %v645
    %1039 = vmatpush.bf16.msra.mxu0 %v641
    %1040 = vmatpush.bf16.msra.mxu0 %v637
    %1041 = vmatpush.bf16.msra.mxu0 %v633
    %1042 = vmatpush.bf16.msra.mxu0 %v629
    %1043 = vmatpush.bf16.msra.mxu0 %v625
    %1044 = vmatpush.bf16.msra.mxu0 %v621
    %1045 = vmatpush.bf16.msra.mxu0 %v617
    %1046 = vmatmul.bf16.gmra.mxu0 %v88
    %v1047 = vpop.f32.mrf.mxu0
    %v1048 = vadd.f32 %v225, %v1047
    %v1049 = vpop.f32.mrf.mxu0
    %v1050 = vadd.f32 %v225, %v1049
    %1051 = vdwg.mxu0
    %1052 = vmatpush.bf16.msra.mxu0 %v677
    %1053 = vmatpush.bf16.msra.mxu0 %v673
    %1054 = vmatpush.bf16.msra.mxu0 %v669
    %1055 = vmatpush.bf16.msra.mxu0 %v665
    %1056 = vmatpush.bf16.msra.mxu0 %v661
    %1057 = vmatpush.bf16.msra.mxu0 %v657
    %1058 = vmatpush.bf16.msra.mxu0 %v653
    %1059 = vmatpush.bf16.msra.mxu0 %v649
    %1060 = vmatmul.bf16.gmra.mxu0 %v89
    %v1061 = vpop.f32.mrf.mxu0
    %v1062 = vadd.f32 %v1048, %v1061
    %v1063 = vpop.f32.mrf.mxu0
    %v1064 = vadd.f32 %v1050, %v1063
    %1065 = vdwg.mxu0
    %1066 = vmatpush.bf16.msra.mxu0 %v709
    %1067 = vmatpush.bf16.msra.mxu0 %v705
    %1068 = vmatpush.bf16.msra.mxu0 %v701
    %1069 = vmatpush.bf16.msra.mxu0 %v697
    %1070 = vmatpush.bf16.msra.mxu0 %v693
    %1071 = vmatpush.bf16.msra.mxu0 %v689
    %1072 = vmatpush.bf16.msra.mxu0 %v685
    %1073 = vmatpush.bf16.msra.mxu0 %v681
    %1074 = vmatmul.bf16.gmra.mxu0 %v90
    %v1075 = vpop.f32.mrf.mxu0
    %v1076 = vadd.f32 %v1062, %v1075
    %v1077 = vpop.f32.mrf.mxu0
    %v1078 = vadd.f32 %v1064, %v1077
    %1079 = vdwg.mxu0
    %1080 = vmatpush.bf16.msra.mxu0 %v741
    %1081 = vmatpush.bf16.msra.mxu0 %v737
    %1082 = vmatpush.bf16.msra.mxu0 %v733
    %1083 = vmatpush.bf16.msra.mxu0 %v729
    %1084 = vmatpush.bf16.msra.mxu0 %v725
    %1085 = vmatpush.bf16.msra.mxu0 %v721
    %1086 = vmatpush.bf16.msra.mxu0 %v717
    %1087 = vmatpush.bf16.msra.mxu0 %v713
    %1088 = vmatmul.bf16.gmra.mxu0 %v91
    %v1089 = vpop.f32.mrf.mxu0
    %v1090 = vadd.f32 %v1076, %v1089
    %v1091 = vpop.f32.mrf.mxu0
    %v1092 = vadd.f32 %v1078, %v1091
    %1093 = vdwg.mxu0
    %v1094 = vld [vmem:[%s3] sm:$0xff]
    %v1095 = vld [vmem:[%s3 + $0x8] sm:$0xff]
    %v1096 = vld [vmem:[%s3 + $0x10] sm:$0xff]
    %v1097 = vld [vmem:[%s3 + $0x18] sm:$0xff]
    %v1098 = vld [vmem:[%s3 + $0x20] sm:$0xff]
    %v1099 = vld [vmem:[%s3 + $0x28] sm:$0xff]
    %v1100 = vld [vmem:[%s3 + $0x30] sm:$0xff]
    %v1101 = vld [vmem:[%s3 + $0x38] sm:$0xff]
    %v1102 = vadd.f32 %v922, %v1094
    %v1103 = vadd.f32 %v978, %v1095
    %v1104 = vadd.f32 %v1034, %v1096
    %v1105 = vadd.f32 %v1090, %v1097
    %v1106 = vadd.f32 %v924, %v1098
    %v1107 = vadd.f32 %v980, %v1099
    %v1108 = vadd.f32 %v1036, %v1100
    %v1109 = vadd.f32 %v1092, %v1101
    %v1110 = vld [vmem:[#allocation6] sm:$0xf]
    %v1111 = vld [vmem:[#allocation7] sm:$0xf]
    %v1112 = vadd.f32 %v1102, %v1103
    %v1113 = vadd.f32 %v1112, %v1104
    %v1114 = vadd.f32 %v1113, %v1105
    %1115 = vadd.xlane.f32.xlu0 %v1114
    %v1116 = vpop.xlane.xlu0 %1115
    %v1117 = vadd.f32 %v1106, %v1107
    %v1118 = vadd.f32 %v1117, %v1108
    %v1119 = vadd.f32 %v1118, %v1109
    %1120 = vadd.xlane.f32.xlu0 %v1119
    %v1121 = vpop.xlane.xlu0 %1120
    %v1122 = vrcp.pop 512.0
    %v1123 = vmul.f32 512.0, %v1122
    %v1124 = vsub.f32 1.0, %v1123
    %v1125 = vmul.f32 %v1122, %v1124
    %v1126 = vadd.f32 %v1122, %v1125
    %vm1127 = vweird.f32 %v1122
    %v1128 = vsel %vm1127, %v1122, %v1126
    %v1129 = vmul.f32 %v1116, %v1128
    %v1130 = vmul.f32 %v1121, %v1128
    %v1131 = vsub.f32 %v1102, %v1129
    %v1132 = vsub.f32 %v1103, %v1129
    %v1133 = vsub.f32 %v1104, %v1129
    %v1134 = vsub.f32 %v1105, %v1129
    %v1135 = vsub.f32 %v1106, %v1130
    %v1136 = vsub.f32 %v1107, %v1130
    %v1137 = vsub.f32 %v1108, %v1130
    %v1138 = vsub.f32 %v1109, %v1130
    %v1139 = vmul.f32 %v1131, %v1131
    %v1140 = vmul.f32 %v1132, %v1132
    %v1141 = vmul.f32 %v1133, %v1133
    %v1142 = vmul.f32 %v1134, %v1134
    %v1143 = vmul.f32 %v1135, %v1135
    %v1144 = vmul.f32 %v1136, %v1136
    %v1145 = vmul.f32 %v1137, %v1137
    %v1146 = vmul.f32 %v1138, %v1138
    %v1147 = vadd.f32 %v1139, %v1140
    %v1148 = vadd.f32 %v1147, %v1141
    %v1149 = vadd.f32 %v1148, %v1142
    %1150 = vadd.xlane.f32.xlu0 %v1149
    %v1151 = vpop.xlane.xlu0 %1150
    %v1152 = vadd.f32 %v1143, %v1144
    %v1153 = vadd.f32 %v1152, %v1145
    %v1154 = vadd.f32 %v1153, %v1146
    %1155 = vadd.xlane.f32.xlu0 %v1154
    %v1156 = vpop.xlane.xlu0 %1155
    %v1157 = vmul.f32 %v1151, %v1128
    %v1158 = vmul.f32 %v1156, %v1128
    %v1159 = vadd.f32 %v1157, 1e-05
    %v1160 = vadd.f32 %v1158, 1e-05
    %v1161 = vrsqrt.pop %v1159
    %v1162 = vmul.f32 %v1161, %v1159
    %v1163 = vmul.f32 %v1162, %v1161
    %v1164 = vmul.f32 0.5, %v1163
    %v1165 = vsub.f32 1.5, %v1164
    %v1166 = vmul.f32 %v1161, %v1165
    %vm1167 = vweird.f32 %v1159
    %vm1168 = vweird.f32 %v1161
    %vm1169 = vmor %vm1167, %vm1168
    %v1170 = vsel %vm1169, %v1161, %v1166
    %v1171 = vrsqrt.pop %v1160
    %v1172 = vmul.f32 %v1171, %v1160
    %v1173 = vmul.f32 %v1172, %v1171
    %v1174 = vmul.f32 0.5, %v1173
    %v1175 = vsub.f32 1.5, %v1174
    %v1176 = vmul.f32 %v1171, %v1175
    %vm1177 = vweird.f32 %v1160
    %vm1178 = vweird.f32 %v1171
    %vm1179 = vmor %vm1177, %vm1178
    %v1180 = vsel %vm1179, %v1171, %v1176
    %v1181 = vmul.f32 %v1131, %v1170
    %v1182 = vmul.f32 %v1132, %v1170
    %v1183 = vmul.f32 %v1133, %v1170
    %v1184 = vmul.f32 %v1134, %v1170
    %v1185 = vmul.f32 %v1135, %v1180
    %v1186 = vmul.f32 %v1136, %v1180
    %v1187 = vmul.f32 %v1137, %v1180
    %v1188 = vmul.f32 %v1138, %v1180
    %v1190 = vperm.slane %v1110, 0
    %v1191 = vperm.slane %v1110, 1
    %v1192 = vperm.slane %v1110, 2
    %v1193 = vperm.slane %v1110, 3
    %v1198 = vmul.f32 %v1181, %v1190
    %v1199 = vmul.f32 %v1182, %v1191
    %v1200 = vmul.f32 %v1183, %v1192
    %v1201 = vmul.f32 %v1184, %v1193
    %v1202 = vmul.f32 %v1185, %v1190
    %v1203 = vmul.f32 %v1186, %v1191
    %v1204 = vmul.f32 %v1187, %v1192
    %v1205 = vmul.f32 %v1188, %v1193
    %v1207 = vperm.slane %v1111, 0
    %v1208 = vperm.slane %v1111, 1
    %v1209 = vperm.slane %v1111, 2
    %v1210 = vperm.slane %v1111, 3
    %v1215 = vadd.f32 %v1198, %v1207
    %v1216 = vadd.f32 %v1199, %v1208
    %v1217 = vadd.f32 %v1200, %v1209
    %v1218 = vadd.f32 %v1201, %v1210
    %v1219 = vadd.f32 %v1202, %v1207
    %v1220 = vadd.f32 %v1203, %v1208
    %v1221 = vadd.f32 %v1204, %v1209
    %v1222 = vadd.f32 %v1205, %v1210
    %1223 = vst [vmem:[%s6] sm:$0xff] %v1215
    %1224 = vst [vmem:[%s6 + $0x8] sm:$0xff] %v1216
    %1225 = vst [vmem:[%s6 + $0x10] sm:$0xff] %v1217
    %1226 = vst [vmem:[%s6 + $0x18] sm:$0xff] %v1218
    %1227 = vst [vmem:[%s6 + $0x20] sm:$0xff] %v1219
    %1228 = vst [vmem:[%s6 + $0x28] sm:$0xff] %v1220
    %1229 = vst [vmem:[%s6 + $0x30] sm:$0xff] %v1221
    %1230 = vst [vmem:[%s6 + $0x38] sm:$0xff] %v1222
    // Predicated region
    $region42: #{encoder_forward.26} parent=1 // pred_check
      _
    $region43: #{encoder_forward.26} parent=1 // pred_check_branch
      %1232 = sbr.rel (0) target = $region45
    $region44: #{encoder_forward.26} parent=1 // pred_region
      _
    $region45: #{encoder_forward.26} parent=1 // pred_fallthru
      _
    // Predicated region
    $region46: #{encoder_forward.26} parent=1 // pred_check
      _
    $region47: #{encoder_forward.26} parent=1 // pred_check_branch
      %1234 = sbr.rel (0) target = $region49
    $region48: #{encoder_forward.26} parent=1 // pred_region
      _
    $region49: #{encoder_forward.26} parent=1 // pred_fallthru
      _
    %1235 = vsyncpa [#allocation3], 1
    %1236 = vsyncpa [#allocation5], 1
    %1237 = vsyncpa [#allocation8], 1

// kernel: encoder_forward.24
$region0: #{encoder_forward.24}
  #allocation0 [shape = 'u32[]', space=smem, size = 0x4, offset = 0x4, fixed_abs, tag = 'smem constant byte address 0x4 - core index']
  #allocation1 [shape = 'u32[72,128]{1,0:T(1,128)}', space=vmem, size = 0x9000, scoped, tag = 'internal scratch']
  %s0 = inlined_call_operand.vmem [shape: f32[16,512], index: 0, kind: input, shape index: {}]
  %s1 = inlined_call_operand.hbm [shape: bf16[512,1536], index: 1, kind: input, shape index: {}]
  %s2 = inlined_call_operand.vmem [shape: f32[1,1536], index: 2, kind: input, shape index: {}]
  %s3 = inlined_call_operand.vmem [shape: f32[16,1536], index: 3, kind: output, shape index: {}]
  %s4 = sld [smem:[#allocation0]]
  $region26: #{encoder_forward.24} parent=0
    _
  %s6 = ssub.s32 1, %s4
  %s7 = scalar_select 0, %s6, %s4
  $region1: #{encoder_forward.24} parent=0
    #allocation2 [shape = 'u8[1572864]{0}', space=vmem, size = 0x180000, scoped, tag = 'input window, operand 1, single buffered']
    #allocation3 [shape = 's32[1]{0}', space=sflag, size = 0x4, scoped, tag = 'scoped memory for encoder_forward.24']
    %8 = vsyncpa [#allocation3], 0
    // Predicated region
    $region2: #{encoder_forward.24} parent=1 // pred_check
      _
    $region3: #{encoder_forward.24} parent=1 // pred_check_branch
      %10 = sbr.rel (0) target = $region5
    $region4: #{encoder_forward.24} parent=1 // pred_region
      _
    $region5: #{encoder_forward.24} parent=1 // pred_fallthru
      _
    // Predicated region
    $region6: #{encoder_forward.24} parent=1 // pred_check
      _
    $region7: #{encoder_forward.24} parent=1 // pred_check_branch
      %12 = sbr.rel (0) target = $region9
    $region8: #{encoder_forward.24} parent=1 // pred_region
      %14 = vsyncadd [#allocation3], 0
      %s15 = sshll.u32 %s1, 4
      %s16 = int_to_ptr.hbm [resolvable:$true] %s15
      %s17 = sshll.u32 [#allocation2], 4
      %s18 = int_to_ptr.vmem [resolvable:$true] %s17
      %23 = dma.hbm_to_vmem [thread:$0]  %s16, 49152, %s18, [#allocation3], 768, 768, 48
    $region9: #{encoder_forward.24} parent=1 // pred_fallthru
      _
    // Predicated region
    $region10: #{encoder_forward.24} parent=1 // pred_check
      _
    $region11: #{encoder_forward.24} parent=1 // pred_check_branch
      %25 = sbr.rel (0) target = $region13
    $region12: #{encoder_forward.24} parent=1 // pred_region
      _
    $region13: #{encoder_forward.24} parent=1 // pred_fallthru
      _
    // Predicated region
    $region14: #{encoder_forward.24} parent=1 // pred_check
      _
    $region15: #{encoder_forward.24} parent=1 // pred_check_branch
      %27 = sbr.rel (0) target = $region17
    $region16: #{encoder_forward.24} parent=1 // pred_region
      %29 = dma.done [#allocation3], 49152
    $region17: #{encoder_forward.24} parent=1 // pred_fallthru
      _
    %v30 = vld [vmem:[%s0] sm:$0xff]
    %v31 = vld [vmem:[%s0 + $0x8] sm:$0xff]
    %v32 = vld [vmem:[%s0 + $0x10] sm:$0xff]
    %v33 = vld [vmem:[%s0 + $0x18] sm:$0xff]
    %v34 = vld [vmem:[%s0 + $0x20] sm:$0xff]
    %v35 = vld [vmem:[%s0 + $0x28] sm:$0xff]
    %v36 = vld [vmem:[%s0 + $0x30] sm:$0xff]
    %v37 = vld [vmem:[%s0 + $0x38] sm:$0xff]
    %v38 = vpack.c.bf16 %v34, %v30
    %v39 = vpack.c.bf16 %v35, %v31
    %v40 = vpack.c.bf16 %v36, %v32
    %v41 = vpack.c.bf16 %v37, %v33
    %v42 = vld [vmem:[#allocation2] sm:$0xff]
    %v43 = vld [vmem:[#allocation2 + $0x8] sm:$0xff]
    %v44 = vld [vmem:[#allocation2 + $0x10] sm:$0xff]
    %v45 = vld [vmem:[#allocation2 + $0x18] sm:$0xff]
    %v46 = vld [vmem:[#allocation2 + $0x20] sm:$0xff]
    %v47 = vld [vmem:[#allocation2 + $0x28] sm:$0xff]
    %v48 = vld [vmem:[#allocation2 + $0x30] sm:$0xff]
    %v49 = vld [vmem:[#allocation2 + $0x38] sm:$0xff]
    %v50 = vld [vmem:[#allocation2 + $0x40] sm:$0xff]
    %v51 = vld [vmem:[#allocation2 + $0x48] sm:$0xff]
    %v52 = vld [vmem:[#allocation2 + $0x50] sm:$0xff]
    %v53 = vld [vmem:[#allocation2 + $0x58] sm:$0xff]
    %v54 = vld [vmem:[#allocation2 + $0x60] sm:$0xff]
    %v55 = vld [vmem:[#allocation2 + $0x68] sm:$0xff]
    %v56 = vld [vmem:[#allocation2 + $0x70] sm:$0xff]
    %v57 = vld [vmem:[#allocation2 + $0x78] sm:$0xff]
    %v58 = vld [vmem:[#allocation2 + $0x80] sm:$0xff]
    %v59 = vld [vmem:[#allocation2 + $0x88] sm:$0xff]
    %v60 = vld [vmem:[#allocation2 + $0x90] sm:$0xff]
    %v61 = vld [vmem:[#allocation2 + $0x98] sm:$0xff]
    %v62 = vld [vmem:[#allocation2 + $0xa0] sm:$0xff]
    %v63 = vld [vmem:[#allocation2 + $0xa8] sm:$0xff]
    %v64 = vld [vmem:[#allocation2 + $0xb0] sm:$0xff]
    %v65 = vld [vmem:[#allocation2 + $0xb8] sm:$0xff]
    %v66 = vld [vmem:[#allocation2 + $0xc0] sm:$0xff]
    %v67 = vld [vmem:[#allocation2 + $0xc8] sm:$0xff]
    %v68 = vld [vmem:[#allocation2 + $0xd0] sm:$0xff]
    %v69 = vld [vmem:[#allocation2 + $0xd8] sm:$0xff]
    %v70 = vld [vmem:[#allocation2 + $0xe0] sm:$0xff]
    %v71 = vld [vmem:[#allocation2 + $0xe8] sm:$0xff]
    %v72 = vld [vmem:[#allocation2 + $0xf0] sm:$0xff]
    %v73 = vld [vmem:[#allocation2 + $0xf8] sm:$0xff]
    %v74 = vld [vmem:[#allocation2 + $0x100] sm:$0xff]
    %v75 = vld [vmem:[#allocation2 + $0x108] sm:$0xff]
    %v76 = vld [vmem:[#allocation2 + $0x110] sm:$0xff]
    %v77 = vld [vmem:[#allocation2 + $0x118] sm:$0xff]
    %v78 = vld [vmem:[#allocation2 + $0x120] sm:$0xff]
    %v79 = vld [vmem:[#allocation2 + $0x128] sm:$0xff]
    %v80 = vld [vmem:[#allocation2 + $0x130] sm:$0xff]
    %v81 = vld [vmem:[#allocation2 + $0x138] sm:$0xff]
    %v82 = vld [vmem:[#allocation2 + $0x140] sm:$0xff]
    %v83 = vld [vmem:[#allocation2 + $0x148] sm:$0xff]
    %v84 = vld [vmem:[#allocation2 + $0x150] sm:$0xff]
    %v85 = vld [vmem:[#allocation2 + $0x158] sm:$0xff]
    %v86 = vld [vmem:[#allocation2 + $0x160] sm:$0xff]
    %v87 = vld [vmem:[#allocation2 + $0x168] sm:$0xff]
    %v88 = vld [vmem:[#allocation2 + $0x170] sm:$0xff]
    %v89 = vld [vmem:[#allocation2 + $0x178] sm:$0xff]
    %v90 = vld [vmem:[#allocation2 + $0x180] sm:$0xff]
    %v91 = vld [vmem:[#allocation2 + $0x188] sm:$0xff]
    %v92 = vld [vmem:[#allocation2 + $0x190] sm:$0xff]
    %v93 = vld [vmem:[#allocation2 + $0x198] sm:$0xff]
    %v94 = vld [vmem:[#allocation2 + $0x1a0] sm:$0xff]
    %v95 = vld [vmem:[#allocation2 + $0x1a8] sm:$0xff]
    %v96 = vld [vmem:[#allocation2 + $0x1b0] sm:$0xff]
    %v97 = vld [vmem:[#allocation2 + $0x1b8] sm:$0xff]
    %v98 = vld [vmem:[#allocation2 + $0x1c0] sm:$0xff]
    %v99 = vld [vmem:[#allocation2 + $0x1c8] sm:$0xff]
    %v100 = vld [vmem:[#allocation2 + $0x1d0] sm:$0xff]
    %v101 = vld [vmem:[#allocation2 + $0x1d8] sm:$0xff]
    %v102 = vld [vmem:[#allocation2 + $0x1e0] sm:$0xff]
    %v103 = vld [vmem:[#allocation2 + $0x1e8] sm:$0xff]
    %v104 = vld [vmem:[#allocation2 + $0x1f0] sm:$0xff]
    %v105 = vld [vmem:[#allocation2 + $0x1f8] sm:$0xff]
    %v106 = vld [vmem:[#allocation2 + $0x200] sm:$0xff]
    %v107 = vld [vmem:[#allocation2 + $0x208] sm:$0xff]
    %v108 = vld [vmem:[#allocation2 + $0x210] sm:$0xff]
    %v109 = vld [vmem:[#allocation2 + $0x218] sm:$0xff]
    %v110 = vld [vmem:[#allocation2 + $0x220] sm:$0xff]
    %v111 = vld [vmem:[#allocation2 + $0x228] sm:$0xff]
    %v112 = vld [vmem:[#allocation2 + $0x230] sm:$0xff]
    %v113 = vld [vmem:[#allocation2 + $0x238] sm:$0xff]
    %v114 = vld [vmem:[#allocation2 + $0x240] sm:$0xff]
    %v115 = vld [vmem:[#allocation2 + $0x248] sm:$0xff]
    %v116 = vld [vmem:[#allocation2 + $0x250] sm:$0xff]
    %v117 = vld [vmem:[#allocation2 + $0x258] sm:$0xff]
    %v118 = vld [vmem:[#allocation2 + $0x260] sm:$0xff]
    %v119 = vld [vmem:[#allocation2 + $0x268] sm:$0xff]
    %v120 = vld [vmem:[#allocation2 + $0x270] sm:$0xff]
    %v121 = vld [vmem:[#allocation2 + $0x278] sm:$0xff]
    %v122 = vld [vmem:[#allocation2 + $0x280] sm:$0xff]
    %v123 = vld [vmem:[#allocation2 + $0x288] sm:$0xff]
    %v124 = vld [vmem:[#allocation2 + $0x290] sm:$0xff]
    %v125 = vld [vmem:[#allocation2 + $0x298] sm:$0xff]
    %v126 = vld [vmem:[#allocation2 + $0x2a0] sm:$0xff]
    %v127 = vld [vmem:[#allocation2 + $0x2a8] sm:$0xff]
    %v128 = vld [vmem:[#allocation2 + $0x2b0] sm:$0xff]
    %v129 = vld [vmem:[#allocation2 + $0x2b8] sm:$0xff]
    %v130 = vld [vmem:[#allocation2 + $0x2c0] sm:$0xff]
    %v131 = vld [vmem:[#allocation2 + $0x2c8] sm:$0xff]
    %v132 = vld [vmem:[#allocation2 + $0x2d0] sm:$0xff]
    %v133 = vld [vmem:[#allocation2 + $0x2d8] sm:$0xff]
    %v134 = vld [vmem:[#allocation2 + $0x2e0] sm:$0xff]
    %v135 = vld [vmem:[#allocation2 + $0x2e8] sm:$0xff]
    %v136 = vld [vmem:[#allocation2 + $0x2f0] sm:$0xff]
    %v137 = vld [vmem:[#allocation2 + $0x2f8] sm:$0xff]
    %v138 = vld [vmem:[#allocation2 + $0x300] sm:$0xff]
    %v139 = vld [vmem:[#allocation2 + $0x308] sm:$0xff]
    %v140 = vld [vmem:[#allocation2 + $0x310] sm:$0xff]
    %v141 = vld [vmem:[#allocation2 + $0x318] sm:$0xff]
    %v142 = vld [vmem:[#allocation2 + $0x320] sm:$0xff]
    %v143 = vld [vmem:[#allocation2 + $0x328] sm:$0xff]
    %v144 = vld [vmem:[#allocation2 + $0x330] sm:$0xff]
    %v145 = vld [vmem:[#allocation2 + $0x338] sm:$0xff]
    %v146 = vld [vmem:[#allocation2 + $0x340] sm:$0xff]
    %v147 = vld [vmem:[#allocation2 + $0x348] sm:$0xff]
    %v148 = vld [vmem:[#allocation2 + $0x350] sm:$0xff]
    %v149 = vld [vmem:[#allocation2 + $0x358] sm:$0xff]
    %v150 = vld [vmem:[#allocation2 + $0x360] sm:$0xff]
    %v151 = vld [vmem:[#allocation2 + $0x368] sm:$0xff]
    %v152 = vld [vmem:[#allocation2 + $0x370] sm:$0xff]
    %v153 = vld [vmem:[#allocation2 + $0x378] sm:$0xff]
    %v154 = vld [vmem:[#allocation2 + $0x380] sm:$0xff]
    %v155 = vld [vmem:[#allocation2 + $0x388] sm:$0xff]
    %v156 = vld [vmem:[#allocation2 + $0x390] sm:$0xff]
    %v157 = vld [vmem:[#allocation2 + $0x398] sm:$0xff]
    %v158 = vld [vmem:[#allocation2 + $0x3a0] sm:$0xff]
    %v159 = vld [vmem:[#allocation2 + $0x3a8] sm:$0xff]
    %v160 = vld [vmem:[#allocation2 + $0x3b0] sm:$0xff]
    %v161 = vld [vmem:[#allocation2 + $0x3b8] sm:$0xff]
    %v162 = vld [vmem:[#allocation2 + $0x3c0] sm:$0xff]
    %v163 = vld [vmem:[#allocation2 + $0x3c8] sm:$0xff]
    %v164 = vld [vmem:[#allocation2 + $0x3d0] sm:$0xff]
    %v165 = vld [vmem:[#allocation2 + $0x3d8] sm:$0xff]
    %v166 = vld [vmem:[#allocation2 + $0x3e0] sm:$0xff]
    %v167 = vld [vmem:[#allocation2 + $0x3e8] sm:$0xff]
    %v168 = vld [vmem:[#allocation2 + $0x3f0] sm:$0xff]
    %v169 = vld [vmem:[#allocation2 + $0x3f8] sm:$0xff]
    %v170 = vld [vmem:[#allocation2 + $0x400] sm:$0xff]
    %v171 = vld [vmem:[#allocation2 + $0x408] sm:$0xff]
    %v172 = vld [vmem:[#allocation2 + $0x410] sm:$0xff]
    %v173 = vld [vmem:[#allocation2 + $0x418] sm:$0xff]
    %v174 = vld [vmem:[#allocation2 + $0x420] sm:$0xff]
    %v175 = vld [vmem:[#allocation2 + $0x428] sm:$0xff]
    %v176 = vld [vmem:[#allocation2 + $0x430] sm:$0xff]
    %v177 = vld [vmem:[#allocation2 + $0x438] sm:$0xff]
    %v178 = vld [vmem:[#allocation2 + $0x440] sm:$0xff]
    %v179 = vld [vmem:[#allocation2 + $0x448] sm:$0xff]
    %v180 = vld [vmem:[#allocation2 + $0x450] sm:$0xff]
    %v181 = vld [vmem:[#allocation2 + $0x458] sm:$0xff]
    %v182 = vld [vmem:[#allocation2 + $0x460] sm:$0xff]
    %v183 = vld [vmem:[#allocation2 + $0x468] sm:$0xff]
    %v184 = vld [vmem:[#allocation2 + $0x470] sm:$0xff]
    %v185 = vld [vmem:[#allocation2 + $0x478] sm:$0xff]
    %v186 = vld [vmem:[#allocation2 + $0x480] sm:$0xff]
    %v187 = vld [vmem:[#allocation2 + $0x488] sm:$0xff]
    %v188 = vld [vmem:[#allocation2 + $0x490] sm:$0xff]
    %v189 = vld [vmem:[#allocation2 + $0x498] sm:$0xff]
    %v190 = vld [vmem:[#allocation2 + $0x4a0] sm:$0xff]
    %v191 = vld [vmem:[#allocation2 + $0x4a8] sm:$0xff]
    %v192 = vld [vmem:[#allocation2 + $0x4b0] sm:$0xff]
    %v193 = vld [vmem:[#allocation2 + $0x4b8] sm:$0xff]
    %v194 = vld [vmem:[#allocation2 + $0x4c0] sm:$0xff]
    %v195 = vld [vmem:[#allocation2 + $0x4c8] sm:$0xff]
    %v196 = vld [vmem:[#allocation2 + $0x4d0] sm:$0xff]
    %v197 = vld [vmem:[#allocation2 + $0x4d8] sm:$0xff]
    %v198 = vld [vmem:[#allocation2 + $0x4e0] sm:$0xff]
    %v199 = vld [vmem:[#allocation2 + $0x4e8] sm:$0xff]
    %v200 = vld [vmem:[#allocation2 + $0x4f0] sm:$0xff]
    %v201 = vld [vmem:[#allocation2 + $0x4f8] sm:$0xff]
    %v202 = vld [vmem:[#allocation2 + $0x500] sm:$0xff]
    %v203 = vld [vmem:[#allocation2 + $0x508] sm:$0xff]
    %v204 = vld [vmem:[#allocation2 + $0x510] sm:$0xff]
    %v205 = vld [vmem:[#allocation2 + $0x518] sm:$0xff]
    %v206 = vld [vmem:[#allocation2 + $0x520] sm:$0xff]
    %v207 = vld [vmem:[#allocation2 + $0x528] sm:$0xff]
    %v208 = vld [vmem:[#allocation2 + $0x530] sm:$0xff]
    %v209 = vld [vmem:[#allocation2 + $0x538] sm:$0xff]
    %v210 = vld [vmem:[#allocation2 + $0x540] sm:$0xff]
    %v211 = vld [vmem:[#allocation2 + $0x548] sm:$0xff]
    %v212 = vld [vmem:[#allocation2 + $0x550] sm:$0xff]
    %v213 = vld [vmem:[#allocation2 + $0x558] sm:$0xff]
    %v214 = vld [vmem:[#allocation2 + $0x560] sm:$0xff]
    %v215 = vld [vmem:[#allocation2 + $0x568] sm:$0xff]
    %v216 = vld [vmem:[#allocation2 + $0x570] sm:$0xff]
    %v217 = vld [vmem:[#allocation2 + $0x578] sm:$0xff]
    %v218 = vld [vmem:[#allocation2 + $0x580] sm:$0xff]
    %v219 = vld [vmem:[#allocation2 + $0x588] sm:$0xff]
    %v220 = vld [vmem:[#allocation2 + $0x590] sm:$0xff]
    %v221 = vld [vmem:[#allocation2 + $0x598] sm:$0xff]
    %v222 = vld [vmem:[#allocation2 + $0x5a0] sm:$0xff]
    %v223 = vld [vmem:[#allocation2 + $0x5a8] sm:$0xff]
    %v224 = vld [vmem:[#allocation2 + $0x5b0] sm:$0xff]
    %v225 = vld [vmem:[#allocation2 + $0x5b8] sm:$0xff]
    %v226 = vld [vmem:[#allocation2 + $0x5c0] sm:$0xff]
    %v227 = vld [vmem:[#allocation2 + $0x5c8] sm:$0xff]
    %v228 = vld [vmem:[#allocation2 + $0x5d0] sm:$0xff]
    %v229 = vld [vmem:[#allocation2 + $0x5d8] sm:$0xff]
    %v230 = vld [vmem:[#allocation2 + $0x5e0] sm:$0xff]
    %v231 = vld [vmem:[#allocation2 + $0x5e8] sm:$0xff]
    %v232 = vld [vmem:[#allocation2 + $0x5f0] sm:$0xff]
    %v233 = vld [vmem:[#allocation2 + $0x5f8] sm:$0xff]
    %v234 = vld [vmem:[#allocation2 + $0x600] sm:$0xff]
    %v235 = vld [vmem:[#allocation2 + $0x608] sm:$0xff]
    %v236 = vld [vmem:[#allocation2 + $0x610] sm:$0xff]
    %v237 = vld [vmem:[#allocation2 + $0x618] sm:$0xff]
    %v238 = vld [vmem:[#allocation2 + $0x620] sm:$0xff]
    %v239 = vld [vmem:[#allocation2 + $0x628] sm:$0xff]
    %v240 = vld [vmem:[#allocation2 + $0x630] sm:$0xff]
    %v241 = vld [vmem:[#allocation2 + $0x638] sm:$0xff]
    %v242 = vld [vmem:[#allocation2 + $0x640] sm:$0xff]
    %v243 = vld [vmem:[#allocation2 + $0x648] sm:$0xff]
    %v244 = vld [vmem:[#allocation2 + $0x650] sm:$0xff]
    %v245 = vld [vmem:[#allocation2 + $0x658] sm:$0xff]
    %v246 = vld [vmem:[#allocation2 + $0x660] sm:$0xff]
    %v247 = vld [vmem:[#allocation2 + $0x668] sm:$0xff]
    %v248 = vld [vmem:[#allocation2 + $0x670] sm:$0xff]
    %v249 = vld [vmem:[#allocation2 + $0x678] sm:$0xff]
    %v250 = vld [vmem:[#allocation2 + $0x680] sm:$0xff]
    %v251 = vld [vmem:[#allocation2 + $0x688] sm:$0xff]
    %v252 = vld [vmem:[#allocation2 + $0x690] sm:$0xff]
    %v253 = vld [vmem:[#allocation2 + $0x698] sm:$0xff]
    %v254 = vld [vmem:[#allocation2 + $0x6a0] sm:$0xff]
    %v255 = vld [vmem:[#allocation2 + $0x6a8] sm:$0xff]
    %v256 = vld [vmem:[#allocation2 + $0x6b0] sm:$0xff]
    %v257 = vld [vmem:[#allocation2 + $0x6b8] sm:$0xff]
    %v258 = vld [vmem:[#allocation2 + $0x6c0] sm:$0xff]
    %v259 = vld [vmem:[#allocation2 + $0x6c8] sm:$0xff]
    %v260 = vld [vmem:[#allocation2 + $0x6d0] sm:$0xff]
    %v261 = vld [vmem:[#allocation2 + $0x6d8] sm:$0xff]
    %v262 = vld [vmem:[#allocation2 + $0x6e0] sm:$0xff]
    %v263 = vld [vmem:[#allocation2 + $0x6e8] sm:$0xff]
    %v264 = vld [vmem:[#allocation2 + $0x6f0] sm:$0xff]
    %v265 = vld [vmem:[#allocation2 + $0x6f8] sm:$0xff]
    %v266 = vld [vmem:[#allocation2 + $0x700] sm:$0xff]
    %v267 = vld [vmem:[#allocation2 + $0x708] sm:$0xff]
    %v268 = vld [vmem:[#allocation2 + $0x710] sm:$0xff]
    %v269 = vld [vmem:[#allocation2 + $0x718] sm:$0xff]
    %v270 = vld [vmem:[#allocation2 + $0x720] sm:$0xff]
    %v271 = vld [vmem:[#allocation2 + $0x728] sm:$0xff]
    %v272 = vld [vmem:[#allocation2 + $0x730] sm:$0xff]
    %v273 = vld [vmem:[#allocation2 + $0x738] sm:$0xff]
    %v274 = vld [vmem:[#allocation2 + $0x740] sm:$0xff]
    %v275 = vld [vmem:[#allocation2 + $0x748] sm:$0xff]
    %v276 = vld [vmem:[#allocation2 + $0x750] sm:$0xff]
    %v277 = vld [vmem:[#allocation2 + $0x758] sm:$0xff]
    %v278 = vld [vmem:[#allocation2 + $0x760] sm:$0xff]
    %v279 = vld [vmem:[#allocation2 + $0x768] sm:$0xff]
    %v280 = vld [vmem:[#allocation2 + $0x770] sm:$0xff]
    %v281 = vld [vmem:[#allocation2 + $0x778] sm:$0xff]
    %v282 = vld [vmem:[#allocation2 + $0x780] sm:$0xff]
    %v283 = vld [vmem:[#allocation2 + $0x788] sm:$0xff]
    %v284 = vld [vmem:[#allocation2 + $0x790] sm:$0xff]
    %v285 = vld [vmem:[#allocation2 + $0x798] sm:$0xff]
    %v286 = vld [vmem:[#allocation2 + $0x7a0] sm:$0xff]
    %v287 = vld [vmem:[#allocation2 + $0x7a8] sm:$0xff]
    %v288 = vld [vmem:[#allocation2 + $0x7b0] sm:$0xff]
    %v289 = vld [vmem:[#allocation2 + $0x7b8] sm:$0xff]
    %v290 = vld [vmem:[#allocation2 + $0x7c0] sm:$0xff]
    %v291 = vld [vmem:[#allocation2 + $0x7c8] sm:$0xff]
    %v292 = vld [vmem:[#allocation2 + $0x7d0] sm:$0xff]
    %v293 = vld [vmem:[#allocation2 + $0x7d8] sm:$0xff]
    %v294 = vld [vmem:[#allocation2 + $0x7e0] sm:$0xff]
    %v295 = vld [vmem:[#allocation2 + $0x7e8] sm:$0xff]
    %v296 = vld [vmem:[#allocation2 + $0x7f0] sm:$0xff]
    %v297 = vld [vmem:[#allocation2 + $0x7f8] sm:$0xff]
    %v298 = vld [vmem:[#allocation2 + $0x800] sm:$0xff]
    %v299 = vld [vmem:[#allocation2 + $0x808] sm:$0xff]
    %v300 = vld [vmem:[#allocation2 + $0x810] sm:$0xff]
    %v301 = vld [vmem:[#allocation2 + $0x818] sm:$0xff]
    %v302 = vld [vmem:[#allocation2 + $0x820] sm:$0xff]
    %v303 = vld [vmem:[#allocation2 + $0x828] sm:$0xff]
    %v304 = vld [vmem:[#allocation2 + $0x830] sm:$0xff]
    %v305 = vld [vmem:[#allocation2 + $0x838] sm:$0xff]
    %v306 = vld [vmem:[#allocation2 + $0x840] sm:$0xff]
    %v307 = vld [vmem:[#allocation2 + $0x848] sm:$0xff]
    %v308 = vld [vmem:[#allocation2 + $0x850] sm:$0xff]
    %v309 = vld [vmem:[#allocation2 + $0x858] sm:$0xff]
    %v310 = vld [vmem:[#allocation2 + $0x860] sm:$0xff]
    %v311 = vld [vmem:[#allocation2 + $0x868] sm:$0xff]
    %v312 = vld [vmem:[#allocation2 + $0x870] sm:$0xff]
    %v313 = vld [vmem:[#allocation2 + $0x878] sm:$0xff]
    %v314 = vld [vmem:[#allocation2 + $0x880] sm:$0xff]
    %v315 = vld [vmem:[#allocation2 + $0x888] sm:$0xff]
    %v316 = vld [vmem:[#allocation2 + $0x890] sm:$0xff]
    %v317 = vld [vmem:[#allocation2 + $0x898] sm:$0xff]
    %v318 = vld [vmem:[#allocation2 + $0x8a0] sm:$0xff]
    %v319 = vld [vmem:[#allocation2 + $0x8a8] sm:$0xff]
    %v320 = vld [vmem:[#allocation2 + $0x8b0] sm:$0xff]
    %v321 = vld [vmem:[#allocation2 + $0x8b8] sm:$0xff]
    %v322 = vld [vmem:[#allocation2 + $0x8c0] sm:$0xff]
    %v323 = vld [vmem:[#allocation2 + $0x8c8] sm:$0xff]
    %v324 = vld [vmem:[#allocation2 + $0x8d0] sm:$0xff]
    %v325 = vld [vmem:[#allocation2 + $0x8d8] sm:$0xff]
    %v326 = vld [vmem:[#allocation2 + $0x8e0] sm:$0xff]
    %v327 = vld [vmem:[#allocation2 + $0x8e8] sm:$0xff]
    %v328 = vld [vmem:[#allocation2 + $0x8f0] sm:$0xff]
    %v329 = vld [vmem:[#allocation2 + $0x8f8] sm:$0xff]
    %v330 = vld [vmem:[#allocation2 + $0x900] sm:$0xff]
    %v331 = vld [vmem:[#allocation2 + $0x908] sm:$0xff]
    %v332 = vld [vmem:[#allocation2 + $0x910] sm:$0xff]
    %v333 = vld [vmem:[#allocation2 + $0x918] sm:$0xff]
    %v334 = vld [vmem:[#allocation2 + $0x920] sm:$0xff]
    %v335 = vld [vmem:[#allocation2 + $0x928] sm:$0xff]
    %v336 = vld [vmem:[#allocation2 + $0x930] sm:$0xff]
    %v337 = vld [vmem:[#allocation2 + $0x938] sm:$0xff]
    %v338 = vld [vmem:[#allocation2 + $0x940] sm:$0xff]
    %v339 = vld [vmem:[#allocation2 + $0x948] sm:$0xff]
    %v340 = vld [vmem:[#allocation2 + $0x950] sm:$0xff]
    %v341 = vld [vmem:[#allocation2 + $0x958] sm:$0xff]
    %v342 = vld [vmem:[#allocation2 + $0x960] sm:$0xff]
    %v343 = vld [vmem:[#allocation2 + $0x968] sm:$0xff]
    %v344 = vld [vmem:[#allocation2 + $0x970] sm:$0xff]
    %v345 = vld [vmem:[#allocation2 + $0x978] sm:$0xff]
    %v346 = vld [vmem:[#allocation2 + $0x980] sm:$0xff]
    %v347 = vld [vmem:[#allocation2 + $0x988] sm:$0xff]
    %v348 = vld [vmem:[#allocation2 + $0x990] sm:$0xff]
    %v349 = vld [vmem:[#allocation2 + $0x998] sm:$0xff]
    %v350 = vld [vmem:[#allocation2 + $0x9a0] sm:$0xff]
    %v351 = vld [vmem:[#allocation2 + $0x9a8] sm:$0xff]
    %v352 = vld [vmem:[#allocation2 + $0x9b0] sm:$0xff]
    %v353 = vld [vmem:[#allocation2 + $0x9b8] sm:$0xff]
    %v354 = vld [vmem:[#allocation2 + $0x9c0] sm:$0xff]
    %v355 = vld [vmem:[#allocation2 + $0x9c8] sm:$0xff]
    %v356 = vld [vmem:[#allocation2 + $0x9d0] sm:$0xff]
    %v357 = vld [vmem:[#allocation2 + $0x9d8] sm:$0xff]
    %v358 = vld [vmem:[#allocation2 + $0x9e0] sm:$0xff]
    %v359 = vld [vmem:[#allocation2 + $0x9e8] sm:$0xff]
    %v360 = vld [vmem:[#allocation2 + $0x9f0] sm:$0xff]
    %v361 = vld [vmem:[#allocation2 + $0x9f8] sm:$0xff]
    %v362 = vld [vmem:[#allocation2 + $0xa00] sm:$0xff]
    %v363 = vld [vmem:[#allocation2 + $0xa08] sm:$0xff]
    %v364 = vld [vmem:[#allocation2 + $0xa10] sm:$0xff]
    %v365 = vld [vmem:[#allocation2 + $0xa18] sm:$0xff]
    %v366 = vld [vmem:[#allocation2 + $0xa20] sm:$0xff]
    %v367 = vld [vmem:[#allocation2 + $0xa28] sm:$0xff]
    %v368 = vld [vmem:[#allocation2 + $0xa30] sm:$0xff]
    %v369 = vld [vmem:[#allocation2 + $0xa38] sm:$0xff]
    %v370 = vld [vmem:[#allocation2 + $0xa40] sm:$0xff]
    %v371 = vld [vmem:[#allocation2 + $0xa48] sm:$0xff]
    %v372 = vld [vmem:[#allocation2 + $0xa50] sm:$0xff]
    %v373 = vld [vmem:[#allocation2 + $0xa58] sm:$0xff]
    %v374 = vld [vmem:[#allocation2 + $0xa60] sm:$0xff]
    %v375 = vld [vmem:[#allocation2 + $0xa68] sm:$0xff]
    %v376 = vld [vmem:[#allocation2 + $0xa70] sm:$0xff]
    %v377 = vld [vmem:[#allocation2 + $0xa78] sm:$0xff]
    %v378 = vld [vmem:[#allocation2 + $0xa80] sm:$0xff]
    %v379 = vld [vmem:[#allocation2 + $0xa88] sm:$0xff]
    %v380 = vld [vmem:[#allocation2 + $0xa90] sm:$0xff]
    %v381 = vld [vmem:[#allocation2 + $0xa98] sm:$0xff]
    %v382 = vld [vmem:[#allocation2 + $0xaa0] sm:$0xff]
    %v383 = vld [vmem:[#allocation2 + $0xaa8] sm:$0xff]
    %v384 = vld [vmem:[#allocation2 + $0xab0] sm:$0xff]
    %v385 = vld [vmem:[#allocation2 + $0xab8] sm:$0xff]
    %v386 = vld [vmem:[#allocation2 + $0xac0] sm:$0xff]
    %v387 = vld [vmem:[#allocation2 + $0xac8] sm:$0xff]
    %v388 = vld [vmem:[#allocation2 + $0xad0] sm:$0xff]
    %v389 = vld [vmem:[#allocation2 + $0xad8] sm:$0xff]
    %v390 = vld [vmem:[#allocation2 + $0xae0] sm:$0xff]
    %v391 = vld [vmem:[#allocation2 + $0xae8] sm:$0xff]
    %v392 = vld [vmem:[#allocation2 + $0xaf0] sm:$0xff]
    %v393 = vld [vmem:[#allocation2 + $0xaf8] sm:$0xff]
    %v394 = vld [vmem:[#allocation2 + $0xb00] sm:$0xff]
    %v395 = vld [vmem:[#allocation2 + $0xb08] sm:$0xff]
    %v396 = vld [vmem:[#allocation2 + $0xb10] sm:$0xff]
    %v397 = vld [vmem:[#allocation2 + $0xb18] sm:$0xff]
    %v398 = vld [vmem:[#allocation2 + $0xb20] sm:$0xff]
    %v399 = vld [vmem:[#allocation2 + $0xb28] sm:$0xff]
    %v400 = vld [vmem:[#allocation2 + $0xb30] sm:$0xff]
    %v401 = vld [vmem:[#allocation2 + $0xb38] sm:$0xff]
    %v402 = vld [vmem:[#allocation2 + $0xb40] sm:$0xff]
    %v403 = vld [vmem:[#allocation2 + $0xb48] sm:$0xff]
    %v404 = vld [vmem:[#allocation2 + $0xb50] sm:$0xff]
    %v405 = vld [vmem:[#allocation2 + $0xb58] sm:$0xff]
    %v406 = vld [vmem:[#allocation2 + $0xb60] sm:$0xff]
    %v407 = vld [vmem:[#allocation2 + $0xb68] sm:$0xff]
    %v408 = vld [vmem:[#allocation2 + $0xb70] sm:$0xff]
    %v409 = vld [vmem:[#allocation2 + $0xb78] sm:$0xff]
    %v410 = vld [vmem:[#allocation2 + $0xb80] sm:$0xff]
    %v411 = vld [vmem:[#allocation2 + $0xb88] sm:$0xff]
    %v412 = vld [vmem:[#allocation2 + $0xb90] sm:$0xff]
    %v413 = vld [vmem:[#allocation2 + $0xb98] sm:$0xff]
    %v414 = vld [vmem:[#allocation2 + $0xba0] sm:$0xff]
    %v415 = vld [vmem:[#allocation2 + $0xba8] sm:$0xff]
    %v416 = vld [vmem:[#allocation2 + $0xbb0] sm:$0xff]
    %v417 = vld [vmem:[#allocation2 + $0xbb8] sm:$0xff]
    %v418 = vld [vmem:[#allocation2 + $0xbc0] sm:$0xff]
    %v419 = vld [vmem:[#allocation2 + $0xbc8] sm:$0xff]
    %v420 = vld [vmem:[#allocation2 + $0xbd0] sm:$0xff]
    %v421 = vld [vmem:[#allocation2 + $0xbd8] sm:$0xff]
    %v422 = vld [vmem:[#allocation2 + $0xbe0] sm:$0xff]
    %v423 = vld [vmem:[#allocation2 + $0xbe8] sm:$0xff]
    %v424 = vld [vmem:[#allocation2 + $0xbf0] sm:$0xff]
    %v425 = vld [vmem:[#allocation2 + $0xbf8] sm:$0xff]
    %v426 = vld [vmem:[%s2] sm:$0xff]
    %v427 = vld [vmem:[%s2 + $0x8] sm:$0xf]
    %v430 = vperm.slane %v426, 0
    %v431 = vperm.slane %v426, 1
    %v432 = vperm.slane %v426, 2
    %v433 = vperm.slane %v426, 3
    %v434 = vperm.slane %v426, 4
    %v435 = vperm.slane %v426, 5
    %v436 = vperm.slane %v426, 6
    %v437 = vperm.slane %v426, 7
    %v438 = vperm.slane %v427, 0
    %v439 = vperm.slane %v427, 1
    %v440 = vperm.slane %v427, 2
    %v441 = vperm.slane %v427, 3
    %v838 = vunpack.c.l.b16 %v42
    %v839 = vunpack.c.h.b16 %v42
    %v840 = vunpack.c.l.b16 %v43
    %v841 = vunpack.c.h.b16 %v43
    %v842 = vunpack.c.l.b16 %v44
    %v843 = vunpack.c.h.b16 %v44
    %v844 = vunpack.c.l.b16 %v45
    %v845 = vunpack.c.h.b16 %v45
    %v846 = vunpack.c.l.b16 %v46
    %v847 = vunpack.c.h.b16 %v46
    %v848 = vunpack.c.l.b16 %v47
    %v849 = vunpack.c.h.b16 %v47
    %v850 = vunpack.c.l.b16 %v48
    %v851 = vunpack.c.h.b16 %v48
    %v852 = vunpack.c.l.b16 %v49
    %v853 = vunpack.c.h.b16 %v49
    %v854 = vunpack.c.l.b16 %v50
    %v855 = vunpack.c.h.b16 %v50
    %v856 = vunpack.c.l.b16 %v51
    %v857 = vunpack.c.h.b16 %v51
    %v858 = vunpack.c.l.b16 %v52
    %v859 = vunpack.c.h.b16 %v52
    %v860 = vunpack.c.l.b16 %v53
    %v861 = vunpack.c.h.b16 %v53
    %v862 = vunpack.c.l.b16 %v54
    %v863 = vunpack.c.h.b16 %v54
    %v864 = vunpack.c.l.b16 %v55
    %v865 = vunpack.c.h.b16 %v55
    %v866 = vunpack.c.l.b16 %v56
    %v867 = vunpack.c.h.b16 %v56
    %v868 = vunpack.c.l.b16 %v57
    %v869 = vunpack.c.h.b16 %v57
    %v870 = vunpack.c.l.b16 %v58
    %v871 = vunpack.c.h.b16 %v58
    %v872 = vunpack.c.l.b16 %v59
    %v873 = vunpack.c.h.b16 %v59
    %v874 = vunpack.c.l.b16 %v60
    %v875 = vunpack.c.h.b16 %v60
    %v876 = vunpack.c.l.b16 %v61
    %v877 = vunpack.c.h.b16 %v61
    %v878 = vunpack.c.l.b16 %v62
    %v879 = vunpack.c.h.b16 %v62
    %v880 = vunpack.c.l.b16 %v63
    %v881 = vunpack.c.h.b16 %v63
    %v882 = vunpack.c.l.b16 %v64
    %v883 = vunpack.c.h.b16 %v64
    %v884 = vunpack.c.l.b16 %v65
    %v885 = vunpack.c.h.b16 %v65
    %v886 = vunpack.c.l.b16 %v66
    %v887 = vunpack.c.h.b16 %v66
    %v888 = vunpack.c.l.b16 %v67
    %v889 = vunpack.c.h.b16 %v67
    %v890 = vunpack.c.l.b16 %v68
    %v891 = vunpack.c.h.b16 %v68
    %v892 = vunpack.c.l.b16 %v69
    %v893 = vunpack.c.h.b16 %v69
    %v894 = vunpack.c.l.b16 %v70
    %v895 = vunpack.c.h.b16 %v70
    %v896 = vunpack.c.l.b16 %v71
    %v897 = vunpack.c.h.b16 %v71
    %v898 = vunpack.c.l.b16 %v72
    %v899 = vunpack.c.h.b16 %v72
    %v900 = vunpack.c.l.b16 %v73
    %v901 = vunpack.c.h.b16 %v73
    %v902 = vunpack.c.l.b16 %v74
    %v903 = vunpack.c.h.b16 %v74
    %v904 = vunpack.c.l.b16 %v75
    %v905 = vunpack.c.h.b16 %v75
    %v906 = vunpack.c.l.b16 %v76
    %v907 = vunpack.c.h.b16 %v76
    %v908 = vunpack.c.l.b16 %v77
    %v909 = vunpack.c.h.b16 %v77
    %v910 = vunpack.c.l.b16 %v78
    %v911 = vunpack.c.h.b16 %v78
    %v912 = vunpack.c.l.b16 %v79
    %v913 = vunpack.c.h.b16 %v79
    %v914 = vunpack.c.l.b16 %v80
    %v915 = vunpack.c.h.b16 %v80
    %v916 = vunpack.c.l.b16 %v81
    %v917 = vunpack.c.h.b16 %v81
    %v918 = vunpack.c.l.b16 %v82
    %v919 = vunpack.c.h.b16 %v82
    %v920 = vunpack.c.l.b16 %v83
    %v921 = vunpack.c.h.b16 %v83
    %v922 = vunpack.c.l.b16 %v84
    %v923 = vunpack.c.h.b16 %v84
    %v924 = vunpack.c.l.b16 %v85
    %v925 = vunpack.c.h.b16 %v85
    %v926 = vunpack.c.l.b16 %v86
    %v927 = vunpack.c.h.b16 %v86
    %v928 = vunpack.c.l.b16 %v87
    %v929 = vunpack.c.h.b16 %v87
    %v930 = vunpack.c.l.b16 %v88
    %v931 = vunpack.c.h.b16 %v88
    %v932 = vunpack.c.l.b16 %v89
    %v933 = vunpack.c.h.b16 %v89
    %v934 = vunpack.c.l.b16 %v90
    %v935 = vunpack.c.h.b16 %v90
    %v936 = vunpack.c.l.b16 %v91
    %v937 = vunpack.c.h.b16 %v91
    %v938 = vunpack.c.l.b16 %v92
    %v939 = vunpack.c.h.b16 %v92
    %v940 = vunpack.c.l.b16 %v93
    %v941 = vunpack.c.h.b16 %v93
    %v942 = vunpack.c.l.b16 %v94
    %v943 = vunpack.c.h.b16 %v94
    %v944 = vunpack.c.l.b16 %v95
    %v945 = vunpack.c.h.b16 %v95
    %v946 = vunpack.c.l.b16 %v96
    %v947 = vunpack.c.h.b16 %v96
    %v948 = vunpack.c.l.b16 %v97
    %v949 = vunpack.c.h.b16 %v97
    %v950 = vunpack.c.l.b16 %v98
    %v951 = vunpack.c.h.b16 %v98
    %v952 = vunpack.c.l.b16 %v99
    %v953 = vunpack.c.h.b16 %v99
    %v954 = vunpack.c.l.b16 %v100
    %v955 = vunpack.c.h.b16 %v100
    %v956 = vunpack.c.l.b16 %v101
    %v957 = vunpack.c.h.b16 %v101
    %v958 = vunpack.c.l.b16 %v102
    %v959 = vunpack.c.h.b16 %v102
    %v960 = vunpack.c.l.b16 %v103
    %v961 = vunpack.c.h.b16 %v103
    %v962 = vunpack.c.l.b16 %v104
    %v963 = vunpack.c.h.b16 %v104
    %v964 = vunpack.c.l.b16 %v105
    %v965 = vunpack.c.h.b16 %v105
    %v966 = vunpack.c.l.b16 %v106
    %v967 = vunpack.c.h.b16 %v106
    %v968 = vunpack.c.l.b16 %v107
    %v969 = vunpack.c.h.b16 %v107
    %v970 = vunpack.c.l.b16 %v108
    %v971 = vunpack.c.h.b16 %v108
    %v972 = vunpack.c.l.b16 %v109
    %v973 = vunpack.c.h.b16 %v109
    %v974 = vunpack.c.l.b16 %v110
    %v975 = vunpack.c.h.b16 %v110
    %v976 = vunpack.c.l.b16 %v111
    %v977 = vunpack.c.h.b16 %v111
    %v978 = vunpack.c.l.b16 %v112
    %v979 = vunpack.c.h.b16 %v112
    %v980 = vunpack.c.l.b16 %v113
    %v981 = vunpack.c.h.b16 %v113
    %v982 = vunpack.c.l.b16 %v114
    %v983 = vunpack.c.h.b16 %v114
    %v984 = vunpack.c.l.b16 %v115
    %v985 = vunpack.c.h.b16 %v115
    %v986 = vunpack.c.l.b16 %v116
    %v987 = vunpack.c.h.b16 %v116
    %v988 = vunpack.c.l.b16 %v117
    %v989 = vunpack.c.h.b16 %v117
    %v990 = vunpack.c.l.b16 %v118
    %v991 = vunpack.c.h.b16 %v118
    %v992 = vunpack.c.l.b16 %v119
    %v993 = vunpack.c.h.b16 %v119
    %v994 = vunpack.c.l.b16 %v120
    %v995 = vunpack.c.h.b16 %v120
    %v996 = vunpack.c.l.b16 %v121
    %v997 = vunpack.c.h.b16 %v121
    %v998 = vunpack.c.l.b16 %v122
    %v999 = vunpack.c.h.b16 %v122
    %v1000 = vunpack.c.l.b16 %v123
    %v1001 = vunpack.c.h.b16 %v123
    %v1002 = vunpack.c.l.b16 %v124
    %v1003 = vunpack.c.h.b16 %v124
    %v1004 = vunpack.c.l.b16 %v125
    %v1005 = vunpack.c.h.b16 %v125
    %v1006 = vunpack.c.l.b16 %v126
    %v1007 = vunpack.c.h.b16 %v126
    %v1008 = vunpack.c.l.b16 %v127
    %v1009 = vunpack.c.h.b16 %v127
    %v1010 = vunpack.c.l.b16 %v128
    %v1011 = vunpack.c.h.b16 %v128
    %v1012 = vunpack.c.l.b16 %v129
    %v1013 = vunpack.c.h.b16 %v129
    %v1014 = vunpack.c.l.b16 %v130
    %v1015 = vunpack.c.h.b16 %v130
    %v1016 = vunpack.c.l.b16 %v131
    %v1017 = vunpack.c.h.b16 %v131
    %v1018 = vunpack.c.l.b16 %v132
    %v1019 = vunpack.c.h.b16 %v132
    %v1020 = vunpack.c.l.b16 %v133
    %v1021 = vunpack.c.h.b16 %v133
    %v1022 = vunpack.c.l.b16 %v134
    %v1023 = vunpack.c.h.b16 %v134
    %v1024 = vunpack.c.l.b16 %v135
    %v1025 = vunpack.c.h.b16 %v135
    %v1026 = vunpack.c.l.b16 %v136
    %v1027 = vunpack.c.h.b16 %v136
    %v1028 = vunpack.c.l.b16 %v137
    %v1029 = vunpack.c.h.b16 %v137
    %v1030 = vunpack.c.l.b16 %v138
    %v1031 = vunpack.c.h.b16 %v138
    %v1032 = vunpack.c.l.b16 %v139
    %v1033 = vunpack.c.h.b16 %v139
    %v1034 = vunpack.c.l.b16 %v140
    %v1035 = vunpack.c.h.b16 %v140
    %v1036 = vunpack.c.l.b16 %v141
    %v1037 = vunpack.c.h.b16 %v141
    %v1038 = vunpack.c.l.b16 %v142
    %v1039 = vunpack.c.h.b16 %v142
    %v1040 = vunpack.c.l.b16 %v143
    %v1041 = vunpack.c.h.b16 %v143
    %v1042 = vunpack.c.l.b16 %v144
    %v1043 = vunpack.c.h.b16 %v144
    %v1044 = vunpack.c.l.b16 %v145
    %v1045 = vunpack.c.h.b16 %v145
    %v1046 = vunpack.c.l.b16 %v146
    %v1047 = vunpack.c.h.b16 %v146
    %v1048 = vunpack.c.l.b16 %v147
    %v1049 = vunpack.c.h.b16 %v147
    %v1050 = vunpack.c.l.b16 %v148
    %v1051 = vunpack.c.h.b16 %v148
    %v1052 = vunpack.c.l.b16 %v149
    %v1053 = vunpack.c.h.b16 %v149
    %v1054 = vunpack.c.l.b16 %v150
    %v1055 = vunpack.c.h.b16 %v150
    %v1056 = vunpack.c.l.b16 %v151
    %v1057 = vunpack.c.h.b16 %v151
    %v1058 = vunpack.c.l.b16 %v152
    %v1059 = vunpack.c.h.b16 %v152
    %v1060 = vunpack.c.l.b16 %v153
    %v1061 = vunpack.c.h.b16 %v153
    %v1062 = vunpack.c.l.b16 %v154
    %v1063 = vunpack.c.h.b16 %v154
    %v1064 = vunpack.c.l.b16 %v155
    %v1065 = vunpack.c.h.b16 %v155
    %v1066 = vunpack.c.l.b16 %v156
    %v1067 = vunpack.c.h.b16 %v156
    %v1068 = vunpack.c.l.b16 %v157
    %v1069 = vunpack.c.h.b16 %v157
    %v1070 = vunpack.c.l.b16 %v158
    %v1071 = vunpack.c.h.b16 %v158
    %v1072 = vunpack.c.l.b16 %v159
    %v1073 = vunpack.c.h.b16 %v159
    %v1074 = vunpack.c.l.b16 %v160
    %v1075 = vunpack.c.h.b16 %v160
    %v1076 = vunpack.c.l.b16 %v161
    %v1077 = vunpack.c.h.b16 %v161
    %v1078 = vunpack.c.l.b16 %v162
    %v1079 = vunpack.c.h.b16 %v162
    %v1080 = vunpack.c.l.b16 %v163
    %v1081 = vunpack.c.h.b16 %v163
    %v1082 = vunpack.c.l.b16 %v164
    %v1083 = vunpack.c.h.b16 %v164
    %v1084 = vunpack.c.l.b16 %v165
    %v1085 = vunpack.c.h.b16 %v165
    %v1086 = vunpack.c.l.b16 %v166
    %v1087 = vunpack.c.h.b16 %v166
    %v1088 = vunpack.c.l.b16 %v167
    %v1089 = vunpack.c.h.b16 %v167
    %v1090 = vunpack.c.l.b16 %v168
    %v1091 = vunpack.c.h.b16 %v168
    %v1092 = vunpack.c.l.b16 %v169
    %v1093 = vunpack.c.h.b16 %v169
    %v1094 = vunpack.c.l.b16 %v170
    %v1095 = vunpack.c.h.b16 %v170
    %v1096 = vunpack.c.l.b16 %v171
    %v1097 = vunpack.c.h.b16 %v171
    %v1098 = vunpack.c.l.b16 %v172
    %v1099 = vunpack.c.h.b16 %v172
    %v1100 = vunpack.c.l.b16 %v173
    %v1101 = vunpack.c.h.b16 %v173
    %v1102 = vunpack.c.l.b16 %v174
    %v1103 = vunpack.c.h.b16 %v174
    %v1104 = vunpack.c.l.b16 %v175
    %v1105 = vunpack.c.h.b16 %v175
    %v1106 = vunpack.c.l.b16 %v176
    %v1107 = vunpack.c.h.b16 %v176
    %v1108 = vunpack.c.l.b16 %v177
    %v1109 = vunpack.c.h.b16 %v177
    %v1110 = vunpack.c.l.b16 %v178
    %v1111 = vunpack.c.h.b16 %v178
    %v1112 = vunpack.c.l.b16 %v179
    %v1113 = vunpack.c.h.b16 %v179
    %v1114 = vunpack.c.l.b16 %v180
    %v1115 = vunpack.c.h.b16 %v180
    %v1116 = vunpack.c.l.b16 %v181
    %v1117 = vunpack.c.h.b16 %v181
    %v1118 = vunpack.c.l.b16 %v182
    %v1119 = vunpack.c.h.b16 %v182
    %v1120 = vunpack.c.l.b16 %v183
    %v1121 = vunpack.c.h.b16 %v183
    %v1122 = vunpack.c.l.b16 %v184
    %v1123 = vunpack.c.h.b16 %v184
    %v1124 = vunpack.c.l.b16 %v185
    %v1125 = vunpack.c.h.b16 %v185
    %v1126 = vunpack.c.l.b16 %v186
    %v1127 = vunpack.c.h.b16 %v186
    %v1128 = vunpack.c.l.b16 %v187
    %v1129 = vunpack.c.h.b16 %v187
    %v1130 = vunpack.c.l.b16 %v188
    %v1131 = vunpack.c.h.b16 %v188
    %v1132 = vunpack.c.l.b16 %v189
    %v1133 = vunpack.c.h.b16 %v189
    %v1134 = vunpack.c.l.b16 %v190
    %v1135 = vunpack.c.h.b16 %v190
    %v1136 = vunpack.c.l.b16 %v191
    %v1137 = vunpack.c.h.b16 %v191
    %v1138 = vunpack.c.l.b16 %v192
    %v1139 = vunpack.c.h.b16 %v192
    %v1140 = vunpack.c.l.b16 %v193
    %v1141 = vunpack.c.h.b16 %v193
    %v1142 = vunpack.c.l.b16 %v194
    %v1143 = vunpack.c.h.b16 %v194
    %v1144 = vunpack.c.l.b16 %v195
    %v1145 = vunpack.c.h.b16 %v195
    %v1146 = vunpack.c.l.b16 %v196
    %v1147 = vunpack.c.h.b16 %v196
    %v1148 = vunpack.c.l.b16 %v197
    %v1149 = vunpack.c.h.b16 %v197
    %v1150 = vunpack.c.l.b16 %v198
    %v1151 = vunpack.c.h.b16 %v198
    %v1152 = vunpack.c.l.b16 %v199
    %v1153 = vunpack.c.h.b16 %v199
    %v1154 = vunpack.c.l.b16 %v200
    %v1155 = vunpack.c.h.b16 %v200
    %v1156 = vunpack.c.l.b16 %v201
    %v1157 = vunpack.c.h.b16 %v201
    %v1158 = vunpack.c.l.b16 %v202
    %v1159 = vunpack.c.h.b16 %v202
    %v1160 = vunpack.c.l.b16 %v203
    %v1161 = vunpack.c.h.b16 %v203
    %v1162 = vunpack.c.l.b16 %v204
    %v1163 = vunpack.c.h.b16 %v204
    %v1164 = vunpack.c.l.b16 %v205
    %v1165 = vunpack.c.h.b16 %v205
    %v1166 = vunpack.c.l.b16 %v206
    %v1167 = vunpack.c.h.b16 %v206
    %v1168 = vunpack.c.l.b16 %v207
    %v1169 = vunpack.c.h.b16 %v207
    %v1170 = vunpack.c.l.b16 %v208
    %v1171 = vunpack.c.h.b16 %v208
    %v1172 = vunpack.c.l.b16 %v209
    %v1173 = vunpack.c.h.b16 %v209
    %v1174 = vunpack.c.l.b16 %v210
    %v1175 = vunpack.c.h.b16 %v210
    %v1176 = vunpack.c.l.b16 %v211
    %v1177 = vunpack.c.h.b16 %v211
    %v1178 = vunpack.c.l.b16 %v212
    %v1179 = vunpack.c.h.b16 %v212
    %v1180 = vunpack.c.l.b16 %v213
    %v1181 = vunpack.c.h.b16 %v213
    %v1182 = vunpack.c.l.b16 %v214
    %v1183 = vunpack.c.h.b16 %v214
    %v1184 = vunpack.c.l.b16 %v215
    %v1185 = vunpack.c.h.b16 %v215
    %v1186 = vunpack.c.l.b16 %v216
    %v1187 = vunpack.c.h.b16 %v216
    %v1188 = vunpack.c.l.b16 %v217
    %v1189 = vunpack.c.h.b16 %v217
    %v1190 = vunpack.c.l.b16 %v218
    %v1191 = vunpack.c.h.b16 %v218
    %v1192 = vunpack.c.l.b16 %v219
    %v1193 = vunpack.c.h.b16 %v219
    %v1194 = vunpack.c.l.b16 %v220
    %v1195 = vunpack.c.h.b16 %v220
    %v1196 = vunpack.c.l.b16 %v221
    %v1197 = vunpack.c.h.b16 %v221
    %v1198 = vunpack.c.l.b16 %v222
    %v1199 = vunpack.c.h.b16 %v222
    %v1200 = vunpack.c.l.b16 %v223
    %v1201 = vunpack.c.h.b16 %v223
    %v1202 = vunpack.c.l.b16 %v224
    %v1203 = vunpack.c.h.b16 %v224
    %v1204 = vunpack.c.l.b16 %v225
    %v1205 = vunpack.c.h.b16 %v225
    %v1206 = vunpack.c.l.b16 %v226
    %v1207 = vunpack.c.h.b16 %v226
    %v1208 = vunpack.c.l.b16 %v227
    %v1209 = vunpack.c.h.b16 %v227
    %v1210 = vunpack.c.l.b16 %v228
    %v1211 = vunpack.c.h.b16 %v228
    %v1212 = vunpack.c.l.b16 %v229
    %v1213 = vunpack.c.h.b16 %v229
    %v1214 = vunpack.c.l.b16 %v230
    %v1215 = vunpack.c.h.b16 %v230
    %v1216 = vunpack.c.l.b16 %v231
    %v1217 = vunpack.c.h.b16 %v231
    %v1218 = vunpack.c.l.b16 %v232
    %v1219 = vunpack.c.h.b16 %v232
    %v1220 = vunpack.c.l.b16 %v233
    %v1221 = vunpack.c.h.b16 %v233
    %v1222 = vunpack.c.l.b16 %v234
    %v1223 = vunpack.c.h.b16 %v234
    %v1224 = vunpack.c.l.b16 %v235
    %v1225 = vunpack.c.h.b16 %v235
    %v1226 = vunpack.c.l.b16 %v236
    %v1227 = vunpack.c.h.b16 %v236
    %v1228 = vunpack.c.l.b16 %v237
    %v1229 = vunpack.c.h.b16 %v237
    %v1230 = vunpack.c.l.b16 %v238
    %v1231 = vunpack.c.h.b16 %v238
    %v1232 = vunpack.c.l.b16 %v239
    %v1233 = vunpack.c.h.b16 %v239
    %v1234 = vunpack.c.l.b16 %v240
    %v1235 = vunpack.c.h.b16 %v240
    %v1236 = vunpack.c.l.b16 %v241
    %v1237 = vunpack.c.h.b16 %v241
    %v1238 = vunpack.c.l.b16 %v242
    %v1239 = vunpack.c.h.b16 %v242
    %v1240 = vunpack.c.l.b16 %v243
    %v1241 = vunpack.c.h.b16 %v243
    %v1242 = vunpack.c.l.b16 %v244
    %v1243 = vunpack.c.h.b16 %v244
    %v1244 = vunpack.c.l.b16 %v245
    %v1245 = vunpack.c.h.b16 %v245
    %v1246 = vunpack.c.l.b16 %v246
    %v1247 = vunpack.c.h.b16 %v246
    %v1248 = vunpack.c.l.b16 %v247
    %v1249 = vunpack.c.h.b16 %v247
    %v1250 = vunpack.c.l.b16 %v248
    %v1251 = vunpack.c.h.b16 %v248
    %v1252 = vunpack.c.l.b16 %v249
    %v1253 = vunpack.c.h.b16 %v249
    %v1254 = vunpack.c.l.b16 %v250
    %v1255 = vunpack.c.h.b16 %v250
    %v1256 = vunpack.c.l.b16 %v251
    %v1257 = vunpack.c.h.b16 %v251
    %v1258 = vunpack.c.l.b16 %v252
    %v1259 = vunpack.c.h.b16 %v252
    %v1260 = vunpack.c.l.b16 %v253
    %v1261 = vunpack.c.h.b16 %v253
    %v1262 = vunpack.c.l.b16 %v254
    %v1263 = vunpack.c.h.b16 %v254
    %v1264 = vunpack.c.l.b16 %v255
    %v1265 = vunpack.c.h.b16 %v255
    %v1266 = vunpack.c.l.b16 %v256
    %v1267 = vunpack.c.h.b16 %v256
    %v1268 = vunpack.c.l.b16 %v257
    %v1269 = vunpack.c.h.b16 %v257
    %v1270 = vunpack.c.l.b16 %v258
    %v1271 = vunpack.c.h.b16 %v258
    %v1272 = vunpack.c.l.b16 %v259
    %v1273 = vunpack.c.h.b16 %v259
    %v1274 = vunpack.c.l.b16 %v260
    %v1275 = vunpack.c.h.b16 %v260
    %v1276 = vunpack.c.l.b16 %v261
    %v1277 = vunpack.c.h.b16 %v261
    %v1278 = vunpack.c.l.b16 %v262
    %v1279 = vunpack.c.h.b16 %v262
    %v1280 = vunpack.c.l.b16 %v263
    %v1281 = vunpack.c.h.b16 %v263
    %v1282 = vunpack.c.l.b16 %v264
    %v1283 = vunpack.c.h.b16 %v264
    %v1284 = vunpack.c.l.b16 %v265
    %v1285 = vunpack.c.h.b16 %v265
    %v1286 = vunpack.c.l.b16 %v266
    %v1287 = vunpack.c.h.b16 %v266
    %v1288 = vunpack.c.l.b16 %v267
    %v1289 = vunpack.c.h.b16 %v267
    %v1290 = vunpack.c.l.b16 %v268
    %v1291 = vunpack.c.h.b16 %v268
    %v1292 = vunpack.c.l.b16 %v269
    %v1293 = vunpack.c.h.b16 %v269
    %v1294 = vunpack.c.l.b16 %v270
    %v1295 = vunpack.c.h.b16 %v270
    %v1296 = vunpack.c.l.b16 %v271
    %v1297 = vunpack.c.h.b16 %v271
    %v1298 = vunpack.c.l.b16 %v272
    %v1299 = vunpack.c.h.b16 %v272
    %v1300 = vunpack.c.l.b16 %v273
    %v1301 = vunpack.c.h.b16 %v273
    %v1302 = vunpack.c.l.b16 %v274
    %v1303 = vunpack.c.h.b16 %v274
    %v1304 = vunpack.c.l.b16 %v275
    %v1305 = vunpack.c.h.b16 %v275
    %v1306 = vunpack.c.l.b16 %v276
    %v1307 = vunpack.c.h.b16 %v276
    %v1308 = vunpack.c.l.b16 %v277
    %v1309 = vunpack.c.h.b16 %v277
    %v1310 = vunpack.c.l.b16 %v278
    %v1311 = vunpack.c.h.b16 %v278
    %v1312 = vunpack.c.l.b16 %v279
    %v1313 = vunpack.c.h.b16 %v279
    %v1314 = vunpack.c.l.b16 %v280
    %v1315 = vunpack.c.h.b16 %v280
    %v1316 = vunpack.c.l.b16 %v281
    %v1317 = vunpack.c.h.b16 %v281
    %v1318 = vunpack.c.l.b16 %v282
    %v1319 = vunpack.c.h.b16 %v282
    %v1320 = vunpack.c.l.b16 %v283
    %v1321 = vunpack.c.h.b16 %v283
    %v1322 = vunpack.c.l.b16 %v284
    %v1323 = vunpack.c.h.b16 %v284
    %v1324 = vunpack.c.l.b16 %v285
    %v1325 = vunpack.c.h.b16 %v285
    %v1326 = vunpack.c.l.b16 %v286
    %v1327 = vunpack.c.h.b16 %v286
    %v1328 = vunpack.c.l.b16 %v287
    %v1329 = vunpack.c.h.b16 %v287
    %v1330 = vunpack.c.l.b16 %v288
    %v1331 = vunpack.c.h.b16 %v288
    %v1332 = vunpack.c.l.b16 %v289
    %v1333 = vunpack.c.h.b16 %v289
    %v1334 = vunpack.c.l.b16 %v290
    %v1335 = vunpack.c.h.b16 %v290
    %v1336 = vunpack.c.l.b16 %v291
    %v1337 = vunpack.c.h.b16 %v291
    %v1338 = vunpack.c.l.b16 %v292
    %v1339 = vunpack.c.h.b16 %v292
    %v1340 = vunpack.c.l.b16 %v293
    %v1341 = vunpack.c.h.b16 %v293
    %v1342 = vunpack.c.l.b16 %v294
    %v1343 = vunpack.c.h.b16 %v294
    %v1344 = vunpack.c.l.b16 %v295
    %v1345 = vunpack.c.h.b16 %v295
    %v1346 = vunpack.c.l.b16 %v296
    %v1347 = vunpack.c.h.b16 %v296
    %v1348 = vunpack.c.l.b16 %v297
    %v1349 = vunpack.c.h.b16 %v297
    %v1350 = vunpack.c.l.b16 %v298
    %v1351 = vunpack.c.h.b16 %v298
    %v1352 = vunpack.c.l.b16 %v299
    %v1353 = vunpack.c.h.b16 %v299
    %v1354 = vunpack.c.l.b16 %v300
    %v1355 = vunpack.c.h.b16 %v300
    %v1356 = vunpack.c.l.b16 %v301
    %v1357 = vunpack.c.h.b16 %v301
    %v1358 = vunpack.c.l.b16 %v302
    %v1359 = vunpack.c.h.b16 %v302
    %v1360 = vunpack.c.l.b16 %v303
    %v1361 = vunpack.c.h.b16 %v303
    %v1362 = vunpack.c.l.b16 %v304
    %v1363 = vunpack.c.h.b16 %v304
    %v1364 = vunpack.c.l.b16 %v305
    %v1365 = vunpack.c.h.b16 %v305
    %v1366 = vunpack.c.l.b16 %v306
    %v1367 = vunpack.c.h.b16 %v306
    %v1368 = vunpack.c.l.b16 %v307
    %v1369 = vunpack.c.h.b16 %v307
    %v1370 = vunpack.c.l.b16 %v308
    %v1371 = vunpack.c.h.b16 %v308
    %v1372 = vunpack.c.l.b16 %v309
    %v1373 = vunpack.c.h.b16 %v309
    %v1374 = vunpack.c.l.b16 %v310
    %v1375 = vunpack.c.h.b16 %v310
    %v1376 = vunpack.c.l.b16 %v311
    %v1377 = vunpack.c.h.b16 %v311
    %v1378 = vunpack.c.l.b16 %v312
    %v1379 = vunpack.c.h.b16 %v312
    %v1380 = vunpack.c.l.b16 %v313
    %v1381 = vunpack.c.h.b16 %v313
    %v1382 = vunpack.c.l.b16 %v314
    %v1383 = vunpack.c.h.b16 %v314
    %v1384 = vunpack.c.l.b16 %v315
    %v1385 = vunpack.c.h.b16 %v315
    %v1386 = vunpack.c.l.b16 %v316
    %v1387 = vunpack.c.h.b16 %v316
    %v1388 = vunpack.c.l.b16 %v317
    %v1389 = vunpack.c.h.b16 %v317
    %v1390 = vunpack.c.l.b16 %v318
    %v1391 = vunpack.c.h.b16 %v318
    %v1392 = vunpack.c.l.b16 %v319
    %v1393 = vunpack.c.h.b16 %v319
    %v1394 = vunpack.c.l.b16 %v320
    %v1395 = vunpack.c.h.b16 %v320
    %v1396 = vunpack.c.l.b16 %v321
    %v1397 = vunpack.c.h.b16 %v321
    %v1398 = vunpack.c.l.b16 %v322
    %v1399 = vunpack.c.h.b16 %v322
    %v1400 = vunpack.c.l.b16 %v323
    %v1401 = vunpack.c.h.b16 %v323
    %v1402 = vunpack.c.l.b16 %v324
    %v1403 = vunpack.c.h.b16 %v324
    %v1404 = vunpack.c.l.b16 %v325
    %v1405 = vunpack.c.h.b16 %v325
    %v1406 = vunpack.c.l.b16 %v326
    %v1407 = vunpack.c.h.b16 %v326
    %v1408 = vunpack.c.l.b16 %v327
    %v1409 = vunpack.c.h.b16 %v327
    %v1410 = vunpack.c.l.b16 %v328
    %v1411 = vunpack.c.h.b16 %v328
    %v1412 = vunpack.c.l.b16 %v329
    %v1413 = vunpack.c.h.b16 %v329
    %v1414 = vunpack.c.l.b16 %v330
    %v1415 = vunpack.c.h.b16 %v330
    %v1416 = vunpack.c.l.b16 %v331
    %v1417 = vunpack.c.h.b16 %v331
    %v1418 = vunpack.c.l.b16 %v332
    %v1419 = vunpack.c.h.b16 %v332
    %v1420 = vunpack.c.l.b16 %v333
    %v1421 = vunpack.c.h.b16 %v333
    %v1422 = vunpack.c.l.b16 %v334
    %v1423 = vunpack.c.h.b16 %v334
    %v1424 = vunpack.c.l.b16 %v335
    %v1425 = vunpack.c.h.b16 %v335
    %v1426 = vunpack.c.l.b16 %v336
    %v1427 = vunpack.c.h.b16 %v336
    %v1428 = vunpack.c.l.b16 %v337
    %v1429 = vunpack.c.h.b16 %v337
    %v1430 = vunpack.c.l.b16 %v338
    %v1431 = vunpack.c.h.b16 %v338
    %v1432 = vunpack.c.l.b16 %v339
    %v1433 = vunpack.c.h.b16 %v339
    %v1434 = vunpack.c.l.b16 %v340
    %v1435 = vunpack.c.h.b16 %v340
    %v1436 = vunpack.c.l.b16 %v341
    %v1437 = vunpack.c.h.b16 %v341
    %v1438 = vunpack.c.l.b16 %v342
    %v1439 = vunpack.c.h.b16 %v342
    %v1440 = vunpack.c.l.b16 %v343
    %v1441 = vunpack.c.h.b16 %v343
    %v1442 = vunpack.c.l.b16 %v344
    %v1443 = vunpack.c.h.b16 %v344
    %v1444 = vunpack.c.l.b16 %v345
    %v1445 = vunpack.c.h.b16 %v345
    %v1446 = vunpack.c.l.b16 %v346
    %v1447 = vunpack.c.h.b16 %v346
    %v1448 = vunpack.c.l.b16 %v347
    %v1449 = vunpack.c.h.b16 %v347
    %v1450 = vunpack.c.l.b16 %v348
    %v1451 = vunpack.c.h.b16 %v348
    %v1452 = vunpack.c.l.b16 %v349
    %v1453 = vunpack.c.h.b16 %v349
    %v1454 = vunpack.c.l.b16 %v350
    %v1455 = vunpack.c.h.b16 %v350
    %v1456 = vunpack.c.l.b16 %v351
    %v1457 = vunpack.c.h.b16 %v351
    %v1458 = vunpack.c.l.b16 %v352
    %v1459 = vunpack.c.h.b16 %v352
    %v1460 = vunpack.c.l.b16 %v353
    %v1461 = vunpack.c.h.b16 %v353
    %v1462 = vunpack.c.l.b16 %v354
    %v1463 = vunpack.c.h.b16 %v354
    %v1464 = vunpack.c.l.b16 %v355
    %v1465 = vunpack.c.h.b16 %v355
    %v1466 = vunpack.c.l.b16 %v356
    %v1467 = vunpack.c.h.b16 %v356
    %v1468 = vunpack.c.l.b16 %v357
    %v1469 = vunpack.c.h.b16 %v357
    %v1470 = vunpack.c.l.b16 %v358
    %v1471 = vunpack.c.h.b16 %v358
    %v1472 = vunpack.c.l.b16 %v359
    %v1473 = vunpack.c.h.b16 %v359
    %v1474 = vunpack.c.l.b16 %v360
    %v1475 = vunpack.c.h.b16 %v360
    %v1476 = vunpack.c.l.b16 %v361
    %v1477 = vunpack.c.h.b16 %v361
    %v1478 = vunpack.c.l.b16 %v362
    %v1479 = vunpack.c.h.b16 %v362
    %v1480 = vunpack.c.l.b16 %v363
    %v1481 = vunpack.c.h.b16 %v363
    %v1482 = vunpack.c.l.b16 %v364
    %v1483 = vunpack.c.h.b16 %v364
    %v1484 = vunpack.c.l.b16 %v365
    %v1485 = vunpack.c.h.b16 %v365
    %v1486 = vunpack.c.l.b16 %v366
    %v1487 = vunpack.c.h.b16 %v366
    %v1488 = vunpack.c.l.b16 %v367
    %v1489 = vunpack.c.h.b16 %v367
    %v1490 = vunpack.c.l.b16 %v368
    %v1491 = vunpack.c.h.b16 %v368
    %v1492 = vunpack.c.l.b16 %v369
    %v1493 = vunpack.c.h.b16 %v369
    %v1494 = vunpack.c.l.b16 %v370
    %v1495 = vunpack.c.h.b16 %v370
    %v1496 = vunpack.c.l.b16 %v371
    %v1497 = vunpack.c.h.b16 %v371
    %v1498 = vunpack.c.l.b16 %v372
    %v1499 = vunpack.c.h.b16 %v372
    %v1500 = vunpack.c.l.b16 %v373
    %v1501 = vunpack.c.h.b16 %v373
    %v1502 = vunpack.c.l.b16 %v374
    %v1503 = vunpack.c.h.b16 %v374
    %v1504 = vunpack.c.l.b16 %v375
    %v1505 = vunpack.c.h.b16 %v375
    %v1506 = vunpack.c.l.b16 %v376
    %v1507 = vunpack.c.h.b16 %v376
    %v1508 = vunpack.c.l.b16 %v377
    %v1509 = vunpack.c.h.b16 %v377
    %v1510 = vunpack.c.l.b16 %v378
    %v1511 = vunpack.c.h.b16 %v378
    %v1512 = vunpack.c.l.b16 %v379
    %v1513 = vunpack.c.h.b16 %v379
    %v1514 = vunpack.c.l.b16 %v380
    %v1515 = vunpack.c.h.b16 %v380
    %v1516 = vunpack.c.l.b16 %v381
    %v1517 = vunpack.c.h.b16 %v381
    %v1518 = vunpack.c.l.b16 %v382
    %v1519 = vunpack.c.h.b16 %v382
    %v1520 = vunpack.c.l.b16 %v383
    %v1521 = vunpack.c.h.b16 %v383
    %v1522 = vunpack.c.l.b16 %v384
    %v1523 = vunpack.c.h.b16 %v384
    %v1524 = vunpack.c.l.b16 %v385
    %v1525 = vunpack.c.h.b16 %v385
    %v1526 = vunpack.c.l.b16 %v386
    %v1527 = vunpack.c.h.b16 %v386
    %v1528 = vunpack.c.l.b16 %v387
    %v1529 = vunpack.c.h.b16 %v387
    %v1530 = vunpack.c.l.b16 %v388
    %v1531 = vunpack.c.h.b16 %v388
    %v1532 = vunpack.c.l.b16 %v389
    %v1533 = vunpack.c.h.b16 %v389
    %v1534 = vunpack.c.l.b16 %v390
    %v1535 = vunpack.c.h.b16 %v390
    %v1536 = vunpack.c.l.b16 %v391
    %v1537 = vunpack.c.h.b16 %v391
    %v1538 = vunpack.c.l.b16 %v392
    %v1539 = vunpack.c.h.b16 %v392
    %v1540 = vunpack.c.l.b16 %v393
    %v1541 = vunpack.c.h.b16 %v393
    %v1542 = vunpack.c.l.b16 %v394
    %v1543 = vunpack.c.h.b16 %v394
    %v1544 = vunpack.c.l.b16 %v395
    %v1545 = vunpack.c.h.b16 %v395
    %v1546 = vunpack.c.l.b16 %v396
    %v1547 = vunpack.c.h.b16 %v396
    %v1548 = vunpack.c.l.b16 %v397
    %v1549 = vunpack.c.h.b16 %v397
    %v1550 = vunpack.c.l.b16 %v398
    %v1551 = vunpack.c.h.b16 %v398
    %v1552 = vunpack.c.l.b16 %v399
    %v1553 = vunpack.c.h.b16 %v399
    %v1554 = vunpack.c.l.b16 %v400
    %v1555 = vunpack.c.h.b16 %v400
    %v1556 = vunpack.c.l.b16 %v401
    %v1557 = vunpack.c.h.b16 %v401
    %v1558 = vunpack.c.l.b16 %v402
    %v1559 = vunpack.c.h.b16 %v402
    %v1560 = vunpack.c.l.b16 %v403
    %v1561 = vunpack.c.h.b16 %v403
    %v1562 = vunpack.c.l.b16 %v404
    %v1563 = vunpack.c.h.b16 %v404
    %v1564 = vunpack.c.l.b16 %v405
    %v1565 = vunpack.c.h.b16 %v405
    %v1566 = vunpack.c.l.b16 %v406
    %v1567 = vunpack.c.h.b16 %v406
    %v1568 = vunpack.c.l.b16 %v407
    %v1569 = vunpack.c.h.b16 %v407
    %v1570 = vunpack.c.l.b16 %v408
    %v1571 = vunpack.c.h.b16 %v408
    %v1572 = vunpack.c.l.b16 %v409
    %v1573 = vunpack.c.h.b16 %v409
    %v1574 = vunpack.c.l.b16 %v410
    %v1575 = vunpack.c.h.b16 %v410
    %v1576 = vunpack.c.l.b16 %v411
    %v1577 = vunpack.c.h.b16 %v411
    %v1578 = vunpack.c.l.b16 %v412
    %v1579 = vunpack.c.h.b16 %v412
    %v1580 = vunpack.c.l.b16 %v413
    %v1581 = vunpack.c.h.b16 %v413
    %v1582 = vunpack.c.l.b16 %v414
    %v1583 = vunpack.c.h.b16 %v414
    %v1584 = vunpack.c.l.b16 %v415
    %v1585 = vunpack.c.h.b16 %v415
    %v1586 = vunpack.c.l.b16 %v416
    %v1587 = vunpack.c.h.b16 %v416
    %v1588 = vunpack.c.l.b16 %v417
    %v1589 = vunpack.c.h.b16 %v417
    %v1590 = vunpack.c.l.b16 %v418
    %v1591 = vunpack.c.h.b16 %v418
    %v1592 = vunpack.c.l.b16 %v419
    %v1593 = vunpack.c.h.b16 %v419
    %v1594 = vunpack.c.l.b16 %v420
    %v1595 = vunpack.c.h.b16 %v420
    %v1596 = vunpack.c.l.b16 %v421
    %v1597 = vunpack.c.h.b16 %v421
    %v1598 = vunpack.c.l.b16 %v422
    %v1599 = vunpack.c.h.b16 %v422
    %v1600 = vunpack.c.l.b16 %v423
    %v1601 = vunpack.c.h.b16 %v423
    %v1602 = vunpack.c.l.b16 %v424
    %v1603 = vunpack.c.h.b16 %v424
    %v1604 = vunpack.c.l.b16 %v425
    %v1605 = vunpack.c.h.b16 %v425
    %v1606 = vpack.c.b16 %v850, %v838
    %v1607 = vpack.c.b16 %v851, %v839
    %v1608 = vpack.c.b16 %v852, %v840
    %v1609 = vpack.c.b16 %v853, %v841
    %v1610 = vpack.c.b16 %v854, %v842
    %v1611 = vpack.c.b16 %v855, %v843
    %v1612 = vpack.c.b16 %v856, %v844
    %v1613 = vpack.c.b16 %v857, %v845
    %v1614 = vpack.c.b16 %v858, %v846
    %v1615 = vpack.c.b16 %v859, %v847
    %v1616 = vpack.c.b16 %v860, %v848
    %v1617 = vpack.c.b16 %v861, %v849
    %v1618 = vpack.c.b16 %v874, %v862
    %v1619 = vpack.c.b16 %v875, %v863
    %v1620 = vpack.c.b16 %v876, %v864
    %v1621 = vpack.c.b16 %v877, %v865
    %v1622 = vpack.c.b16 %v878, %v866
    %v1623 = vpack.c.b16 %v879, %v867
    %v1624 = vpack.c.b16 %v880, %v868
    %v1625 = vpack.c.b16 %v881, %v869
    %v1626 = vpack.c.b16 %v882, %v870
    %v1627 = vpack.c.b16 %v883, %v871
    %v1628 = vpack.c.b16 %v884, %v872
    %v1629 = vpack.c.b16 %v885, %v873
    %v1630 = vpack.c.b16 %v898, %v886
    %v1631 = vpack.c.b16 %v899, %v887
    %v1632 = vpack.c.b16 %v900, %v888
    %v1633 = vpack.c.b16 %v901, %v889
    %v1634 = vpack.c.b16 %v902, %v890
    %v1635 = vpack.c.b16 %v903, %v891
    %v1636 = vpack.c.b16 %v904, %v892
    %v1637 = vpack.c.b16 %v905, %v893
    %v1638 = vpack.c.b16 %v906, %v894
    %v1639 = vpack.c.b16 %v907, %v895
    %v1640 = vpack.c.b16 %v908, %v896
    %v1641 = vpack.c.b16 %v909, %v897
    %v1642 = vpack.c.b16 %v922, %v910
    %v1643 = vpack.c.b16 %v923, %v911
    %v1644 = vpack.c.b16 %v924, %v912
    %v1645 = vpack.c.b16 %v925, %v913
    %v1646 = vpack.c.b16 %v926, %v914
    %v1647 = vpack.c.b16 %v927, %v915
    %v1648 = vpack.c.b16 %v928, %v916
    %v1649 = vpack.c.b16 %v929, %v917
    %v1650 = vpack.c.b16 %v930, %v918
    %v1651 = vpack.c.b16 %v931, %v919
    %v1652 = vpack.c.b16 %v932, %v920
    %v1653 = vpack.c.b16 %v933, %v921
    %v1654 = vpack.c.b16 %v946, %v934
    %v1655 = vpack.c.b16 %v947, %v935
    %v1656 = vpack.c.b16 %v948, %v936
    %v1657 = vpack.c.b16 %v949, %v937
    %v1658 = vpack.c.b16 %v950, %v938
    %v1659 = vpack.c.b16 %v951, %v939
    %v1660 = vpack.c.b16 %v952, %v940
    %v1661 = vpack.c.b16 %v953, %v941
    %v1662 = vpack.c.b16 %v954, %v942
    %v1663 = vpack.c.b16 %v955, %v943
    %v1664 = vpack.c.b16 %v956, %v944
    %v1665 = vpack.c.b16 %v957, %v945
    %v1666 = vpack.c.b16 %v970, %v958
    %v1667 = vpack.c.b16 %v971, %v959
    %v1668 = vpack.c.b16 %v972, %v960
    %v1669 = vpack.c.b16 %v973, %v961
    %v1670 = vpack.c.b16 %v974, %v962
    %v1671 = vpack.c.b16 %v975, %v963
    %v1672 = vpack.c.b16 %v976, %v964
    %v1673 = vpack.c.b16 %v977, %v965
    %v1674 = vpack.c.b16 %v978, %v966
    %v1675 = vpack.c.b16 %v979, %v967
    %v1676 = vpack.c.b16 %v980, %v968
    %v1677 = vpack.c.b16 %v981, %v969
    %v1678 = vpack.c.b16 %v994, %v982
    %v1679 = vpack.c.b16 %v995, %v983
    %v1680 = vpack.c.b16 %v996, %v984
    %v1681 = vpack.c.b16 %v997, %v985
    %v1682 = vpack.c.b16 %v998, %v986
    %v1683 = vpack.c.b16 %v999, %v987
    %v1684 = vpack.c.b16 %v1000, %v988
    %v1685 = vpack.c.b16 %v1001, %v989
    %v1686 = vpack.c.b16 %v1002, %v990
    %v1687 = vpack.c.b16 %v1003, %v991
    %v1688 = vpack.c.b16 %v1004, %v992
    %v1689 = vpack.c.b16 %v1005, %v993
    %v1690 = vpack.c.b16 %v1018, %v1006
    %v1691 = vpack.c.b16 %v1019, %v1007
    %v1692 = vpack.c.b16 %v1020, %v1008
    %v1693 = vpack.c.b16 %v1021, %v1009
    %v1694 = vpack.c.b16 %v1022, %v1010
    %v1695 = vpack.c.b16 %v1023, %v1011
    %v1696 = vpack.c.b16 %v1024, %v1012
    %v1697 = vpack.c.b16 %v1025, %v1013
    %v1698 = vpack.c.b16 %v1026, %v1014
    %v1699 = vpack.c.b16 %v1027, %v1015
    %v1700 = vpack.c.b16 %v1028, %v1016
    %v1701 = vpack.c.b16 %v1029, %v1017
    %v1702 = vpack.c.b16 %v1042, %v1030
    %v1703 = vpack.c.b16 %v1043, %v1031
    %v1704 = vpack.c.b16 %v1044, %v1032
    %v1705 = vpack.c.b16 %v1045, %v1033
    %v1706 = vpack.c.b16 %v1046, %v1034
    %v1707 = vpack.c.b16 %v1047, %v1035
    %v1708 = vpack.c.b16 %v1048, %v1036
    %v1709 = vpack.c.b16 %v1049, %v1037
    %v1710 = vpack.c.b16 %v1050, %v1038
    %v1711 = vpack.c.b16 %v1051, %v1039
    %v1712 = vpack.c.b16 %v1052, %v1040
    %v1713 = vpack.c.b16 %v1053, %v1041
    %v1714 = vpack.c.b16 %v1066, %v1054
    %v1715 = vpack.c.b16 %v1067, %v1055
    %v1716 = vpack.c.b16 %v1068, %v1056
    %v1717 = vpack.c.b16 %v1069, %v1057
    %v1718 = vpack.c.b16 %v1070, %v1058
    %v1719 = vpack.c.b16 %v1071, %v1059
    %v1720 = vpack.c.b16 %v1072, %v1060
    %v1721 = vpack.c.b16 %v1073, %v1061
    %v1722 = vpack.c.b16 %v1074, %v1062
    %v1723 = vpack.c.b16 %v1075, %v1063
    %v1724 = vpack.c.b16 %v1076, %v1064
    %v1725 = vpack.c.b16 %v1077, %v1065
    %v1726 = vpack.c.b16 %v1090, %v1078
    %v1727 = vpack.c.b16 %v1091, %v1079
    %v1728 = vpack.c.b16 %v1092, %v1080
    %v1729 = vpack.c.b16 %v1093, %v1081
    %v1730 = vpack.c.b16 %v1094, %v1082
    %v1731 = vpack.c.b16 %v1095, %v1083
    %v1732 = vpack.c.b16 %v1096, %v1084
    %v1733 = vpack.c.b16 %v1097, %v1085
    %v1734 = vpack.c.b16 %v1098, %v1086
    %v1735 = vpack.c.b16 %v1099, %v1087
    %v1736 = vpack.c.b16 %v1100, %v1088
    %v1737 = vpack.c.b16 %v1101, %v1089
    %v1738 = vpack.c.b16 %v1114, %v1102
    %v1739 = vpack.c.b16 %v1115, %v1103
    %v1740 = vpack.c.b16 %v1116, %v1104
    %v1741 = vpack.c.b16 %v1117, %v1105
    %v1742 = vpack.c.b16 %v1118, %v1106
    %v1743 = vpack.c.b16 %v1119, %v1107
    %v1744 = vpack.c.b16 %v1120, %v1108
    %v1745 = vpack.c.b16 %v1121, %v1109
    %v1746 = vpack.c.b16 %v1122, %v1110
    %v1747 = vpack.c.b16 %v1123, %v1111
    %v1748 = vpack.c.b16 %v1124, %v1112
    %v1749 = vpack.c.b16 %v1125, %v1113
    %v1750 = vpack.c.b16 %v1138, %v1126
    %v1751 = vpack.c.b16 %v1139, %v1127
    %v1752 = vpack.c.b16 %v1140, %v1128
    %v1753 = vpack.c.b16 %v1141, %v1129
    %v1754 = vpack.c.b16 %v1142, %v1130
    %v1755 = vpack.c.b16 %v1143, %v1131
    %v1756 = vpack.c.b16 %v1144, %v1132
    %v1757 = vpack.c.b16 %v1145, %v1133
    %v1758 = vpack.c.b16 %v1146, %v1134
    %v1759 = vpack.c.b16 %v1147, %v1135
    %v1760 = vpack.c.b16 %v1148, %v1136
    %v1761 = vpack.c.b16 %v1149, %v1137
    %v1762 = vpack.c.b16 %v1162, %v1150
    %v1763 = vpack.c.b16 %v1163, %v1151
    %v1764 = vpack.c.b16 %v1164, %v1152
    %v1765 = vpack.c.b16 %v1165, %v1153
    %v1766 = vpack.c.b16 %v1166, %v1154
    %v1767 = vpack.c.b16 %v1167, %v1155
    %v1768 = vpack.c.b16 %v1168, %v1156
    %v1769 = vpack.c.b16 %v1169, %v1157
    %v1770 = vpack.c.b16 %v1170, %v1158
    %v1771 = vpack.c.b16 %v1171, %v1159
    %v1772 = vpack.c.b16 %v1172, %v1160
    %v1773 = vpack.c.b16 %v1173, %v1161
    %v1774 = vpack.c.b16 %v1186, %v1174
    %v1775 = vpack.c.b16 %v1187, %v1175
    %v1776 = vpack.c.b16 %v1188, %v1176
    %v1777 = vpack.c.b16 %v1189, %v1177
    %v1778 = vpack.c.b16 %v1190, %v1178
    %v1779 = vpack.c.b16 %v1191, %v1179
    %v1780 = vpack.c.b16 %v1192, %v1180
    %v1781 = vpack.c.b16 %v1193, %v1181
    %v1782 = vpack.c.b16 %v1194, %v1182
    %v1783 = vpack.c.b16 %v1195, %v1183
    %v1784 = vpack.c.b16 %v1196, %v1184
    %v1785 = vpack.c.b16 %v1197, %v1185
    %v1786 = vpack.c.b16 %v1210, %v1198
    %v1787 = vpack.c.b16 %v1211, %v1199
    %v1788 = vpack.c.b16 %v1212, %v1200
    %v1789 = vpack.c.b16 %v1213, %v1201
    %v1790 = vpack.c.b16 %v1214, %v1202
    %v1791 = vpack.c.b16 %v1215, %v1203
    %v1792 = vpack.c.b16 %v1216, %v1204
    %v1793 = vpack.c.b16 %v1217, %v1205
    %v1794 = vpack.c.b16 %v1218, %v1206
    %v1795 = vpack.c.b16 %v1219, %v1207
    %v1796 = vpack.c.b16 %v1220, %v1208
    %v1797 = vpack.c.b16 %v1221, %v1209
    %v1798 = vpack.c.b16 %v1234, %v1222
    %v1799 = vpack.c.b16 %v1235, %v1223
    %v1800 = vpack.c.b16 %v1236, %v1224
    %v1801 = vpack.c.b16 %v1237, %v1225
    %v1802 = vpack.c.b16 %v1238, %v1226
    %v1803 = vpack.c.b16 %v1239, %v1227
    %v1804 = vpack.c.b16 %v1240, %v1228
    %v1805 = vpack.c.b16 %v1241, %v1229
    %v1806 = vpack.c.b16 %v1242, %v1230
    %v1807 = vpack.c.b16 %v1243, %v1231
    %v1808 = vpack.c.b16 %v1244, %v1232
    %v1809 = vpack.c.b16 %v1245, %v1233
    %v1810 = vpack.c.b16 %v1258, %v1246
    %v1811 = vpack.c.b16 %v1259, %v1247
    %v1812 = vpack.c.b16 %v1260, %v1248
    %v1813 = vpack.c.b16 %v1261, %v1249
    %v1814 = vpack.c.b16 %v1262, %v1250
    %v1815 = vpack.c.b16 %v1263, %v1251
    %v1816 = vpack.c.b16 %v1264, %v1252
    %v1817 = vpack.c.b16 %v1265, %v1253
    %v1818 = vpack.c.b16 %v1266, %v1254
    %v1819 = vpack.c.b16 %v1267, %v1255
    %v1820 = vpack.c.b16 %v1268, %v1256
    %v1821 = vpack.c.b16 %v1269, %v1257
    %v1822 = vpack.c.b16 %v1282, %v1270
    %v1823 = vpack.c.b16 %v1283, %v1271
    %v1824 = vpack.c.b16 %v1284, %v1272
    %v1825 = vpack.c.b16 %v1285, %v1273
    %v1826 = vpack.c.b16 %v1286, %v1274
    %v1827 = vpack.c.b16 %v1287, %v1275
    %v1828 = vpack.c.b16 %v1288, %v1276
    %v1829 = vpack.c.b16 %v1289, %v1277
    %v1830 = vpack.c.b16 %v1290, %v1278
    %v1831 = vpack.c.b16 %v1291, %v1279
    %v1832 = vpack.c.b16 %v1292, %v1280
    %v1833 = vpack.c.b16 %v1293, %v1281
    %v1834 = vpack.c.b16 %v1306, %v1294
    %v1835 = vpack.c.b16 %v1307, %v1295
    %v1836 = vpack.c.b16 %v1308, %v1296
    %v1837 = vpack.c.b16 %v1309, %v1297
    %v1838 = vpack.c.b16 %v1310, %v1298
    %v1839 = vpack.c.b16 %v1311, %v1299
    %v1840 = vpack.c.b16 %v1312, %v1300
    %v1841 = vpack.c.b16 %v1313, %v1301
    %v1842 = vpack.c.b16 %v1314, %v1302
    %v1843 = vpack.c.b16 %v1315, %v1303
    %v1844 = vpack.c.b16 %v1316, %v1304
    %v1845 = vpack.c.b16 %v1317, %v1305
    %v1846 = vpack.c.b16 %v1330, %v1318
    %v1847 = vpack.c.b16 %v1331, %v1319
    %v1848 = vpack.c.b16 %v1332, %v1320
    %v1849 = vpack.c.b16 %v1333, %v1321
    %v1850 = vpack.c.b16 %v1334, %v1322
    %v1851 = vpack.c.b16 %v1335, %v1323
    %v1852 = vpack.c.b16 %v1336, %v1324
    %v1853 = vpack.c.b16 %v1337, %v1325
    %v1854 = vpack.c.b16 %v1338, %v1326
    %v1855 = vpack.c.b16 %v1339, %v1327
    %v1856 = vpack.c.b16 %v1340, %v1328
    %v1857 = vpack.c.b16 %v1341, %v1329
    %v1858 = vpack.c.b16 %v1354, %v1342
    %v1859 = vpack.c.b16 %v1355, %v1343
    %v1860 = vpack.c.b16 %v1356, %v1344
    %v1861 = vpack.c.b16 %v1357, %v1345
    %v1862 = vpack.c.b16 %v1358, %v1346
    %v1863 = vpack.c.b16 %v1359, %v1347
    %v1864 = vpack.c.b16 %v1360, %v1348
    %v1865 = vpack.c.b16 %v1361, %v1349
    %v1866 = vpack.c.b16 %v1362, %v1350
    %v1867 = vpack.c.b16 %v1363, %v1351
    %v1868 = vpack.c.b16 %v1364, %v1352
    %v1869 = vpack.c.b16 %v1365, %v1353
    %v1870 = vpack.c.b16 %v1378, %v1366
    %v1871 = vpack.c.b16 %v1379, %v1367
    %v1872 = vpack.c.b16 %v1380, %v1368
    %v1873 = vpack.c.b16 %v1381, %v1369
    %v1874 = vpack.c.b16 %v1382, %v1370
    %v1875 = vpack.c.b16 %v1383, %v1371
    %v1876 = vpack.c.b16 %v1384, %v1372
    %v1877 = vpack.c.b16 %v1385, %v1373
    %v1878 = vpack.c.b16 %v1386, %v1374
    %v1879 = vpack.c.b16 %v1387, %v1375
    %v1880 = vpack.c.b16 %v1388, %v1376
    %v1881 = vpack.c.b16 %v1389, %v1377
    %v1882 = vpack.c.b16 %v1402, %v1390
    %v1883 = vpack.c.b16 %v1403, %v1391
    %v1884 = vpack.c.b16 %v1404, %v1392
    %v1885 = vpack.c.b16 %v1405, %v1393
    %v1886 = vpack.c.b16 %v1406, %v1394
    %v1887 = vpack.c.b16 %v1407, %v1395
    %v1888 = vpack.c.b16 %v1408, %v1396
    %v1889 = vpack.c.b16 %v1409, %v1397
    %v1890 = vpack.c.b16 %v1410, %v1398
    %v1891 = vpack.c.b16 %v1411, %v1399
    %v1892 = vpack.c.b16 %v1412, %v1400
    %v1893 = vpack.c.b16 %v1413, %v1401
    %v1894 = vpack.c.b16 %v1426, %v1414
    %v1895 = vpack.c.b16 %v1427, %v1415
    %v1896 = vpack.c.b16 %v1428, %v1416
    %v1897 = vpack.c.b16 %v1429, %v1417
    %v1898 = vpack.c.b16 %v1430, %v1418
    %v1899 = vpack.c.b16 %v1431, %v1419
    %v1900 = vpack.c.b16 %v1432, %v1420
    %v1901 = vpack.c.b16 %v1433, %v1421
    %v1902 = vpack.c.b16 %v1434, %v1422
    %v1903 = vpack.c.b16 %v1435, %v1423
    %v1904 = vpack.c.b16 %v1436, %v1424
    %v1905 = vpack.c.b16 %v1437, %v1425
    %v1906 = vpack.c.b16 %v1450, %v1438
    %v1907 = vpack.c.b16 %v1451, %v1439
    %v1908 = vpack.c.b16 %v1452, %v1440
    %v1909 = vpack.c.b16 %v1453, %v1441
    %v1910 = vpack.c.b16 %v1454, %v1442
    %v1911 = vpack.c.b16 %v1455, %v1443
    %v1912 = vpack.c.b16 %v1456, %v1444
    %v1913 = vpack.c.b16 %v1457, %v1445
    %v1914 = vpack.c.b16 %v1458, %v1446
    %v1915 = vpack.c.b16 %v1459, %v1447
    %v1916 = vpack.c.b16 %v1460, %v1448
    %v1917 = vpack.c.b16 %v1461, %v1449
    %v1918 = vpack.c.b16 %v1474, %v1462
    %v1919 = vpack.c.b16 %v1475, %v1463
    %v1920 = vpack.c.b16 %v1476, %v1464
    %v1921 = vpack.c.b16 %v1477, %v1465
    %v1922 = vpack.c.b16 %v1478, %v1466
    %v1923 = vpack.c.b16 %v1479, %v1467
    %v1924 = vpack.c.b16 %v1480, %v1468
    %v1925 = vpack.c.b16 %v1481, %v1469
    %v1926 = vpack.c.b16 %v1482, %v1470
    %v1927 = vpack.c.b16 %v1483, %v1471
    %v1928 = vpack.c.b16 %v1484, %v1472
    %v1929 = vpack.c.b16 %v1485, %v1473
    %v1930 = vpack.c.b16 %v1498, %v1486
    %v1931 = vpack.c.b16 %v1499, %v1487
    %v1932 = vpack.c.b16 %v1500, %v1488
    %v1933 = vpack.c.b16 %v1501, %v1489
    %v1934 = vpack.c.b16 %v1502, %v1490
    %v1935 = vpack.c.b16 %v1503, %v1491
    %v1936 = vpack.c.b16 %v1504, %v1492
    %v1937 = vpack.c.b16 %v1505, %v1493
    %v1938 = vpack.c.b16 %v1506, %v1494
    %v1939 = vpack.c.b16 %v1507, %v1495
    %v1940 = vpack.c.b16 %v1508, %v1496
    %v1941 = vpack.c.b16 %v1509, %v1497
    %v1942 = vpack.c.b16 %v1522, %v1510
    %v1943 = vpack.c.b16 %v1523, %v1511
    %v1944 = vpack.c.b16 %v1524, %v1512
    %v1945 = vpack.c.b16 %v1525, %v1513
    %v1946 = vpack.c.b16 %v1526, %v1514
    %v1947 = vpack.c.b16 %v1527, %v1515
    %v1948 = vpack.c.b16 %v1528, %v1516
    %v1949 = vpack.c.b16 %v1529, %v1517
    %v1950 = vpack.c.b16 %v1530, %v1518
    %v1951 = vpack.c.b16 %v1531, %v1519
    %v1952 = vpack.c.b16 %v1532, %v1520
    %v1953 = vpack.c.b16 %v1533, %v1521
    %v1954 = vpack.c.b16 %v1546, %v1534
    %v1955 = vpack.c.b16 %v1547, %v1535
    %v1956 = vpack.c.b16 %v1548, %v1536
    %v1957 = vpack.c.b16 %v1549, %v1537
    %v1958 = vpack.c.b16 %v1550, %v1538
    %v1959 = vpack.c.b16 %v1551, %v1539
    %v1960 = vpack.c.b16 %v1552, %v1540
    %v1961 = vpack.c.b16 %v1553, %v1541
    %v1962 = vpack.c.b16 %v1554, %v1542
    %v1963 = vpack.c.b16 %v1555, %v1543
    %v1964 = vpack.c.b16 %v1556, %v1544
    %v1965 = vpack.c.b16 %v1557, %v1545
    %v1966 = vpack.c.b16 %v1570, %v1558
    %v1967 = vpack.c.b16 %v1571, %v1559
    %v1968 = vpack.c.b16 %v1572, %v1560
    %v1969 = vpack.c.b16 %v1573, %v1561
    %v1970 = vpack.c.b16 %v1574, %v1562
    %v1971 = vpack.c.b16 %v1575, %v1563
    %v1972 = vpack.c.b16 %v1576, %v1564
    %v1973 = vpack.c.b16 %v1577, %v1565
    %v1974 = vpack.c.b16 %v1578, %v1566
    %v1975 = vpack.c.b16 %v1579, %v1567
    %v1976 = vpack.c.b16 %v1580, %v1568
    %v1977 = vpack.c.b16 %v1581, %v1569
    %v1978 = vpack.c.b16 %v1594, %v1582
    %v1979 = vpack.c.b16 %v1595, %v1583
    %v1980 = vpack.c.b16 %v1596, %v1584
    %v1981 = vpack.c.b16 %v1597, %v1585
    %v1982 = vpack.c.b16 %v1598, %v1586
    %v1983 = vpack.c.b16 %v1599, %v1587
    %v1984 = vpack.c.b16 %v1600, %v1588
    %v1985 = vpack.c.b16 %v1601, %v1589
    %v1986 = vpack.c.b16 %v1602, %v1590
    %v1987 = vpack.c.b16 %v1603, %v1591
    %v1988 = vpack.c.b16 %v1604, %v1592
    %v1989 = vpack.c.b16 %v1605, %v1593
    %2374 = vmatpush.bf16.msra.mxu0 %v1690
    %2375 = vmatpush.bf16.msra.mxu0 %v1678
    %2376 = vmatpush.bf16.msra.mxu0 %v1666
    %2377 = vmatpush.bf16.msra.mxu0 %v1654
    %2378 = vmatpush.bf16.msra.mxu0 %v1642
    %2379 = vmatpush.bf16.msra.mxu0 %v1630
    %2380 = vmatpush.bf16.msra.mxu0 %v1618
    %2381 = vmatpush.bf16.msra.mxu0 %v1606
    %2382 = vmatmul.bf16.gmra.mxu0 %v38
    %v2383 = vpop.f32.mrf.mxu0
    %v2384 = vadd.f32 %v430, %v2383
    %v2385 = vpop.f32.mrf.mxu0
    %v2386 = vadd.f32 %v430, %v2385
    %2387 = vdwg.mxu0
    %2388 = vmatpush.bf16.msra.mxu0 %v1786
    %2389 = vmatpush.bf16.msra.mxu0 %v1774
    %2390 = vmatpush.bf16.msra.mxu0 %v1762
    %2391 = vmatpush.bf16.msra.mxu0 %v1750
    %2392 = vmatpush.bf16.msra.mxu0 %v1738
    %2393 = vmatpush.bf16.msra.mxu0 %v1726
    %2394 = vmatpush.bf16.msra.mxu0 %v1714
    %2395 = vmatpush.bf16.msra.mxu0 %v1702
    %2396 = vmatmul.bf16.gmra.mxu0 %v39
    %v2397 = vpop.f32.mrf.mxu0
    %v2398 = vadd.f32 %v2384, %v2397
    %v2399 = vpop.f32.mrf.mxu0
    %v2400 = vadd.f32 %v2386, %v2399
    %2401 = vdwg.mxu0
    %2402 = vmatpush.bf16.msra.mxu0 %v1882
    %2403 = vmatpush.bf16.msra.mxu0 %v1870
    %2404 = vmatpush.bf16.msra.mxu0 %v1858
    %2405 = vmatpush.bf16.msra.mxu0 %v1846
    %2406 = vmatpush.bf16.msra.mxu0 %v1834
    %2407 = vmatpush.bf16.msra.mxu0 %v1822
    %2408 = vmatpush.bf16.msra.mxu0 %v1810
    %2409 = vmatpush.bf16.msra.mxu0 %v1798
    %2410 = vmatmul.bf16.gmra.mxu0 %v40
    %v2411 = vpop.f32.mrf.mxu0
    %v2412 = vadd.f32 %v2398, %v2411
    %v2413 = vpop.f32.mrf.mxu0
    %v2414 = vadd.f32 %v2400, %v2413
    %2415 = vdwg.mxu0
    %2416 = vmatpush.bf16.msra.mxu0 %v1978
    %2417 = vmatpush.bf16.msra.mxu0 %v1966
    %2418 = vmatpush.bf16.msra.mxu0 %v1954
    %2419 = vmatpush.bf16.msra.mxu0 %v1942
    %2420 = vmatpush.bf16.msra.mxu0 %v1930
    %2421 = vmatpush.bf16.msra.mxu0 %v1918
    %2422 = vmatpush.bf16.msra.mxu0 %v1906
    %2423 = vmatpush.bf16.msra.mxu0 %v1894
    %2424 = vmatmul.bf16.gmra.mxu0 %v41
    %v2425 = vpop.f32.mrf.mxu0
    %v2426 = vadd.f32 %v2412, %v2425
    %v2427 = vpop.f32.mrf.mxu0
    %v2428 = vadd.f32 %v2414, %v2427
    %2429 = vdwg.mxu0
    %2430 = vmatpush.bf16.msra.mxu0 %v1691
    %2431 = vmatpush.bf16.msra.mxu0 %v1679
    %2432 = vmatpush.bf16.msra.mxu0 %v1667
    %2433 = vmatpush.bf16.msra.mxu0 %v1655
    %2434 = vmatpush.bf16.msra.mxu0 %v1643
    %2435 = vmatpush.bf16.msra.mxu0 %v1631
    %2436 = vmatpush.bf16.msra.mxu0 %v1619
    %2437 = vmatpush.bf16.msra.mxu0 %v1607
    %2438 = vmatmul.bf16.gmra.mxu0 %v38
    %v2439 = vpop.f32.mrf.mxu0
    %v2440 = vadd.f32 %v431, %v2439
    %v2441 = vpop.f32.mrf.mxu0
    %v2442 = vadd.f32 %v431, %v2441
    %2443 = vdwg.mxu0
    %2444 = vmatpush.bf16.msra.mxu0 %v1787
    %2445 = vmatpush.bf16.msra.mxu0 %v1775
    %2446 = vmatpush.bf16.msra.mxu0 %v1763
    %2447 = vmatpush.bf16.msra.mxu0 %v1751
    %2448 = vmatpush.bf16.msra.mxu0 %v1739
    %2449 = vmatpush.bf16.msra.mxu0 %v1727
    %2450 = vmatpush.bf16.msra.mxu0 %v1715
    %2451 = vmatpush.bf16.msra.mxu0 %v1703
    %2452 = vmatmul.bf16.gmra.mxu0 %v39
    %v2453 = vpop.f32.mrf.mxu0
    %v2454 = vadd.f32 %v2440, %v2453
    %v2455 = vpop.f32.mrf.mxu0
    %v2456 = vadd.f32 %v2442, %v2455
    %2457 = vdwg.mxu0
    %2458 = vmatpush.bf16.msra.mxu0 %v1883
    %2459 = vmatpush.bf16.msra.mxu0 %v1871
    %2460 = vmatpush.bf16.msra.mxu0 %v1859
    %2461 = vmatpush.bf16.msra.mxu0 %v1847
    %2462 = vmatpush.bf16.msra.mxu0 %v1835
    %2463 = vmatpush.bf16.msra.mxu0 %v1823
    %2464 = vmatpush.bf16.msra.mxu0 %v1811
    %2465 = vmatpush.bf16.msra.mxu0 %v1799
    %2466 = vmatmul.bf16.gmra.mxu0 %v40
    %v2467 = vpop.f32.mrf.mxu0
    %v2468 = vadd.f32 %v2454, %v2467
    %v2469 = vpop.f32.mrf.mxu0
    %v2470 = vadd.f32 %v2456, %v2469
    %2471 = vdwg.mxu0
    %2472 = vmatpush.bf16.msra.mxu0 %v1979
    %2473 = vmatpush.bf16.msra.mxu0 %v1967
    %2474 = vmatpush.bf16.msra.mxu0 %v1955
    %2475 = vmatpush.bf16.msra.mxu0 %v1943
    %2476 = vmatpush.bf16.msra.mxu0 %v1931
    %2477 = vmatpush.bf16.msra.mxu0 %v1919
    %2478 = vmatpush.bf16.msra.mxu0 %v1907
    %2479 = vmatpush.bf16.msra.mxu0 %v1895
    %2480 = vmatmul.bf16.gmra.mxu0 %v41
    %v2481 = vpop.f32.mrf.mxu0
    %v2482 = vadd.f32 %v2468, %v2481
    %v2483 = vpop.f32.mrf.mxu0
    %v2484 = vadd.f32 %v2470, %v2483
    %2485 = vdwg.mxu0
    %2486 = vmatpush.bf16.msra.mxu0 %v1692
    %2487 = vmatpush.bf16.msra.mxu0 %v1680
    %2488 = vmatpush.bf16.msra.mxu0 %v1668
    %2489 = vmatpush.bf16.msra.mxu0 %v1656
    %2490 = vmatpush.bf16.msra.mxu0 %v1644
    %2491 = vmatpush.bf16.msra.mxu0 %v1632
    %2492 = vmatpush.bf16.msra.mxu0 %v1620
    %2493 = vmatpush.bf16.msra.mxu0 %v1608
    %2494 = vmatmul.bf16.gmra.mxu0 %v38
    %v2495 = vpop.f32.mrf.mxu0
    %v2496 = vadd.f32 %v432, %v2495
    %v2497 = vpop.f32.mrf.mxu0
    %v2498 = vadd.f32 %v432, %v2497
    %2499 = vdwg.mxu0
    %2500 = vmatpush.bf16.msra.mxu0 %v1788
    %2501 = vmatpush.bf16.msra.mxu0 %v1776
    %2502 = vmatpush.bf16.msra.mxu0 %v1764
    %2503 = vmatpush.bf16.msra.mxu0 %v1752
    %2504 = vmatpush.bf16.msra.mxu0 %v1740
    %2505 = vmatpush.bf16.msra.mxu0 %v1728
    %2506 = vmatpush.bf16.msra.mxu0 %v1716
    %2507 = vmatpush.bf16.msra.mxu0 %v1704
    %2508 = vmatmul.bf16.gmra.mxu0 %v39
    %v2509 = vpop.f32.mrf.mxu0
    %v2510 = vadd.f32 %v2496, %v2509
    %v2511 = vpop.f32.mrf.mxu0
    %v2512 = vadd.f32 %v2498, %v2511
    %2513 = vdwg.mxu0
    %2514 = vmatpush.bf16.msra.mxu0 %v1884
    %2515 = vmatpush.bf16.msra.mxu0 %v1872
    %2516 = vmatpush.bf16.msra.mxu0 %v1860
    %2517 = vmatpush.bf16.msra.mxu0 %v1848
    %2518 = vmatpush.bf16.msra.mxu0 %v1836
    %2519 = vmatpush.bf16.msra.mxu0 %v1824
    %2520 = vmatpush.bf16.msra.mxu0 %v1812
    %2521 = vmatpush.bf16.msra.mxu0 %v1800
    %2522 = vmatmul.bf16.gmra.mxu0 %v40
    %v2523 = vpop.f32.mrf.mxu0
    %v2524 = vadd.f32 %v2510, %v2523
    %v2525 = vpop.f32.mrf.mxu0
    %v2526 = vadd.f32 %v2512, %v2525
    %2527 = vdwg.mxu0
    %2528 = vmatpush.bf16.msra.mxu0 %v1980
    %2529 = vmatpush.bf16.msra.mxu0 %v1968
    %2530 = vmatpush.bf16.msra.mxu0 %v1956
    %2531 = vmatpush.bf16.msra.mxu0 %v1944
    %2532 = vmatpush.bf16.msra.mxu0 %v1932
    %2533 = vmatpush.bf16.msra.mxu0 %v1920
    %2534 = vmatpush.bf16.msra.mxu0 %v1908
    %2535 = vmatpush.bf16.msra.mxu0 %v1896
    %2536 = vmatmul.bf16.gmra.mxu0 %v41
    %v2537 = vpop.f32.mrf.mxu0
    %v2538 = vadd.f32 %v2524, %v2537
    %v2539 = vpop.f32.mrf.mxu0
    %v2540 = vadd.f32 %v2526, %v2539
    %2541 = vdwg.mxu0
    %2542 = vmatpush.bf16.msra.mxu0 %v1693
    %2543 = vmatpush.bf16.msra.mxu0 %v1681
    %2544 = vmatpush.bf16.msra.mxu0 %v1669
    %2545 = vmatpush.bf16.msra.mxu0 %v1657
    %2546 = vmatpush.bf16.msra.mxu0 %v1645
    %2547 = vmatpush.bf16.msra.mxu0 %v1633
    %2548 = vmatpush.bf16.msra.mxu0 %v1621
    %2549 = vmatpush.bf16.msra.mxu0 %v1609
    %2550 = vmatmul.bf16.gmra.mxu0 %v38
    %v2551 = vpop.f32.mrf.mxu0
    %v2552 = vadd.f32 %v433, %v2551
    %v2553 = vpop.f32.mrf.mxu0
    %v2554 = vadd.f32 %v433, %v2553
    %2555 = vdwg.mxu0
    %2556 = vmatpush.bf16.msra.mxu0 %v1789
    %2557 = vmatpush.bf16.msra.mxu0 %v1777
    %2558 = vmatpush.bf16.msra.mxu0 %v1765
    %2559 = vmatpush.bf16.msra.mxu0 %v1753
    %2560 = vmatpush.bf16.msra.mxu0 %v1741
    %2561 = vmatpush.bf16.msra.mxu0 %v1729
    %2562 = vmatpush.bf16.msra.mxu0 %v1717
    %2563 = vmatpush.bf16.msra.mxu0 %v1705
    %2564 = vmatmul.bf16.gmra.mxu0 %v39
    %v2565 = vpop.f32.mrf.mxu0
    %v2566 = vadd.f32 %v2552, %v2565
    %v2567 = vpop.f32.mrf.mxu0
    %v2568 = vadd.f32 %v2554, %v2567
    %2569 = vdwg.mxu0
    %2570 = vmatpush.bf16.msra.mxu0 %v1885
    %2571 = vmatpush.bf16.msra.mxu0 %v1873
    %2572 = vmatpush.bf16.msra.mxu0 %v1861
    %2573 = vmatpush.bf16.msra.mxu0 %v1849
    %2574 = vmatpush.bf16.msra.mxu0 %v1837
    %2575 = vmatpush.bf16.msra.mxu0 %v1825
    %2576 = vmatpush.bf16.msra.mxu0 %v1813
    %2577 = vmatpush.bf16.msra.mxu0 %v1801
    %2578 = vmatmul.bf16.gmra.mxu0 %v40
    %v2579 = vpop.f32.mrf.mxu0
    %v2580 = vadd.f32 %v2566, %v2579
    %v2581 = vpop.f32.mrf.mxu0
    %v2582 = vadd.f32 %v2568, %v2581
    %2583 = vdwg.mxu0
    %2584 = vmatpush.bf16.msra.mxu0 %v1981
    %2585 = vmatpush.bf16.msra.mxu0 %v1969
    %2586 = vmatpush.bf16.msra.mxu0 %v1957
    %2587 = vmatpush.bf16.msra.mxu0 %v1945
    %2588 = vmatpush.bf16.msra.mxu0 %v1933
    %2589 = vmatpush.bf16.msra.mxu0 %v1921
    %2590 = vmatpush.bf16.msra.mxu0 %v1909
    %2591 = vmatpush.bf16.msra.mxu0 %v1897
    %2592 = vmatmul.bf16.gmra.mxu0 %v41
    %v2593 = vpop.f32.mrf.mxu0
    %v2594 = vadd.f32 %v2580, %v2593
    %v2595 = vpop.f32.mrf.mxu0
    %v2596 = vadd.f32 %v2582, %v2595
    %2597 = vdwg.mxu0
    %2598 = vmatpush.bf16.msra.mxu0 %v1694
    %2599 = vmatpush.bf16.msra.mxu0 %v1682
    %2600 = vmatpush.bf16.msra.mxu0 %v1670
    %2601 = vmatpush.bf16.msra.mxu0 %v1658
    %2602 = vmatpush.bf16.msra.mxu0 %v1646
    %2603 = vmatpush.bf16.msra.mxu0 %v1634
    %2604 = vmatpush.bf16.msra.mxu0 %v1622
    %2605 = vmatpush.bf16.msra.mxu0 %v1610
    %2606 = vmatmul.bf16.gmra.mxu0 %v38
    %v2607 = vpop.f32.mrf.mxu0
    %v2608 = vadd.f32 %v434, %v2607
    %v2609 = vpop.f32.mrf.mxu0
    %v2610 = vadd.f32 %v434, %v2609
    %2611 = vdwg.mxu0
    %2612 = vmatpush.bf16.msra.mxu0 %v1790
    %2613 = vmatpush.bf16.msra.mxu0 %v1778
    %2614 = vmatpush.bf16.msra.mxu0 %v1766
    %2615 = vmatpush.bf16.msra.mxu0 %v1754
    %2616 = vmatpush.bf16.msra.mxu0 %v1742
    %2617 = vmatpush.bf16.msra.mxu0 %v1730
    %2618 = vmatpush.bf16.msra.mxu0 %v1718
    %2619 = vmatpush.bf16.msra.mxu0 %v1706
    %2620 = vmatmul.bf16.gmra.mxu0 %v39
    %v2621 = vpop.f32.mrf.mxu0
    %v2622 = vadd.f32 %v2608, %v2621
    %v2623 = vpop.f32.mrf.mxu0
    %v2624 = vadd.f32 %v2610, %v2623
    %2625 = vdwg.mxu0
    %2626 = vmatpush.bf16.msra.mxu0 %v1886
    %2627 = vmatpush.bf16.msra.mxu0 %v1874
    %2628 = vmatpush.bf16.msra.mxu0 %v1862
    %2629 = vmatpush.bf16.msra.mxu0 %v1850
    %2630 = vmatpush.bf16.msra.mxu0 %v1838
    %2631 = vmatpush.bf16.msra.mxu0 %v1826
    %2632 = vmatpush.bf16.msra.mxu0 %v1814
    %2633 = vmatpush.bf16.msra.mxu0 %v1802
    %2634 = vmatmul.bf16.gmra.mxu0 %v40
    %v2635 = vpop.f32.mrf.mxu0
    %v2636 = vadd.f32 %v2622, %v2635
    %v2637 = vpop.f32.mrf.mxu0
    %v2638 = vadd.f32 %v2624, %v2637
    %2639 = vdwg.mxu0
    %2640 = vmatpush.bf16.msra.mxu0 %v1982
    %2641 = vmatpush.bf16.msra.mxu0 %v1970
    %2642 = vmatpush.bf16.msra.mxu0 %v1958
    %2643 = vmatpush.bf16.msra.mxu0 %v1946
    %2644 = vmatpush.bf16.msra.mxu0 %v1934
    %2645 = vmatpush.bf16.msra.mxu0 %v1922
    %2646 = vmatpush.bf16.msra.mxu0 %v1910
    %2647 = vmatpush.bf16.msra.mxu0 %v1898
    %2648 = vmatmul.bf16.gmra.mxu0 %v41
    %v2649 = vpop.f32.mrf.mxu0
    %v2650 = vadd.f32 %v2636, %v2649
    %v2651 = vpop.f32.mrf.mxu0
    %v2652 = vadd.f32 %v2638, %v2651
    %2653 = vdwg.mxu0
    %2654 = vmatpush.bf16.msra.mxu0 %v1695
    %2655 = vmatpush.bf16.msra.mxu0 %v1683
    %2656 = vmatpush.bf16.msra.mxu0 %v1671
    %2657 = vmatpush.bf16.msra.mxu0 %v1659
    %2658 = vmatpush.bf16.msra.mxu0 %v1647
    %2659 = vmatpush.bf16.msra.mxu0 %v1635
    %2660 = vmatpush.bf16.msra.mxu0 %v1623
    %2661 = vmatpush.bf16.msra.mxu0 %v1611
    %2662 = vmatmul.bf16.gmra.mxu0 %v38
    %v2663 = vpop.f32.mrf.mxu0
    %v2664 = vadd.f32 %v435, %v2663
    %v2665 = vpop.f32.mrf.mxu0
    %v2666 = vadd.f32 %v435, %v2665
    %2667 = vdwg.mxu0
    %2668 = vmatpush.bf16.msra.mxu0 %v1791
    %2669 = vmatpush.bf16.msra.mxu0 %v1779
    %2670 = vmatpush.bf16.msra.mxu0 %v1767
    %2671 = vmatpush.bf16.msra.mxu0 %v1755
    %2672 = vmatpush.bf16.msra.mxu0 %v1743
    %2673 = vmatpush.bf16.msra.mxu0 %v1731
    %2674 = vmatpush.bf16.msra.mxu0 %v1719
    %2675 = vmatpush.bf16.msra.mxu0 %v1707
    %2676 = vmatmul.bf16.gmra.mxu0 %v39
    %v2677 = vpop.f32.mrf.mxu0
    %v2678 = vadd.f32 %v2664, %v2677
    %v2679 = vpop.f32.mrf.mxu0
    %v2680 = vadd.f32 %v2666, %v2679
    %2681 = vdwg.mxu0
    %2682 = vmatpush.bf16.msra.mxu0 %v1887
    %2683 = vmatpush.bf16.msra.mxu0 %v1875
    %2684 = vmatpush.bf16.msra.mxu0 %v1863
    %2685 = vmatpush.bf16.msra.mxu0 %v1851
    %2686 = vmatpush.bf16.msra.mxu0 %v1839
    %2687 = vmatpush.bf16.msra.mxu0 %v1827
    %2688 = vmatpush.bf16.msra.mxu0 %v1815
    %2689 = vmatpush.bf16.msra.mxu0 %v1803
    %2690 = vmatmul.bf16.gmra.mxu0 %v40
    %v2691 = vpop.f32.mrf.mxu0
    %v2692 = vadd.f32 %v2678, %v2691
    %v2693 = vpop.f32.mrf.mxu0
    %v2694 = vadd.f32 %v2680, %v2693
    %2695 = vdwg.mxu0
    %2696 = vmatpush.bf16.msra.mxu0 %v1983
    %2697 = vmatpush.bf16.msra.mxu0 %v1971
    %2698 = vmatpush.bf16.msra.mxu0 %v1959
    %2699 = vmatpush.bf16.msra.mxu0 %v1947
    %2700 = vmatpush.bf16.msra.mxu0 %v1935
    %2701 = vmatpush.bf16.msra.mxu0 %v1923
    %2702 = vmatpush.bf16.msra.mxu0 %v1911
    %2703 = vmatpush.bf16.msra.mxu0 %v1899
    %2704 = vmatmul.bf16.gmra.mxu0 %v41
    %v2705 = vpop.f32.mrf.mxu0
    %v2706 = vadd.f32 %v2692, %v2705
    %v2707 = vpop.f32.mrf.mxu0
    %v2708 = vadd.f32 %v2694, %v2707
    %2709 = vdwg.mxu0
    %2710 = vmatpush.bf16.msra.mxu0 %v1696
    %2711 = vmatpush.bf16.msra.mxu0 %v1684
    %2712 = vmatpush.bf16.msra.mxu0 %v1672
    %2713 = vmatpush.bf16.msra.mxu0 %v1660
    %2714 = vmatpush.bf16.msra.mxu0 %v1648
    %2715 = vmatpush.bf16.msra.mxu0 %v1636
    %2716 = vmatpush.bf16.msra.mxu0 %v1624
    %2717 = vmatpush.bf16.msra.mxu0 %v1612
    %2718 = vmatmul.bf16.gmra.mxu0 %v38
    %v2719 = vpop.f32.mrf.mxu0
    %v2720 = vadd.f32 %v436, %v2719
    %v2721 = vpop.f32.mrf.mxu0
    %v2722 = vadd.f32 %v436, %v2721
    %2723 = vdwg.mxu0
    %2724 = vmatpush.bf16.msra.mxu0 %v1792
    %2725 = vmatpush.bf16.msra.mxu0 %v1780
    %2726 = vmatpush.bf16.msra.mxu0 %v1768
    %2727 = vmatpush.bf16.msra.mxu0 %v1756
    %2728 = vmatpush.bf16.msra.mxu0 %v1744
    %2729 = vmatpush.bf16.msra.mxu0 %v1732
    %2730 = vmatpush.bf16.msra.mxu0 %v1720
    %2731 = vmatpush.bf16.msra.mxu0 %v1708
    %2732 = vmatmul.bf16.gmra.mxu0 %v39
    %v2733 = vpop.f32.mrf.mxu0
    %v2734 = vadd.f32 %v2720, %v2733
    %v2735 = vpop.f32.mrf.mxu0
    %v2736 = vadd.f32 %v2722, %v2735
    %2737 = vdwg.mxu0
    %2738 = vmatpush.bf16.msra.mxu0 %v1888
    %2739 = vmatpush.bf16.msra.mxu0 %v1876
    %2740 = vmatpush.bf16.msra.mxu0 %v1864
    %2741 = vmatpush.bf16.msra.mxu0 %v1852
    %2742 = vmatpush.bf16.msra.mxu0 %v1840
    %2743 = vmatpush.bf16.msra.mxu0 %v1828
    %2744 = vmatpush.bf16.msra.mxu0 %v1816
    %2745 = vmatpush.bf16.msra.mxu0 %v1804
    %2746 = vmatmul.bf16.gmra.mxu0 %v40
    %v2747 = vpop.f32.mrf.mxu0
    %v2748 = vadd.f32 %v2734, %v2747
    %v2749 = vpop.f32.mrf.mxu0
    %v2750 = vadd.f32 %v2736, %v2749
    %2751 = vdwg.mxu0
    %2752 = vmatpush.bf16.msra.mxu0 %v1984
    %2753 = vmatpush.bf16.msra.mxu0 %v1972
    %2754 = vmatpush.bf16.msra.mxu0 %v1960
    %2755 = vmatpush.bf16.msra.mxu0 %v1948
    %2756 = vmatpush.bf16.msra.mxu0 %v1936
    %2757 = vmatpush.bf16.msra.mxu0 %v1924
    %2758 = vmatpush.bf16.msra.mxu0 %v1912
    %2759 = vmatpush.bf16.msra.mxu0 %v1900
    %2760 = vmatmul.bf16.gmra.mxu0 %v41
    %v2761 = vpop.f32.mrf.mxu0
    %v2762 = vadd.f32 %v2748, %v2761
    %v2763 = vpop.f32.mrf.mxu0
    %v2764 = vadd.f32 %v2750, %v2763
    %2765 = vdwg.mxu0
    %2766 = vmatpush.bf16.msra.mxu0 %v1697
    %2767 = vmatpush.bf16.msra.mxu0 %v1685
    %2768 = vmatpush.bf16.msra.mxu0 %v1673
    %2769 = vmatpush.bf16.msra.mxu0 %v1661
    %2770 = vmatpush.bf16.msra.mxu0 %v1649
    %2771 = vmatpush.bf16.msra.mxu0 %v1637
    %2772 = vmatpush.bf16.msra.mxu0 %v1625
    %2773 = vmatpush.bf16.msra.mxu0 %v1613
    %2774 = vmatmul.bf16.gmra.mxu0 %v38
    %v2775 = vpop.f32.mrf.mxu0
    %v2776 = vadd.f32 %v437, %v2775
    %v2777 = vpop.f32.mrf.mxu0
    %v2778 = vadd.f32 %v437, %v2777
    %2779 = vdwg.mxu0
    %2780 = vmatpush.bf16.msra.mxu0 %v1793
    %2781 = vmatpush.bf16.msra.mxu0 %v1781
    %2782 = vmatpush.bf16.msra.mxu0 %v1769
    %2783 = vmatpush.bf16.msra.mxu0 %v1757
    %2784 = vmatpush.bf16.msra.mxu0 %v1745
    %2785 = vmatpush.bf16.msra.mxu0 %v1733
    %2786 = vmatpush.bf16.msra.mxu0 %v1721
    %2787 = vmatpush.bf16.msra.mxu0 %v1709
    %2788 = vmatmul.bf16.gmra.mxu0 %v39
    %v2789 = vpop.f32.mrf.mxu0
    %v2790 = vadd.f32 %v2776, %v2789
    %v2791 = vpop.f32.mrf.mxu0
    %v2792 = vadd.f32 %v2778, %v2791
    %2793 = vdwg.mxu0
    %2794 = vmatpush.bf16.msra.mxu0 %v1889
    %2795 = vmatpush.bf16.msra.mxu0 %v1877
    %2796 = vmatpush.bf16.msra.mxu0 %v1865
    %2797 = vmatpush.bf16.msra.mxu0 %v1853
    %2798 = vmatpush.bf16.msra.mxu0 %v1841
    %2799 = vmatpush.bf16.msra.mxu0 %v1829
    %2800 = vmatpush.bf16.msra.mxu0 %v1817
    %2801 = vmatpush.bf16.msra.mxu0 %v1805
    %2802 = vmatmul.bf16.gmra.mxu0 %v40
    %v2803 = vpop.f32.mrf.mxu0
    %v2804 = vadd.f32 %v2790, %v2803
    %v2805 = vpop.f32.mrf.mxu0
    %v2806 = vadd.f32 %v2792, %v2805
    %2807 = vdwg.mxu0
    %2808 = vmatpush.bf16.msra.mxu0 %v1985
    %2809 = vmatpush.bf16.msra.mxu0 %v1973
    %2810 = vmatpush.bf16.msra.mxu0 %v1961
    %2811 = vmatpush.bf16.msra.mxu0 %v1949
    %2812 = vmatpush.bf16.msra.mxu0 %v1937
    %2813 = vmatpush.bf16.msra.mxu0 %v1925
    %2814 = vmatpush.bf16.msra.mxu0 %v1913
    %2815 = vmatpush.bf16.msra.mxu0 %v1901
    %2816 = vmatmul.bf16.gmra.mxu0 %v41
    %v2817 = vpop.f32.mrf.mxu0
    %v2818 = vadd.f32 %v2804, %v2817
    %v2819 = vpop.f32.mrf.mxu0
    %v2820 = vadd.f32 %v2806, %v2819
    %2821 = vdwg.mxu0
    %2822 = vmatpush.bf16.msra.mxu0 %v1698
    %2823 = vmatpush.bf16.msra.mxu0 %v1686
    %2824 = vmatpush.bf16.msra.mxu0 %v1674
    %2825 = vmatpush.bf16.msra.mxu0 %v1662
    %2826 = vmatpush.bf16.msra.mxu0 %v1650
    %2827 = vmatpush.bf16.msra.mxu0 %v1638
    %2828 = vmatpush.bf16.msra.mxu0 %v1626
    %2829 = vmatpush.bf16.msra.mxu0 %v1614
    %2830 = vmatmul.bf16.gmra.mxu0 %v38
    %v2831 = vpop.f32.mrf.mxu0
    %v2832 = vadd.f32 %v438, %v2831
    %v2833 = vpop.f32.mrf.mxu0
    %v2834 = vadd.f32 %v438, %v2833
    %2835 = vdwg.mxu0
    %2836 = vmatpush.bf16.msra.mxu0 %v1794
    %2837 = vmatpush.bf16.msra.mxu0 %v1782
    %2838 = vmatpush.bf16.msra.mxu0 %v1770
    %2839 = vmatpush.bf16.msra.mxu0 %v1758
    %2840 = vmatpush.bf16.msra.mxu0 %v1746
    %2841 = vmatpush.bf16.msra.mxu0 %v1734
    %2842 = vmatpush.bf16.msra.mxu0 %v1722
    %2843 = vmatpush.bf16.msra.mxu0 %v1710
    %2844 = vmatmul.bf16.gmra.mxu0 %v39
    %v2845 = vpop.f32.mrf.mxu0
    %v2846 = vadd.f32 %v2832, %v2845
    %v2847 = vpop.f32.mrf.mxu0
    %v2848 = vadd.f32 %v2834, %v2847
    %2849 = vdwg.mxu0
    %2850 = vmatpush.bf16.msra.mxu0 %v1890
    %2851 = vmatpush.bf16.msra.mxu0 %v1878
    %2852 = vmatpush.bf16.msra.mxu0 %v1866
    %2853 = vmatpush.bf16.msra.mxu0 %v1854
    %2854 = vmatpush.bf16.msra.mxu0 %v1842
    %2855 = vmatpush.bf16.msra.mxu0 %v1830
    %2856 = vmatpush.bf16.msra.mxu0 %v1818
    %2857 = vmatpush.bf16.msra.mxu0 %v1806
    %2858 = vmatmul.bf16.gmra.mxu0 %v40
    %v2859 = vpop.f32.mrf.mxu0
    %v2860 = vadd.f32 %v2846, %v2859
    %v2861 = vpop.f32.mrf.mxu0
    %v2862 = vadd.f32 %v2848, %v2861
    %2863 = vdwg.mxu0
    %2864 = vmatpush.bf16.msra.mxu0 %v1986
    %2865 = vmatpush.bf16.msra.mxu0 %v1974
    %2866 = vmatpush.bf16.msra.mxu0 %v1962
    %2867 = vmatpush.bf16.msra.mxu0 %v1950
    %2868 = vmatpush.bf16.msra.mxu0 %v1938
    %2869 = vmatpush.bf16.msra.mxu0 %v1926
    %2870 = vmatpush.bf16.msra.mxu0 %v1914
    %2871 = vmatpush.bf16.msra.mxu0 %v1902
    %2872 = vmatmul.bf16.gmra.mxu0 %v41
    %v2873 = vpop.f32.mrf.mxu0
    %v2874 = vadd.f32 %v2860, %v2873
    %v2875 = vpop.f32.mrf.mxu0
    %v2876 = vadd.f32 %v2862, %v2875
    %2877 = vdwg.mxu0
    %2878 = vmatpush.bf16.msra.mxu0 %v1699
    %2879 = vmatpush.bf16.msra.mxu0 %v1687
    %2880 = vmatpush.bf16.msra.mxu0 %v1675
    %2881 = vmatpush.bf16.msra.mxu0 %v1663
    %2882 = vmatpush.bf16.msra.mxu0 %v1651
    %2883 = vmatpush.bf16.msra.mxu0 %v1639
    %2884 = vmatpush.bf16.msra.mxu0 %v1627
    %2885 = vmatpush.bf16.msra.mxu0 %v1615
    %2886 = vmatmul.bf16.gmra.mxu0 %v38
    %v2887 = vpop.f32.mrf.mxu0
    %v2888 = vadd.f32 %v439, %v2887
    %v2889 = vpop.f32.mrf.mxu0
    %v2890 = vadd.f32 %v439, %v2889
    %2891 = vdwg.mxu0
    %2892 = vmatpush.bf16.msra.mxu0 %v1795
    %2893 = vmatpush.bf16.msra.mxu0 %v1783
    %2894 = vmatpush.bf16.msra.mxu0 %v1771
    %2895 = vmatpush.bf16.msra.mxu0 %v1759
    %2896 = vmatpush.bf16.msra.mxu0 %v1747
    %2897 = vmatpush.bf16.msra.mxu0 %v1735
    %2898 = vmatpush.bf16.msra.mxu0 %v1723
    %2899 = vmatpush.bf16.msra.mxu0 %v1711
    %2900 = vmatmul.bf16.gmra.mxu0 %v39
    %v2901 = vpop.f32.mrf.mxu0
    %v2902 = vadd.f32 %v2888, %v2901
    %v2903 = vpop.f32.mrf.mxu0
    %v2904 = vadd.f32 %v2890, %v2903
    %2905 = vdwg.mxu0
    %2906 = vmatpush.bf16.msra.mxu0 %v1891
    %2907 = vmatpush.bf16.msra.mxu0 %v1879
    %2908 = vmatpush.bf16.msra.mxu0 %v1867
    %2909 = vmatpush.bf16.msra.mxu0 %v1855
    %2910 = vmatpush.bf16.msra.mxu0 %v1843
    %2911 = vmatpush.bf16.msra.mxu0 %v1831
    %2912 = vmatpush.bf16.msra.mxu0 %v1819
    %2913 = vmatpush.bf16.msra.mxu0 %v1807
    %2914 = vmatmul.bf16.gmra.mxu0 %v40
    %v2915 = vpop.f32.mrf.mxu0
    %v2916 = vadd.f32 %v2902, %v2915
    %v2917 = vpop.f32.mrf.mxu0
    %v2918 = vadd.f32 %v2904, %v2917
    %2919 = vdwg.mxu0
    %2920 = vmatpush.bf16.msra.mxu0 %v1987
    %2921 = vmatpush.bf16.msra.mxu0 %v1975
    %2922 = vmatpush.bf16.msra.mxu0 %v1963
    %2923 = vmatpush.bf16.msra.mxu0 %v1951
    %2924 = vmatpush.bf16.msra.mxu0 %v1939
    %2925 = vmatpush.bf16.msra.mxu0 %v1927
    %2926 = vmatpush.bf16.msra.mxu0 %v1915
    %2927 = vmatpush.bf16.msra.mxu0 %v1903
    %2928 = vmatmul.bf16.gmra.mxu0 %v41
    %v2929 = vpop.f32.mrf.mxu0
    %v2930 = vadd.f32 %v2916, %v2929
    %v2931 = vpop.f32.mrf.mxu0
    %v2932 = vadd.f32 %v2918, %v2931
    %2933 = vdwg.mxu0
    %2934 = vmatpush.bf16.msra.mxu0 %v1700
    %2935 = vmatpush.bf16.msra.mxu0 %v1688
    %2936 = vmatpush.bf16.msra.mxu0 %v1676
    %2937 = vmatpush.bf16.msra.mxu0 %v1664
    %2938 = vmatpush.bf16.msra.mxu0 %v1652
    %2939 = vmatpush.bf16.msra.mxu0 %v1640
    %2940 = vmatpush.bf16.msra.mxu0 %v1628
    %2941 = vmatpush.bf16.msra.mxu0 %v1616
    %2942 = vmatmul.bf16.gmra.mxu0 %v38
    %v2943 = vpop.f32.mrf.mxu0
    %v2944 = vadd.f32 %v440, %v2943
    %v2945 = vpop.f32.mrf.mxu0
    %v2946 = vadd.f32 %v440, %v2945
    %2947 = vdwg.mxu0
    %2948 = vmatpush.bf16.msra.mxu0 %v1796
    %2949 = vmatpush.bf16.msra.mxu0 %v1784
    %2950 = vmatpush.bf16.msra.mxu0 %v1772
    %2951 = vmatpush.bf16.msra.mxu0 %v1760
    %2952 = vmatpush.bf16.msra.mxu0 %v1748
    %2953 = vmatpush.bf16.msra.mxu0 %v1736
    %2954 = vmatpush.bf16.msra.mxu0 %v1724
    %2955 = vmatpush.bf16.msra.mxu0 %v1712
    %2956 = vmatmul.bf16.gmra.mxu0 %v39
    %v2957 = vpop.f32.mrf.mxu0
    %v2958 = vadd.f32 %v2944, %v2957
    %v2959 = vpop.f32.mrf.mxu0
    %v2960 = vadd.f32 %v2946, %v2959
    %2961 = vdwg.mxu0
    %2962 = vmatpush.bf16.msra.mxu0 %v1892
    %2963 = vmatpush.bf16.msra.mxu0 %v1880
    %2964 = vmatpush.bf16.msra.mxu0 %v1868
    %2965 = vmatpush.bf16.msra.mxu0 %v1856
    %2966 = vmatpush.bf16.msra.mxu0 %v1844
    %2967 = vmatpush.bf16.msra.mxu0 %v1832
    %2968 = vmatpush.bf16.msra.mxu0 %v1820
    %2969 = vmatpush.bf16.msra.mxu0 %v1808
    %2970 = vmatmul.bf16.gmra.mxu0 %v40
    %v2971 = vpop.f32.mrf.mxu0
    %v2972 = vadd.f32 %v2958, %v2971
    %v2973 = vpop.f32.mrf.mxu0
    %v2974 = vadd.f32 %v2960, %v2973
    %2975 = vdwg.mxu0
    %2976 = vmatpush.bf16.msra.mxu0 %v1988
    %2977 = vmatpush.bf16.msra.mxu0 %v1976
    %2978 = vmatpush.bf16.msra.mxu0 %v1964
    %2979 = vmatpush.bf16.msra.mxu0 %v1952
    %2980 = vmatpush.bf16.msra.mxu0 %v1940
    %2981 = vmatpush.bf16.msra.mxu0 %v1928
    %2982 = vmatpush.bf16.msra.mxu0 %v1916
    %2983 = vmatpush.bf16.msra.mxu0 %v1904
    %2984 = vmatmul.bf16.gmra.mxu0 %v41
    %v2985 = vpop.f32.mrf.mxu0
    %v2986 = vadd.f32 %v2972, %v2985
    %v2987 = vpop.f32.mrf.mxu0
    %v2988 = vadd.f32 %v2974, %v2987
    %2989 = vdwg.mxu0
    %2990 = vmatpush.bf16.msra.mxu0 %v1701
    %2991 = vmatpush.bf16.msra.mxu0 %v1689
    %2992 = vmatpush.bf16.msra.mxu0 %v1677
    %2993 = vmatpush.bf16.msra.mxu0 %v1665
    %2994 = vmatpush.bf16.msra.mxu0 %v1653
    %2995 = vmatpush.bf16.msra.mxu0 %v1641
    %2996 = vmatpush.bf16.msra.mxu0 %v1629
    %2997 = vmatpush.bf16.msra.mxu0 %v1617
    %2998 = vmatmul.bf16.gmra.mxu0 %v38
    %v2999 = vpop.f32.mrf.mxu0
    %v3000 = vadd.f32 %v441, %v2999
    %v3001 = vpop.f32.mrf.mxu0
    %v3002 = vadd.f32 %v441, %v3001
    %3003 = vdwg.mxu0
    %3004 = vmatpush.bf16.msra.mxu0 %v1797
    %3005 = vmatpush.bf16.msra.mxu0 %v1785
    %3006 = vmatpush.bf16.msra.mxu0 %v1773
    %3007 = vmatpush.bf16.msra.mxu0 %v1761
    %3008 = vmatpush.bf16.msra.mxu0 %v1749
    %3009 = vmatpush.bf16.msra.mxu0 %v1737
    %3010 = vmatpush.bf16.msra.mxu0 %v1725
    %3011 = vmatpush.bf16.msra.mxu0 %v1713
    %3012 = vmatmul.bf16.gmra.mxu0 %v39
    %v3013 = vpop.f32.mrf.mxu0
    %v3014 = vadd.f32 %v3000, %v3013
    %v3015 = vpop.f32.mrf.mxu0
    %v3016 = vadd.f32 %v3002, %v3015
    %3017 = vdwg.mxu0
    %3018 = vmatpush.bf16.msra.mxu0 %v1893
    %3019 = vmatpush.bf16.msra.mxu0 %v1881
    %3020 = vmatpush.bf16.msra.mxu0 %v1869
    %3021 = vmatpush.bf16.msra.mxu0 %v1857
    %3022 = vmatpush.bf16.msra.mxu0 %v1845
    %3023 = vmatpush.bf16.msra.mxu0 %v1833
    %3024 = vmatpush.bf16.msra.mxu0 %v1821
    %3025 = vmatpush.bf16.msra.mxu0 %v1809
    %3026 = vmatmul.bf16.gmra.mxu0 %v40
    %v3027 = vpop.f32.mrf.mxu0
    %v3028 = vadd.f32 %v3014, %v3027
    %v3029 = vpop.f32.mrf.mxu0
    %v3030 = vadd.f32 %v3016, %v3029
    %3031 = vdwg.mxu0
    %3032 = vmatpush.bf16.msra.mxu0 %v1989
    %3033 = vmatpush.bf16.msra.mxu0 %v1977
    %3034 = vmatpush.bf16.msra.mxu0 %v1965
    %3035 = vmatpush.bf16.msra.mxu0 %v1953
    %3036 = vmatpush.bf16.msra.mxu0 %v1941
    %3037 = vmatpush.bf16.msra.mxu0 %v1929
    %3038 = vmatpush.bf16.msra.mxu0 %v1917
    %3039 = vmatpush.bf16.msra.mxu0 %v1905
    %3040 = vmatmul.bf16.gmra.mxu0 %v41
    %v3041 = vpop.f32.mrf.mxu0
    %v3042 = vadd.f32 %v3028, %v3041
    %v3043 = vpop.f32.mrf.mxu0
    %v3044 = vadd.f32 %v3030, %v3043
    %3045 = vdwg.mxu0
    %3046 = vst [vmem:[%s3] sm:$0xff] %v2426
    %3047 = vst [vmem:[%s3 + $0x8] sm:$0xff] %v2482
    %3048 = vst [vmem:[%s3 + $0x10] sm:$0xff] %v2538
    %3049 = vst [vmem:[%s3 + $0x18] sm:$0xff] %v2594
    %3050 = vst [vmem:[%s3 + $0x20] sm:$0xff] %v2650
    %3051 = vst [vmem:[%s3 + $0x28] sm:$0xff] %v2706
    %3052 = vst [vmem:[%s3 + $0x30] sm:$0xff] %v2762
    %3053 = vst [vmem:[%s3 + $0x38] sm:$0xff] %v2818
    %3054 = vst [vmem:[%s3 + $0x40] sm:$0xff] %v2874
    %3055 = vst [vmem:[%s3 + $0x48] sm:$0xff] %v2930
    %3056 = vst [vmem:[%s3 + $0x50] sm:$0xff] %v2986
    %3057 = vst [vmem:[%s3 + $0x58] sm:$0xff] %v3042
    %3058 = vst [vmem:[%s3 + $0x60] sm:$0xff] %v2428
    %3059 = vst [vmem:[%s3 + $0x68] sm:$0xff] %v2484
    %3060 = vst [vmem:[%s3 + $0x70] sm:$0xff] %v2540
    %3061 = vst [vmem:[%s3 + $0x78] sm:$0xff] %v2596
    %3062 = vst [vmem:[%s3 + $0x80] sm:$0xff] %v2652
    %3063 = vst [vmem:[%s3 + $0x88] sm:$0xff] %v2708
    %3064 = vst [vmem:[%s3 + $0x90] sm:$0xff] %v2764
    %3065 = vst [vmem:[%s3 + $0x98] sm:$0xff] %v2820
    %3066 = vst [vmem:[%s3 + $0xa0] sm:$0xff] %v2876
    %3067 = vst [vmem:[%s3 + $0xa8] sm:$0xff] %v2932
    %3068 = vst [vmem:[%s3 + $0xb0] sm:$0xff] %v2988
    %3069 = vst [vmem:[%s3 + $0xb8] sm:$0xff] %v3044
    // Predicated region
    $region18: #{encoder_forward.24} parent=1 // pred_check
      _
    $region19: #{encoder_forward.24} parent=1 // pred_check_branch
      %3071 = sbr.rel (0) target = $region21
    $region20: #{encoder_forward.24} parent=1 // pred_region
      _
    $region21: #{encoder_forward.24} parent=1 // pred_fallthru
      _
    // Predicated region
    $region22: #{encoder_forward.24} parent=1 // pred_check
      _
    $region23: #{encoder_forward.24} parent=1 // pred_check_branch
      %3073 = sbr.rel (0) target = $region25
    $region24: #{encoder_forward.24} parent=1 // pred_region
      _
    $region25: #{encoder_forward.24} parent=1 // pred_fallthru
      _
    %3074 = vsyncpa [#allocation3], 1

// kernel: encoder_forward.27
$region0: #{encoder_forward.27}
  #allocation0 [shape = 'u32[]', space=smem, size = 0x4, offset = 0x4, fixed_abs, tag = 'smem constant byte address 0x4 - core index']
  #allocation1 [shape = 'u32[72,128]{1,0:T(1,128)}', space=vmem, size = 0x9000, scoped, tag = 'internal scratch']
  %s0 = inlined_call_operand.vmem [shape: f32[16,512], index: 0, kind: input, shape index: {}, may-alias: {0,7}]
  %s1 = inlined_call_operand.hbm [shape: bf16[512,2048], index: 1, kind: input, shape index: {}]
  %s2 = inlined_call_operand.hbm [shape: f32[1,2048], index: 2, kind: input, shape index: {}]
  %s3 = inlined_call_operand.hbm [shape: bf16[2048,512], index: 3, kind: input, shape index: {}]
  %s4 = inlined_call_operand.hbm [shape: f32[1,512], index: 4, kind: input, shape index: {}]
  %s5 = inlined_call_operand.hbm [shape: f32[1,512], index: 5, kind: input, shape index: {}]
  %s6 = inlined_call_operand.hbm [shape: f32[1,512], index: 6, kind: input, shape index: {}]
  %s7 = inlined_call_operand.vmem [shape: f32[16,512], index: 7, kind: output, shape index: {}, may-alias: {0,7}]
  %s8 = sld [smem:[#allocation0]]
  $region62: #{encoder_forward.27} parent=0
    _
  %s10 = ssub.s32 1, %s8
  %s11 = scalar_select 0, %s10, %s8
  $region1: #{encoder_forward.27} parent=0
    #allocation2 [shape = 'u8[2097152]{0}', space=vmem, size = 0x200000, scoped, tag = 'input window, operand 1, single buffered']
    #allocation3 [shape = 's32[1]{0}', space=sflag, size = 0x4, scoped, tag = 'scoped memory for encoder_forward.27']
    #allocation4 [shape = 'u8[8192]{0}', space=vmem, size = 0x2000, scoped, tag = 'input window, operand 2, single buffered']
    #allocation5 [shape = 's32[1]{0}', space=sflag, size = 0x4, scoped, tag = 'scoped memory for encoder_forward.27']
    #allocation6 [shape = 'u8[2097152]{0}', space=vmem, size = 0x200000, scoped, tag = 'input window, operand 3, single buffered']
    #allocation7 [shape = 'u8[2048]{0}', space=vmem, size = 0x800, scoped, tag = 'input window, operand 4, single buffered']
    #allocation8 [shape = 's32[1]{0}', space=sflag, size = 0x4, scoped, tag = 'scoped memory for encoder_forward.27']
    #allocation9 [shape = 'u8[2048]{0}', space=vmem, size = 0x800, scoped, tag = 'input window, operand 5, single buffered']
    #allocation10 [shape = 'u8[2048]{0}', space=vmem, size = 0x800, scoped, tag = 'input window, operand 6, single buffered']
    #allocation11 [shape = 's32[1]{0}', space=sflag, size = 0x4, scoped, tag = 'scoped memory for encoder_forward.27']
    %12 = vsyncpa [#allocation3], 0
    %13 = vsyncpa [#allocation5], 0
    %14 = vsyncpa [#allocation8], 0
    %15 = vsyncpa [#allocation11], 0
    // Predicated region
    $region2: #{encoder_forward.27} parent=1 // pred_check
      _
    $region3: #{encoder_forward.27} parent=1 // pred_check_branch
      %17 = sbr.rel (0) target = $region5
    $region4: #{encoder_forward.27} parent=1 // pred_region
      _
    $region5: #{encoder_forward.27} parent=1 // pred_fallthru
      _
    // Predicated region
    $region6: #{encoder_forward.27} parent=1 // pred_check
      _
    $region7: #{encoder_forward.27} parent=1 // pred_check_branch
      %19 = sbr.rel (0) target = $region9
    $region8: #{encoder_forward.27} parent=1 // pred_region
      %21 = vsyncadd [#allocation3], 0
      %s22 = sshll.u32 %s1, 4
      %s23 = int_to_ptr.hbm [resolvable:$true] %s22
      %s24 = sshll.u32 [#allocation2], 4
      %s25 = int_to_ptr.vmem [resolvable:$true] %s24
      %30 = dma.hbm_to_vmem [thread:$0]  %s23, 65536, %s25, [#allocation3], 1024, 1024, 64
    $region9: #{encoder_forward.27} parent=1 // pred_fallthru
      _
    // Predicated region
    $region10: #{encoder_forward.27} parent=1 // pred_check
      _
    $region11: #{encoder_forward.27} parent=1 // pred_check_branch
      %32 = sbr.rel (0) target = $region13
    $region12: #{encoder_forward.27} parent=1 // pred_region
      %34 = vsyncadd [#allocation5], 0
      %s36 = sshll.u32 %s2, 4
      %s37 = int_to_ptr.hbm [resolvable:$true] %s36
      %s38 = sshll.u32 [#allocation4], 4
      %s39 = int_to_ptr.vmem [resolvable:$true] %s38
      %41 = dma.hbm_to_vmem [thread:$0]  %s37, 256, %s39, [#allocation5]
    $region13: #{encoder_forward.27} parent=1 // pred_fallthru
      _
    // Predicated region
    $region14: #{encoder_forward.27} parent=1 // pred_check
      _
    $region15: #{encoder_forward.27} parent=1 // pred_check_branch
      %43 = sbr.rel (0) target = $region17
    $region16: #{encoder_forward.27} parent=1 // pred_region
      %45 = vsyncadd [#allocation5], 0
      %s46 = sshll.u32 %s3, 4
      %s47 = int_to_ptr.hbm [resolvable:$true] %s46
      %s48 = sshll.u32 [#allocation6], 4
      %s49 = int_to_ptr.vmem [resolvable:$true] %s48
      %54 = dma.hbm_to_vmem [thread:$0]  %s47, 65536, %s49, [#allocation5], 256, 256, 16
    $region17: #{encoder_forward.27} parent=1 // pred_fallthru
      _
    // Predicated region
    $region18: #{encoder_forward.27} parent=1 // pred_check
      _
    $region19: #{encoder_forward.27} parent=1 // pred_check_branch
      %56 = sbr.rel (0) target = $region21
    $region20: #{encoder_forward.27} parent=1 // pred_region
      %58 = vsyncadd [#allocation8], 0
      %s60 = sshll.u32 %s4, 4
      %s61 = int_to_ptr.hbm [resolvable:$true] %s60
      %s62 = sshll.u32 [#allocation7], 4
      %s63 = int_to_ptr.vmem [resolvable:$true] %s62
      %65 = dma.hbm_to_vmem [thread:$0]  %s61, 64, %s63, [#allocation8]
    $region21: #{encoder_forward.27} parent=1 // pred_fallthru
      _
    // Predicated region
    $region22: #{encoder_forward.27} parent=1 // pred_check
      _
    $region23: #{encoder_forward.27} parent=1 // pred_check_branch
      %67 = sbr.rel (0) target = $region25
    $region24: #{encoder_forward.27} parent=1 // pred_region
      %69 = vsyncadd [#allocation8], 0
      %s71 = sshll.u32 %s5, 4
      %s72 = int_to_ptr.hbm [resolvable:$true] %s71
      %s73 = sshll.u32 [#allocation9], 4
      %s74 = int_to_ptr.vmem [resolvable:$true] %s73
      %76 = dma.hbm_to_vmem [thread:$0]  %s72, 64, %s74, [#allocation8]
    $region25: #{encoder_forward.27} parent=1 // pred_fallthru
      _
    // Predicated region
    $region26: #{encoder_forward.27} parent=1 // pred_check
      _
    $region27: #{encoder_forward.27} parent=1 // pred_check_branch
      %78 = sbr.rel (0) target = $region29
    $region28: #{encoder_forward.27} parent=1 // pred_region
      %80 = vsyncadd [#allocation11], 0
      %s82 = sshll.u32 %s6, 4
      %s83 = int_to_ptr.hbm [resolvable:$true] %s82
      %s84 = sshll.u32 [#allocation10], 4
      %s85 = int_to_ptr.vmem [resolvable:$true] %s84
      %87 = dma.hbm_to_vmem [thread:$0]  %s83, 64, %s85, [#allocation11]
    $region29: #{encoder_forward.27} parent=1 // pred_fallthru
      _
    // Predicated region
    $region30: #{encoder_forward.27} parent=1 // pred_check
      _
    $region31: #{encoder_forward.27} parent=1 // pred_check_branch
      %89 = sbr.rel (0) target = $region33
    $region32: #{encoder_forward.27} parent=1 // pred_region
      %91 = dma.done [#allocation3], 65536
    $region33: #{encoder_forward.27} parent=1 // pred_fallthru
      _
    // Predicated region
    $region34: #{encoder_forward.27} parent=1 // pred_check
      _
    $region35: #{encoder_forward.27} parent=1 // pred_check_branch
      %93 = sbr.rel (0) target = $region37
    $region36: #{encoder_forward.27} parent=1 // pred_region
      %95 = dma.done [#allocation5], 256
    $region37: #{encoder_forward.27} parent=1 // pred_fallthru
      _
    // Predicated region
    $region38: #{encoder_forward.27} parent=1 // pred_check
      _
    $region39: #{encoder_forward.27} parent=1 // pred_check_branch
      %97 = sbr.rel (0) target = $region41
    $region40: #{encoder_forward.27} parent=1 // pred_region
      %99 = dma.done [#allocation5], 65536
    $region41: #{encoder_forward.27} parent=1 // pred_fallthru
      _
    // Predicated region
    $region42: #{encoder_forward.27} parent=1 // pred_check
      _
    $region43: #{encoder_forward.27} parent=1 // pred_check_branch
      %101 = sbr.rel (0) target = $region45
    $region44: #{encoder_forward.27} parent=1 // pred_region
      %103 = dma.done [#allocation8], 64
    $region45: #{encoder_forward.27} parent=1 // pred_fallthru
      _
    // Predicated region
    $region46: #{encoder_forward.27} parent=1 // pred_check
      _
    $region47: #{encoder_forward.27} parent=1 // pred_check_branch
      %105 = sbr.rel (0) target = $region49
    $region48: #{encoder_forward.27} parent=1 // pred_region
      %107 = dma.done [#allocation8], 64
    $region49: #{encoder_forward.27} parent=1 // pred_fallthru
      _
    // Predicated region
    $region50: #{encoder_forward.27} parent=1 // pred_check
      _
    $region51: #{encoder_forward.27} parent=1 // pred_check_branch
      %109 = sbr.rel (0) target = $region53
    $region52: #{encoder_forward.27} parent=1 // pred_region
      %111 = dma.done [#allocation11], 64
    $region53: #{encoder_forward.27} parent=1 // pred_fallthru
      _
    %v112 = vld [vmem:[%s0] sm:$0xff]
    %v113 = vld [vmem:[%s0 + $0x8] sm:$0xff]
    %v114 = vld [vmem:[%s0 + $0x10] sm:$0xff]
    %v115 = vld [vmem:[%s0 + $0x18] sm:$0xff]
    %v116 = vld [vmem:[%s0 + $0x20] sm:$0xff]
    %v117 = vld [vmem:[%s0 + $0x28] sm:$0xff]
    %v118 = vld [vmem:[%s0 + $0x30] sm:$0xff]
    %v119 = vld [vmem:[%s0 + $0x38] sm:$0xff]
    %v120 = vpack.c.bf16 %v116, %v112
    %v121 = vpack.c.bf16 %v117, %v113
    %v122 = vpack.c.bf16 %v118, %v114
    %v123 = vpack.c.bf16 %v119, %v115
    %v124 = vld [vmem:[#allocation2] sm:$0xff]
    %v125 = vld [vmem:[#allocation2 + $0x8] sm:$0xff]
    %v126 = vld [vmem:[#allocation2 + $0x10] sm:$0xff]
    %v127 = vld [vmem:[#allocation2 + $0x18] sm:$0xff]
    %v128 = vld [vmem:[#allocation2 + $0x20] sm:$0xff]
    %v129 = vld [vmem:[#allocation2 + $0x28] sm:$0xff]
    %v130 = vld [vmem:[#allocation2 + $0x30] sm:$0xff]
    %v131 = vld [vmem:[#allocation2 + $0x38] sm:$0xff]
    %v132 = vld [vmem:[#allocation2 + $0x40] sm:$0xff]
    %v133 = vld [vmem:[#allocation2 + $0x48] sm:$0xff]
    %v134 = vld [vmem:[#allocation2 + $0x50] sm:$0xff]
    %v135 = vld [vmem:[#allocation2 + $0x58] sm:$0xff]
    %v136 = vld [vmem:[#allocation2 + $0x60] sm:$0xff]
    %v137 = vld [vmem:[#allocation2 + $0x68] sm:$0xff]
    %v138 = vld [vmem:[#allocation2 + $0x70] sm:$0xff]
    %v139 = vld [vmem:[#allocation2 + $0x78] sm:$0xff]
    %v140 = vld [vmem:[#allocation2 + $0x80] sm:$0xff]
    %v141 = vld [vmem:[#allocation2 + $0x88] sm:$0xff]
    %v142 = vld [vmem:[#allocation2 + $0x90] sm:$0xff]
    %v143 = vld [vmem:[#allocation2 + $0x98] sm:$0xff]
    %v144 = vld [vmem:[#allocation2 + $0xa0] sm:$0xff]
    %v145 = vld [vmem:[#allocation2 + $0xa8] sm:$0xff]
    %v146 = vld [vmem:[#allocation2 + $0xb0] sm:$0xff]
    %v147 = vld [vmem:[#allocation2 + $0xb8] sm:$0xff]
    %v148 = vld [vmem:[#allocation2 + $0xc0] sm:$0xff]
    %v149 = vld [vmem:[#allocation2 + $0xc8] sm:$0xff]
    %v150 = vld [vmem:[#allocation2 + $0xd0] sm:$0xff]
    %v151 = vld [vmem:[#allocation2 + $0xd8] sm:$0xff]
    %v152 = vld [vmem:[#allocation2 + $0xe0] sm:$0xff]
    %v153 = vld [vmem:[#allocation2 + $0xe8] sm:$0xff]
    %v154 = vld [vmem:[#allocation2 + $0xf0] sm:$0xff]
    %v155 = vld [vmem:[#allocation2 + $0xf8] sm:$0xff]
    %v156 = vld [vmem:[#allocation2 + $0x100] sm:$0xff]
    %v157 = vld [vmem:[#allocation2 + $0x108] sm:$0xff]
    %v158 = vld [vmem:[#allocation2 + $0x110] sm:$0xff]
    %v159 = vld [vmem:[#allocation2 + $0x118] sm:$0xff]
    %v160 = vld [vmem:[#allocation2 + $0x120] sm:$0xff]
    %v161 = vld [vmem:[#allocation2 + $0x128] sm:$0xff]
    %v162 = vld [vmem:[#allocation2 + $0x130] sm:$0xff]
    %v163 = vld [vmem:[#allocation2 + $0x138] sm:$0xff]
    %v164 = vld [vmem:[#allocation2 + $0x140] sm:$0xff]
    %v165 = vld [vmem:[#allocation2 + $0x148] sm:$0xff]
    %v166 = vld [vmem:[#allocation2 + $0x150] sm:$0xff]
    %v167 = vld [vmem:[#allocation2 + $0x158] sm:$0xff]
    %v168 = vld [vmem:[#allocation2 + $0x160] sm:$0xff]
    %v169 = vld [vmem:[#allocation2 + $0x168] sm:$0xff]
    %v170 = vld [vmem:[#allocation2 + $0x170] sm:$0xff]
    %v171 = vld [vmem:[#allocation2 + $0x178] sm:$0xff]
    %v172 = vld [vmem:[#allocation2 + $0x180] sm:$0xff]
    %v173 = vld [vmem:[#allocation2 + $0x188] sm:$0xff]
    %v174 = vld [vmem:[#allocation2 + $0x190] sm:$0xff]
    %v175 = vld [vmem:[#allocation2 + $0x198] sm:$0xff]
    %v176 = vld [vmem:[#allocation2 + $0x1a0] sm:$0xff]
    %v177 = vld [vmem:[#allocation2 + $0x1a8] sm:$0xff]
    %v178 = vld [vmem:[#allocation2 + $0x1b0] sm:$0xff]
    %v179 = vld [vmem:[#allocation2 + $0x1b8] sm:$0xff]
    %v180 = vld [vmem:[#allocation2 + $0x1c0] sm:$0xff]
    %v181 = vld [vmem:[#allocation2 + $0x1c8] sm:$0xff]
    %v182 = vld [vmem:[#allocation2 + $0x1d0] sm:$0xff]
    %v183 = vld [vmem:[#allocation2 + $0x1d8] sm:$0xff]
    %v184 = vld [vmem:[#allocation2 + $0x1e0] sm:$0xff]
    %v185 = vld [vmem:[#allocation2 + $0x1e8] sm:$0xff]
    %v186 = vld [vmem:[#allocation2 + $0x1f0] sm:$0xff]
    %v187 = vld [vmem:[#allocation2 + $0x1f8] sm:$0xff]
    %v188 = vld [vmem:[#allocation2 + $0x200] sm:$0xff]
    %v189 = vld [vmem:[#allocation2 + $0x208] sm:$0xff]
    %v190 = vld [vmem:[#allocation2 + $0x210] sm:$0xff]
    %v191 = vld [vmem:[#allocation2 + $0x218] sm:$0xff]
    %v192 = vld [vmem:[#allocation2 + $0x220] sm:$0xff]
    %v193 = vld [vmem:[#allocation2 + $0x228] sm:$0xff]
    %v194 = vld [vmem:[#allocation2 + $0x230] sm:$0xff]
    %v195 = vld [vmem:[#allocation2 + $0x238] sm:$0xff]
    %v196 = vld [vmem:[#allocation2 + $0x240] sm:$0xff]
    %v197 = vld [vmem:[#allocation2 + $0x248] sm:$0xff]
    %v198 = vld [vmem:[#allocation2 + $0x250] sm:$0xff]
    %v199 = vld [vmem:[#allocation2 + $0x258] sm:$0xff]
    %v200 = vld [vmem:[#allocation2 + $0x260] sm:$0xff]
    %v201 = vld [vmem:[#allocation2 + $0x268] sm:$0xff]
    %v202 = vld [vmem:[#allocation2 + $0x270] sm:$0xff]
    %v203 = vld [vmem:[#allocation2 + $0x278] sm:$0xff]
    %v204 = vld [vmem:[#allocation2 + $0x280] sm:$0xff]
    %v205 = vld [vmem:[#allocation2 + $0x288] sm:$0xff]
    %v206 = vld [vmem:[#allocation2 + $0x290] sm:$0xff]
    %v207 = vld [vmem:[#allocation2 + $0x298] sm:$0xff]
    %v208 = vld [vmem:[#allocation2 + $0x2a0] sm:$0xff]
    %v209 = vld [vmem:[#allocation2 + $0x2a8] sm:$0xff]
    %v210 = vld [vmem:[#allocation2 + $0x2b0] sm:$0xff]
    %v211 = vld [vmem:[#allocation2 + $0x2b8] sm:$0xff]
    %v212 = vld [vmem:[#allocation2 + $0x2c0] sm:$0xff]
    %v213 = vld [vmem:[#allocation2 + $0x2c8] sm:$0xff]
    %v214 = vld [vmem:[#allocation2 + $0x2d0] sm:$0xff]
    %v215 = vld [vmem:[#allocation2 + $0x2d8] sm:$0xff]
    %v216 = vld [vmem:[#allocation2 + $0x2e0] sm:$0xff]
    %v217 = vld [vmem:[#allocation2 + $0x2e8] sm:$0xff]
    %v218 = vld [vmem:[#allocation2 + $0x2f0] sm:$0xff]
    %v219 = vld [vmem:[#allocation2 + $0x2f8] sm:$0xff]
    %v220 = vld [vmem:[#allocation2 + $0x300] sm:$0xff]
    %v221 = vld [vmem:[#allocation2 + $0x308] sm:$0xff]
    %v222 = vld [vmem:[#allocation2 + $0x310] sm:$0xff]
    %v223 = vld [vmem:[#allocation2 + $0x318] sm:$0xff]
    %v224 = vld [vmem:[#allocation2 + $0x320] sm:$0xff]
    %v225 = vld [vmem:[#allocation2 + $0x328] sm:$0xff]
    %v226 = vld [vmem:[#allocation2 + $0x330] sm:$0xff]
    %v227 = vld [vmem:[#allocation2 + $0x338] sm:$0xff]
    %v228 = vld [vmem:[#allocation2 + $0x340] sm:$0xff]
    %v229 = vld [vmem:[#allocation2 + $0x348] sm:$0xff]
    %v230 = vld [vmem:[#allocation2 + $0x350] sm:$0xff]
    %v231 = vld [vmem:[#allocation2 + $0x358] sm:$0xff]
    %v232 = vld [vmem:[#allocation2 + $0x360] sm:$0xff]
    %v233 = vld [vmem:[#allocation2 + $0x368] sm:$0xff]
    %v234 = vld [vmem:[#allocation2 + $0x370] sm:$0xff]
    %v235 = vld [vmem:[#allocation2 + $0x378] sm:$0xff]
    %v236 = vld [vmem:[#allocation2 + $0x380] sm:$0xff]
    %v237 = vld [vmem:[#allocation2 + $0x388] sm:$0xff]
    %v238 = vld [vmem:[#allocation2 + $0x390] sm:$0xff]
    %v239 = vld [vmem:[#allocation2 + $0x398] sm:$0xff]
    %v240 = vld [vmem:[#allocation2 + $0x3a0] sm:$0xff]
    %v241 = vld [vmem:[#allocation2 + $0x3a8] sm:$0xff]
    %v242 = vld [vmem:[#allocation2 + $0x3b0] sm:$0xff]
    %v243 = vld [vmem:[#allocation2 + $0x3b8] sm:$0xff]
    %v244 = vld [vmem:[#allocation2 + $0x3c0] sm:$0xff]
    %v245 = vld [vmem:[#allocation2 + $0x3c8] sm:$0xff]
    %v246 = vld [vmem:[#allocation2 + $0x3d0] sm:$0xff]
    %v247 = vld [vmem:[#allocation2 + $0x3d8] sm:$0xff]
    %v248 = vld [vmem:[#allocation2 + $0x3e0] sm:$0xff]
    %v249 = vld [vmem:[#allocation2 + $0x3e8] sm:$0xff]
    %v250 = vld [vmem:[#allocation2 + $0x3f0] sm:$0xff]
    %v251 = vld [vmem:[#allocation2 + $0x3f8] sm:$0xff]
    %v252 = vld [vmem:[#allocation2 + $0x400] sm:$0xff]
    %v253 = vld [vmem:[#allocation2 + $0x408] sm:$0xff]
    %v254 = vld [vmem:[#allocation2 + $0x410] sm:$0xff]
    %v255 = vld [vmem:[#allocation2 + $0x418] sm:$0xff]
    %v256 = vld [vmem:[#allocation2 + $0x420] sm:$0xff]
    %v257 = vld [vmem:[#allocation2 + $0x428] sm:$0xff]
    %v258 = vld [vmem:[#allocation2 + $0x430] sm:$0xff]
    %v259 = vld [vmem:[#allocation2 + $0x438] sm:$0xff]
    %v260 = vld [vmem:[#allocation2 + $0x440] sm:$0xff]
    %v261 = vld [vmem:[#allocation2 + $0x448] sm:$0xff]
    %v262 = vld [vmem:[#allocation2 + $0x450] sm:$0xff]
    %v263 = vld [vmem:[#allocation2 + $0x458] sm:$0xff]
    %v264 = vld [vmem:[#allocation2 + $0x460] sm:$0xff]
    %v265 = vld [vmem:[#allocation2 + $0x468] sm:$0xff]
    %v266 = vld [vmem:[#allocation2 + $0x470] sm:$0xff]
    %v267 = vld [vmem:[#allocation2 + $0x478] sm:$0xff]
    %v268 = vld [vmem:[#allocation2 + $0x480] sm:$0xff]
    %v269 = vld [vmem:[#allocation2 + $0x488] sm:$0xff]
    %v270 = vld [vmem:[#allocation2 + $0x490] sm:$0xff]
    %v271 = vld [vmem:[#allocation2 + $0x498] sm:$0xff]
    %v272 = vld [vmem:[#allocation2 + $0x4a0] sm:$0xff]
    %v273 = vld [vmem:[#allocation2 + $0x4a8] sm:$0xff]
    %v274 = vld [vmem:[#allocation2 + $0x4b0] sm:$0xff]
    %v275 = vld [vmem:[#allocation2 + $0x4b8] sm:$0xff]
    %v276 = vld [vmem:[#allocation2 + $0x4c0] sm:$0xff]
    %v277 = vld [vmem:[#allocation2 + $0x4c8] sm:$0xff]
    %v278 = vld [vmem:[#allocation2 + $0x4d0] sm:$0xff]
    %v279 = vld [vmem:[#allocation2 + $0x4d8] sm:$0xff]
    %v280 = vld [vmem:[#allocation2 + $0x4e0] sm:$0xff]
    %v281 = vld [vmem:[#allocation2 + $0x4e8] sm:$0xff]
    %v282 = vld [vmem:[#allocation2 + $0x4f0] sm:$0xff]
    %v283 = vld [vmem:[#allocation2 + $0x4f8] sm:$0xff]
    %v284 = vld [vmem:[#allocation2 + $0x500] sm:$0xff]
    %v285 = vld [vmem:[#allocation2 + $0x508] sm:$0xff]
    %v286 = vld [vmem:[#allocation2 + $0x510] sm:$0xff]
    %v287 = vld [vmem:[#allocation2 + $0x518] sm:$0xff]
    %v288 = vld [vmem:[#allocation2 + $0x520] sm:$0xff]
    %v289 = vld [vmem:[#allocation2 + $0x528] sm:$0xff]
    %v290 = vld [vmem:[#allocation2 + $0x530] sm:$0xff]
    %v291 = vld [vmem:[#allocation2 + $0x538] sm:$0xff]
    %v292 = vld [vmem:[#allocation2 + $0x540] sm:$0xff]
    %v293 = vld [vmem:[#allocation2 + $0x548] sm:$0xff]
    %v294 = vld [vmem:[#allocation2 + $0x550] sm:$0xff]
    %v295 = vld [vmem:[#allocation2 + $0x558] sm:$0xff]
    %v296 = vld [vmem:[#allocation2 + $0x560] sm:$0xff]
    %v297 = vld [vmem:[#allocation2 + $0x568] sm:$0xff]
    %v298 = vld [vmem:[#allocation2 + $0x570] sm:$0xff]
    %v299 = vld [vmem:[#allocation2 + $0x578] sm:$0xff]
    %v300 = vld [vmem:[#allocation2 + $0x580] sm:$0xff]
    %v301 = vld [vmem:[#allocation2 + $0x588] sm:$0xff]
    %v302 = vld [vmem:[#allocation2 + $0x590] sm:$0xff]
    %v303 = vld [vmem:[#allocation2 + $0x598] sm:$0xff]
    %v304 = vld [vmem:[#allocation2 + $0x5a0] sm:$0xff]
    %v305 = vld [vmem:[#allocation2 + $0x5a8] sm:$0xff]
    %v306 = vld [vmem:[#allocation2 + $0x5b0] sm:$0xff]
    %v307 = vld [vmem:[#allocation2 + $0x5b8] sm:$0xff]
    %v308 = vld [vmem:[#allocation2 + $0x5c0] sm:$0xff]
    %v309 = vld [vmem:[#allocation2 + $0x5c8] sm:$0xff]
    %v310 = vld [vmem:[#allocation2 + $0x5d0] sm:$0xff]
    %v311 = vld [vmem:[#allocation2 + $0x5d8] sm:$0xff]
    %v312 = vld [vmem:[#allocation2 + $0x5e0] sm:$0xff]
    %v313 = vld [vmem:[#allocation2 + $0x5e8] sm:$0xff]
    %v314 = vld [vmem:[#allocation2 + $0x5f0] sm:$0xff]
    %v315 = vld [vmem:[#allocation2 + $0x5f8] sm:$0xff]
    %v316 = vld [vmem:[#allocation2 + $0x600] sm:$0xff]
    %v317 = vld [vmem:[#allocation2 + $0x608] sm:$0xff]
    %v318 = vld [vmem:[#allocation2 + $0x610] sm:$0xff]
    %v319 = vld [vmem:[#allocation2 + $0x618] sm:$0xff]
    %v320 = vld [vmem:[#allocation2 + $0x620] sm:$0xff]
    %v321 = vld [vmem:[#allocation2 + $0x628] sm:$0xff]
    %v322 = vld [vmem:[#allocation2 + $0x630] sm:$0xff]
    %v323 = vld [vmem:[#allocation2 + $0x638] sm:$0xff]
    %v324 = vld [vmem:[#allocation2 + $0x640] sm:$0xff]
    %v325 = vld [vmem:[#allocation2 + $0x648] sm:$0xff]
    %v326 = vld [vmem:[#allocation2 + $0x650] sm:$0xff]
    %v327 = vld [vmem:[#allocation2 + $0x658] sm:$0xff]
    %v328 = vld [vmem:[#allocation2 + $0x660] sm:$0xff]
    %v329 = vld [vmem:[#allocation2 + $0x668] sm:$0xff]
    %v330 = vld [vmem:[#allocation2 + $0x670] sm:$0xff]
    %v331 = vld [vmem:[#allocation2 + $0x678] sm:$0xff]
    %v332 = vld [vmem:[#allocation2 + $0x680] sm:$0xff]
    %v333 = vld [vmem:[#allocation2 + $0x688] sm:$0xff]
    %v334 = vld [vmem:[#allocation2 + $0x690] sm:$0xff]
    %v335 = vld [vmem:[#allocation2 + $0x698] sm:$0xff]
    %v336 = vld [vmem:[#allocation2 + $0x6a0] sm:$0xff]
    %v337 = vld [vmem:[#allocation2 + $0x6a8] sm:$0xff]
    %v338 = vld [vmem:[#allocation2 + $0x6b0] sm:$0xff]
    %v339 = vld [vmem:[#allocation2 + $0x6b8] sm:$0xff]
    %v340 = vld [vmem:[#allocation2 + $0x6c0] sm:$0xff]
    %v341 = vld [vmem:[#allocation2 + $0x6c8] sm:$0xff]
    %v342 = vld [vmem:[#allocation2 + $0x6d0] sm:$0xff]
    %v343 = vld [vmem:[#allocation2 + $0x6d8] sm:$0xff]
    %v344 = vld [vmem:[#allocation2 + $0x6e0] sm:$0xff]
    %v345 = vld [vmem:[#allocation2 + $0x6e8] sm:$0xff]
    %v346 = vld [vmem:[#allocation2 + $0x6f0] sm:$0xff]
    %v347 = vld [vmem:[#allocation2 + $0x6f8] sm:$0xff]
    %v348 = vld [vmem:[#allocation2 + $0x700] sm:$0xff]
    %v349 = vld [vmem:[#allocation2 + $0x708] sm:$0xff]
    %v350 = vld [vmem:[#allocation2 + $0x710] sm:$0xff]
    %v351 = vld [vmem:[#allocation2 + $0x718] sm:$0xff]
    %v352 = vld [vmem:[#allocation2 + $0x720] sm:$0xff]
    %v353 = vld [vmem:[#allocation2 + $0x728] sm:$0xff]
    %v354 = vld [vmem:[#allocation2 + $0x730] sm:$0xff]
    %v355 = vld [vmem:[#allocation2 + $0x738] sm:$0xff]
    %v356 = vld [vmem:[#allocation2 + $0x740] sm:$0xff]
    %v357 = vld [vmem:[#allocation2 + $0x748] sm:$0xff]
    %v358 = vld [vmem:[#allocation2 + $0x750] sm:$0xff]
    %v359 = vld [vmem:[#allocation2 + $0x758] sm:$0xff]
    %v360 = vld [vmem:[#allocation2 + $0x760] sm:$0xff]
    %v361 = vld [vmem:[#allocation2 + $0x768] sm:$0xff]
    %v362 = vld [vmem:[#allocation2 + $0x770] sm:$0xff]
    %v363 = vld [vmem:[#allocation2 + $0x778] sm:$0xff]
    %v364 = vld [vmem:[#allocation2 + $0x780] sm:$0xff]
    %v365 = vld [vmem:[#allocation2 + $0x788] sm:$0xff]
    %v366 = vld [vmem:[#allocation2 + $0x790] sm:$0xff]
    %v367 = vld [vmem:[#allocation2 + $0x798] sm:$0xff]
    %v368 = vld [vmem:[#allocation2 + $0x7a0] sm:$0xff]
    %v369 = vld [vmem:[#allocation2 + $0x7a8] sm:$0xff]
    %v370 = vld [vmem:[#allocation2 + $0x7b0] sm:$0xff]
    %v371 = vld [vmem:[#allocation2 + $0x7b8] sm:$0xff]
    %v372 = vld [vmem:[#allocation2 + $0x7c0] sm:$0xff]
    %v373 = vld [vmem:[#allocation2 + $0x7c8] sm:$0xff]
    %v374 = vld [vmem:[#allocation2 + $0x7d0] sm:$0xff]
    %v375 = vld [vmem:[#allocation2 + $0x7d8] sm:$0xff]
    %v376 = vld [vmem:[#allocation2 + $0x7e0] sm:$0xff]
    %v377 = vld [vmem:[#allocation2 + $0x7e8] sm:$0xff]
    %v378 = vld [vmem:[#allocation2 + $0x7f0] sm:$0xff]
    %v379 = vld [vmem:[#allocation2 + $0x7f8] sm:$0xff]
    %v380 = vld [vmem:[#allocation2 + $0x800] sm:$0xff]
    %v381 = vld [vmem:[#allocation2 + $0x808] sm:$0xff]
    %v382 = vld [vmem:[#allocation2 + $0x810] sm:$0xff]
    %v383 = vld [vmem:[#allocation2 + $0x818] sm:$0xff]
    %v384 = vld [vmem:[#allocation2 + $0x820] sm:$0xff]
    %v385 = vld [vmem:[#allocation2 + $0x828] sm:$0xff]
    %v386 = vld [vmem:[#allocation2 + $0x830] sm:$0xff]
    %v387 = vld [vmem:[#allocation2 + $0x838] sm:$0xff]
    %v388 = vld [vmem:[#allocation2 + $0x840] sm:$0xff]
    %v389 = vld [vmem:[#allocation2 + $0x848] sm:$0xff]
    %v390 = vld [vmem:[#allocation2 + $0x850] sm:$0xff]
    %v391 = vld [vmem:[#allocation2 + $0x858] sm:$0xff]
    %v392 = vld [vmem:[#allocation2 + $0x860] sm:$0xff]
    %v393 = vld [vmem:[#allocation2 + $0x868] sm:$0xff]
    %v394 = vld [vmem:[#allocation2 + $0x870] sm:$0xff]
    %v395 = vld [vmem:[#allocation2 + $0x878] sm:$0xff]
    %v396 = vld [vmem:[#allocation2 + $0x880] sm:$0xff]
    %v397 = vld [vmem:[#allocation2 + $0x888] sm:$0xff]
    %v398 = vld [vmem:[#allocation2 + $0x890] sm:$0xff]
    %v399 = vld [vmem:[#allocation2 + $0x898] sm:$0xff]
    %v400 = vld [vmem:[#allocation2 + $0x8a0] sm:$0xff]
    %v401 = vld [vmem:[#allocation2 + $0x8a8] sm:$0xff]
    %v402 = vld [vmem:[#allocation2 + $0x8b0] sm:$0xff]
    %v403 = vld [vmem:[#allocation2 + $0x8b8] sm:$0xff]
    %v404 = vld [vmem:[#allocation2 + $0x8c0] sm:$0xff]
    %v405 = vld [vmem:[#allocation2 + $0x8c8] sm:$0xff]
    %v406 = vld [vmem:[#allocation2 + $0x8d0] sm:$0xff]
    %v407 = vld [vmem:[#allocation2 + $0x8d8] sm:$0xff]
    %v408 = vld [vmem:[#allocation2 + $0x8e0] sm:$0xff]
    %v409 = vld [vmem:[#allocation2 + $0x8e8] sm:$0xff]
    %v410 = vld [vmem:[#allocation2 + $0x8f0] sm:$0xff]
    %v411 = vld [vmem:[#allocation2 + $0x8f8] sm:$0xff]
    %v412 = vld [vmem:[#allocation2 + $0x900] sm:$0xff]
    %v413 = vld [vmem:[#allocation2 + $0x908] sm:$0xff]
    %v414 = vld [vmem:[#allocation2 + $0x910] sm:$0xff]
    %v415 = vld [vmem:[#allocation2 + $0x918] sm:$0xff]
    %v416 = vld [vmem:[#allocation2 + $0x920] sm:$0xff]
    %v417 = vld [vmem:[#allocation2 + $0x928] sm:$0xff]
    %v418 = vld [vmem:[#allocation2 + $0x930] sm:$0xff]
    %v419 = vld [vmem:[#allocation2 + $0x938] sm:$0xff]
    %v420 = vld [vmem:[#allocation2 + $0x940] sm:$0xff]
    %v421 = vld [vmem:[#allocation2 + $0x948] sm:$0xff]
    %v422 = vld [vmem:[#allocation2 + $0x950] sm:$0xff]
    %v423 = vld [vmem:[#allocation2 + $0x958] sm:$0xff]
    %v424 = vld [vmem:[#allocation2 + $0x960] sm:$0xff]
    %v425 = vld [vmem:[#allocation2 + $0x968] sm:$0xff]
    %v426 = vld [vmem:[#allocation2 + $0x970] sm:$0xff]
    %v427 = vld [vmem:[#allocation2 + $0x978] sm:$0xff]
    %v428 = vld [vmem:[#allocation2 + $0x980] sm:$0xff]
    %v429 = vld [vmem:[#allocation2 + $0x988] sm:$0xff]
    %v430 = vld [vmem:[#allocation2 + $0x990] sm:$0xff]
    %v431 = vld [vmem:[#allocation2 + $0x998] sm:$0xff]
    %v432 = vld [vmem:[#allocation2 + $0x9a0] sm:$0xff]
    %v433 = vld [vmem:[#allocation2 + $0x9a8] sm:$0xff]
    %v434 = vld [vmem:[#allocation2 + $0x9b0] sm:$0xff]
    %v435 = vld [vmem:[#allocation2 + $0x9b8] sm:$0xff]
    %v436 = vld [vmem:[#allocation2 + $0x9c0] sm:$0xff]
    %v437 = vld [vmem:[#allocation2 + $0x9c8] sm:$0xff]
    %v438 = vld [vmem:[#allocation2 + $0x9d0] sm:$0xff]
    %v439 = vld [vmem:[#allocation2 + $0x9d8] sm:$0xff]
    %v440 = vld [vmem:[#allocation2 + $0x9e0] sm:$0xff]
    %v441 = vld [vmem:[#allocation2 + $0x9e8] sm:$0xff]
    %v442 = vld [vmem:[#allocation2 + $0x9f0] sm:$0xff]
    %v443 = vld [vmem:[#allocation2 + $0x9f8] sm:$0xff]
    %v444 = vld [vmem:[#allocation2 + $0xa00] sm:$0xff]
    %v445 = vld [vmem:[#allocation2 + $0xa08] sm:$0xff]
    %v446 = vld [vmem:[#allocation2 + $0xa10] sm:$0xff]
    %v447 = vld [vmem:[#allocation2 + $0xa18] sm:$0xff]
    %v448 = vld [vmem:[#allocation2 + $0xa20] sm:$0xff]
    %v449 = vld [vmem:[#allocation2 + $0xa28] sm:$0xff]
    %v450 = vld [vmem:[#allocation2 + $0xa30] sm:$0xff]
    %v451 = vld [vmem:[#allocation2 + $0xa38] sm:$0xff]
    %v452 = vld [vmem:[#allocation2 + $0xa40] sm:$0xff]
    %v453 = vld [vmem:[#allocation2 + $0xa48] sm:$0xff]
    %v454 = vld [vmem:[#allocation2 + $0xa50] sm:$0xff]
    %v455 = vld [vmem:[#allocation2 + $0xa58] sm:$0xff]
    %v456 = vld [vmem:[#allocation2 + $0xa60] sm:$0xff]
    %v457 = vld [vmem:[#allocation2 + $0xa68] sm:$0xff]
    %v458 = vld [vmem:[#allocation2 + $0xa70] sm:$0xff]
    %v459 = vld [vmem:[#allocation2 + $0xa78] sm:$0xff]
    %v460 = vld [vmem:[#allocation2 + $0xa80] sm:$0xff]
    %v461 = vld [vmem:[#allocation2 + $0xa88] sm:$0xff]
    %v462 = vld [vmem:[#allocation2 + $0xa90] sm:$0xff]
    %v463 = vld [vmem:[#allocation2 + $0xa98] sm:$0xff]
    %v464 = vld [vmem:[#allocation2 + $0xaa0] sm:$0xff]
    %v465 = vld [vmem:[#allocation2 + $0xaa8] sm:$0xff]
    %v466 = vld [vmem:[#allocation2 + $0xab0] sm:$0xff]
    %v467 = vld [vmem:[#allocation2 + $0xab8] sm:$0xff]
    %v468 = vld [vmem:[#allocation2 + $0xac0] sm:$0xff]
    %v469 = vld [vmem:[#allocation2 + $0xac8] sm:$0xff]
    %v470 = vld [vmem:[#allocation2 + $0xad0] sm:$0xff]
    %v471 = vld [vmem:[#allocation2 + $0xad8] sm:$0xff]
    %v472 = vld [vmem:[#allocation2 + $0xae0] sm:$0xff]
    %v473 = vld [vmem:[#allocation2 + $0xae8] sm:$0xff]
    %v474 = vld [vmem:[#allocation2 + $0xaf0] sm:$0xff]
    %v475 = vld [vmem:[#allocation2 + $0xaf8] sm:$0xff]
    %v476 = vld [vmem:[#allocation2 + $0xb00] sm:$0xff]
    %v477 = vld [vmem:[#allocation2 + $0xb08] sm:$0xff]
    %v478 = vld [vmem:[#allocation2 + $0xb10] sm:$0xff]
    %v479 = vld [vmem:[#allocation2 + $0xb18] sm:$0xff]
    %v480 = vld [vmem:[#allocation2 + $0xb20] sm:$0xff]
    %v481 = vld [vmem:[#allocation2 + $0xb28] sm:$0xff]
    %v482 = vld [vmem:[#allocation2 + $0xb30] sm:$0xff]
    %v483 = vld [vmem:[#allocation2 + $0xb38] sm:$0xff]
    %v484 = vld [vmem:[#allocation2 + $0xb40] sm:$0xff]
    %v485 = vld [vmem:[#allocation2 + $0xb48] sm:$0xff]
    %v486 = vld [vmem:[#allocation2 + $0xb50] sm:$0xff]
    %v487 = vld [vmem:[#allocation2 + $0xb58] sm:$0xff]
    %v488 = vld [vmem:[#allocation2 + $0xb60] sm:$0xff]
    %v489 = vld [vmem:[#allocation2 + $0xb68] sm:$0xff]
    %v490 = vld [vmem:[#allocation2 + $0xb70] sm:$0xff]
    %v491 = vld [vmem:[#allocation2 + $0xb78] sm:$0xff]
    %v492 = vld [vmem:[#allocation2 + $0xb80] sm:$0xff]
    %v493 = vld [vmem:[#allocation2 + $0xb88] sm:$0xff]
    %v494 = vld [vmem:[#allocation2 + $0xb90] sm:$0xff]
    %v495 = vld [vmem:[#allocation2 + $0xb98] sm:$0xff]
    %v496 = vld [vmem:[#allocation2 + $0xba0] sm:$0xff]
    %v497 = vld [vmem:[#allocation2 + $0xba8] sm:$0xff]
    %v498 = vld [vmem:[#allocation2 + $0xbb0] sm:$0xff]
    %v499 = vld [vmem:[#allocation2 + $0xbb8] sm:$0xff]
    %v500 = vld [vmem:[#allocation2 + $0xbc0] sm:$0xff]
    %v501 = vld [vmem:[#allocation2 + $0xbc8] sm:$0xff]
    %v502 = vld [vmem:[#allocation2 + $0xbd0] sm:$0xff]
    %v503 = vld [vmem:[#allocation2 + $0xbd8] sm:$0xff]
    %v504 = vld [vmem:[#allocation2 + $0xbe0] sm:$0xff]
    %v505 = vld [vmem:[#allocation2 + $0xbe8] sm:$0xff]
    %v506 = vld [vmem:[#allocation2 + $0xbf0] sm:$0xff]
    %v507 = vld [vmem:[#allocation2 + $0xbf8] sm:$0xff]
    %v508 = vld [vmem:[#allocation2 + $0xc00] sm:$0xff]
    %v509 = vld [vmem:[#allocation2 + $0xc08] sm:$0xff]
    %v510 = vld [vmem:[#allocation2 + $0xc10] sm:$0xff]
    %v511 = vld [vmem:[#allocation2 + $0xc18] sm:$0xff]
    %v512 = vld [vmem:[#allocation2 + $0xc20] sm:$0xff]
    %v513 = vld [vmem:[#allocation2 + $0xc28] sm:$0xff]
    %v514 = vld [vmem:[#allocation2 + $0xc30] sm:$0xff]
    %v515 = vld [vmem:[#allocation2 + $0xc38] sm:$0xff]
    %v516 = vld [vmem:[#allocation2 + $0xc40] sm:$0xff]
    %v517 = vld [vmem:[#allocation2 + $0xc48] sm:$0xff]
    %v518 = vld [vmem:[#allocation2 + $0xc50] sm:$0xff]
    %v519 = vld [vmem:[#allocation2 + $0xc58] sm:$0xff]
    %v520 = vld [vmem:[#allocation2 + $0xc60] sm:$0xff]
    %v521 = vld [vmem:[#allocation2 + $0xc68] sm:$0xff]
    %v522 = vld [vmem:[#allocation2 + $0xc70] sm:$0xff]
    %v523 = vld [vmem:[#allocation2 + $0xc78] sm:$0xff]
    %v524 = vld [vmem:[#allocation2 + $0xc80] sm:$0xff]
    %v525 = vld [vmem:[#allocation2 + $0xc88] sm:$0xff]
    %v526 = vld [vmem:[#allocation2 + $0xc90] sm:$0xff]
    %v527 = vld [vmem:[#allocation2 + $0xc98] sm:$0xff]
    %v528 = vld [vmem:[#allocation2 + $0xca0] sm:$0xff]
    %v529 = vld [vmem:[#allocation2 + $0xca8] sm:$0xff]
    %v530 = vld [vmem:[#allocation2 + $0xcb0] sm:$0xff]
    %v531 = vld [vmem:[#allocation2 + $0xcb8] sm:$0xff]
    %v532 = vld [vmem:[#allocation2 + $0xcc0] sm:$0xff]
    %v533 = vld [vmem:[#allocation2 + $0xcc8] sm:$0xff]
    %v534 = vld [vmem:[#allocation2 + $0xcd0] sm:$0xff]
    %v535 = vld [vmem:[#allocation2 + $0xcd8] sm:$0xff]
    %v536 = vld [vmem:[#allocation2 + $0xce0] sm:$0xff]
    %v537 = vld [vmem:[#allocation2 + $0xce8] sm:$0xff]
    %v538 = vld [vmem:[#allocation2 + $0xcf0] sm:$0xff]
    %v539 = vld [vmem:[#allocation2 + $0xcf8] sm:$0xff]
    %v540 = vld [vmem:[#allocation2 + $0xd00] sm:$0xff]
    %v541 = vld [vmem:[#allocation2 + $0xd08] sm:$0xff]
    %v542 = vld [vmem:[#allocation2 + $0xd10] sm:$0xff]
    %v543 = vld [vmem:[#allocation2 + $0xd18] sm:$0xff]
    %v544 = vld [vmem:[#allocation2 + $0xd20] sm:$0xff]
    %v545 = vld [vmem:[#allocation2 + $0xd28] sm:$0xff]
    %v546 = vld [vmem:[#allocation2 + $0xd30] sm:$0xff]
    %v547 = vld [vmem:[#allocation2 + $0xd38] sm:$0xff]
    %v548 = vld [vmem:[#allocation2 + $0xd40] sm:$0xff]
    %v549 = vld [vmem:[#allocation2 + $0xd48] sm:$0xff]
    %v550 = vld [vmem:[#allocation2 + $0xd50] sm:$0xff]
    %v551 = vld [vmem:[#allocation2 + $0xd58] sm:$0xff]
    %v552 = vld [vmem:[#allocation2 + $0xd60] sm:$0xff]
    %v553 = vld [vmem:[#allocation2 + $0xd68] sm:$0xff]
    %v554 = vld [vmem:[#allocation2 + $0xd70] sm:$0xff]
    %v555 = vld [vmem:[#allocation2 + $0xd78] sm:$0xff]
    %v556 = vld [vmem:[#allocation2 + $0xd80] sm:$0xff]
    %v557 = vld [vmem:[#allocation2 + $0xd88] sm:$0xff]
    %v558 = vld [vmem:[#allocation2 + $0xd90] sm:$0xff]
    %v559 = vld [vmem:[#allocation2 + $0xd98] sm:$0xff]
    %v560 = vld [vmem:[#allocation2 + $0xda0] sm:$0xff]
    %v561 = vld [vmem:[#allocation2 + $0xda8] sm:$0xff]
    %v562 = vld [vmem:[#allocation2 + $0xdb0] sm:$0xff]
    %v563 = vld [vmem:[#allocation2 + $0xdb8] sm:$0xff]
    %v564 = vld [vmem:[#allocation2 + $0xdc0] sm:$0xff]
    %v565 = vld [vmem:[#allocation2 + $0xdc8] sm:$0xff]
    %v566 = vld [vmem:[#allocation2 + $0xdd0] sm:$0xff]
    %v567 = vld [vmem:[#allocation2 + $0xdd8] sm:$0xff]
    %v568 = vld [vmem:[#allocation2 + $0xde0] sm:$0xff]
    %v569 = vld [vmem:[#allocation2 + $0xde8] sm:$0xff]
    %v570 = vld [vmem:[#allocation2 + $0xdf0] sm:$0xff]
    %v571 = vld [vmem:[#allocation2 + $0xdf8] sm:$0xff]
    %v572 = vld [vmem:[#allocation2 + $0xe00] sm:$0xff]
    %v573 = vld [vmem:[#allocation2 + $0xe08] sm:$0xff]
    %v574 = vld [vmem:[#allocation2 + $0xe10] sm:$0xff]
    %v575 = vld [vmem:[#allocation2 + $0xe18] sm:$0xff]
    %v576 = vld [vmem:[#allocation2 + $0xe20] sm:$0xff]
    %v577 = vld [vmem:[#allocation2 + $0xe28] sm:$0xff]
    %v578 = vld [vmem:[#allocation2 + $0xe30] sm:$0xff]
    %v579 = vld [vmem:[#allocation2 + $0xe38] sm:$0xff]
    %v580 = vld [vmem:[#allocation2 + $0xe40] sm:$0xff]
    %v581 = vld [vmem:[#allocation2 + $0xe48] sm:$0xff]
    %v582 = vld [vmem:[#allocation2 + $0xe50] sm:$0xff]
    %v583 = vld [vmem:[#allocation2 + $0xe58] sm:$0xff]
    %v584 = vld [vmem:[#allocation2 + $0xe60] sm:$0xff]
    %v585 = vld [vmem:[#allocation2 + $0xe68] sm:$0xff]
    %v586 = vld [vmem:[#allocation2 + $0xe70] sm:$0xff]
    %v587 = vld [vmem:[#allocation2 + $0xe78] sm:$0xff]
    %v588 = vld [vmem:[#allocation2 + $0xe80] sm:$0xff]
    %v589 = vld [vmem:[#allocation2 + $0xe88] sm:$0xff]
    %v590 = vld [vmem:[#allocation2 + $0xe90] sm:$0xff]
    %v591 = vld [vmem:[#allocation2 + $0xe98] sm:$0xff]
    %v592 = vld [vmem:[#allocation2 + $0xea0] sm:$0xff]
    %v593 = vld [vmem:[#allocation2 + $0xea8] sm:$0xff]
    %v594 = vld [vmem:[#allocation2 + $0xeb0] sm:$0xff]
    %v595 = vld [vmem:[#allocation2 + $0xeb8] sm:$0xff]
    %v596 = vld [vmem:[#allocation2 + $0xec0] sm:$0xff]
    %v597 = vld [vmem:[#allocation2 + $0xec8] sm:$0xff]
    %v598 = vld [vmem:[#allocation2 + $0xed0] sm:$0xff]
    %v599 = vld [vmem:[#allocation2 + $0xed8] sm:$0xff]
    %v600 = vld [vmem:[#allocation2 + $0xee0] sm:$0xff]
    %v601 = vld [vmem:[#allocation2 + $0xee8] sm:$0xff]
    %v602 = vld [vmem:[#allocation2 + $0xef0] sm:$0xff]
    %v603 = vld [vmem:[#allocation2 + $0xef8] sm:$0xff]
    %v604 = vld [vmem:[#allocation2 + $0xf00] sm:$0xff]
    %v605 = vld [vmem:[#allocation2 + $0xf08] sm:$0xff]
    %v606 = vld [vmem:[#allocation2 + $0xf10] sm:$0xff]
    %v607 = vld [vmem:[#allocation2 + $0xf18] sm:$0xff]
    %v608 = vld [vmem:[#allocation2 + $0xf20] sm:$0xff]
    %v609 = vld [vmem:[#allocation2 + $0xf28] sm:$0xff]
    %v610 = vld [vmem:[#allocation2 + $0xf30] sm:$0xff]
    %v611 = vld [vmem:[#allocation2 + $0xf38] sm:$0xff]
    %v612 = vld [vmem:[#allocation2 + $0xf40] sm:$0xff]
    %v613 = vld [vmem:[#allocation2 + $0xf48] sm:$0xff]
    %v614 = vld [vmem:[#allocation2 + $0xf50] sm:$0xff]
    %v615 = vld [vmem:[#allocation2 + $0xf58] sm:$0xff]
    %v616 = vld [vmem:[#allocation2 + $0xf60] sm:$0xff]
    %v617 = vld [vmem:[#allocation2 + $0xf68] sm:$0xff]
    %v618 = vld [vmem:[#allocation2 + $0xf70] sm:$0xff]
    %v619 = vld [vmem:[#allocation2 + $0xf78] sm:$0xff]
    %v620 = vld [vmem:[#allocation2 + $0xf80] sm:$0xff]
    %v621 = vld [vmem:[#allocation2 + $0xf88] sm:$0xff]
    %v622 = vld [vmem:[#allocation2 + $0xf90] sm:$0xff]
    %v623 = vld [vmem:[#allocation2 + $0xf98] sm:$0xff]
    %v624 = vld [vmem:[#allocation2 + $0xfa0] sm:$0xff]
    %v625 = vld [vmem:[#allocation2 + $0xfa8] sm:$0xff]
    %v626 = vld [vmem:[#allocation2 + $0xfb0] sm:$0xff]
    %v627 = vld [vmem:[#allocation2 + $0xfb8] sm:$0xff]
    %v628 = vld [vmem:[#allocation2 + $0xfc0] sm:$0xff]
    %v629 = vld [vmem:[#allocation2 + $0xfc8] sm:$0xff]
    %v630 = vld [vmem:[#allocation2 + $0xfd0] sm:$0xff]
    %v631 = vld [vmem:[#allocation2 + $0xfd8] sm:$0xff]
    %v632 = vld [vmem:[#allocation2 + $0xfe0] sm:$0xff]
    %v633 = vld [vmem:[#allocation2 + $0xfe8] sm:$0xff]
    %v634 = vld [vmem:[#allocation2 + $0xff0] sm:$0xff]
    %v635 = vld [vmem:[#allocation2 + $0xff8] sm:$0xff]
    %v636 = vld [vmem:[#allocation4] sm:$0xff]
    %v637 = vld [vmem:[#allocation4 + $0x8] sm:$0xff]
    %v640 = vperm.slane %v636, 0
    %v641 = vperm.slane %v636, 1
    %v642 = vperm.slane %v636, 2
    %v643 = vperm.slane %v636, 3
    %v644 = vperm.slane %v636, 4
    %v645 = vperm.slane %v636, 5
    %v646 = vperm.slane %v636, 6
    %v647 = vperm.slane %v636, 7
    %v648 = vperm.slane %v637, 0
    %v649 = vperm.slane %v637, 1
    %v650 = vperm.slane %v637, 2
    %v651 = vperm.slane %v637, 3
    %v652 = vperm.slane %v637, 4
    %v653 = vperm.slane %v637, 5
    %v654 = vperm.slane %v637, 6
    %v655 = vperm.slane %v637, 7
    %v1184 = vunpack.c.l.b16 %v124
    %v1185 = vunpack.c.h.b16 %v124
    %v1186 = vunpack.c.l.b16 %v125
    %v1187 = vunpack.c.h.b16 %v125
    %v1188 = vunpack.c.l.b16 %v126
    %v1189 = vunpack.c.h.b16 %v126
    %v1190 = vunpack.c.l.b16 %v127
    %v1191 = vunpack.c.h.b16 %v127
    %v1192 = vunpack.c.l.b16 %v128
    %v1193 = vunpack.c.h.b16 %v128
    %v1194 = vunpack.c.l.b16 %v129
    %v1195 = vunpack.c.h.b16 %v129
    %v1196 = vunpack.c.l.b16 %v130
    %v1197 = vunpack.c.h.b16 %v130
    %v1198 = vunpack.c.l.b16 %v131
    %v1199 = vunpack.c.h.b16 %v131
    %v1200 = vunpack.c.l.b16 %v132
    %v1201 = vunpack.c.h.b16 %v132
    %v1202 = vunpack.c.l.b16 %v133
    %v1203 = vunpack.c.h.b16 %v133
    %v1204 = vunpack.c.l.b16 %v134
    %v1205 = vunpack.c.h.b16 %v134
    %v1206 = vunpack.c.l.b16 %v135
    %v1207 = vunpack.c.h.b16 %v135
    %v1208 = vunpack.c.l.b16 %v136
    %v1209 = vunpack.c.h.b16 %v136
    %v1210 = vunpack.c.l.b16 %v137
    %v1211 = vunpack.c.h.b16 %v137
    %v1212 = vunpack.c.l.b16 %v138
    %v1213 = vunpack.c.h.b16 %v138
    %v1214 = vunpack.c.l.b16 %v139
    %v1215 = vunpack.c.h.b16 %v139
    %v1216 = vunpack.c.l.b16 %v140
    %v1217 = vunpack.c.h.b16 %v140
    %v1218 = vunpack.c.l.b16 %v141
    %v1219 = vunpack.c.h.b16 %v141
    %v1220 = vunpack.c.l.b16 %v142
    %v1221 = vunpack.c.h.b16 %v142
    %v1222 = vunpack.c.l.b16 %v143
    %v1223 = vunpack.c.h.b16 %v143
    %v1224 = vunpack.c.l.b16 %v144
    %v1225 = vunpack.c.h.b16 %v144
    %v1226 = vunpack.c.l.b16 %v145
    %v1227 = vunpack.c.h.b16 %v145
    %v1228 = vunpack.c.l.b16 %v146
    %v1229 = vunpack.c.h.b16 %v146
    %v1230 = vunpack.c.l.b16 %v147
    %v1231 = vunpack.c.h.b16 %v147
    %v1232 = vunpack.c.l.b16 %v148
    %v1233 = vunpack.c.h.b16 %v148
    %v1234 = vunpack.c.l.b16 %v149
    %v1235 = vunpack.c.h.b16 %v149
    %v1236 = vunpack.c.l.b16 %v150
    %v1237 = vunpack.c.h.b16 %v150
    %v1238 = vunpack.c.l.b16 %v151
    %v1239 = vunpack.c.h.b16 %v151
    %v1240 = vunpack.c.l.b16 %v152
    %v1241 = vunpack.c.h.b16 %v152
    %v1242 = vunpack.c.l.b16 %v153
    %v1243 = vunpack.c.h.b16 %v153
    %v1244 = vunpack.c.l.b16 %v154
    %v1245 = vunpack.c.h.b16 %v154
    %v1246 = vunpack.c.l.b16 %v155
    %v1247 = vunpack.c.h.b16 %v155
    %v1248 = vunpack.c.l.b16 %v156
    %v1249 = vunpack.c.h.b16 %v156
    %v1250 = vunpack.c.l.b16 %v157
    %v1251 = vunpack.c.h.b16 %v157
    %v1252 = vunpack.c.l.b16 %v158
    %v1253 = vunpack.c.h.b16 %v158
    %v1254 = vunpack.c.l.b16 %v159
    %v1255 = vunpack.c.h.b16 %v159
    %v1256 = vunpack.c.l.b16 %v160
    %v1257 = vunpack.c.h.b16 %v160
    %v1258 = vunpack.c.l.b16 %v161
    %v1259 = vunpack.c.h.b16 %v161
    %v1260 = vunpack.c.l.b16 %v162
    %v1261 = vunpack.c.h.b16 %v162
    %v1262 = vunpack.c.l.b16 %v163
    %v1263 = vunpack.c.h.b16 %v163
    %v1264 = vunpack.c.l.b16 %v164
    %v1265 = vunpack.c.h.b16 %v164
    %v1266 = vunpack.c.l.b16 %v165
    %v1267 = vunpack.c.h.b16 %v165
    %v1268 = vunpack.c.l.b16 %v166
    %v1269 = vunpack.c.h.b16 %v166
    %v1270 = vunpack.c.l.b16 %v167
    %v1271 = vunpack.c.h.b16 %v167
    %v1272 = vunpack.c.l.b16 %v168
    %v1273 = vunpack.c.h.b16 %v168
    %v1274 = vunpack.c.l.b16 %v169
    %v1275 = vunpack.c.h.b16 %v169
    %v1276 = vunpack.c.l.b16 %v170
    %v1277 = vunpack.c.h.b16 %v170
    %v1278 = vunpack.c.l.b16 %v171
    %v1279 = vunpack.c.h.b16 %v171
    %v1280 = vunpack.c.l.b16 %v172
    %v1281 = vunpack.c.h.b16 %v172
    %v1282 = vunpack.c.l.b16 %v173
    %v1283 = vunpack.c.h.b16 %v173
    %v1284 = vunpack.c.l.b16 %v174
    %v1285 = vunpack.c.h.b16 %v174
    %v1286 = vunpack.c.l.b16 %v175
    %v1287 = vunpack.c.h.b16 %v175
    %v1288 = vunpack.c.l.b16 %v176
    %v1289 = vunpack.c.h.b16 %v176
    %v1290 = vunpack.c.l.b16 %v177
    %v1291 = vunpack.c.h.b16 %v177
    %v1292 = vunpack.c.l.b16 %v178
    %v1293 = vunpack.c.h.b16 %v178
    %v1294 = vunpack.c.l.b16 %v179
    %v1295 = vunpack.c.h.b16 %v179
    %v1296 = vunpack.c.l.b16 %v180
    %v1297 = vunpack.c.h.b16 %v180
    %v1298 = vunpack.c.l.b16 %v181
    %v1299 = vunpack.c.h.b16 %v181
    %v1300 = vunpack.c.l.b16 %v182
    %v1301 = vunpack.c.h.b16 %v182
    %v1302 = vunpack.c.l.b16 %v183
    %v1303 = vunpack.c.h.b16 %v183
    %v1304 = vunpack.c.l.b16 %v184
    %v1305 = vunpack.c.h.b16 %v184
    %v1306 = vunpack.c.l.b16 %v185
    %v1307 = vunpack.c.h.b16 %v185
    %v1308 = vunpack.c.l.b16 %v186
    %v1309 = vunpack.c.h.b16 %v186
    %v1310 = vunpack.c.l.b16 %v187
    %v1311 = vunpack.c.h.b16 %v187
    %v1312 = vunpack.c.l.b16 %v188
    %v1313 = vunpack.c.h.b16 %v188
    %v1314 = vunpack.c.l.b16 %v189
    %v1315 = vunpack.c.h.b16 %v189
    %v1316 = vunpack.c.l.b16 %v190
    %v1317 = vunpack.c.h.b16 %v190
    %v1318 = vunpack.c.l.b16 %v191
    %v1319 = vunpack.c.h.b16 %v191
    %v1320 = vunpack.c.l.b16 %v192
    %v1321 = vunpack.c.h.b16 %v192
    %v1322 = vunpack.c.l.b16 %v193
    %v1323 = vunpack.c.h.b16 %v193
    %v1324 = vunpack.c.l.b16 %v194
    %v1325 = vunpack.c.h.b16 %v194
    %v1326 = vunpack.c.l.b16 %v195
    %v1327 = vunpack.c.h.b16 %v195
    %v1328 = vunpack.c.l.b16 %v196
    %v1329 = vunpack.c.h.b16 %v196
    %v1330 = vunpack.c.l.b16 %v197
    %v1331 = vunpack.c.h.b16 %v197
    %v1332 = vunpack.c.l.b16 %v198
    %v1333 = vunpack.c.h.b16 %v198
    %v1334 = vunpack.c.l.b16 %v199
    %v1335 = vunpack.c.h.b16 %v199
    %v1336 = vunpack.c.l.b16 %v200
    %v1337 = vunpack.c.h.b16 %v200
    %v1338 = vunpack.c.l.b16 %v201
    %v1339 = vunpack.c.h.b16 %v201
    %v1340 = vunpack.c.l.b16 %v202
    %v1341 = vunpack.c.h.b16 %v202
    %v1342 = vunpack.c.l.b16 %v203
    %v1343 = vunpack.c.h.b16 %v203
    %v1344 = vunpack.c.l.b16 %v204
    %v1345 = vunpack.c.h.b16 %v204
    %v1346 = vunpack.c.l.b16 %v205
    %v1347 = vunpack.c.h.b16 %v205
    %v1348 = vunpack.c.l.b16 %v206
    %v1349 = vunpack.c.h.b16 %v206
    %v1350 = vunpack.c.l.b16 %v207
    %v1351 = vunpack.c.h.b16 %v207
    %v1352 = vunpack.c.l.b16 %v208
    %v1353 = vunpack.c.h.b16 %v208
    %v1354 = vunpack.c.l.b16 %v209
    %v1355 = vunpack.c.h.b16 %v209
    %v1356 = vunpack.c.l.b16 %v210
    %v1357 = vunpack.c.h.b16 %v210
    %v1358 = vunpack.c.l.b16 %v211
    %v1359 = vunpack.c.h.b16 %v211
    %v1360 = vunpack.c.l.b16 %v212
    %v1361 = vunpack.c.h.b16 %v212
    %v1362 = vunpack.c.l.b16 %v213
    %v1363 = vunpack.c.h.b16 %v213
    %v1364 = vunpack.c.l.b16 %v214
    %v1365 = vunpack.c.h.b16 %v214
    %v1366 = vunpack.c.l.b16 %v215
    %v1367 = vunpack.c.h.b16 %v215
    %v1368 = vunpack.c.l.b16 %v216
    %v1369 = vunpack.c.h.b16 %v216
    %v1370 = vunpack.c.l.b16 %v217
    %v1371 = vunpack.c.h.b16 %v217
    %v1372 = vunpack.c.l.b16 %v218
    %v1373 = vunpack.c.h.b16 %v218
    %v1374 = vunpack.c.l.b16 %v219
    %v1375 = vunpack.c.h.b16 %v219
    %v1376 = vunpack.c.l.b16 %v220
    %v1377 = vunpack.c.h.b16 %v220
    %v1378 = vunpack.c.l.b16 %v221
    %v1379 = vunpack.c.h.b16 %v221
    %v1380 = vunpack.c.l.b16 %v222
    %v1381 = vunpack.c.h.b16 %v222
    %v1382 = vunpack.c.l.b16 %v223
    %v1383 = vunpack.c.h.b16 %v223
    %v1384 = vunpack.c.l.b16 %v224
    %v1385 = vunpack.c.h.b16 %v224
    %v1386 = vunpack.c.l.b16 %v225
    %v1387 = vunpack.c.h.b16 %v225
    %v1388 = vunpack.c.l.b16 %v226
    %v1389 = vunpack.c.h.b16 %v226
    %v1390 = vunpack.c.l.b16 %v227
    %v1391 = vunpack.c.h.b16 %v227
    %v1392 = vunpack.c.l.b16 %v228
    %v1393 = vunpack.c.h.b16 %v228
    %v1394 = vunpack.c.l.b16 %v229
    %v1395 = vunpack.c.h.b16 %v229
    %v1396 = vunpack.c.l.b16 %v230
    %v1397 = vunpack.c.h.b16 %v230
    %v1398 = vunpack.c.l.b16 %v231
    %v1399 = vunpack.c.h.b16 %v231
    %v1400 = vunpack.c.l.b16 %v232
    %v1401 = vunpack.c.h.b16 %v232
    %v1402 = vunpack.c.l.b16 %v233
    %v1403 = vunpack.c.h.b16 %v233
    %v1404 = vunpack.c.l.b16 %v234
    %v1405 = vunpack.c.h.b16 %v234
    %v1406 = vunpack.c.l.b16 %v235
    %v1407 = vunpack.c.h.b16 %v235
    %v1408 = vunpack.c.l.b16 %v236
    %v1409 = vunpack.c.h.b16 %v236
    %v1410 = vunpack.c.l.b16 %v237
    %v1411 = vunpack.c.h.b16 %v237
    %v1412 = vunpack.c.l.b16 %v238
    %v1413 = vunpack.c.h.b16 %v238
    %v1414 = vunpack.c.l.b16 %v239
    %v1415 = vunpack.c.h.b16 %v239
    %v1416 = vunpack.c.l.b16 %v240
    %v1417 = vunpack.c.h.b16 %v240
    %v1418 = vunpack.c.l.b16 %v241
    %v1419 = vunpack.c.h.b16 %v241
    %v1420 = vunpack.c.l.b16 %v242
    %v1421 = vunpack.c.h.b16 %v242
    %v1422 = vunpack.c.l.b16 %v243
    %v1423 = vunpack.c.h.b16 %v243
    %v1424 = vunpack.c.l.b16 %v244
    %v1425 = vunpack.c.h.b16 %v244
    %v1426 = vunpack.c.l.b16 %v245
    %v1427 = vunpack.c.h.b16 %v245
    %v1428 = vunpack.c.l.b16 %v246
    %v1429 = vunpack.c.h.b16 %v246
    %v1430 = vunpack.c.l.b16 %v247
    %v1431 = vunpack.c.h.b16 %v247
    %v1432 = vunpack.c.l.b16 %v248
    %v1433 = vunpack.c.h.b16 %v248
    %v1434 = vunpack.c.l.b16 %v249
    %v1435 = vunpack.c.h.b16 %v249
    %v1436 = vunpack.c.l.b16 %v250
    %v1437 = vunpack.c.h.b16 %v250
    %v1438 = vunpack.c.l.b16 %v251
    %v1439 = vunpack.c.h.b16 %v251
    %v1440 = vunpack.c.l.b16 %v252
    %v1441 = vunpack.c.h.b16 %v252
    %v1442 = vunpack.c.l.b16 %v253
    %v1443 = vunpack.c.h.b16 %v253
    %v1444 = vunpack.c.l.b16 %v254
    %v1445 = vunpack.c.h.b16 %v254
    %v1446 = vunpack.c.l.b16 %v255
    %v1447 = vunpack.c.h.b16 %v255
    %v1448 = vunpack.c.l.b16 %v256
    %v1449 = vunpack.c.h.b16 %v256
    %v1450 = vunpack.c.l.b16 %v257
    %v1451 = vunpack.c.h.b16 %v257
    %v1452 = vunpack.c.l.b16 %v258
    %v1453 = vunpack.c.h.b16 %v258
    %v1454 = vunpack.c.l.b16 %v259
    %v1455 = vunpack.c.h.b16 %v259
    %v1456 = vunpack.c.l.b16 %v260
    %v1457 = vunpack.c.h.b16 %v260
    %v1458 = vunpack.c.l.b16 %v261
    %v1459 = vunpack.c.h.b16 %v261
    %v1460 = vunpack.c.l.b16 %v262
    %v1461 = vunpack.c.h.b16 %v262
    %v1462 = vunpack.c.l.b16 %v263
    %v1463 = vunpack.c.h.b16 %v263
    %v1464 = vunpack.c.l.b16 %v264
    %v1465 = vunpack.c.h.b16 %v264
    %v1466 = vunpack.c.l.b16 %v265
    %v1467 = vunpack.c.h.b16 %v265
    %v1468 = vunpack.c.l.b16 %v266
    %v1469 = vunpack.c.h.b16 %v266
    %v1470 = vunpack.c.l.b16 %v267
    %v1471 = vunpack.c.h.b16 %v267
    %v1472 = vunpack.c.l.b16 %v268
    %v1473 = vunpack.c.h.b16 %v268
    %v1474 = vunpack.c.l.b16 %v269
    %v1475 = vunpack.c.h.b16 %v269
    %v1476 = vunpack.c.l.b16 %v270
    %v1477 = vunpack.c.h.b16 %v270
    %v1478 = vunpack.c.l.b16 %v271
    %v1479 = vunpack.c.h.b16 %v271
    %v1480 = vunpack.c.l.b16 %v272
    %v1481 = vunpack.c.h.b16 %v272
    %v1482 = vunpack.c.l.b16 %v273
    %v1483 = vunpack.c.h.b16 %v273
    %v1484 = vunpack.c.l.b16 %v274
    %v1485 = vunpack.c.h.b16 %v274
    %v1486 = vunpack.c.l.b16 %v275
    %v1487 = vunpack.c.h.b16 %v275
    %v1488 = vunpack.c.l.b16 %v276
    %v1489 = vunpack.c.h.b16 %v276
    %v1490 = vunpack.c.l.b16 %v277
    %v1491 = vunpack.c.h.b16 %v277
    %v1492 = vunpack.c.l.b16 %v278
    %v1493 = vunpack.c.h.b16 %v278
    %v1494 = vunpack.c.l.b16 %v279
    %v1495 = vunpack.c.h.b16 %v279
    %v1496 = vunpack.c.l.b16 %v280
    %v1497 = vunpack.c.h.b16 %v280
    %v1498 = vunpack.c.l.b16 %v281
    %v1499 = vunpack.c.h.b16 %v281
    %v1500 = vunpack.c.l.b16 %v282
    %v1501 = vunpack.c.h.b16 %v282
    %v1502 = vunpack.c.l.b16 %v283
    %v1503 = vunpack.c.h.b16 %v283
    %v1504 = vunpack.c.l.b16 %v284
    %v1505 = vunpack.c.h.b16 %v284
    %v1506 = vunpack.c.l.b16 %v285
    %v1507 = vunpack.c.h.b16 %v285
    %v1508 = vunpack.c.l.b16 %v286
    %v1509 = vunpack.c.h.b16 %v286
    %v1510 = vunpack.c.l.b16 %v287
    %v1511 = vunpack.c.h.b16 %v287
    %v1512 = vunpack.c.l.b16 %v288
    %v1513 = vunpack.c.h.b16 %v288
    %v1514 = vunpack.c.l.b16 %v289
    %v1515 = vunpack.c.h.b16 %v289
    %v1516 = vunpack.c.l.b16 %v290
    %v1517 = vunpack.c.h.b16 %v290
    %v1518 = vunpack.c.l.b16 %v291
    %v1519 = vunpack.c.h.b16 %v291
    %v1520 = vunpack.c.l.b16 %v292
    %v1521 = vunpack.c.h.b16 %v292
    %v1522 = vunpack.c.l.b16 %v293
    %v1523 = vunpack.c.h.b16 %v293
    %v1524 = vunpack.c.l.b16 %v294
    %v1525 = vunpack.c.h.b16 %v294
    %v1526 = vunpack.c.l.b16 %v295
    %v1527 = vunpack.c.h.b16 %v295
    %v1528 = vunpack.c.l.b16 %v296
    %v1529 = vunpack.c.h.b16 %v296
    %v1530 = vunpack.c.l.b16 %v297
    %v1531 = vunpack.c.h.b16 %v297
    %v1532 = vunpack.c.l.b16 %v298
    %v1533 = vunpack.c.h.b16 %v298
    %v1534 = vunpack.c.l.b16 %v299
    %v1535 = vunpack.c.h.b16 %v299
    %v1536 = vunpack.c.l.b16 %v300
    %v1537 = vunpack.c.h.b16 %v300
    %v1538 = vunpack.c.l.b16 %v301
    %v1539 = vunpack.c.h.b16 %v301
    %v1540 = vunpack.c.l.b16 %v302
    %v1541 = vunpack.c.h.b16 %v302
    %v1542 = vunpack.c.l.b16 %v303
    %v1543 = vunpack.c.h.b16 %v303
    %v1544 = vunpack.c.l.b16 %v304
    %v1545 = vunpack.c.h.b16 %v304
    %v1546 = vunpack.c.l.b16 %v305
    %v1547 = vunpack.c.h.b16 %v305
    %v1548 = vunpack.c.l.b16 %v306
    %v1549 = vunpack.c.h.b16 %v306
    %v1550 = vunpack.c.l.b16 %v307
    %v1551 = vunpack.c.h.b16 %v307
    %v1552 = vunpack.c.l.b16 %v308
    %v1553 = vunpack.c.h.b16 %v308
    %v1554 = vunpack.c.l.b16 %v309
    %v1555 = vunpack.c.h.b16 %v309
    %v1556 = vunpack.c.l.b16 %v310
    %v1557 = vunpack.c.h.b16 %v310
    %v1558 = vunpack.c.l.b16 %v311
    %v1559 = vunpack.c.h.b16 %v311
    %v1560 = vunpack.c.l.b16 %v312
    %v1561 = vunpack.c.h.b16 %v312
    %v1562 = vunpack.c.l.b16 %v313
    %v1563 = vunpack.c.h.b16 %v313
    %v1564 = vunpack.c.l.b16 %v314
    %v1565 = vunpack.c.h.b16 %v314
    %v1566 = vunpack.c.l.b16 %v315
    %v1567 = vunpack.c.h.b16 %v315
    %v1568 = vunpack.c.l.b16 %v316
    %v1569 = vunpack.c.h.b16 %v316
    %v1570 = vunpack.c.l.b16 %v317
    %v1571 = vunpack.c.h.b16 %v317
    %v1572 = vunpack.c.l.b16 %v318
    %v1573 = vunpack.c.h.b16 %v318
    %v1574 = vunpack.c.l.b16 %v319
    %v1575 = vunpack.c.h.b16 %v319
    %v1576 = vunpack.c.l.b16 %v320
    %v1577 = vunpack.c.h.b16 %v320
    %v1578 = vunpack.c.l.b16 %v321
    %v1579 = vunpack.c.h.b16 %v321
    %v1580 = vunpack.c.l.b16 %v322
    %v1581 = vunpack.c.h.b16 %v322
    %v1582 = vunpack.c.l.b16 %v323
    %v1583 = vunpack.c.h.b16 %v323
    %v1584 = vunpack.c.l.b16 %v324
    %v1585 = vunpack.c.h.b16 %v324
    %v1586 = vunpack.c.l.b16 %v325
    %v1587 = vunpack.c.h.b16 %v325
    %v1588 = vunpack.c.l.b16 %v326
    %v1589 = vunpack.c.h.b16 %v326
    %v1590 = vunpack.c.l.b16 %v327
    %v1591 = vunpack.c.h.b16 %v327
    %v1592 = vunpack.c.l.b16 %v328
    %v1593 = vunpack.c.h.b16 %v328
    %v1594 = vunpack.c.l.b16 %v329
    %v1595 = vunpack.c.h.b16 %v329
    %v1596 = vunpack.c.l.b16 %v330
    %v1597 = vunpack.c.h.b16 %v330
    %v1598 = vunpack.c.l.b16 %v331
    %v1599 = vunpack.c.h.b16 %v331
    %v1600 = vunpack.c.l.b16 %v332
    %v1601 = vunpack.c.h.b16 %v332
    %v1602 = vunpack.c.l.b16 %v333
    %v1603 = vunpack.c.h.b16 %v333
    %v1604 = vunpack.c.l.b16 %v334
    %v1605 = vunpack.c.h.b16 %v334
    %v1606 = vunpack.c.l.b16 %v335
    %v1607 = vunpack.c.h.b16 %v335
    %v1608 = vunpack.c.l.b16 %v336
    %v1609 = vunpack.c.h.b16 %v336
    %v1610 = vunpack.c.l.b16 %v337
    %v1611 = vunpack.c.h.b16 %v337
    %v1612 = vunpack.c.l.b16 %v338
    %v1613 = vunpack.c.h.b16 %v338
    %v1614 = vunpack.c.l.b16 %v339
    %v1615 = vunpack.c.h.b16 %v339
    %v1616 = vunpack.c.l.b16 %v340
    %v1617 = vunpack.c.h.b16 %v340
    %v1618 = vunpack.c.l.b16 %v341
    %v1619 = vunpack.c.h.b16 %v341
    %v1620 = vunpack.c.l.b16 %v342
    %v1621 = vunpack.c.h.b16 %v342
    %v1622 = vunpack.c.l.b16 %v343
    %v1623 = vunpack.c.h.b16 %v343
    %v1624 = vunpack.c.l.b16 %v344
    %v1625 = vunpack.c.h.b16 %v344
    %v1626 = vunpack.c.l.b16 %v345
    %v1627 = vunpack.c.h.b16 %v345
    %v1628 = vunpack.c.l.b16 %v346
    %v1629 = vunpack.c.h.b16 %v346
    %v1630 = vunpack.c.l.b16 %v347
    %v1631 = vunpack.c.h.b16 %v347
    %v1632 = vunpack.c.l.b16 %v348
    %v1633 = vunpack.c.h.b16 %v348
    %v1634 = vunpack.c.l.b16 %v349
    %v1635 = vunpack.c.h.b16 %v349
    %v1636 = vunpack.c.l.b16 %v350
    %v1637 = vunpack.c.h.b16 %v350
    %v1638 = vunpack.c.l.b16 %v351
    %v1639 = vunpack.c.h.b16 %v351
    %v1640 = vunpack.c.l.b16 %v352
    %v1641 = vunpack.c.h.b16 %v352
    %v1642 = vunpack.c.l.b16 %v353
    %v1643 = vunpack.c.h.b16 %v353
    %v1644 = vunpack.c.l.b16 %v354
    %v1645 = vunpack.c.h.b16 %v354
    %v1646 = vunpack.c.l.b16 %v355
    %v1647 = vunpack.c.h.b16 %v355
    %v1648 = vunpack.c.l.b16 %v356
    %v1649 = vunpack.c.h.b16 %v356
    %v1650 = vunpack.c.l.b16 %v357
    %v1651 = vunpack.c.h.b16 %v357
    %v1652 = vunpack.c.l.b16 %v358
    %v1653 = vunpack.c.h.b16 %v358
    %v1654 = vunpack.c.l.b16 %v359
    %v1655 = vunpack.c.h.b16 %v359
    %v1656 = vunpack.c.l.b16 %v360
    %v1657 = vunpack.c.h.b16 %v360
    %v1658 = vunpack.c.l.b16 %v361
    %v1659 = vunpack.c.h.b16 %v361
    %v1660 = vunpack.c.l.b16 %v362
    %v1661 = vunpack.c.h.b16 %v362
    %v1662 = vunpack.c.l.b16 %v363
    %v1663 = vunpack.c.h.b16 %v363
    %v1664 = vunpack.c.l.b16 %v364
    %v1665 = vunpack.c.h.b16 %v364
    %v1666 = vunpack.c.l.b16 %v365
    %v1667 = vunpack.c.h.b16 %v365
    %v1668 = vunpack.c.l.b16 %v366
    %v1669 = vunpack.c.h.b16 %v366
    %v1670 = vunpack.c.l.b16 %v367
    %v1671 = vunpack.c.h.b16 %v367
    %v1672 = vunpack.c.l.b16 %v368
    %v1673 = vunpack.c.h.b16 %v368
    %v1674 = vunpack.c.l.b16 %v369
    %v1675 = vunpack.c.h.b16 %v369
    %v1676 = vunpack.c.l.b16 %v370
    %v1677 = vunpack.c.h.b16 %v370
    %v1678 = vunpack.c.l.b16 %v371
    %v1679 = vunpack.c.h.b16 %v371
    %v1680 = vunpack.c.l.b16 %v372
    %v1681 = vunpack.c.h.b16 %v372
    %v1682 = vunpack.c.l.b16 %v373
    %v1683 = vunpack.c.h.b16 %v373
    %v1684 = vunpack.c.l.b16 %v374
    %v1685 = vunpack.c.h.b16 %v374
    %v1686 = vunpack.c.l.b16 %v375
    %v1687 = vunpack.c.h.b16 %v375
    %v1688 = vunpack.c.l.b16 %v376
    %v1689 = vunpack.c.h.b16 %v376
    %v1690 = vunpack.c.l.b16 %v377
    %v1691 = vunpack.c.h.b16 %v377
    %v1692 = vunpack.c.l.b16 %v378
    %v1693 = vunpack.c.h.b16 %v378
    %v1694 = vunpack.c.l.b16 %v379
    %v1695 = vunpack.c.h.b16 %v379
    %v1696 = vunpack.c.l.b16 %v380
    %v1697 = vunpack.c.h.b16 %v380
    %v1698 = vunpack.c.l.b16 %v381
    %v1699 = vunpack.c.h.b16 %v381
    %v1700 = vunpack.c.l.b16 %v382
    %v1701 = vunpack.c.h.b16 %v382
    %v1702 = vunpack.c.l.b16 %v383
    %v1703 = vunpack.c.h.b16 %v383
    %v1704 = vunpack.c.l.b16 %v384
    %v1705 = vunpack.c.h.b16 %v384
    %v1706 = vunpack.c.l.b16 %v385
    %v1707 = vunpack.c.h.b16 %v385
    %v1708 = vunpack.c.l.b16 %v386
    %v1709 = vunpack.c.h.b16 %v386
    %v1710 = vunpack.c.l.b16 %v387
    %v1711 = vunpack.c.h.b16 %v387
    %v1712 = vunpack.c.l.b16 %v388
    %v1713 = vunpack.c.h.b16 %v388
    %v1714 = vunpack.c.l.b16 %v389
    %v1715 = vunpack.c.h.b16 %v389
    %v1716 = vunpack.c.l.b16 %v390
    %v1717 = vunpack.c.h.b16 %v390
    %v1718 = vunpack.c.l.b16 %v391
    %v1719 = vunpack.c.h.b16 %v391
    %v1720 = vunpack.c.l.b16 %v392
    %v1721 = vunpack.c.h.b16 %v392
    %v1722 = vunpack.c.l.b16 %v393
    %v1723 = vunpack.c.h.b16 %v393
    %v1724 = vunpack.c.l.b16 %v394
    %v1725 = vunpack.c.h.b16 %v394
    %v1726 = vunpack.c.l.b16 %v395
    %v1727 = vunpack.c.h.b16 %v395
    %v1728 = vunpack.c.l.b16 %v396
    %v1729 = vunpack.c.h.b16 %v396
    %v1730 = vunpack.c.l.b16 %v397
    %v1731 = vunpack.c.h.b16 %v397
    %v1732 = vunpack.c.l.b16 %v398
    %v1733 = vunpack.c.h.b16 %v398
    %v1734 = vunpack.c.l.b16 %v399
    %v1735 = vunpack.c.h.b16 %v399
    %v1736 = vunpack.c.l.b16 %v400
    %v1737 = vunpack.c.h.b16 %v400
    %v1738 = vunpack.c.l.b16 %v401
    %v1739 = vunpack.c.h.b16 %v401
    %v1740 = vunpack.c.l.b16 %v402
    %v1741 = vunpack.c.h.b16 %v402
    %v1742 = vunpack.c.l.b16 %v403
    %v1743 = vunpack.c.h.b16 %v403
    %v1744 = vunpack.c.l.b16 %v404
    %v1745 = vunpack.c.h.b16 %v404
    %v1746 = vunpack.c.l.b16 %v405
    %v1747 = vunpack.c.h.b16 %v405
    %v1748 = vunpack.c.l.b16 %v406
    %v1749 = vunpack.c.h.b16 %v406
    %v1750 = vunpack.c.l.b16 %v407
    %v1751 = vunpack.c.h.b16 %v407
    %v1752 = vunpack.c.l.b16 %v408
    %v1753 = vunpack.c.h.b16 %v408
    %v1754 = vunpack.c.l.b16 %v409
    %v1755 = vunpack.c.h.b16 %v409
    %v1756 = vunpack.c.l.b16 %v410
    %v1757 = vunpack.c.h.b16 %v410
    %v1758 = vunpack.c.l.b16 %v411
    %v1759 = vunpack.c.h.b16 %v411
    %v1760 = vunpack.c.l.b16 %v412
    %v1761 = vunpack.c.h.b16 %v412
    %v1762 = vunpack.c.l.b16 %v413
    %v1763 = vunpack.c.h.b16 %v413
    %v1764 = vunpack.c.l.b16 %v414
    %v1765 = vunpack.c.h.b16 %v414
    %v1766 = vunpack.c.l.b16 %v415
    %v1767 = vunpack.c.h.b16 %v415
    %v1768 = vunpack.c.l.b16 %v416
    %v1769 = vunpack.c.h.b16 %v416
    %v1770 = vunpack.c.l.b16 %v417
    %v1771 = vunpack.c.h.b16 %v417
    %v1772 = vunpack.c.l.b16 %v418
    %v1773 = vunpack.c.h.b16 %v418
    %v1774 = vunpack.c.l.b16 %v419
    %v1775 = vunpack.c.h.b16 %v419
    %v1776 = vunpack.c.l.b16 %v420
    %v1777 = vunpack.c.h.b16 %v420
    %v1778 = vunpack.c.l.b16 %v421
    %v1779 = vunpack.c.h.b16 %v421
    %v1780 = vunpack.c.l.b16 %v422
    %v1781 = vunpack.c.h.b16 %v422
    %v1782 = vunpack.c.l.b16 %v423
    %v1783 = vunpack.c.h.b16 %v423
    %v1784 = vunpack.c.l.b16 %v424
    %v1785 = vunpack.c.h.b16 %v424
    %v1786 = vunpack.c.l.b16 %v425
    %v1787 = vunpack.c.h.b16 %v425
    %v1788 = vunpack.c.l.b16 %v426
    %v1789 = vunpack.c.h.b16 %v426
    %v1790 = vunpack.c.l.b16 %v427
    %v1791 = vunpack.c.h.b16 %v427
    %v1792 = vunpack.c.l.b16 %v428
    %v1793 = vunpack.c.h.b16 %v428
    %v1794 = vunpack.c.l.b16 %v429
    %v1795 = vunpack.c.h.b16 %v429
    %v1796 = vunpack.c.l.b16 %v430
    %v1797 = vunpack.c.h.b16 %v430
    %v1798 = vunpack.c.l.b16 %v431
    %v1799 = vunpack.c.h.b16 %v431
    %v1800 = vunpack.c.l.b16 %v432
    %v1801 = vunpack.c.h.b16 %v432
    %v1802 = vunpack.c.l.b16 %v433
    %v1803 = vunpack.c.h.b16 %v433
    %v1804 = vunpack.c.l.b16 %v434
    %v1805 = vunpack.c.h.b16 %v434
    %v1806 = vunpack.c.l.b16 %v435
    %v1807 = vunpack.c.h.b16 %v435
    %v1808 = vunpack.c.l.b16 %v436
    %v1809 = vunpack.c.h.b16 %v436
    %v1810 = vunpack.c.l.b16 %v437
    %v1811 = vunpack.c.h.b16 %v437
    %v1812 = vunpack.c.l.b16 %v438
    %v1813 = vunpack.c.h.b16 %v438
    %v1814 = vunpack.c.l.b16 %v439
    %v1815 = vunpack.c.h.b16 %v439
    %v1816 = vunpack.c.l.b16 %v440
    %v1817 = vunpack.c.h.b16 %v440
    %v1818 = vunpack.c.l.b16 %v441
    %v1819 = vunpack.c.h.b16 %v441
    %v1820 = vunpack.c.l.b16 %v442
    %v1821 = vunpack.c.h.b16 %v442
    %v1822 = vunpack.c.l.b16 %v443
    %v1823 = vunpack.c.h.b16 %v443
    %v1824 = vunpack.c.l.b16 %v444
    %v1825 = vunpack.c.h.b16 %v444
    %v1826 = vunpack.c.l.b16 %v445
    %v1827 = vunpack.c.h.b16 %v445
    %v1828 = vunpack.c.l.b16 %v446
    %v1829 = vunpack.c.h.b16 %v446
    %v1830 = vunpack.c.l.b16 %v447
    %v1831 = vunpack.c.h.b16 %v447
    %v1832 = vunpack.c.l.b16 %v448
    %v1833 = vunpack.c.h.b16 %v448
    %v1834 = vunpack.c.l.b16 %v449
    %v1835 = vunpack.c.h.b16 %v449
    %v1836 = vunpack.c.l.b16 %v450
    %v1837 = vunpack.c.h.b16 %v450
    %v1838 = vunpack.c.l.b16 %v451
    %v1839 = vunpack.c.h.b16 %v451
    %v1840 = vunpack.c.l.b16 %v452
    %v1841 = vunpack.c.h.b16 %v452
    %v1842 = vunpack.c.l.b16 %v453
    %v1843 = vunpack.c.h.b16 %v453
    %v1844 = vunpack.c.l.b16 %v454
    %v1845 = vunpack.c.h.b16 %v454
    %v1846 = vunpack.c.l.b16 %v455
    %v1847 = vunpack.c.h.b16 %v455
    %v1848 = vunpack.c.l.b16 %v456
    %v1849 = vunpack.c.h.b16 %v456
    %v1850 = vunpack.c.l.b16 %v457
    %v1851 = vunpack.c.h.b16 %v457
    %v1852 = vunpack.c.l.b16 %v458
    %v1853 = vunpack.c.h.b16 %v458
    %v1854 = vunpack.c.l.b16 %v459
    %v1855 = vunpack.c.h.b16 %v459
    %v1856 = vunpack.c.l.b16 %v460
    %v1857 = vunpack.c.h.b16 %v460
    %v1858 = vunpack.c.l.b16 %v461
    %v1859 = vunpack.c.h.b16 %v461
    %v1860 = vunpack.c.l.b16 %v462
    %v1861 = vunpack.c.h.b16 %v462
    %v1862 = vunpack.c.l.b16 %v463
    %v1863 = vunpack.c.h.b16 %v463
    %v1864 = vunpack.c.l.b16 %v464
    %v1865 = vunpack.c.h.b16 %v464
    %v1866 = vunpack.c.l.b16 %v465
    %v1867 = vunpack.c.h.b16 %v465
    %v1868 = vunpack.c.l.b16 %v466
    %v1869 = vunpack.c.h.b16 %v466
    %v1870 = vunpack.c.l.b16 %v467
    %v1871 = vunpack.c.h.b16 %v467
    %v1872 = vunpack.c.l.b16 %v468
    %v1873 = vunpack.c.h.b16 %v468
    %v1874 = vunpack.c.l.b16 %v469
    %v1875 = vunpack.c.h.b16 %v469
    %v1876 = vunpack.c.l.b16 %v470
    %v1877 = vunpack.c.h.b16 %v470
    %v1878 = vunpack.c.l.b16 %v471
    %v1879 = vunpack.c.h.b16 %v471
    %v1880 = vunpack.c.l.b16 %v472
    %v1881 = vunpack.c.h.b16 %v472
    %v1882 = vunpack.c.l.b16 %v473
    %v1883 = vunpack.c.h.b16 %v473
    %v1884 = vunpack.c.l.b16 %v474
    %v1885 = vunpack.c.h.b16 %v474
    %v1886 = vunpack.c.l.b16 %v475
    %v1887 = vunpack.c.h.b16 %v475
    %v1888 = vunpack.c.l.b16 %v476
    %v1889 = vunpack.c.h.b16 %v476
    %v1890 = vunpack.c.l.b16 %v477
    %v1891 = vunpack.c.h.b16 %v477
    %v1892 = vunpack.c.l.b16 %v478
    %v1893 = vunpack.c.h.b16 %v478
    %v1894 = vunpack.c.l.b16 %v479
    %v1895 = vunpack.c.h.b16 %v479
    %v1896 = vunpack.c.l.b16 %v480
    %v1897 = vunpack.c.h.b16 %v480
    %v1898 = vunpack.c.l.b16 %v481
    %v1899 = vunpack.c.h.b16 %v481
    %v1900 = vunpack.c.l.b16 %v482
    %v1901 = vunpack.c.h.b16 %v482
    %v1902 = vunpack.c.l.b16 %v483
    %v1903 = vunpack.c.h.b16 %v483
    %v1904 = vunpack.c.l.b16 %v484
    %v1905 = vunpack.c.h.b16 %v484
    %v1906 = vunpack.c.l.b16 %v485
    %v1907 = vunpack.c.h.b16 %v485
    %v1908 = vunpack.c.l.b16 %v486
    %v1909 = vunpack.c.h.b16 %v486
    %v1910 = vunpack.c.l.b16 %v487
    %v1911 = vunpack.c.h.b16 %v487
    %v1912 = vunpack.c.l.b16 %v488
    %v1913 = vunpack.c.h.b16 %v488
    %v1914 = vunpack.c.l.b16 %v489
    %v1915 = vunpack.c.h.b16 %v489
    %v1916 = vunpack.c.l.b16 %v490
    %v1917 = vunpack.c.h.b16 %v490
    %v1918 = vunpack.c.l.b16 %v491
    %v1919 = vunpack.c.h.b16 %v491
    %v1920 = vunpack.c.l.b16 %v492
    %v1921 = vunpack.c.h.b16 %v492
    %v1922 = vunpack.c.l.b16 %v493
    %v1923 = vunpack.c.h.b16 %v493
    %v1924 = vunpack.c.l.b16 %v494
    %v1925 = vunpack.c.h.b16 %v494
    %v1926 = vunpack.c.l.b16 %v495
    %v1927 = vunpack.c.h.b16 %v495
    %v1928 = vunpack.c.l.b16 %v496
    %v1929 = vunpack.c.h.b16 %v496
    %v1930 = vunpack.c.l.b16 %v497
    %v1931 = vunpack.c.h.b16 %v497
    %v1932 = vunpack.c.l.b16 %v498
    %v1933 = vunpack.c.h.b16 %v498
    %v1934 = vunpack.c.l.b16 %v499
    %v1935 = vunpack.c.h.b16 %v499
    %v1936 = vunpack.c.l.b16 %v500
    %v1937 = vunpack.c.h.b16 %v500
    %v1938 = vunpack.c.l.b16 %v501
    %v1939 = vunpack.c.h.b16 %v501
    %v1940 = vunpack.c.l.b16 %v502
    %v1941 = vunpack.c.h.b16 %v502
    %v1942 = vunpack.c.l.b16 %v503
    %v1943 = vunpack.c.h.b16 %v503
    %v1944 = vunpack.c.l.b16 %v504
    %v1945 = vunpack.c.h.b16 %v504
    %v1946 = vunpack.c.l.b16 %v505
    %v1947 = vunpack.c.h.b16 %v505
    %v1948 = vunpack.c.l.b16 %v506
    %v1949 = vunpack.c.h.b16 %v506
    %v1950 = vunpack.c.l.b16 %v507
    %v1951 = vunpack.c.h.b16 %v507
    %v1952 = vunpack.c.l.b16 %v508
    %v1953 = vunpack.c.h.b16 %v508
    %v1954 = vunpack.c.l.b16 %v509
    %v1955 = vunpack.c.h.b16 %v509
    %v1956 = vunpack.c.l.b16 %v510
    %v1957 = vunpack.c.h.b16 %v510
    %v1958 = vunpack.c.l.b16 %v511
    %v1959 = vunpack.c.h.b16 %v511
    %v1960 = vunpack.c.l.b16 %v512
    %v1961 = vunpack.c.h.b16 %v512
    %v1962 = vunpack.c.l.b16 %v513
    %v1963 = vunpack.c.h.b16 %v513
    %v1964 = vunpack.c.l.b16 %v514
    %v1965 = vunpack.c.h.b16 %v514
    %v1966 = vunpack.c.l.b16 %v515
    %v1967 = vunpack.c.h.b16 %v515
    %v1968 = vunpack.c.l.b16 %v516
    %v1969 = vunpack.c.h.b16 %v516
    %v1970 = vunpack.c.l.b16 %v517
    %v1971 = vunpack.c.h.b16 %v517
    %v1972 = vunpack.c.l.b16 %v518
    %v1973 = vunpack.c.h.b16 %v518
    %v1974 = vunpack.c.l.b16 %v519
    %v1975 = vunpack.c.h.b16 %v519
    %v1976 = vunpack.c.l.b16 %v520
    %v1977 = vunpack.c.h.b16 %v520
    %v1978 = vunpack.c.l.b16 %v521
    %v1979 = vunpack.c.h.b16 %v521
    %v1980 = vunpack.c.l.b16 %v522
    %v1981 = vunpack.c.h.b16 %v522
    %v1982 = vunpack.c.l.b16 %v523
    %v1983 = vunpack.c.h.b16 %v523
    %v1984 = vunpack.c.l.b16 %v524
    %v1985 = vunpack.c.h.b16 %v524
    %v1986 = vunpack.c.l.b16 %v525
    %v1987 = vunpack.c.h.b16 %v525
    %v1988 = vunpack.c.l.b16 %v526
    %v1989 = vunpack.c.h.b16 %v526
    %v1990 = vunpack.c.l.b16 %v527
    %v1991 = vunpack.c.h.b16 %v527
    %v1992 = vunpack.c.l.b16 %v528
    %v1993 = vunpack.c.h.b16 %v528
    %v1994 = vunpack.c.l.b16 %v529
    %v1995 = vunpack.c.h.b16 %v529
    %v1996 = vunpack.c.l.b16 %v530
    %v1997 = vunpack.c.h.b16 %v530
    %v1998 = vunpack.c.l.b16 %v531
    %v1999 = vunpack.c.h.b16 %v531
    %v2000 = vunpack.c.l.b16 %v532
    %v2001 = vunpack.c.h.b16 %v532
    %v2002 = vunpack.c.l.b16 %v533
    %v2003 = vunpack.c.h.b16 %v533
    %v2004 = vunpack.c.l.b16 %v534
    %v2005 = vunpack.c.h.b16 %v534
    %v2006 = vunpack.c.l.b16 %v535
    %v2007 = vunpack.c.h.b16 %v535
    %v2008 = vunpack.c.l.b16 %v536
    %v2009 = vunpack.c.h.b16 %v536
    %v2010 = vunpack.c.l.b16 %v537
    %v2011 = vunpack.c.h.b16 %v537
    %v2012 = vunpack.c.l.b16 %v538
    %v2013 = vunpack.c.h.b16 %v538
    %v2014 = vunpack.c.l.b16 %v539
    %v2015 = vunpack.c.h.b16 %v539
    %v2016 = vunpack.c.l.b16 %v540
    %v2017 = vunpack.c.h.b16 %v540
    %v2018 = vunpack.c.l.b16 %v541
    %v2019 = vunpack.c.h.b16 %v541
    %v2020 = vunpack.c.l.b16 %v542
    %v2021 = vunpack.c.h.b16 %v542
    %v2022 = vunpack.c.l.b16 %v543
    %v2023 = vunpack.c.h.b16 %v543
    %v2024 = vunpack.c.l.b16 %v544
    %v2025 = vunpack.c.h.b16 %v544
    %v2026 = vunpack.c.l.b16 %v545
    %v2027 = vunpack.c.h.b16 %v545
    %v2028 = vunpack.c.l.b16 %v546
    %v2029 = vunpack.c.h.b16 %v546
    %v2030 = vunpack.c.l.b16 %v547
    %v2031 = vunpack.c.h.b16 %v547
    %v2032 = vunpack.c.l.b16 %v548
    %v2033 = vunpack.c.h.b16 %v548
    %v2034 = vunpack.c.l.b16 %v549
    %v2035 = vunpack.c.h.b16 %v549
    %v2036 = vunpack.c.l.b16 %v550
    %v2037 = vunpack.c.h.b16 %v550
    %v2038 = vunpack.c.l.b16 %v551
    %v2039 = vunpack.c.h.b16 %v551
    %v2040 = vunpack.c.l.b16 %v552
    %v2041 = vunpack.c.h.b16 %v552
    %v2042 = vunpack.c.l.b16 %v553
    %v2043 = vunpack.c.h.b16 %v553
    %v2044 = vunpack.c.l.b16 %v554
    %v2045 = vunpack.c.h.b16 %v554
    %v2046 = vunpack.c.l.b16 %v555
    %v2047 = vunpack.c.h.b16 %v555
    %v2048 = vunpack.c.l.b16 %v556
    %v2049 = vunpack.c.h.b16 %v556
    %v2050 = vunpack.c.l.b16 %v557
    %v2051 = vunpack.c.h.b16 %v557
    %v2052 = vunpack.c.l.b16 %v558
    %v2053 = vunpack.c.h.b16 %v558
    %v2054 = vunpack.c.l.b16 %v559
    %v2055 = vunpack.c.h.b16 %v559
    %v2056 = vunpack.c.l.b16 %v560
    %v2057 = vunpack.c.h.b16 %v560
    %v2058 = vunpack.c.l.b16 %v561
    %v2059 = vunpack.c.h.b16 %v561
    %v2060 = vunpack.c.l.b16 %v562
    %v2061 = vunpack.c.h.b16 %v562
    %v2062 = vunpack.c.l.b16 %v563
    %v2063 = vunpack.c.h.b16 %v563
    %v2064 = vunpack.c.l.b16 %v564
    %v2065 = vunpack.c.h.b16 %v564
    %v2066 = vunpack.c.l.b16 %v565
    %v2067 = vunpack.c.h.b16 %v565
    %v2068 = vunpack.c.l.b16 %v566
    %v2069 = vunpack.c.h.b16 %v566
    %v2070 = vunpack.c.l.b16 %v567
    %v2071 = vunpack.c.h.b16 %v567
    %v2072 = vunpack.c.l.b16 %v568
    %v2073 = vunpack.c.h.b16 %v568
    %v2074 = vunpack.c.l.b16 %v569
    %v2075 = vunpack.c.h.b16 %v569
    %v2076 = vunpack.c.l.b16 %v570
    %v2077 = vunpack.c.h.b16 %v570
    %v2078 = vunpack.c.l.b16 %v571
    %v2079 = vunpack.c.h.b16 %v571
    %v2080 = vunpack.c.l.b16 %v572
    %v2081 = vunpack.c.h.b16 %v572
    %v2082 = vunpack.c.l.b16 %v573
    %v2083 = vunpack.c.h.b16 %v573
    %v2084 = vunpack.c.l.b16 %v574
    %v2085 = vunpack.c.h.b16 %v574
    %v2086 = vunpack.c.l.b16 %v575
    %v2087 = vunpack.c.h.b16 %v575
    %v2088 = vunpack.c.l.b16 %v576
    %v2089 = vunpack.c.h.b16 %v576
    %v2090 = vunpack.c.l.b16 %v577
    %v2091 = vunpack.c.h.b16 %v577
    %v2092 = vunpack.c.l.b16 %v578
    %v2093 = vunpack.c.h.b16 %v578
    %v2094 = vunpack.c.l.b16 %v579
    %v2095 = vunpack.c.h.b16 %v579
    %v2096 = vunpack.c.l.b16 %v580
    %v2097 = vunpack.c.h.b16 %v580
    %v2098 = vunpack.c.l.b16 %v581
    %v2099 = vunpack.c.h.b16 %v581
    %v2100 = vunpack.c.l.b16 %v582
    %v2101 = vunpack.c.h.b16 %v582
    %v2102 = vunpack.c.l.b16 %v583
    %v2103 = vunpack.c.h.b16 %v583
    %v2104 = vunpack.c.l.b16 %v584
    %v2105 = vunpack.c.h.b16 %v584
    %v2106 = vunpack.c.l.b16 %v585
    %v2107 = vunpack.c.h.b16 %v585
    %v2108 = vunpack.c.l.b16 %v586
    %v2109 = vunpack.c.h.b16 %v586
    %v2110 = vunpack.c.l.b16 %v587
    %v2111 = vunpack.c.h.b16 %v587
    %v2112 = vunpack.c.l.b16 %v588
    %v2113 = vunpack.c.h.b16 %v588
    %v2114 = vunpack.c.l.b16 %v589
    %v2115 = vunpack.c.h.b16 %v589
    %v2116 = vunpack.c.l.b16 %v590
    %v2117 = vunpack.c.h.b16 %v590
    %v2118 = vunpack.c.l.b16 %v591
    %v2119 = vunpack.c.h.b16 %v591
    %v2120 = vunpack.c.l.b16 %v592
    %v2121 = vunpack.c.h.b16 %v592
    %v2122 = vunpack.c.l.b16 %v593
    %v2123 = vunpack.c.h.b16 %v593
    %v2124 = vunpack.c.l.b16 %v594
    %v2125 = vunpack.c.h.b16 %v594
    %v2126 = vunpack.c.l.b16 %v595
    %v2127 = vunpack.c.h.b16 %v595
    %v2128 = vunpack.c.l.b16 %v596
    %v2129 = vunpack.c.h.b16 %v596
    %v2130 = vunpack.c.l.b16 %v597
    %v2131 = vunpack.c.h.b16 %v597
    %v2132 = vunpack.c.l.b16 %v598
    %v2133 = vunpack.c.h.b16 %v598
    %v2134 = vunpack.c.l.b16 %v599
    %v2135 = vunpack.c.h.b16 %v599
    %v2136 = vunpack.c.l.b16 %v600
    %v2137 = vunpack.c.h.b16 %v600
    %v2138 = vunpack.c.l.b16 %v601
    %v2139 = vunpack.c.h.b16 %v601
    %v2140 = vunpack.c.l.b16 %v602
    %v2141 = vunpack.c.h.b16 %v602
    %v2142 = vunpack.c.l.b16 %v603
    %v2143 = vunpack.c.h.b16 %v603
    %v2144 = vunpack.c.l.b16 %v604
    %v2145 = vunpack.c.h.b16 %v604
    %v2146 = vunpack.c.l.b16 %v605
    %v2147 = vunpack.c.h.b16 %v605
    %v2148 = vunpack.c.l.b16 %v606
    %v2149 = vunpack.c.h.b16 %v606
    %v2150 = vunpack.c.l.b16 %v607
    %v2151 = vunpack.c.h.b16 %v607
    %v2152 = vunpack.c.l.b16 %v608
    %v2153 = vunpack.c.h.b16 %v608
    %v2154 = vunpack.c.l.b16 %v609
    %v2155 = vunpack.c.h.b16 %v609
    %v2156 = vunpack.c.l.b16 %v610
    %v2157 = vunpack.c.h.b16 %v610
    %v2158 = vunpack.c.l.b16 %v611
    %v2159 = vunpack.c.h.b16 %v611
    %v2160 = vunpack.c.l.b16 %v612
    %v2161 = vunpack.c.h.b16 %v612
    %v2162 = vunpack.c.l.b16 %v613
    %v2163 = vunpack.c.h.b16 %v613
    %v2164 = vunpack.c.l.b16 %v614
    %v2165 = vunpack.c.h.b16 %v614
    %v2166 = vunpack.c.l.b16 %v615
    %v2167 = vunpack.c.h.b16 %v615
    %v2168 = vunpack.c.l.b16 %v616
    %v2169 = vunpack.c.h.b16 %v616
    %v2170 = vunpack.c.l.b16 %v617
    %v2171 = vunpack.c.h.b16 %v617
    %v2172 = vunpack.c.l.b16 %v618
    %v2173 = vunpack.c.h.b16 %v618
    %v2174 = vunpack.c.l.b16 %v619
    %v2175 = vunpack.c.h.b16 %v619
    %v2176 = vunpack.c.l.b16 %v620
    %v2177 = vunpack.c.h.b16 %v620
    %v2178 = vunpack.c.l.b16 %v621
    %v2179 = vunpack.c.h.b16 %v621
    %v2180 = vunpack.c.l.b16 %v622
    %v2181 = vunpack.c.h.b16 %v622
    %v2182 = vunpack.c.l.b16 %v623
    %v2183 = vunpack.c.h.b16 %v623
    %v2184 = vunpack.c.l.b16 %v624
    %v2185 = vunpack.c.h.b16 %v624
    %v2186 = vunpack.c.l.b16 %v625
    %v2187 = vunpack.c.h.b16 %v625
    %v2188 = vunpack.c.l.b16 %v626
    %v2189 = vunpack.c.h.b16 %v626
    %v2190 = vunpack.c.l.b16 %v627
    %v2191 = vunpack.c.h.b16 %v627
    %v2192 = vunpack.c.l.b16 %v628
    %v2193 = vunpack.c.h.b16 %v628
    %v2194 = vunpack.c.l.b16 %v629
    %v2195 = vunpack.c.h.b16 %v629
    %v2196 = vunpack.c.l.b16 %v630
    %v2197 = vunpack.c.h.b16 %v630
    %v2198 = vunpack.c.l.b16 %v631
    %v2199 = vunpack.c.h.b16 %v631
    %v2200 = vunpack.c.l.b16 %v632
    %v2201 = vunpack.c.h.b16 %v632
    %v2202 = vunpack.c.l.b16 %v633
    %v2203 = vunpack.c.h.b16 %v633
    %v2204 = vunpack.c.l.b16 %v634
    %v2205 = vunpack.c.h.b16 %v634
    %v2206 = vunpack.c.l.b16 %v635
    %v2207 = vunpack.c.h.b16 %v635
    %v2208 = vpack.c.b16 %v1200, %v1184
    %v2209 = vpack.c.b16 %v1201, %v1185
    %v2210 = vpack.c.b16 %v1202, %v1186
    %v2211 = vpack.c.b16 %v1203, %v1187
    %v2212 = vpack.c.b16 %v1204, %v1188
    %v2213 = vpack.c.b16 %v1205, %v1189
    %v2214 = vpack.c.b16 %v1206, %v1190
    %v2215 = vpack.c.b16 %v1207, %v1191
    %v2216 = vpack.c.b16 %v1208, %v1192
    %v2217 = vpack.c.b16 %v1209, %v1193
    %v2218 = vpack.c.b16 %v1210, %v1194
    %v2219 = vpack.c.b16 %v1211, %v1195
    %v2220 = vpack.c.b16 %v1212, %v1196
    %v2221 = vpack.c.b16 %v1213, %v1197
    %v2222 = vpack.c.b16 %v1214, %v1198
    %v2223 = vpack.c.b16 %v1215, %v1199
    %v2224 = vpack.c.b16 %v1232, %v1216
    %v2225 = vpack.c.b16 %v1233, %v1217
    %v2226 = vpack.c.b16 %v1234, %v1218
    %v2227 = vpack.c.b16 %v1235, %v1219
    %v2228 = vpack.c.b16 %v1236, %v1220
    %v2229 = vpack.c.b16 %v1237, %v1221
    %v2230 = vpack.c.b16 %v1238, %v1222
    %v2231 = vpack.c.b16 %v1239, %v1223
    %v2232 = vpack.c.b16 %v1240, %v1224
    %v2233 = vpack.c.b16 %v1241, %v1225
    %v2234 = vpack.c.b16 %v1242, %v1226
    %v2235 = vpack.c.b16 %v1243, %v1227
    %v2236 = vpack.c.b16 %v1244, %v1228
    %v2237 = vpack.c.b16 %v1245, %v1229
    %v2238 = vpack.c.b16 %v1246, %v1230
    %v2239 = vpack.c.b16 %v1247, %v1231
    %v2240 = vpack.c.b16 %v1264, %v1248
    %v2241 = vpack.c.b16 %v1265, %v1249
    %v2242 = vpack.c.b16 %v1266, %v1250
    %v2243 = vpack.c.b16 %v1267, %v1251
    %v2244 = vpack.c.b16 %v1268, %v1252
    %v2245 = vpack.c.b16 %v1269, %v1253
    %v2246 = vpack.c.b16 %v1270, %v1254
    %v2247 = vpack.c.b16 %v1271, %v1255
    %v2248 = vpack.c.b16 %v1272, %v1256
    %v2249 = vpack.c.b16 %v1273, %v1257
    %v2250 = vpack.c.b16 %v1274, %v1258
    %v2251 = vpack.c.b16 %v1275, %v1259
    %v2252 = vpack.c.b16 %v1276, %v1260
    %v2253 = vpack.c.b16 %v1277, %v1261
    %v2254 = vpack.c.b16 %v1278, %v1262
    %v2255 = vpack.c.b16 %v1279, %v1263
    %v2256 = vpack.c.b16 %v1296, %v1280
    %v2257 = vpack.c.b16 %v1297, %v1281
    %v2258 = vpack.c.b16 %v1298, %v1282
    %v2259 = vpack.c.b16 %v1299, %v1283
    %v2260 = vpack.c.b16 %v1300, %v1284
    %v2261 = vpack.c.b16 %v1301, %v1285
    %v2262 = vpack.c.b16 %v1302, %v1286
    %v2263 = vpack.c.b16 %v1303, %v1287
    %v2264 = vpack.c.b16 %v1304, %v1288
    %v2265 = vpack.c.b16 %v1305, %v1289
    %v2266 = vpack.c.b16 %v1306, %v1290
    %v2267 = vpack.c.b16 %v1307, %v1291
    %v2268 = vpack.c.b16 %v1308, %v1292
    %v2269 = vpack.c.b16 %v1309, %v1293
    %v2270 = vpack.c.b16 %v1310, %v1294
    %v2271 = vpack.c.b16 %v1311, %v1295
    %v2272 = vpack.c.b16 %v1328, %v1312
    %v2273 = vpack.c.b16 %v1329, %v1313
    %v2274 = vpack.c.b16 %v1330, %v1314
    %v2275 = vpack.c.b16 %v1331, %v1315
    %v2276 = vpack.c.b16 %v1332, %v1316
    %v2277 = vpack.c.b16 %v1333, %v1317
    %v2278 = vpack.c.b16 %v1334, %v1318
    %v2279 = vpack.c.b16 %v1335, %v1319
    %v2280 = vpack.c.b16 %v1336, %v1320
    %v2281 = vpack.c.b16 %v1337, %v1321
    %v2282 = vpack.c.b16 %v1338, %v1322
    %v2283 = vpack.c.b16 %v1339, %v1323
    %v2284 = vpack.c.b16 %v1340, %v1324
    %v2285 = vpack.c.b16 %v1341, %v1325
    %v2286 = vpack.c.b16 %v1342, %v1326
    %v2287 = vpack.c.b16 %v1343, %v1327
    %v2288 = vpack.c.b16 %v1360, %v1344
    %v2289 = vpack.c.b16 %v1361, %v1345
    %v2290 = vpack.c.b16 %v1362, %v1346
    %v2291 = vpack.c.b16 %v1363, %v1347
    %v2292 = vpack.c.b16 %v1364, %v1348
    %v2293 = vpack.c.b16 %v1365, %v1349
    %v2294 = vpack.c.b16 %v1366, %v1350
    %v2295 = vpack.c.b16 %v1367, %v1351
    %v2296 = vpack.c.b16 %v1368, %v1352
    %v2297 = vpack.c.b16 %v1369, %v1353
    %v2298 = vpack.c.b16 %v1370, %v1354
    %v2299 = vpack.c.b16 %v1371, %v1355
    %v2300 = vpack.c.b16 %v1372, %v1356
    %v2301 = vpack.c.b16 %v1373, %v1357
    %v2302 = vpack.c.b16 %v1374, %v1358
    %v2303 = vpack.c.b16 %v1375, %v1359
    %v2304 = vpack.c.b16 %v1392, %v1376
    %v2305 = vpack.c.b16 %v1393, %v1377
    %v2306 = vpack.c.b16 %v1394, %v1378
    %v2307 = vpack.c.b16 %v1395, %v1379
    %v2308 = vpack.c.b16 %v1396, %v1380
    %v2309 = vpack.c.b16 %v1397, %v1381
    %v2310 = vpack.c.b16 %v1398, %v1382
    %v2311 = vpack.c.b16 %v1399, %v1383
    %v2312 = vpack.c.b16 %v1400, %v1384
    %v2313 = vpack.c.b16 %v1401, %v1385
    %v2314 = vpack.c.b16 %v1402, %v1386
    %v2315 = vpack.c.b16 %v1403, %v1387
    %v2316 = vpack.c.b16 %v1404, %v1388
    %v2317 = vpack.c.b16 %v1405, %v1389
    %v2318 = vpack.c.b16 %v1406, %v1390
    %v2319 = vpack.c.b16 %v1407, %v1391
    %v2320 = vpack.c.b16 %v1424, %v1408
    %v2321 = vpack.c.b16 %v1425, %v1409
    %v2322 = vpack.c.b16 %v1426, %v1410
    %v2323 = vpack.c.b16 %v1427, %v1411
    %v2324 = vpack.c.b16 %v1428, %v1412
    %v2325 = vpack.c.b16 %v1429, %v1413
    %v2326 = vpack.c.b16 %v1430, %v1414
    %v2327 = vpack.c.b16 %v1431, %v1415
    %v2328 = vpack.c.b16 %v1432, %v1416
    %v2329 = vpack.c.b16 %v1433, %v1417
    %v2330 = vpack.c.b16 %v1434, %v1418
    %v2331 = vpack.c.b16 %v1435, %v1419
    %v2332 = vpack.c.b16 %v1436, %v1420
    %v2333 = vpack.c.b16 %v1437, %v1421
    %v2334 = vpack.c.b16 %v1438, %v1422
    %v2335 = vpack.c.b16 %v1439, %v1423
    %v2336 = vpack.c.b16 %v1456, %v1440
    %v2337 = vpack.c.b16 %v1457, %v1441
    %v2338 = vpack.c.b16 %v1458, %v1442
    %v2339 = vpack.c.b16 %v1459, %v1443
    %v2340 = vpack.c.b16 %v1460, %v1444
    %v2341 = vpack.c.b16 %v1461, %v1445
    %v2342 = vpack.c.b16 %v1462, %v1446
    %v2343 = vpack.c.b16 %v1463, %v1447
    %v2344 = vpack.c.b16 %v1464, %v1448
    %v2345 = vpack.c.b16 %v1465, %v1449
    %v2346 = vpack.c.b16 %v1466, %v1450
    %v2347 = vpack.c.b16 %v1467, %v1451
    %v2348 = vpack.c.b16 %v1468, %v1452
    %v2349 = vpack.c.b16 %v1469, %v1453
    %v2350 = vpack.c.b16 %v1470, %v1454
    %v2351 = vpack.c.b16 %v1471, %v1455
    %v2352 = vpack.c.b16 %v1488, %v1472
    %v2353 = vpack.c.b16 %v1489, %v1473
    %v2354 = vpack.c.b16 %v1490, %v1474
    %v2355 = vpack.c.b16 %v1491, %v1475
    %v2356 = vpack.c.b16 %v1492, %v1476
    %v2357 = vpack.c.b16 %v1493, %v1477
    %v2358 = vpack.c.b16 %v1494, %v1478
    %v2359 = vpack.c.b16 %v1495, %v1479
    %v2360 = vpack.c.b16 %v1496, %v1480
    %v2361 = vpack.c.b16 %v1497, %v1481
    %v2362 = vpack.c.b16 %v1498, %v1482
    %v2363 = vpack.c.b16 %v1499, %v1483
    %v2364 = vpack.c.b16 %v1500, %v1484
    %v2365 = vpack.c.b16 %v1501, %v1485
    %v2366 = vpack.c.b16 %v1502, %v1486
    %v2367 = vpack.c.b16 %v1503, %v1487
    %v2368 = vpack.c.b16 %v1520, %v1504
    %v2369 = vpack.c.b16 %v1521, %v1505
    %v2370 = vpack.c.b16 %v1522, %v1506
    %v2371 = vpack.c.b16 %v1523, %v1507
    %v2372 = vpack.c.b16 %v1524, %v1508
    %v2373 = vpack.c.b16 %v1525, %v1509
    %v2374 = vpack.c.b16 %v1526, %v1510
    %v2375 = vpack.c.b16 %v1527, %v1511
    %v2376 = vpack.c.b16 %v1528, %v1512
    %v2377 = vpack.c.b16 %v1529, %v1513
    %v2378 = vpack.c.b16 %v1530, %v1514
    %v2379 = vpack.c.b16 %v1531, %v1515
    %v2380 = vpack.c.b16 %v1532, %v1516
    %v2381 = vpack.c.b16 %v1533, %v1517
    %v2382 = vpack.c.b16 %v1534, %v1518
    %v2383 = vpack.c.b16 %v1535, %v1519
    %v2384 = vpack.c.b16 %v1552, %v1536
    %v2385 = vpack.c.b16 %v1553, %v1537
    %v2386 = vpack.c.b16 %v1554, %v1538
    %v2387 = vpack.c.b16 %v1555, %v1539
    %v2388 = vpack.c.b16 %v1556, %v1540
    %v2389 = vpack.c.b16 %v1557, %v1541
    %v2390 = vpack.c.b16 %v1558, %v1542
    %v2391 = vpack.c.b16 %v1559, %v1543
    %v2392 = vpack.c.b16 %v1560, %v1544
    %v2393 = vpack.c.b16 %v1561, %v1545
    %v2394 = vpack.c.b16 %v1562, %v1546
    %v2395 = vpack.c.b16 %v1563, %v1547
    %v2396 = vpack.c.b16 %v1564, %v1548
    %v2397 = vpack.c.b16 %v1565, %v1549
    %v2398 = vpack.c.b16 %v1566, %v1550
    %v2399 = vpack.c.b16 %v1567, %v1551
    %v2400 = vpack.c.b16 %v1584, %v1568
    %v2401 = vpack.c.b16 %v1585, %v1569
    %v2402 = vpack.c.b16 %v1586, %v1570
    %v2403 = vpack.c.b16 %v1587, %v1571
    %v2404 = vpack.c.b16 %v1588, %v1572
    %v2405 = vpack.c.b16 %v1589, %v1573
    %v2406 = vpack.c.b16 %v1590, %v1574
    %v2407 = vpack.c.b16 %v1591, %v1575
    %v2408 = vpack.c.b16 %v1592, %v1576
    %v2409 = vpack.c.b16 %v1593, %v1577
    %v2410 = vpack.c.b16 %v1594, %v1578
    %v2411 = vpack.c.b16 %v1595, %v1579
    %v2412 = vpack.c.b16 %v1596, %v1580
    %v2413 = vpack.c.b16 %v1597, %v1581
    %v2414 = vpack.c.b16 %v1598, %v1582
    %v2415 = vpack.c.b16 %v1599, %v1583
    %v2416 = vpack.c.b16 %v1616, %v1600
    %v2417 = vpack.c.b16 %v1617, %v1601
    %v2418 = vpack.c.b16 %v1618, %v1602
    %v2419 = vpack.c.b16 %v1619, %v1603
    %v2420 = vpack.c.b16 %v1620, %v1604
    %v2421 = vpack.c.b16 %v1621, %v1605
    %v2422 = vpack.c.b16 %v1622, %v1606
    %v2423 = vpack.c.b16 %v1623, %v1607
    %v2424 = vpack.c.b16 %v1624, %v1608
    %v2425 = vpack.c.b16 %v1625, %v1609
    %v2426 = vpack.c.b16 %v1626, %v1610
    %v2427 = vpack.c.b16 %v1627, %v1611
    %v2428 = vpack.c.b16 %v1628, %v1612
    %v2429 = vpack.c.b16 %v1629, %v1613
    %v2430 = vpack.c.b16 %v1630, %v1614
    %v2431 = vpack.c.b16 %v1631, %v1615
    %v2432 = vpack.c.b16 %v1648, %v1632
    %v2433 = vpack.c.b16 %v1649, %v1633
    %v2434 = vpack.c.b16 %v1650, %v1634
    %v2435 = vpack.c.b16 %v1651, %v1635
    %v2436 = vpack.c.b16 %v1652, %v1636
    %v2437 = vpack.c.b16 %v1653, %v1637
    %v2438 = vpack.c.b16 %v1654, %v1638
    %v2439 = vpack.c.b16 %v1655, %v1639
    %v2440 = vpack.c.b16 %v1656, %v1640
    %v2441 = vpack.c.b16 %v1657, %v1641
    %v2442 = vpack.c.b16 %v1658, %v1642
    %v2443 = vpack.c.b16 %v1659, %v1643
    %v2444 = vpack.c.b16 %v1660, %v1644
    %v2445 = vpack.c.b16 %v1661, %v1645
    %v2446 = vpack.c.b16 %v1662, %v1646
    %v2447 = vpack.c.b16 %v1663, %v1647
    %v2448 = vpack.c.b16 %v1680, %v1664
    %v2449 = vpack.c.b16 %v1681, %v1665
    %v2450 = vpack.c.b16 %v1682, %v1666
    %v2451 = vpack.c.b16 %v1683, %v1667
    %v2452 = vpack.c.b16 %v1684, %v1668
    %v2453 = vpack.c.b16 %v1685, %v1669
    %v2454 = vpack.c.b16 %v1686, %v1670
    %v2455 = vpack.c.b16 %v1687, %v1671
    %v2456 = vpack.c.b16 %v1688, %v1672
    %v2457 = vpack.c.b16 %v1689, %v1673
    %v2458 = vpack.c.b16 %v1690, %v1674
    %v2459 = vpack.c.b16 %v1691, %v1675
    %v2460 = vpack.c.b16 %v1692, %v1676
    %v2461 = vpack.c.b16 %v1693, %v1677
    %v2462 = vpack.c.b16 %v1694, %v1678
    %v2463 = vpack.c.b16 %v1695, %v1679
    %v2464 = vpack.c.b16 %v1712, %v1696
    %v2465 = vpack.c.b16 %v1713, %v1697
    %v2466 = vpack.c.b16 %v1714, %v1698
    %v2467 = vpack.c.b16 %v1715, %v1699
    %v2468 = vpack.c.b16 %v1716, %v1700
    %v2469 = vpack.c.b16 %v1717, %v1701
    %v2470 = vpack.c.b16 %v1718, %v1702
    %v2471 = vpack.c.b16 %v1719, %v1703
    %v2472 = vpack.c.b16 %v1720, %v1704
    %v2473 = vpack.c.b16 %v1721, %v1705
    %v2474 = vpack.c.b16 %v1722, %v1706
    %v2475 = vpack.c.b16 %v1723, %v1707
    %v2476 = vpack.c.b16 %v1724, %v1708
    %v2477 = vpack.c.b16 %v1725, %v1709
    %v2478 = vpack.c.b16 %v1726, %v1710
    %v2479 = vpack.c.b16 %v1727, %v1711
    %v2480 = vpack.c.b16 %v1744, %v1728
    %v2481 = vpack.c.b16 %v1745, %v1729
    %v2482 = vpack.c.b16 %v1746, %v1730
    %v2483 = vpack.c.b16 %v1747, %v1731
    %v2484 = vpack.c.b16 %v1748, %v1732
    %v2485 = vpack.c.b16 %v1749, %v1733
    %v2486 = vpack.c.b16 %v1750, %v1734
    %v2487 = vpack.c.b16 %v1751, %v1735
    %v2488 = vpack.c.b16 %v1752, %v1736
    %v2489 = vpack.c.b16 %v1753, %v1737
    %v2490 = vpack.c.b16 %v1754, %v1738
    %v2491 = vpack.c.b16 %v1755, %v1739
    %v2492 = vpack.c.b16 %v1756, %v1740
    %v2493 = vpack.c.b16 %v1757, %v1741
    %v2494 = vpack.c.b16 %v1758, %v1742
    %v2495 = vpack.c.b16 %v1759, %v1743
    %v2496 = vpack.c.b16 %v1776, %v1760
    %v2497 = vpack.c.b16 %v1777, %v1761
    %v2498 = vpack.c.b16 %v1778, %v1762
    %v2499 = vpack.c.b16 %v1779, %v1763
    %v2500 = vpack.c.b16 %v1780, %v1764
    %v2501 = vpack.c.b16 %v1781, %v1765
    %v2502 = vpack.c.b16 %v1782, %v1766
    %v2503 = vpack.c.b16 %v1783, %v1767
    %v2504 = vpack.c.b16 %v1784, %v1768
    %v2505 = vpack.c.b16 %v1785, %v1769
    %v2506 = vpack.c.b16 %v1786, %v1770
    %v2507 = vpack.c.b16 %v1787, %v1771
    %v2508 = vpack.c.b16 %v1788, %v1772
    %v2509 = vpack.c.b16 %v1789, %v1773
    %v2510 = vpack.c.b16 %v1790, %v1774
    %v2511 = vpack.c.b16 %v1791, %v1775
    %v2512 = vpack.c.b16 %v1808, %v1792
    %v2513 = vpack.c.b16 %v1809, %v1793
    %v2514 = vpack.c.b16 %v1810, %v1794
    %v2515 = vpack.c.b16 %v1811, %v1795
    %v2516 = vpack.c.b16 %v1812, %v1796
    %v2517 = vpack.c.b16 %v1813, %v1797
    %v2518 = vpack.c.b16 %v1814, %v1798
    %v2519 = vpack.c.b16 %v1815, %v1799
    %v2520 = vpack.c.b16 %v1816, %v1800
    %v2521 = vpack.c.b16 %v1817, %v1801
    %v2522 = vpack.c.b16 %v1818, %v1802
    %v2523 = vpack.c.b16 %v1819, %v1803
    %v2524 = vpack.c.b16 %v1820, %v1804
    %v2525 = vpack.c.b16 %v1821, %v1805
    %v2526 = vpack.c.b16 %v1822, %v1806
    %v2527 = vpack.c.b16 %v1823, %v1807
    %v2528 = vpack.c.b16 %v1840, %v1824
    %v2529 = vpack.c.b16 %v1841, %v1825
    %v2530 = vpack.c.b16 %v1842, %v1826
    %v2531 = vpack.c.b16 %v1843, %v1827
    %v2532 = vpack.c.b16 %v1844, %v1828
    %v2533 = vpack.c.b16 %v1845, %v1829
    %v2534 = vpack.c.b16 %v1846, %v1830
    %v2535 = vpack.c.b16 %v1847, %v1831
    %v2536 = vpack.c.b16 %v1848, %v1832
    %v2537 = vpack.c.b16 %v1849, %v1833
    %v2538 = vpack.c.b16 %v1850, %v1834
    %v2539 = vpack.c.b16 %v1851, %v1835
    %v2540 = vpack.c.b16 %v1852, %v1836
    %v2541 = vpack.c.b16 %v1853, %v1837
    %v2542 = vpack.c.b16 %v1854, %v1838
    %v2543 = vpack.c.b16 %v1855, %v1839
    %v2544 = vpack.c.b16 %v1872, %v1856
    %v2545 = vpack.c.b16 %v1873, %v1857
    %v2546 = vpack.c.b16 %v1874, %v1858
    %v2547 = vpack.c.b16 %v1875, %v1859
    %v2548 = vpack.c.b16 %v1876, %v1860
    %v2549 = vpack.c.b16 %v1877, %v1861
    %v2550 = vpack.c.b16 %v1878, %v1862
    %v2551 = vpack.c.b16 %v1879, %v1863
    %v2552 = vpack.c.b16 %v1880, %v1864
    %v2553 = vpack.c.b16 %v1881, %v1865
    %v2554 = vpack.c.b16 %v1882, %v1866
    %v2555 = vpack.c.b16 %v1883, %v1867
    %v2556 = vpack.c.b16 %v1884, %v1868
    %v2557 = vpack.c.b16 %v1885, %v1869
    %v2558 = vpack.c.b16 %v1886, %v1870
    %v2559 = vpack.c.b16 %v1887, %v1871
    %v2560 = vpack.c.b16 %v1904, %v1888
    %v2561 = vpack.c.b16 %v1905, %v1889
    %v2562 = vpack.c.b16 %v1906, %v1890
    %v2563 = vpack.c.b16 %v1907, %v1891
    %v2564 = vpack.c.b16 %v1908, %v1892
    %v2565 = vpack.c.b16 %v1909, %v1893
    %v2566 = vpack.c.b16 %v1910, %v1894
    %v2567 = vpack.c.b16 %v1911, %v1895
    %v2568 = vpack.c.b16 %v1912, %v1896
    %v2569 = vpack.c.b16 %v1913, %v1897
    %v2570 = vpack.c.b16 %v1914, %v1898
    %v2571 = vpack.c.b16 %v1915, %v1899
    %v2572 = vpack.c.b16 %v1916, %v1900
    %v2573 = vpack.c.b16 %v1917, %v1901
    %v2574 = vpack.c.b16 %v1918, %v1902
    %v2575 = vpack.c.b16 %v1919, %v1903
    %v2576 = vpack.c.b16 %v1936, %v1920
    %v2577 = vpack.c.b16 %v1937, %v1921
    %v2578 = vpack.c.b16 %v1938, %v1922
    %v2579 = vpack.c.b16 %v1939, %v1923
    %v2580 = vpack.c.b16 %v1940, %v1924
    %v2581 = vpack.c.b16 %v1941, %v1925
    %v2582 = vpack.c.b16 %v1942, %v1926
    %v2583 = vpack.c.b16 %v1943, %v1927
    %v2584 = vpack.c.b16 %v1944, %v1928
    %v2585 = vpack.c.b16 %v1945, %v1929
    %v2586 = vpack.c.b16 %v1946, %v1930
    %v2587 = vpack.c.b16 %v1947, %v1931
    %v2588 = vpack.c.b16 %v1948, %v1932
    %v2589 = vpack.c.b16 %v1949, %v1933
    %v2590 = vpack.c.b16 %v1950, %v1934
    %v2591 = vpack.c.b16 %v1951, %v1935
    %v2592 = vpack.c.b16 %v1968, %v1952
    %v2593 = vpack.c.b16 %v1969, %v1953
    %v2594 = vpack.c.b16 %v1970, %v1954
    %v2595 = vpack.c.b16 %v1971, %v1955
    %v2596 = vpack.c.b16 %v1972, %v1956
    %v2597 = vpack.c.b16 %v1973, %v1957
    %v2598 = vpack.c.b16 %v1974, %v1958
    %v2599 = vpack.c.b16 %v1975, %v1959
    %v2600 = vpack.c.b16 %v1976, %v1960
    %v2601 = vpack.c.b16 %v1977, %v1961
    %v2602 = vpack.c.b16 %v1978, %v1962
    %v2603 = vpack.c.b16 %v1979, %v1963
    %v2604 = vpack.c.b16 %v1980, %v1964
    %v2605 = vpack.c.b16 %v1981, %v1965
    %v2606 = vpack.c.b16 %v1982, %v1966
    %v2607 = vpack.c.b16 %v1983, %v1967
    %v2608 = vpack.c.b16 %v2000, %v1984
    %v2609 = vpack.c.b16 %v2001, %v1985
    %v2610 = vpack.c.b16 %v2002, %v1986
    %v2611 = vpack.c.b16 %v2003, %v1987
    %v2612 = vpack.c.b16 %v2004, %v1988
    %v2613 = vpack.c.b16 %v2005, %v1989
    %v2614 = vpack.c.b16 %v2006, %v1990
    %v2615 = vpack.c.b16 %v2007, %v1991
    %v2616 = vpack.c.b16 %v2008, %v1992
    %v2617 = vpack.c.b16 %v2009, %v1993
    %v2618 = vpack.c.b16 %v2010, %v1994
    %v2619 = vpack.c.b16 %v2011, %v1995
    %v2620 = vpack.c.b16 %v2012, %v1996
    %v2621 = vpack.c.b16 %v2013, %v1997
    %v2622 = vpack.c.b16 %v2014, %v1998
    %v2623 = vpack.c.b16 %v2015, %v1999
    %v2624 = vpack.c.b16 %v2032, %v2016
    %v2625 = vpack.c.b16 %v2033, %v2017
    %v2626 = vpack.c.b16 %v2034, %v2018
    %v2627 = vpack.c.b16 %v2035, %v2019
    %v2628 = vpack.c.b16 %v2036, %v2020
    %v2629 = vpack.c.b16 %v2037, %v2021
    %v2630 = vpack.c.b16 %v2038, %v2022
    %v2631 = vpack.c.b16 %v2039, %v2023
    %v2632 = vpack.c.b16 %v2040, %v2024
    %v2633 = vpack.c.b16 %v2041, %v2025
    %v2634 = vpack.c.b16 %v2042, %v2026
    %v2635 = vpack.c.b16 %v2043, %v2027
    %v2636 = vpack.c.b16 %v2044, %v2028
    %v2637 = vpack.c.b16 %v2045, %v2029
    %v2638 = vpack.c.b16 %v2046, %v2030
    %v2639 = vpack.c.b16 %v2047, %v2031
    %v2640 = vpack.c.b16 %v2064, %v2048
    %v2641 = vpack.c.b16 %v2065, %v2049
    %v2642 = vpack.c.b16 %v2066, %v2050
    %v2643 = vpack.c.b16 %v2067, %v2051
    %v2644 = vpack.c.b16 %v2068, %v2052
    %v2645 = vpack.c.b16 %v2069, %v2053
    %v2646 = vpack.c.b16 %v2070, %v2054
    %v2647 = vpack.c.b16 %v2071, %v2055
    %v2648 = vpack.c.b16 %v2072, %v2056
    %v2649 = vpack.c.b16 %v2073, %v2057
    %v2650 = vpack.c.b16 %v2074, %v2058
    %v2651 = vpack.c.b16 %v2075, %v2059
    %v2652 = vpack.c.b16 %v2076, %v2060
    %v2653 = vpack.c.b16 %v2077, %v2061
    %v2654 = vpack.c.b16 %v2078, %v2062
    %v2655 = vpack.c.b16 %v2079, %v2063
    %v2656 = vpack.c.b16 %v2096, %v2080
    %v2657 = vpack.c.b16 %v2097, %v2081
    %v2658 = vpack.c.b16 %v2098, %v2082
    %v2659 = vpack.c.b16 %v2099, %v2083
    %v2660 = vpack.c.b16 %v2100, %v2084
    %v2661 = vpack.c.b16 %v2101, %v2085
    %v2662 = vpack.c.b16 %v2102, %v2086
    %v2663 = vpack.c.b16 %v2103, %v2087
    %v2664 = vpack.c.b16 %v2104, %v2088
    %v2665 = vpack.c.b16 %v2105, %v2089
    %v2666 = vpack.c.b16 %v2106, %v2090
    %v2667 = vpack.c.b16 %v2107, %v2091
    %v2668 = vpack.c.b16 %v2108, %v2092
    %v2669 = vpack.c.b16 %v2109, %v2093
    %v2670 = vpack.c.b16 %v2110, %v2094
    %v2671 = vpack.c.b16 %v2111, %v2095
    %v2672 = vpack.c.b16 %v2128, %v2112
    %v2673 = vpack.c.b16 %v2129, %v2113
    %v2674 = vpack.c.b16 %v2130, %v2114
    %v2675 = vpack.c.b16 %v2131, %v2115
    %v2676 = vpack.c.b16 %v2132, %v2116
    %v2677 = vpack.c.b16 %v2133, %v2117
    %v2678 = vpack.c.b16 %v2134, %v2118
    %v2679 = vpack.c.b16 %v2135, %v2119
    %v2680 = vpack.c.b16 %v2136, %v2120
    %v2681 = vpack.c.b16 %v2137, %v2121
    %v2682 = vpack.c.b16 %v2138, %v2122
    %v2683 = vpack.c.b16 %v2139, %v2123
    %v2684 = vpack.c.b16 %v2140, %v2124
    %v2685 = vpack.c.b16 %v2141, %v2125
    %v2686 = vpack.c.b16 %v2142, %v2126
    %v2687 = vpack.c.b16 %v2143, %v2127
    %v2688 = vpack.c.b16 %v2160, %v2144
    %v2689 = vpack.c.b16 %v2161, %v2145
    %v2690 = vpack.c.b16 %v2162, %v2146
    %v2691 = vpack.c.b16 %v2163, %v2147
    %v2692 = vpack.c.b16 %v2164, %v2148
    %v2693 = vpack.c.b16 %v2165, %v2149
    %v2694 = vpack.c.b16 %v2166, %v2150
    %v2695 = vpack.c.b16 %v2167, %v2151
    %v2696 = vpack.c.b16 %v2168, %v2152
    %v2697 = vpack.c.b16 %v2169, %v2153
    %v2698 = vpack.c.b16 %v2170, %v2154
    %v2699 = vpack.c.b16 %v2171, %v2155
    %v2700 = vpack.c.b16 %v2172, %v2156
    %v2701 = vpack.c.b16 %v2173, %v2157
    %v2702 = vpack.c.b16 %v2174, %v2158
    %v2703 = vpack.c.b16 %v2175, %v2159
    %v2704 = vpack.c.b16 %v2192, %v2176
    %v2705 = vpack.c.b16 %v2193, %v2177
    %v2706 = vpack.c.b16 %v2194, %v2178
    %v2707 = vpack.c.b16 %v2195, %v2179
    %v2708 = vpack.c.b16 %v2196, %v2180
    %v2709 = vpack.c.b16 %v2197, %v2181
    %v2710 = vpack.c.b16 %v2198, %v2182
    %v2711 = vpack.c.b16 %v2199, %v2183
    %v2712 = vpack.c.b16 %v2200, %v2184
    %v2713 = vpack.c.b16 %v2201, %v2185
    %v2714 = vpack.c.b16 %v2202, %v2186
    %v2715 = vpack.c.b16 %v2203, %v2187
    %v2716 = vpack.c.b16 %v2204, %v2188
    %v2717 = vpack.c.b16 %v2205, %v2189
    %v2718 = vpack.c.b16 %v2206, %v2190
    %v2719 = vpack.c.b16 %v2207, %v2191
    %3232 = vmatpush.bf16.msra.mxu0 %v2320
    %3233 = vmatpush.bf16.msra.mxu0 %v2304
    %3234 = vmatpush.bf16.msra.mxu0 %v2288
    %3235 = vmatpush.bf16.msra.mxu0 %v2272
    %3236 = vmatpush.bf16.msra.mxu0 %v2256
    %3237 = vmatpush.bf16.msra.mxu0 %v2240
    %3238 = vmatpush.bf16.msra.mxu0 %v2224
    %3239 = vmatpush.bf16.msra.mxu0 %v2208
    %3240 = vmatmul.bf16.gmra.mxu0 %v120
    %v3241 = vpop.f32.mrf.mxu0
    %v3242 = vadd.f32 %v640, %v3241
    %v3243 = vpop.f32.mrf.mxu0
    %v3244 = vadd.f32 %v640, %v3243
    %3245 = vdwg.mxu0
    %3246 = vmatpush.bf16.msra.mxu0 %v2448
    %3247 = vmatpush.bf16.msra.mxu0 %v2432
    %3248 = vmatpush.bf16.msra.mxu0 %v2416
    %3249 = vmatpush.bf16.msra.mxu0 %v2400
    %3250 = vmatpush.bf16.msra.mxu0 %v2384
    %3251 = vmatpush.bf16.msra.mxu0 %v2368
    %3252 = vmatpush.bf16.msra.mxu0 %v2352
    %3253 = vmatpush.bf16.msra.mxu0 %v2336
    %3254 = vmatmul.bf16.gmra.mxu0 %v121
    %v3255 = vpop.f32.mrf.mxu0
    %v3256 = vadd.f32 %v3242, %v3255
    %v3257 = vpop.f32.mrf.mxu0
    %v3258 = vadd.f32 %v3244, %v3257
    %3259 = vdwg.mxu0
    %3260 = vmatpush.bf16.msra.mxu0 %v2576
    %3261 = vmatpush.bf16.msra.mxu0 %v2560
    %3262 = vmatpush.bf16.msra.mxu0 %v2544
    %3263 = vmatpush.bf16.msra.mxu0 %v2528
    %3264 = vmatpush.bf16.msra.mxu0 %v2512
    %3265 = vmatpush.bf16.msra.mxu0 %v2496
    %3266 = vmatpush.bf16.msra.mxu0 %v2480
    %3267 = vmatpush.bf16.msra.mxu0 %v2464
    %3268 = vmatmul.bf16.gmra.mxu0 %v122
    %v3269 = vpop.f32.mrf.mxu0
    %v3270 = vadd.f32 %v3256, %v3269
    %v3271 = vpop.f32.mrf.mxu0
    %v3272 = vadd.f32 %v3258, %v3271
    %3273 = vdwg.mxu0
    %3274 = vmatpush.bf16.msra.mxu0 %v2704
    %3275 = vmatpush.bf16.msra.mxu0 %v2688
    %3276 = vmatpush.bf16.msra.mxu0 %v2672
    %3277 = vmatpush.bf16.msra.mxu0 %v2656
    %3278 = vmatpush.bf16.msra.mxu0 %v2640
    %3279 = vmatpush.bf16.msra.mxu0 %v2624
    %3280 = vmatpush.bf16.msra.mxu0 %v2608
    %3281 = vmatpush.bf16.msra.mxu0 %v2592
    %3282 = vmatmul.bf16.gmra.mxu0 %v123
    %v3283 = vpop.f32.mrf.mxu0
    %v3284 = vadd.f32 %v3270, %v3283
    %v3285 = vpop.f32.mrf.mxu0
    %v3286 = vadd.f32 %v3272, %v3285
    %3287 = vdwg.mxu0
    %3288 = vmatpush.bf16.msra.mxu0 %v2321
    %3289 = vmatpush.bf16.msra.mxu0 %v2305
    %3290 = vmatpush.bf16.msra.mxu0 %v2289
    %3291 = vmatpush.bf16.msra.mxu0 %v2273
    %3292 = vmatpush.bf16.msra.mxu0 %v2257
    %3293 = vmatpush.bf16.msra.mxu0 %v2241
    %3294 = vmatpush.bf16.msra.mxu0 %v2225
    %3295 = vmatpush.bf16.msra.mxu0 %v2209
    %3296 = vmatmul.bf16.gmra.mxu0 %v120
    %v3297 = vpop.f32.mrf.mxu0
    %v3298 = vadd.f32 %v641, %v3297
    %v3299 = vpop.f32.mrf.mxu0
    %v3300 = vadd.f32 %v641, %v3299
    %3301 = vdwg.mxu0
    %3302 = vmatpush.bf16.msra.mxu0 %v2449
    %3303 = vmatpush.bf16.msra.mxu0 %v2433
    %3304 = vmatpush.bf16.msra.mxu0 %v2417
    %3305 = vmatpush.bf16.msra.mxu0 %v2401
    %3306 = vmatpush.bf16.msra.mxu0 %v2385
    %3307 = vmatpush.bf16.msra.mxu0 %v2369
    %3308 = vmatpush.bf16.msra.mxu0 %v2353
    %3309 = vmatpush.bf16.msra.mxu0 %v2337
    %3310 = vmatmul.bf16.gmra.mxu0 %v121
    %v3311 = vpop.f32.mrf.mxu0
    %v3312 = vadd.f32 %v3298, %v3311
    %v3313 = vpop.f32.mrf.mxu0
    %v3314 = vadd.f32 %v3300, %v3313
    %3315 = vdwg.mxu0
    %3316 = vmatpush.bf16.msra.mxu0 %v2577
    %3317 = vmatpush.bf16.msra.mxu0 %v2561
    %3318 = vmatpush.bf16.msra.mxu0 %v2545
    %3319 = vmatpush.bf16.msra.mxu0 %v2529
    %3320 = vmatpush.bf16.msra.mxu0 %v2513
    %3321 = vmatpush.bf16.msra.mxu0 %v2497
    %3322 = vmatpush.bf16.msra.mxu0 %v2481
    %3323 = vmatpush.bf16.msra.mxu0 %v2465
    %3324 = vmatmul.bf16.gmra.mxu0 %v122
    %v3325 = vpop.f32.mrf.mxu0
    %v3326 = vadd.f32 %v3312, %v3325
    %v3327 = vpop.f32.mrf.mxu0
    %v3328 = vadd.f32 %v3314, %v3327
    %3329 = vdwg.mxu0
    %3330 = vmatpush.bf16.msra.mxu0 %v2705
    %3331 = vmatpush.bf16.msra.mxu0 %v2689
    %3332 = vmatpush.bf16.msra.mxu0 %v2673
    %3333 = vmatpush.bf16.msra.mxu0 %v2657
    %3334 = vmatpush.bf16.msra.mxu0 %v2641
    %3335 = vmatpush.bf16.msra.mxu0 %v2625
    %3336 = vmatpush.bf16.msra.mxu0 %v2609
    %3337 = vmatpush.bf16.msra.mxu0 %v2593
    %3338 = vmatmul.bf16.gmra.mxu0 %v123
    %v3339 = vpop.f32.mrf.mxu0
    %v3340 = vadd.f32 %v3326, %v3339
    %v3341 = vpop.f32.mrf.mxu0
    %v3342 = vadd.f32 %v3328, %v3341
    %3343 = vdwg.mxu0
    %3344 = vmatpush.bf16.msra.mxu0 %v2322
    %3345 = vmatpush.bf16.msra.mxu0 %v2306
    %3346 = vmatpush.bf16.msra.mxu0 %v2290
    %3347 = vmatpush.bf16.msra.mxu0 %v2274
    %3348 = vmatpush.bf16.msra.mxu0 %v2258
    %3349 = vmatpush.bf16.msra.mxu0 %v2242
    %3350 = vmatpush.bf16.msra.mxu0 %v2226
    %3351 = vmatpush.bf16.msra.mxu0 %v2210
    %3352 = vmatmul.bf16.gmra.mxu0 %v120
    %v3353 = vpop.f32.mrf.mxu0
    %v3354 = vadd.f32 %v642, %v3353
    %v3355 = vpop.f32.mrf.mxu0
    %v3356 = vadd.f32 %v642, %v3355
    %3357 = vdwg.mxu0
    %3358 = vmatpush.bf16.msra.mxu0 %v2450
    %3359 = vmatpush.bf16.msra.mxu0 %v2434
    %3360 = vmatpush.bf16.msra.mxu0 %v2418
    %3361 = vmatpush.bf16.msra.mxu0 %v2402
    %3362 = vmatpush.bf16.msra.mxu0 %v2386
    %3363 = vmatpush.bf16.msra.mxu0 %v2370
    %3364 = vmatpush.bf16.msra.mxu0 %v2354
    %3365 = vmatpush.bf16.msra.mxu0 %v2338
    %3366 = vmatmul.bf16.gmra.mxu0 %v121
    %v3367 = vpop.f32.mrf.mxu0
    %v3368 = vadd.f32 %v3354, %v3367
    %v3369 = vpop.f32.mrf.mxu0
    %v3370 = vadd.f32 %v3356, %v3369
    %3371 = vdwg.mxu0
    %3372 = vmatpush.bf16.msra.mxu0 %v2578
    %3373 = vmatpush.bf16.msra.mxu0 %v2562
    %3374 = vmatpush.bf16.msra.mxu0 %v2546
    %3375 = vmatpush.bf16.msra.mxu0 %v2530
    %3376 = vmatpush.bf16.msra.mxu0 %v2514
    %3377 = vmatpush.bf16.msra.mxu0 %v2498
    %3378 = vmatpush.bf16.msra.mxu0 %v2482
    %3379 = vmatpush.bf16.msra.mxu0 %v2466
    %3380 = vmatmul.bf16.gmra.mxu0 %v122
    %v3381 = vpop.f32.mrf.mxu0
    %v3382 = vadd.f32 %v3368, %v3381
    %v3383 = vpop.f32.mrf.mxu0
    %v3384 = vadd.f32 %v3370, %v3383
    %3385 = vdwg.mxu0
    %3386 = vmatpush.bf16.msra.mxu0 %v2706
    %3387 = vmatpush.bf16.msra.mxu0 %v2690
    %3388 = vmatpush.bf16.msra.mxu0 %v2674
    %3389 = vmatpush.bf16.msra.mxu0 %v2658
    %3390 = vmatpush.bf16.msra.mxu0 %v2642
    %3391 = vmatpush.bf16.msra.mxu0 %v2626
    %3392 = vmatpush.bf16.msra.mxu0 %v2610
    %3393 = vmatpush.bf16.msra.mxu0 %v2594
    %3394 = vmatmul.bf16.gmra.mxu0 %v123
    %v3395 = vpop.f32.mrf.mxu0
    %v3396 = vadd.f32 %v3382, %v3395
    %v3397 = vpop.f32.mrf.mxu0
    %v3398 = vadd.f32 %v3384, %v3397
    %3399 = vdwg.mxu0
    %3400 = vmatpush.bf16.msra.mxu0 %v2323
    %3401 = vmatpush.bf16.msra.mxu0 %v2307
    %3402 = vmatpush.bf16.msra.mxu0 %v2291
    %3403 = vmatpush.bf16.msra.mxu0 %v2275
    %3404 = vmatpush.bf16.msra.mxu0 %v2259
    %3405 = vmatpush.bf16.msra.mxu0 %v2243
    %3406 = vmatpush.bf16.msra.mxu0 %v2227
    %3407 = vmatpush.bf16.msra.mxu0 %v2211
    %3408 = vmatmul.bf16.gmra.mxu0 %v120
    %v3409 = vpop.f32.mrf.mxu0
    %v3410 = vadd.f32 %v643, %v3409
    %v3411 = vpop.f32.mrf.mxu0
    %v3412 = vadd.f32 %v643, %v3411
    %3413 = vdwg.mxu0
    %3414 = vmatpush.bf16.msra.mxu0 %v2451
    %3415 = vmatpush.bf16.msra.mxu0 %v2435
    %3416 = vmatpush.bf16.msra.mxu0 %v2419
    %3417 = vmatpush.bf16.msra.mxu0 %v2403
    %3418 = vmatpush.bf16.msra.mxu0 %v2387
    %3419 = vmatpush.bf16.msra.mxu0 %v2371
    %3420 = vmatpush.bf16.msra.mxu0 %v2355
    %3421 = vmatpush.bf16.msra.mxu0 %v2339
    %3422 = vmatmul.bf16.gmra.mxu0 %v121
    %v3423 = vpop.f32.mrf.mxu0
    %v3424 = vadd.f32 %v3410, %v3423
    %v3425 = vpop.f32.mrf.mxu0
    %v3426 = vadd.f32 %v3412, %v3425
    %3427 = vdwg.mxu0
    %3428 = vmatpush.bf16.msra.mxu0 %v2579
    %3429 = vmatpush.bf16.msra.mxu0 %v2563
    %3430 = vmatpush.bf16.msra.mxu0 %v2547
    %3431 = vmatpush.bf16.msra.mxu0 %v2531
    %3432 = vmatpush.bf16.msra.mxu0 %v2515
    %3433 = vmatpush.bf16.msra.mxu0 %v2499
    %3434 = vmatpush.bf16.msra.mxu0 %v2483
    %3435 = vmatpush.bf16.msra.mxu0 %v2467
    %3436 = vmatmul.bf16.gmra.mxu0 %v122
    %v3437 = vpop.f32.mrf.mxu0
    %v3438 = vadd.f32 %v3424, %v3437
    %v3439 = vpop.f32.mrf.mxu0
    %v3440 = vadd.f32 %v3426, %v3439
    %3441 = vdwg.mxu0
    %3442 = vmatpush.bf16.msra.mxu0 %v2707
    %3443 = vmatpush.bf16.msra.mxu0 %v2691
    %3444 = vmatpush.bf16.msra.mxu0 %v2675
    %3445 = vmatpush.bf16.msra.mxu0 %v2659
    %3446 = vmatpush.bf16.msra.mxu0 %v2643
    %3447 = vmatpush.bf16.msra.mxu0 %v2627
    %3448 = vmatpush.bf16.msra.mxu0 %v2611
    %3449 = vmatpush.bf16.msra.mxu0 %v2595
    %3450 = vmatmul.bf16.gmra.mxu0 %v123
    %v3451 = vpop.f32.mrf.mxu0
    %v3452 = vadd.f32 %v3438, %v3451
    %v3453 = vpop.f32.mrf.mxu0
    %v3454 = vadd.f32 %v3440, %v3453
    %3455 = vdwg.mxu0
    %3456 = vmatpush.bf16.msra.mxu0 %v2324
    %3457 = vmatpush.bf16.msra.mxu0 %v2308
    %3458 = vmatpush.bf16.msra.mxu0 %v2292
    %3459 = vmatpush.bf16.msra.mxu0 %v2276
    %3460 = vmatpush.bf16.msra.mxu0 %v2260
    %3461 = vmatpush.bf16.msra.mxu0 %v2244
    %3462 = vmatpush.bf16.msra.mxu0 %v2228
    %3463 = vmatpush.bf16.msra.mxu0 %v2212
    %3464 = vmatmul.bf16.gmra.mxu0 %v120
    %v3465 = vpop.f32.mrf.mxu0
    %v3466 = vadd.f32 %v644, %v3465
    %v3467 = vpop.f32.mrf.mxu0
    %v3468 = vadd.f32 %v644, %v3467
    %3469 = vdwg.mxu0
    %3470 = vmatpush.bf16.msra.mxu0 %v2452
    %3471 = vmatpush.bf16.msra.mxu0 %v2436
    %3472 = vmatpush.bf16.msra.mxu0 %v2420
    %3473 = vmatpush.bf16.msra.mxu0 %v2404
    %3474 = vmatpush.bf16.msra.mxu0 %v2388
    %3475 = vmatpush.bf16.msra.mxu0 %v2372
    %3476 = vmatpush.bf16.msra.mxu0 %v2356
    %3477 = vmatpush.bf16.msra.mxu0 %v2340
    %3478 = vmatmul.bf16.gmra.mxu0 %v121
    %v3479 = vpop.f32.mrf.mxu0
    %v3480 = vadd.f32 %v3466, %v3479
    %v3481 = vpop.f32.mrf.mxu0
    %v3482 = vadd.f32 %v3468, %v3481
    %3483 = vdwg.mxu0
    %3484 = vmatpush.bf16.msra.mxu0 %v2580
    %3485 = vmatpush.bf16.msra.mxu0 %v2564
    %3486 = vmatpush.bf16.msra.mxu0 %v2548
    %3487 = vmatpush.bf16.msra.mxu0 %v2532
    %3488 = vmatpush.bf16.msra.mxu0 %v2516
    %3489 = vmatpush.bf16.msra.mxu0 %v2500
    %3490 = vmatpush.bf16.msra.mxu0 %v2484
    %3491 = vmatpush.bf16.msra.mxu0 %v2468
    %3492 = vmatmul.bf16.gmra.mxu0 %v122
    %v3493 = vpop.f32.mrf.mxu0
    %v3494 = vadd.f32 %v3480, %v3493
    %v3495 = vpop.f32.mrf.mxu0
    %v3496 = vadd.f32 %v3482, %v3495
    %3497 = vdwg.mxu0
    %3498 = vmatpush.bf16.msra.mxu0 %v2708
    %3499 = vmatpush.bf16.msra.mxu0 %v2692
    %3500 = vmatpush.bf16.msra.mxu0 %v2676
    %3501 = vmatpush.bf16.msra.mxu0 %v2660
    %3502 = vmatpush.bf16.msra.mxu0 %v2644
    %3503 = vmatpush.bf16.msra.mxu0 %v2628
    %3504 = vmatpush.bf16.msra.mxu0 %v2612
    %3505 = vmatpush.bf16.msra.mxu0 %v2596
    %3506 = vmatmul.bf16.gmra.mxu0 %v123
    %v3507 = vpop.f32.mrf.mxu0
    %v3508 = vadd.f32 %v3494, %v3507
    %v3509 = vpop.f32.mrf.mxu0
    %v3510 = vadd.f32 %v3496, %v3509
    %3511 = vdwg.mxu0
    %3512 = vmatpush.bf16.msra.mxu0 %v2325
    %3513 = vmatpush.bf16.msra.mxu0 %v2309
    %3514 = vmatpush.bf16.msra.mxu0 %v2293
    %3515 = vmatpush.bf16.msra.mxu0 %v2277
    %3516 = vmatpush.bf16.msra.mxu0 %v2261
    %3517 = vmatpush.bf16.msra.mxu0 %v2245
    %3518 = vmatpush.bf16.msra.mxu0 %v2229
    %3519 = vmatpush.bf16.msra.mxu0 %v2213
    %3520 = vmatmul.bf16.gmra.mxu0 %v120
    %v3521 = vpop.f32.mrf.mxu0
    %v3522 = vadd.f32 %v645, %v3521
    %v3523 = vpop.f32.mrf.mxu0
    %v3524 = vadd.f32 %v645, %v3523
    %3525 = vdwg.mxu0
    %3526 = vmatpush.bf16.msra.mxu0 %v2453
    %3527 = vmatpush.bf16.msra.mxu0 %v2437
    %3528 = vmatpush.bf16.msra.mxu0 %v2421
    %3529 = vmatpush.bf16.msra.mxu0 %v2405
    %3530 = vmatpush.bf16.msra.mxu0 %v2389
    %3531 = vmatpush.bf16.msra.mxu0 %v2373
    %3532 = vmatpush.bf16.msra.mxu0 %v2357
    %3533 = vmatpush.bf16.msra.mxu0 %v2341
    %3534 = vmatmul.bf16.gmra.mxu0 %v121
    %v3535 = vpop.f32.mrf.mxu0
    %v3536 = vadd.f32 %v3522, %v3535
    %v3537 = vpop.f32.mrf.mxu0
    %v3538 = vadd.f32 %v3524, %v3537
    %3539 = vdwg.mxu0
    %3540 = vmatpush.bf16.msra.mxu0 %v2581
    %3541 = vmatpush.bf16.msra.mxu0 %v2565
    %3542 = vmatpush.bf16.msra.mxu0 %v2549
    %3543 = vmatpush.bf16.msra.mxu0 %v2533
    %3544 = vmatpush.bf16.msra.mxu0 %v2517
    %3545 = vmatpush.bf16.msra.mxu0 %v2501
    %3546 = vmatpush.bf16.msra.mxu0 %v2485
    %3547 = vmatpush.bf16.msra.mxu0 %v2469
    %3548 = vmatmul.bf16.gmra.mxu0 %v122
    %v3549 = vpop.f32.mrf.mxu0
    %v3550 = vadd.f32 %v3536, %v3549
    %v3551 = vpop.f32.mrf.mxu0
    %v3552 = vadd.f32 %v3538, %v3551
    %3553 = vdwg.mxu0
    %3554 = vmatpush.bf16.msra.mxu0 %v2709
    %3555 = vmatpush.bf16.msra.mxu0 %v2693
    %3556 = vmatpush.bf16.msra.mxu0 %v2677
    %3557 = vmatpush.bf16.msra.mxu0 %v2661
    %3558 = vmatpush.bf16.msra.mxu0 %v2645
    %3559 = vmatpush.bf16.msra.mxu0 %v2629
    %3560 = vmatpush.bf16.msra.mxu0 %v2613
    %3561 = vmatpush.bf16.msra.mxu0 %v2597
    %3562 = vmatmul.bf16.gmra.mxu0 %v123
    %v3563 = vpop.f32.mrf.mxu0
    %v3564 = vadd.f32 %v3550, %v3563
    %v3565 = vpop.f32.mrf.mxu0
    %v3566 = vadd.f32 %v3552, %v3565
    %3567 = vdwg.mxu0
    %3568 = vmatpush.bf16.msra.mxu0 %v2326
    %3569 = vmatpush.bf16.msra.mxu0 %v2310
    %3570 = vmatpush.bf16.msra.mxu0 %v2294
    %3571 = vmatpush.bf16.msra.mxu0 %v2278
    %3572 = vmatpush.bf16.msra.mxu0 %v2262
    %3573 = vmatpush.bf16.msra.mxu0 %v2246
    %3574 = vmatpush.bf16.msra.mxu0 %v2230
    %3575 = vmatpush.bf16.msra.mxu0 %v2214
    %3576 = vmatmul.bf16.gmra.mxu0 %v120
    %v3577 = vpop.f32.mrf.mxu0
    %v3578 = vadd.f32 %v646, %v3577
    %v3579 = vpop.f32.mrf.mxu0
    %v3580 = vadd.f32 %v646, %v3579
    %3581 = vdwg.mxu0
    %3582 = vmatpush.bf16.msra.mxu0 %v2454
    %3583 = vmatpush.bf16.msra.mxu0 %v2438
    %3584 = vmatpush.bf16.msra.mxu0 %v2422
    %3585 = vmatpush.bf16.msra.mxu0 %v2406
    %3586 = vmatpush.bf16.msra.mxu0 %v2390
    %3587 = vmatpush.bf16.msra.mxu0 %v2374
    %3588 = vmatpush.bf16.msra.mxu0 %v2358
    %3589 = vmatpush.bf16.msra.mxu0 %v2342
    %3590 = vmatmul.bf16.gmra.mxu0 %v121
    %v3591 = vpop.f32.mrf.mxu0
    %v3592 = vadd.f32 %v3578, %v3591
    %v3593 = vpop.f32.mrf.mxu0
    %v3594 = vadd.f32 %v3580, %v3593
    %3595 = vdwg.mxu0
    %3596 = vmatpush.bf16.msra.mxu0 %v2582
    %3597 = vmatpush.bf16.msra.mxu0 %v2566
    %3598 = vmatpush.bf16.msra.mxu0 %v2550
    %3599 = vmatpush.bf16.msra.mxu0 %v2534
    %3600 = vmatpush.bf16.msra.mxu0 %v2518
    %3601 = vmatpush.bf16.msra.mxu0 %v2502
    %3602 = vmatpush.bf16.msra.mxu0 %v2486
    %3603 = vmatpush.bf16.msra.mxu0 %v2470
    %3604 = vmatmul.bf16.gmra.mxu0 %v122
    %v3605 = vpop.f32.mrf.mxu0
    %v3606 = vadd.f32 %v3592, %v3605
    %v3607 = vpop.f32.mrf.mxu0
    %v3608 = vadd.f32 %v3594, %v3607
    %3609 = vdwg.mxu0
    %3610 = vmatpush.bf16.msra.mxu0 %v2710
    %3611 = vmatpush.bf16.msra.mxu0 %v2694
    %3612 = vmatpush.bf16.msra.mxu0 %v2678
    %3613 = vmatpush.bf16.msra.mxu0 %v2662
    %3614 = vmatpush.bf16.msra.mxu0 %v2646
    %3615 = vmatpush.bf16.msra.mxu0 %v2630
    %3616 = vmatpush.bf16.msra.mxu0 %v2614
    %3617 = vmatpush.bf16.msra.mxu0 %v2598
    %3618 = vmatmul.bf16.gmra.mxu0 %v123
    %v3619 = vpop.f32.mrf.mxu0
    %v3620 = vadd.f32 %v3606, %v3619
    %v3621 = vpop.f32.mrf.mxu0
    %v3622 = vadd.f32 %v3608, %v3621
    %3623 = vdwg.mxu0
    %3624 = vmatpush.bf16.msra.mxu0 %v2327
    %3625 = vmatpush.bf16.msra.mxu0 %v2311
    %3626 = vmatpush.bf16.msra.mxu0 %v2295
    %3627 = vmatpush.bf16.msra.mxu0 %v2279
    %3628 = vmatpush.bf16.msra.mxu0 %v2263
    %3629 = vmatpush.bf16.msra.mxu0 %v2247
    %3630 = vmatpush.bf16.msra.mxu0 %v2231
    %3631 = vmatpush.bf16.msra.mxu0 %v2215
    %3632 = vmatmul.bf16.gmra.mxu0 %v120
    %v3633 = vpop.f32.mrf.mxu0
    %v3634 = vadd.f32 %v647, %v3633
    %v3635 = vpop.f32.mrf.mxu0
    %v3636 = vadd.f32 %v647, %v3635
    %3637 = vdwg.mxu0
    %3638 = vmatpush.bf16.msra.mxu0 %v2455
    %3639 = vmatpush.bf16.msra.mxu0 %v2439
    %3640 = vmatpush.bf16.msra.mxu0 %v2423
    %3641 = vmatpush.bf16.msra.mxu0 %v2407
    %3642 = vmatpush.bf16.msra.mxu0 %v2391
    %3643 = vmatpush.bf16.msra.mxu0 %v2375
    %3644 = vmatpush.bf16.msra.mxu0 %v2359
    %3645 = vmatpush.bf16.msra.mxu0 %v2343
    %3646 = vmatmul.bf16.gmra.mxu0 %v121
    %v3647 = vpop.f32.mrf.mxu0
    %v3648 = vadd.f32 %v3634, %v3647
    %v3649 = vpop.f32.mrf.mxu0
    %v3650 = vadd.f32 %v3636, %v3649
    %3651 = vdwg.mxu0
    %3652 = vmatpush.bf16.msra.mxu0 %v2583
    %3653 = vmatpush.bf16.msra.mxu0 %v2567
    %3654 = vmatpush.bf16.msra.mxu0 %v2551
    %3655 = vmatpush.bf16.msra.mxu0 %v2535
    %3656 = vmatpush.bf16.msra.mxu0 %v2519
    %3657 = vmatpush.bf16.msra.mxu0 %v2503
    %3658 = vmatpush.bf16.msra.mxu0 %v2487
    %3659 = vmatpush.bf16.msra.mxu0 %v2471
    %3660 = vmatmul.bf16.gmra.mxu0 %v122
    %v3661 = vpop.f32.mrf.mxu0
    %v3662 = vadd.f32 %v3648, %v3661
    %v3663 = vpop.f32.mrf.mxu0
    %v3664 = vadd.f32 %v3650, %v3663
    %3665 = vdwg.mxu0
    %3666 = vmatpush.bf16.msra.mxu0 %v2711
    %3667 = vmatpush.bf16.msra.mxu0 %v2695
    %3668 = vmatpush.bf16.msra.mxu0 %v2679
    %3669 = vmatpush.bf16.msra.mxu0 %v2663
    %3670 = vmatpush.bf16.msra.mxu0 %v2647
    %3671 = vmatpush.bf16.msra.mxu0 %v2631
    %3672 = vmatpush.bf16.msra.mxu0 %v2615
    %3673 = vmatpush.bf16.msra.mxu0 %v2599
    %3674 = vmatmul.bf16.gmra.mxu0 %v123
    %v3675 = vpop.f32.mrf.mxu0
    %v3676 = vadd.f32 %v3662, %v3675
    %v3677 = vpop.f32.mrf.mxu0
    %v3678 = vadd.f32 %v3664, %v3677
    %3679 = vdwg.mxu0
    %3680 = vmatpush.bf16.msra.mxu0 %v2328
    %3681 = vmatpush.bf16.msra.mxu0 %v2312
    %3682 = vmatpush.bf16.msra.mxu0 %v2296
    %3683 = vmatpush.bf16.msra.mxu0 %v2280
    %3684 = vmatpush.bf16.msra.mxu0 %v2264
    %3685 = vmatpush.bf16.msra.mxu0 %v2248
    %3686 = vmatpush.bf16.msra.mxu0 %v2232
    %3687 = vmatpush.bf16.msra.mxu0 %v2216
    %3688 = vmatmul.bf16.gmra.mxu0 %v120
    %v3689 = vpop.f32.mrf.mxu0
    %v3690 = vadd.f32 %v648, %v3689
    %v3691 = vpop.f32.mrf.mxu0
    %v3692 = vadd.f32 %v648, %v3691
    %3693 = vdwg.mxu0
    %3694 = vmatpush.bf16.msra.mxu0 %v2456
    %3695 = vmatpush.bf16.msra.mxu0 %v2440
    %3696 = vmatpush.bf16.msra.mxu0 %v2424
    %3697 = vmatpush.bf16.msra.mxu0 %v2408
    %3698 = vmatpush.bf16.msra.mxu0 %v2392
    %3699 = vmatpush.bf16.msra.mxu0 %v2376
    %3700 = vmatpush.bf16.msra.mxu0 %v2360
    %3701 = vmatpush.bf16.msra.mxu0 %v2344
    %3702 = vmatmul.bf16.gmra.mxu0 %v121
    %v3703 = vpop.f32.mrf.mxu0
    %v3704 = vadd.f32 %v3690, %v3703
    %v3705 = vpop.f32.mrf.mxu0
    %v3706 = vadd.f32 %v3692, %v3705
    %3707 = vdwg.mxu0
    %3708 = vmatpush.bf16.msra.mxu0 %v2584
    %3709 = vmatpush.bf16.msra.mxu0 %v2568
    %3710 = vmatpush.bf16.msra.mxu0 %v2552
    %3711 = vmatpush.bf16.msra.mxu0 %v2536
    %3712 = vmatpush.bf16.msra.mxu0 %v2520
    %3713 = vmatpush.bf16.msra.mxu0 %v2504
    %3714 = vmatpush.bf16.msra.mxu0 %v2488
    %3715 = vmatpush.bf16.msra.mxu0 %v2472
    %3716 = vmatmul.bf16.gmra.mxu0 %v122
    %v3717 = vpop.f32.mrf.mxu0
    %v3718 = vadd.f32 %v3704, %v3717
    %v3719 = vpop.f32.mrf.mxu0
    %v3720 = vadd.f32 %v3706, %v3719
    %3721 = vdwg.mxu0
    %3722 = vmatpush.bf16.msra.mxu0 %v2712
    %3723 = vmatpush.bf16.msra.mxu0 %v2696
    %3724 = vmatpush.bf16.msra.mxu0 %v2680
    %3725 = vmatpush.bf16.msra.mxu0 %v2664
    %3726 = vmatpush.bf16.msra.mxu0 %v2648
    %3727 = vmatpush.bf16.msra.mxu0 %v2632
    %3728 = vmatpush.bf16.msra.mxu0 %v2616
    %3729 = vmatpush.bf16.msra.mxu0 %v2600
    %3730 = vmatmul.bf16.gmra.mxu0 %v123
    %v3731 = vpop.f32.mrf.mxu0
    %v3732 = vadd.f32 %v3718, %v3731
    %v3733 = vpop.f32.mrf.mxu0
    %v3734 = vadd.f32 %v3720, %v3733
    %3735 = vdwg.mxu0
    %3736 = vmatpush.bf16.msra.mxu0 %v2329
    %3737 = vmatpush.bf16.msra.mxu0 %v2313
    %3738 = vmatpush.bf16.msra.mxu0 %v2297
    %3739 = vmatpush.bf16.msra.mxu0 %v2281
    %3740 = vmatpush.bf16.msra.mxu0 %v2265
    %3741 = vmatpush.bf16.msra.mxu0 %v2249
    %3742 = vmatpush.bf16.msra.mxu0 %v2233
    %3743 = vmatpush.bf16.msra.mxu0 %v2217
    %3744 = vmatmul.bf16.gmra.mxu0 %v120
    %v3745 = vpop.f32.mrf.mxu0
    %v3746 = vadd.f32 %v649, %v3745
    %v3747 = vpop.f32.mrf.mxu0
    %v3748 = vadd.f32 %v649, %v3747
    %3749 = vdwg.mxu0
    %3750 = vmatpush.bf16.msra.mxu0 %v2457
    %3751 = vmatpush.bf16.msra.mxu0 %v2441
    %3752 = vmatpush.bf16.msra.mxu0 %v2425
    %3753 = vmatpush.bf16.msra.mxu0 %v2409
    %3754 = vmatpush.bf16.msra.mxu0 %v2393
    %3755 = vmatpush.bf16.msra.mxu0 %v2377
    %3756 = vmatpush.bf16.msra.mxu0 %v2361
    %3757 = vmatpush.bf16.msra.mxu0 %v2345
    %3758 = vmatmul.bf16.gmra.mxu0 %v121
    %v3759 = vpop.f32.mrf.mxu0
    %v3760 = vadd.f32 %v3746, %v3759
    %v3761 = vpop.f32.mrf.mxu0
    %v3762 = vadd.f32 %v3748, %v3761
    %3763 = vdwg.mxu0
    %3764 = vmatpush.bf16.msra.mxu0 %v2585
    %3765 = vmatpush.bf16.msra.mxu0 %v2569
    %3766 = vmatpush.bf16.msra.mxu0 %v2553
    %3767 = vmatpush.bf16.msra.mxu0 %v2537
    %3768 = vmatpush.bf16.msra.mxu0 %v2521
    %3769 = vmatpush.bf16.msra.mxu0 %v2505
    %3770 = vmatpush.bf16.msra.mxu0 %v2489
    %3771 = vmatpush.bf16.msra.mxu0 %v2473
    %3772 = vmatmul.bf16.gmra.mxu0 %v122
    %v3773 = vpop.f32.mrf.mxu0
    %v3774 = vadd.f32 %v3760, %v3773
    %v3775 = vpop.f32.mrf.mxu0
    %v3776 = vadd.f32 %v3762, %v3775
    %3777 = vdwg.mxu0
    %3778 = vmatpush.bf16.msra.mxu0 %v2713
    %3779 = vmatpush.bf16.msra.mxu0 %v2697
    %3780 = vmatpush.bf16.msra.mxu0 %v2681
    %3781 = vmatpush.bf16.msra.mxu0 %v2665
    %3782 = vmatpush.bf16.msra.mxu0 %v2649
    %3783 = vmatpush.bf16.msra.mxu0 %v2633
    %3784 = vmatpush.bf16.msra.mxu0 %v2617
    %3785 = vmatpush.bf16.msra.mxu0 %v2601
    %3786 = vmatmul.bf16.gmra.mxu0 %v123
    %v3787 = vpop.f32.mrf.mxu0
    %v3788 = vadd.f32 %v3774, %v3787
    %v3789 = vpop.f32.mrf.mxu0
    %v3790 = vadd.f32 %v3776, %v3789
    %3791 = vdwg.mxu0
    %3792 = vmatpush.bf16.msra.mxu0 %v2330
    %3793 = vmatpush.bf16.msra.mxu0 %v2314
    %3794 = vmatpush.bf16.msra.mxu0 %v2298
    %3795 = vmatpush.bf16.msra.mxu0 %v2282
    %3796 = vmatpush.bf16.msra.mxu0 %v2266
    %3797 = vmatpush.bf16.msra.mxu0 %v2250
    %3798 = vmatpush.bf16.msra.mxu0 %v2234
    %3799 = vmatpush.bf16.msra.mxu0 %v2218
    %3800 = vmatmul.bf16.gmra.mxu0 %v120
    %v3801 = vpop.f32.mrf.mxu0
    %v3802 = vadd.f32 %v650, %v3801
    %v3803 = vpop.f32.mrf.mxu0
    %v3804 = vadd.f32 %v650, %v3803
    %3805 = vdwg.mxu0
    %3806 = vmatpush.bf16.msra.mxu0 %v2458
    %3807 = vmatpush.bf16.msra.mxu0 %v2442
    %3808 = vmatpush.bf16.msra.mxu0 %v2426
    %3809 = vmatpush.bf16.msra.mxu0 %v2410
    %3810 = vmatpush.bf16.msra.mxu0 %v2394
    %3811 = vmatpush.bf16.msra.mxu0 %v2378
    %3812 = vmatpush.bf16.msra.mxu0 %v2362
    %3813 = vmatpush.bf16.msra.mxu0 %v2346
    %3814 = vmatmul.bf16.gmra.mxu0 %v121
    %v3815 = vpop.f32.mrf.mxu0
    %v3816 = vadd.f32 %v3802, %v3815
    %v3817 = vpop.f32.mrf.mxu0
    %v3818 = vadd.f32 %v3804, %v3817
    %3819 = vdwg.mxu0
    %3820 = vmatpush.bf16.msra.mxu0 %v2586
    %3821 = vmatpush.bf16.msra.mxu0 %v2570
    %3822 = vmatpush.bf16.msra.mxu0 %v2554
    %3823 = vmatpush.bf16.msra.mxu0 %v2538
    %3824 = vmatpush.bf16.msra.mxu0 %v2522
    %3825 = vmatpush.bf16.msra.mxu0 %v2506
    %3826 = vmatpush.bf16.msra.mxu0 %v2490
    %3827 = vmatpush.bf16.msra.mxu0 %v2474
    %3828 = vmatmul.bf16.gmra.mxu0 %v122
    %v3829 = vpop.f32.mrf.mxu0
    %v3830 = vadd.f32 %v3816, %v3829
    %v3831 = vpop.f32.mrf.mxu0
    %v3832 = vadd.f32 %v3818, %v3831
    %3833 = vdwg.mxu0
    %3834 = vmatpush.bf16.msra.mxu0 %v2714
    %3835 = vmatpush.bf16.msra.mxu0 %v2698
    %3836 = vmatpush.bf16.msra.mxu0 %v2682
    %3837 = vmatpush.bf16.msra.mxu0 %v2666
    %3838 = vmatpush.bf16.msra.mxu0 %v2650
    %3839 = vmatpush.bf16.msra.mxu0 %v2634
    %3840 = vmatpush.bf16.msra.mxu0 %v2618
    %3841 = vmatpush.bf16.msra.mxu0 %v2602
    %3842 = vmatmul.bf16.gmra.mxu0 %v123
    %v3843 = vpop.f32.mrf.mxu0
    %v3844 = vadd.f32 %v3830, %v3843
    %v3845 = vpop.f32.mrf.mxu0
    %v3846 = vadd.f32 %v3832, %v3845
    %3847 = vdwg.mxu0
    %3848 = vmatpush.bf16.msra.mxu0 %v2331
    %3849 = vmatpush.bf16.msra.mxu0 %v2315
    %3850 = vmatpush.bf16.msra.mxu0 %v2299
    %3851 = vmatpush.bf16.msra.mxu0 %v2283
    %3852 = vmatpush.bf16.msra.mxu0 %v2267
    %3853 = vmatpush.bf16.msra.mxu0 %v2251
    %3854 = vmatpush.bf16.msra.mxu0 %v2235
    %3855 = vmatpush.bf16.msra.mxu0 %v2219
    %3856 = vmatmul.bf16.gmra.mxu0 %v120
    %v3857 = vpop.f32.mrf.mxu0
    %v3858 = vadd.f32 %v651, %v3857
    %v3859 = vpop.f32.mrf.mxu0
    %v3860 = vadd.f32 %v651, %v3859
    %3861 = vdwg.mxu0
    %3862 = vmatpush.bf16.msra.mxu0 %v2459
    %3863 = vmatpush.bf16.msra.mxu0 %v2443
    %3864 = vmatpush.bf16.msra.mxu0 %v2427
    %3865 = vmatpush.bf16.msra.mxu0 %v2411
    %3866 = vmatpush.bf16.msra.mxu0 %v2395
    %3867 = vmatpush.bf16.msra.mxu0 %v2379
    %3868 = vmatpush.bf16.msra.mxu0 %v2363
    %3869 = vmatpush.bf16.msra.mxu0 %v2347
    %3870 = vmatmul.bf16.gmra.mxu0 %v121
    %v3871 = vpop.f32.mrf.mxu0
    %v3872 = vadd.f32 %v3858, %v3871
    %v3873 = vpop.f32.mrf.mxu0
    %v3874 = vadd.f32 %v3860, %v3873
    %3875 = vdwg.mxu0
    %3876 = vmatpush.bf16.msra.mxu0 %v2587
    %3877 = vmatpush.bf16.msra.mxu0 %v2571
    %3878 = vmatpush.bf16.msra.mxu0 %v2555
    %3879 = vmatpush.bf16.msra.mxu0 %v2539
    %3880 = vmatpush.bf16.msra.mxu0 %v2523
    %3881 = vmatpush.bf16.msra.mxu0 %v2507
    %3882 = vmatpush.bf16.msra.mxu0 %v2491
    %3883 = vmatpush.bf16.msra.mxu0 %v2475
    %3884 = vmatmul.bf16.gmra.mxu0 %v122
    %v3885 = vpop.f32.mrf.mxu0
    %v3886 = vadd.f32 %v3872, %v3885
    %v3887 = vpop.f32.mrf.mxu0
    %v3888 = vadd.f32 %v3874, %v3887
    %3889 = vdwg.mxu0
    %3890 = vmatpush.bf16.msra.mxu0 %v2715
    %3891 = vmatpush.bf16.msra.mxu0 %v2699
    %3892 = vmatpush.bf16.msra.mxu0 %v2683
    %3893 = vmatpush.bf16.msra.mxu0 %v2667
    %3894 = vmatpush.bf16.msra.mxu0 %v2651
    %3895 = vmatpush.bf16.msra.mxu0 %v2635
    %3896 = vmatpush.bf16.msra.mxu0 %v2619
    %3897 = vmatpush.bf16.msra.mxu0 %v2603
    %3898 = vmatmul.bf16.gmra.mxu0 %v123
    %v3899 = vpop.f32.mrf.mxu0
    %v3900 = vadd.f32 %v3886, %v3899
    %v3901 = vpop.f32.mrf.mxu0
    %v3902 = vadd.f32 %v3888, %v3901
    %3903 = vdwg.mxu0
    %3904 = vmatpush.bf16.msra.mxu0 %v2332
    %3905 = vmatpush.bf16.msra.mxu0 %v2316
    %3906 = vmatpush.bf16.msra.mxu0 %v2300
    %3907 = vmatpush.bf16.msra.mxu0 %v2284
    %3908 = vmatpush.bf16.msra.mxu0 %v2268
    %3909 = vmatpush.bf16.msra.mxu0 %v2252
    %3910 = vmatpush.bf16.msra.mxu0 %v2236
    %3911 = vmatpush.bf16.msra.mxu0 %v2220
    %3912 = vmatmul.bf16.gmra.mxu0 %v120
    %v3913 = vpop.f32.mrf.mxu0
    %v3914 = vadd.f32 %v652, %v3913
    %v3915 = vpop.f32.mrf.mxu0
    %v3916 = vadd.f32 %v652, %v3915
    %3917 = vdwg.mxu0
    %3918 = vmatpush.bf16.msra.mxu0 %v2460
    %3919 = vmatpush.bf16.msra.mxu0 %v2444
    %3920 = vmatpush.bf16.msra.mxu0 %v2428
    %3921 = vmatpush.bf16.msra.mxu0 %v2412
    %3922 = vmatpush.bf16.msra.mxu0 %v2396
    %3923 = vmatpush.bf16.msra.mxu0 %v2380
    %3924 = vmatpush.bf16.msra.mxu0 %v2364
    %3925 = vmatpush.bf16.msra.mxu0 %v2348
    %3926 = vmatmul.bf16.gmra.mxu0 %v121
    %v3927 = vpop.f32.mrf.mxu0
    %v3928 = vadd.f32 %v3914, %v3927
    %v3929 = vpop.f32.mrf.mxu0
    %v3930 = vadd.f32 %v3916, %v3929
    %3931 = vdwg.mxu0
    %3932 = vmatpush.bf16.msra.mxu0 %v2588
    %3933 = vmatpush.bf16.msra.mxu0 %v2572
    %3934 = vmatpush.bf16.msra.mxu0 %v2556
    %3935 = vmatpush.bf16.msra.mxu0 %v2540
    %3936 = vmatpush.bf16.msra.mxu0 %v2524
    %3937 = vmatpush.bf16.msra.mxu0 %v2508
    %3938 = vmatpush.bf16.msra.mxu0 %v2492
    %3939 = vmatpush.bf16.msra.mxu0 %v2476
    %3940 = vmatmul.bf16.gmra.mxu0 %v122
    %v3941 = vpop.f32.mrf.mxu0
    %v3942 = vadd.f32 %v3928, %v3941
    %v3943 = vpop.f32.mrf.mxu0
    %v3944 = vadd.f32 %v3930, %v3943
    %3945 = vdwg.mxu0
    %3946 = vmatpush.bf16.msra.mxu0 %v2716
    %3947 = vmatpush.bf16.msra.mxu0 %v2700
    %3948 = vmatpush.bf16.msra.mxu0 %v2684
    %3949 = vmatpush.bf16.msra.mxu0 %v2668
    %3950 = vmatpush.bf16.msra.mxu0 %v2652
    %3951 = vmatpush.bf16.msra.mxu0 %v2636
    %3952 = vmatpush.bf16.msra.mxu0 %v2620
    %3953 = vmatpush.bf16.msra.mxu0 %v2604
    %3954 = vmatmul.bf16.gmra.mxu0 %v123
    %v3955 = vpop.f32.mrf.mxu0
    %v3956 = vadd.f32 %v3942, %v3955
    %v3957 = vpop.f32.mrf.mxu0
    %v3958 = vadd.f32 %v3944, %v3957
    %3959 = vdwg.mxu0
    %3960 = vmatpush.bf16.msra.mxu0 %v2333
    %3961 = vmatpush.bf16.msra.mxu0 %v2317
    %3962 = vmatpush.bf16.msra.mxu0 %v2301
    %3963 = vmatpush.bf16.msra.mxu0 %v2285
    %3964 = vmatpush.bf16.msra.mxu0 %v2269
    %3965 = vmatpush.bf16.msra.mxu0 %v2253
    %3966 = vmatpush.bf16.msra.mxu0 %v2237
    %3967 = vmatpush.bf16.msra.mxu0 %v2221
    %3968 = vmatmul.bf16.gmra.mxu0 %v120
    %v3969 = vpop.f32.mrf.mxu0
    %v3970 = vadd.f32 %v653, %v3969
    %v3971 = vpop.f32.mrf.mxu0
    %v3972 = vadd.f32 %v653, %v3971
    %3973 = vdwg.mxu0
    %3974 = vmatpush.bf16.msra.mxu0 %v2461
    %3975 = vmatpush.bf16.msra.mxu0 %v2445
    %3976 = vmatpush.bf16.msra.mxu0 %v2429
    %3977 = vmatpush.bf16.msra.mxu0 %v2413
    %3978 = vmatpush.bf16.msra.mxu0 %v2397
    %3979 = vmatpush.bf16.msra.mxu0 %v2381
    %3980 = vmatpush.bf16.msra.mxu0 %v2365
    %3981 = vmatpush.bf16.msra.mxu0 %v2349
    %3982 = vmatmul.bf16.gmra.mxu0 %v121
    %v3983 = vpop.f32.mrf.mxu0
    %v3984 = vadd.f32 %v3970, %v3983
    %v3985 = vpop.f32.mrf.mxu0
    %v3986 = vadd.f32 %v3972, %v3985
    %3987 = vdwg.mxu0
    %3988 = vmatpush.bf16.msra.mxu0 %v2589
    %3989 = vmatpush.bf16.msra.mxu0 %v2573
    %3990 = vmatpush.bf16.msra.mxu0 %v2557
    %3991 = vmatpush.bf16.msra.mxu0 %v2541
    %3992 = vmatpush.bf16.msra.mxu0 %v2525
    %3993 = vmatpush.bf16.msra.mxu0 %v2509
    %3994 = vmatpush.bf16.msra.mxu0 %v2493
    %3995 = vmatpush.bf16.msra.mxu0 %v2477
    %3996 = vmatmul.bf16.gmra.mxu0 %v122
    %v3997 = vpop.f32.mrf.mxu0
    %v3998 = vadd.f32 %v3984, %v3997
    %v3999 = vpop.f32.mrf.mxu0
    %v4000 = vadd.f32 %v3986, %v3999
    %4001 = vdwg.mxu0
    %4002 = vmatpush.bf16.msra.mxu0 %v2717
    %4003 = vmatpush.bf16.msra.mxu0 %v2701
    %4004 = vmatpush.bf16.msra.mxu0 %v2685
    %4005 = vmatpush.bf16.msra.mxu0 %v2669
    %4006 = vmatpush.bf16.msra.mxu0 %v2653
    %4007 = vmatpush.bf16.msra.mxu0 %v2637
    %4008 = vmatpush.bf16.msra.mxu0 %v2621
    %4009 = vmatpush.bf16.msra.mxu0 %v2605
    %4010 = vmatmul.bf16.gmra.mxu0 %v123
    %v4011 = vpop.f32.mrf.mxu0
    %v4012 = vadd.f32 %v3998, %v4011
    %v4013 = vpop.f32.mrf.mxu0
    %v4014 = vadd.f32 %v4000, %v4013
    %4015 = vdwg.mxu0
    %4016 = vmatpush.bf16.msra.mxu0 %v2334
    %4017 = vmatpush.bf16.msra.mxu0 %v2318
    %4018 = vmatpush.bf16.msra.mxu0 %v2302
    %4019 = vmatpush.bf16.msra.mxu0 %v2286
    %4020 = vmatpush.bf16.msra.mxu0 %v2270
    %4021 = vmatpush.bf16.msra.mxu0 %v2254
    %4022 = vmatpush.bf16.msra.mxu0 %v2238
    %4023 = vmatpush.bf16.msra.mxu0 %v2222
    %4024 = vmatmul.bf16.gmra.mxu0 %v120
    %v4025 = vpop.f32.mrf.mxu0
    %v4026 = vadd.f32 %v654, %v4025
    %v4027 = vpop.f32.mrf.mxu0
    %v4028 = vadd.f32 %v654, %v4027
    %4029 = vdwg.mxu0
    %4030 = vmatpush.bf16.msra.mxu0 %v2462
    %4031 = vmatpush.bf16.msra.mxu0 %v2446
    %4032 = vmatpush.bf16.msra.mxu0 %v2430
    %4033 = vmatpush.bf16.msra.mxu0 %v2414
    %4034 = vmatpush.bf16.msra.mxu0 %v2398
    %4035 = vmatpush.bf16.msra.mxu0 %v2382
    %4036 = vmatpush.bf16.msra.mxu0 %v2366
    %4037 = vmatpush.bf16.msra.mxu0 %v2350
    %4038 = vmatmul.bf16.gmra.mxu0 %v121
    %v4039 = vpop.f32.mrf.mxu0
    %v4040 = vadd.f32 %v4026, %v4039
    %v4041 = vpop.f32.mrf.mxu0
    %v4042 = vadd.f32 %v4028, %v4041
    %4043 = vdwg.mxu0
    %4044 = vmatpush.bf16.msra.mxu0 %v2590
    %4045 = vmatpush.bf16.msra.mxu0 %v2574
    %4046 = vmatpush.bf16.msra.mxu0 %v2558
    %4047 = vmatpush.bf16.msra.mxu0 %v2542
    %4048 = vmatpush.bf16.msra.mxu0 %v2526
    %4049 = vmatpush.bf16.msra.mxu0 %v2510
    %4050 = vmatpush.bf16.msra.mxu0 %v2494
    %4051 = vmatpush.bf16.msra.mxu0 %v2478
    %4052 = vmatmul.bf16.gmra.mxu0 %v122
    %v4053 = vpop.f32.mrf.mxu0
    %v4054 = vadd.f32 %v4040, %v4053
    %v4055 = vpop.f32.mrf.mxu0
    %v4056 = vadd.f32 %v4042, %v4055
    %4057 = vdwg.mxu0
    %4058 = vmatpush.bf16.msra.mxu0 %v2718
    %4059 = vmatpush.bf16.msra.mxu0 %v2702
    %4060 = vmatpush.bf16.msra.mxu0 %v2686
    %4061 = vmatpush.bf16.msra.mxu0 %v2670
    %4062 = vmatpush.bf16.msra.mxu0 %v2654
    %4063 = vmatpush.bf16.msra.mxu0 %v2638
    %4064 = vmatpush.bf16.msra.mxu0 %v2622
    %4065 = vmatpush.bf16.msra.mxu0 %v2606
    %4066 = vmatmul.bf16.gmra.mxu0 %v123
    %v4067 = vpop.f32.mrf.mxu0
    %v4068 = vadd.f32 %v4054, %v4067
    %v4069 = vpop.f32.mrf.mxu0
    %v4070 = vadd.f32 %v4056, %v4069
    %4071 = vdwg.mxu0
    %4072 = vmatpush.bf16.msra.mxu0 %v2335
    %4073 = vmatpush.bf16.msra.mxu0 %v2319
    %4074 = vmatpush.bf16.msra.mxu0 %v2303
    %4075 = vmatpush.bf16.msra.mxu0 %v2287
    %4076 = vmatpush.bf16.msra.mxu0 %v2271
    %4077 = vmatpush.bf16.msra.mxu0 %v2255
    %4078 = vmatpush.bf16.msra.mxu0 %v2239
    %4079 = vmatpush.bf16.msra.mxu0 %v2223
    %4080 = vmatmul.bf16.gmra.mxu0 %v120
    %v4081 = vpop.f32.mrf.mxu0
    %v4082 = vadd.f32 %v655, %v4081
    %v4083 = vpop.f32.mrf.mxu0
    %v4084 = vadd.f32 %v655, %v4083
    %4085 = vdwg.mxu0
    %4086 = vmatpush.bf16.msra.mxu0 %v2463
    %4087 = vmatpush.bf16.msra.mxu0 %v2447
    %4088 = vmatpush.bf16.msra.mxu0 %v2431
    %4089 = vmatpush.bf16.msra.mxu0 %v2415
    %4090 = vmatpush.bf16.msra.mxu0 %v2399
    %4091 = vmatpush.bf16.msra.mxu0 %v2383
    %4092 = vmatpush.bf16.msra.mxu0 %v2367
    %4093 = vmatpush.bf16.msra.mxu0 %v2351
    %4094 = vmatmul.bf16.gmra.mxu0 %v121
    %v4095 = vpop.f32.mrf.mxu0
    %v4096 = vadd.f32 %v4082, %v4095
    %v4097 = vpop.f32.mrf.mxu0
    %v4098 = vadd.f32 %v4084, %v4097
    %4099 = vdwg.mxu0
    %4100 = vmatpush.bf16.msra.mxu0 %v2591
    %4101 = vmatpush.bf16.msra.mxu0 %v2575
    %4102 = vmatpush.bf16.msra.mxu0 %v2559
    %4103 = vmatpush.bf16.msra.mxu0 %v2543
    %4104 = vmatpush.bf16.msra.mxu0 %v2527
    %4105 = vmatpush.bf16.msra.mxu0 %v2511
    %4106 = vmatpush.bf16.msra.mxu0 %v2495
    %4107 = vmatpush.bf16.msra.mxu0 %v2479
    %4108 = vmatmul.bf16.gmra.mxu0 %v122
    %v4109 = vpop.f32.mrf.mxu0
    %v4110 = vadd.f32 %v4096, %v4109
    %v4111 = vpop.f32.mrf.mxu0
    %v4112 = vadd.f32 %v4098, %v4111
    %4113 = vdwg.mxu0
    %4114 = vmatpush.bf16.msra.mxu0 %v2719
    %4115 = vmatpush.bf16.msra.mxu0 %v2703
    %4116 = vmatpush.bf16.msra.mxu0 %v2687
    %4117 = vmatpush.bf16.msra.mxu0 %v2671
    %4118 = vmatpush.bf16.msra.mxu0 %v2655
    %4119 = vmatpush.bf16.msra.mxu0 %v2639
    %4120 = vmatpush.bf16.msra.mxu0 %v2623
    %4121 = vmatpush.bf16.msra.mxu0 %v2607
    %4122 = vmatmul.bf16.gmra.mxu0 %v123
    %v4123 = vpop.f32.mrf.mxu0
    %v4124 = vadd.f32 %v4110, %v4123
    %v4125 = vpop.f32.mrf.mxu0
    %v4126 = vadd.f32 %v4112, %v4125
    %4127 = vdwg.mxu0
    %v4128 = vmax.f32 %v3284, 0.0
    %v4129 = vmax.f32 %v3340, 0.0
    %v4130 = vmax.f32 %v3396, 0.0
    %v4131 = vmax.f32 %v3452, 0.0
    %v4132 = vmax.f32 %v3508, 0.0
    %v4133 = vmax.f32 %v3564, 0.0
    %v4134 = vmax.f32 %v3620, 0.0
    %v4135 = vmax.f32 %v3676, 0.0
    %v4136 = vmax.f32 %v3732, 0.0
    %v4137 = vmax.f32 %v3788, 0.0
    %v4138 = vmax.f32 %v3844, 0.0
    %v4139 = vmax.f32 %v3900, 0.0
    %v4140 = vmax.f32 %v3956, 0.0
    %v4141 = vmax.f32 %v4012, 0.0
    %v4142 = vmax.f32 %v4068, 0.0
    %v4143 = vmax.f32 %v4124, 0.0
    %v4144 = vmax.f32 %v3286, 0.0
    %v4145 = vmax.f32 %v3342, 0.0
    %v4146 = vmax.f32 %v3398, 0.0
    %v4147 = vmax.f32 %v3454, 0.0
    %v4148 = vmax.f32 %v3510, 0.0
    %v4149 = vmax.f32 %v3566, 0.0
    %v4150 = vmax.f32 %v3622, 0.0
    %v4151 = vmax.f32 %v3678, 0.0
    %v4152 = vmax.f32 %v3734, 0.0
    %v4153 = vmax.f32 %v3790, 0.0
    %v4154 = vmax.f32 %v3846, 0.0
    %v4155 = vmax.f32 %v3902, 0.0
    %v4156 = vmax.f32 %v3958, 0.0
    %v4157 = vmax.f32 %v4014, 0.0
    %v4158 = vmax.f32 %v4070, 0.0
    %v4159 = vmax.f32 %v4126, 0.0
    %v4160 = vpack.c.bf16 %v4144, %v4128
    %v4161 = vpack.c.bf16 %v4145, %v4129
    %v4162 = vpack.c.bf16 %v4146, %v4130
    %v4163 = vpack.c.bf16 %v4147, %v4131
    %v4164 = vpack.c.bf16 %v4148, %v4132
    %v4165 = vpack.c.bf16 %v4149, %v4133
    %v4166 = vpack.c.bf16 %v4150, %v4134
    %v4167 = vpack.c.bf16 %v4151, %v4135
    %v4168 = vpack.c.bf16 %v4152, %v4136
    %v4169 = vpack.c.bf16 %v4153, %v4137
    %v4170 = vpack.c.bf16 %v4154, %v4138
    %v4171 = vpack.c.bf16 %v4155, %v4139
    %v4172 = vpack.c.bf16 %v4156, %v4140
    %v4173 = vpack.c.bf16 %v4157, %v4141
    %v4174 = vpack.c.bf16 %v4158, %v4142
    %v4175 = vpack.c.bf16 %v4159, %v4143
    %v4176 = vld [vmem:[#allocation6] sm:$0xff]
    %v4177 = vld [vmem:[#allocation6 + $0x8] sm:$0xff]
    %v4178 = vld [vmem:[#allocation6 + $0x10] sm:$0xff]
    %v4179 = vld [vmem:[#allocation6 + $0x18] sm:$0xff]
    %v4180 = vld [vmem:[#allocation6 + $0x20] sm:$0xff]
    %v4181 = vld [vmem:[#allocation6 + $0x28] sm:$0xff]
    %v4182 = vld [vmem:[#allocation6 + $0x30] sm:$0xff]
    %v4183 = vld [vmem:[#allocation6 + $0x38] sm:$0xff]
    %v4184 = vld [vmem:[#allocation6 + $0x40] sm:$0xff]
    %v4185 = vld [vmem:[#allocation6 + $0x48] sm:$0xff]
    %v4186 = vld [vmem:[#allocation6 + $0x50] sm:$0xff]
    %v4187 = vld [vmem:[#allocation6 + $0x58] sm:$0xff]
    %v4188 = vld [vmem:[#allocation6 + $0x60] sm:$0xff]
    %v4189 = vld [vmem:[#allocation6 + $0x68] sm:$0xff]
    %v4190 = vld [vmem:[#allocation6 + $0x70] sm:$0xff]
    %v4191 = vld [vmem:[#allocation6 + $0x78] sm:$0xff]
    %v4192 = vld [vmem:[#allocation6 + $0x80] sm:$0xff]
    %v4193 = vld [vmem:[#allocation6 + $0x88] sm:$0xff]
    %v4194 = vld [vmem:[#allocation6 + $0x90] sm:$0xff]
    %v4195 = vld [vmem:[#allocation6 + $0x98] sm:$0xff]
    %v4196 = vld [vmem:[#allocation6 + $0xa0] sm:$0xff]
    %v4197 = vld [vmem:[#allocation6 + $0xa8] sm:$0xff]
    %v4198 = vld [vmem:[#allocation6 + $0xb0] sm:$0xff]
    %v4199 = vld [vmem:[#allocation6 + $0xb8] sm:$0xff]
    %v4200 = vld [vmem:[#allocation6 + $0xc0] sm:$0xff]
    %v4201 = vld [vmem:[#allocation6 + $0xc8] sm:$0xff]
    %v4202 = vld [vmem:[#allocation6 + $0xd0] sm:$0xff]
    %v4203 = vld [vmem:[#allocation6 + $0xd8] sm:$0xff]
    %v4204 = vld [vmem:[#allocation6 + $0xe0] sm:$0xff]
    %v4205 = vld [vmem:[#allocation6 + $0xe8] sm:$0xff]
    %v4206 = vld [vmem:[#allocation6 + $0xf0] sm:$0xff]
    %v4207 = vld [vmem:[#allocation6 + $0xf8] sm:$0xff]
    %v4208 = vld [vmem:[#allocation6 + $0x100] sm:$0xff]
    %v4209 = vld [vmem:[#allocation6 + $0x108] sm:$0xff]
    %v4210 = vld [vmem:[#allocation6 + $0x110] sm:$0xff]
    %v4211 = vld [vmem:[#allocation6 + $0x118] sm:$0xff]
    %v4212 = vld [vmem:[#allocation6 + $0x120] sm:$0xff]
    %v4213 = vld [vmem:[#allocation6 + $0x128] sm:$0xff]
    %v4214 = vld [vmem:[#allocation6 + $0x130] sm:$0xff]
    %v4215 = vld [vmem:[#allocation6 + $0x138] sm:$0xff]
    %v4216 = vld [vmem:[#allocation6 + $0x140] sm:$0xff]
    %v4217 = vld [vmem:[#allocation6 + $0x148] sm:$0xff]
    %v4218 = vld [vmem:[#allocation6 + $0x150] sm:$0xff]
    %v4219 = vld [vmem:[#allocation6 + $0x158] sm:$0xff]
    %v4220 = vld [vmem:[#allocation6 + $0x160] sm:$0xff]
    %v4221 = vld [vmem:[#allocation6 + $0x168] sm:$0xff]
    %v4222 = vld [vmem:[#allocation6 + $0x170] sm:$0xff]
    %v4223 = vld [vmem:[#allocation6 + $0x178] sm:$0xff]
    %v4224 = vld [vmem:[#allocation6 + $0x180] sm:$0xff]
    %v4225 = vld [vmem:[#allocation6 + $0x188] sm:$0xff]
    %v4226 = vld [vmem:[#allocation6 + $0x190] sm:$0xff]
    %v4227 = vld [vmem:[#allocation6 + $0x198] sm:$0xff]
    %v4228 = vld [vmem:[#allocation6 + $0x1a0] sm:$0xff]
    %v4229 = vld [vmem:[#allocation6 + $0x1a8] sm:$0xff]
    %v4230 = vld [vmem:[#allocation6 + $0x1b0] sm:$0xff]
    %v4231 = vld [vmem:[#allocation6 + $0x1b8] sm:$0xff]
    %v4232 = vld [vmem:[#allocation6 + $0x1c0] sm:$0xff]
    %v4233 = vld [vmem:[#allocation6 + $0x1c8] sm:$0xff]
    %v4234 = vld [vmem:[#allocation6 + $0x1d0] sm:$0xff]
    %v4235 = vld [vmem:[#allocation6 + $0x1d8] sm:$0xff]
    %v4236 = vld [vmem:[#allocation6 + $0x1e0] sm:$0xff]
    %v4237 = vld [vmem:[#allocation6 + $0x1e8] sm:$0xff]
    %v4238 = vld [vmem:[#allocation6 + $0x1f0] sm:$0xff]
    %v4239 = vld [vmem:[#allocation6 + $0x1f8] sm:$0xff]
    %v4240 = vld [vmem:[#allocation6 + $0x200] sm:$0xff]
    %v4241 = vld [vmem:[#allocation6 + $0x208] sm:$0xff]
    %v4242 = vld [vmem:[#allocation6 + $0x210] sm:$0xff]
    %v4243 = vld [vmem:[#allocation6 + $0x218] sm:$0xff]
    %v4244 = vld [vmem:[#allocation6 + $0x220] sm:$0xff]
    %v4245 = vld [vmem:[#allocation6 + $0x228] sm:$0xff]
    %v4246 = vld [vmem:[#allocation6 + $0x230] sm:$0xff]
    %v4247 = vld [vmem:[#allocation6 + $0x238] sm:$0xff]
    %v4248 = vld [vmem:[#allocation6 + $0x240] sm:$0xff]
    %v4249 = vld [vmem:[#allocation6 + $0x248] sm:$0xff]
    %v4250 = vld [vmem:[#allocation6 + $0x250] sm:$0xff]
    %v4251 = vld [vmem:[#allocation6 + $0x258] sm:$0xff]
    %v4252 = vld [vmem:[#allocation6 + $0x260] sm:$0xff]
    %v4253 = vld [vmem:[#allocation6 + $0x268] sm:$0xff]
    %v4254 = vld [vmem:[#allocation6 + $0x270] sm:$0xff]
    %v4255 = vld [vmem:[#allocation6 + $0x278] sm:$0xff]
    %v4256 = vld [vmem:[#allocation6 + $0x280] sm:$0xff]
    %v4257 = vld [vmem:[#allocation6 + $0x288] sm:$0xff]
    %v4258 = vld [vmem:[#allocation6 + $0x290] sm:$0xff]
    %v4259 = vld [vmem:[#allocation6 + $0x298] sm:$0xff]
    %v4260 = vld [vmem:[#allocation6 + $0x2a0] sm:$0xff]
    %v4261 = vld [vmem:[#allocation6 + $0x2a8] sm:$0xff]
    %v4262 = vld [vmem:[#allocation6 + $0x2b0] sm:$0xff]
    %v4263 = vld [vmem:[#allocation6 + $0x2b8] sm:$0xff]
    %v4264 = vld [vmem:[#allocation6 + $0x2c0] sm:$0xff]
    %v4265 = vld [vmem:[#allocation6 + $0x2c8] sm:$0xff]
    %v4266 = vld [vmem:[#allocation6 + $0x2d0] sm:$0xff]
    %v4267 = vld [vmem:[#allocation6 + $0x2d8] sm:$0xff]
    %v4268 = vld [vmem:[#allocation6 + $0x2e0] sm:$0xff]
    %v4269 = vld [vmem:[#allocation6 + $0x2e8] sm:$0xff]
    %v4270 = vld [vmem:[#allocation6 + $0x2f0] sm:$0xff]
    %v4271 = vld [vmem:[#allocation6 + $0x2f8] sm:$0xff]
    %v4272 = vld [vmem:[#allocation6 + $0x300] sm:$0xff]
    %v4273 = vld [vmem:[#allocation6 + $0x308] sm:$0xff]
    %v4274 = vld [vmem:[#allocation6 + $0x310] sm:$0xff]
    %v4275 = vld [vmem:[#allocation6 + $0x318] sm:$0xff]
    %v4276 = vld [vmem:[#allocation6 + $0x320] sm:$0xff]
    %v4277 = vld [vmem:[#allocation6 + $0x328] sm:$0xff]
    %v4278 = vld [vmem:[#allocation6 + $0x330] sm:$0xff]
    %v4279 = vld [vmem:[#allocation6 + $0x338] sm:$0xff]
    %v4280 = vld [vmem:[#allocation6 + $0x340] sm:$0xff]
    %v4281 = vld [vmem:[#allocation6 + $0x348] sm:$0xff]
    %v4282 = vld [vmem:[#allocation6 + $0x350] sm:$0xff]
    %v4283 = vld [vmem:[#allocation6 + $0x358] sm:$0xff]
    %v4284 = vld [vmem:[#allocation6 + $0x360] sm:$0xff]
    %v4285 = vld [vmem:[#allocation6 + $0x368] sm:$0xff]
    %v4286 = vld [vmem:[#allocation6 + $0x370] sm:$0xff]
    %v4287 = vld [vmem:[#allocation6 + $0x378] sm:$0xff]
    %v4288 = vld [vmem:[#allocation6 + $0x380] sm:$0xff]
    %v4289 = vld [vmem:[#allocation6 + $0x388] sm:$0xff]
    %v4290 = vld [vmem:[#allocation6 + $0x390] sm:$0xff]
    %v4291 = vld [vmem:[#allocation6 + $0x398] sm:$0xff]
    %v4292 = vld [vmem:[#allocation6 + $0x3a0] sm:$0xff]
    %v4293 = vld [vmem:[#allocation6 + $0x3a8] sm:$0xff]
    %v4294 = vld [vmem:[#allocation6 + $0x3b0] sm:$0xff]
    %v4295 = vld [vmem:[#allocation6 + $0x3b8] sm:$0xff]
    %v4296 = vld [vmem:[#allocation6 + $0x3c0] sm:$0xff]
    %v4297 = vld [vmem:[#allocation6 + $0x3c8] sm:$0xff]
    %v4298 = vld [vmem:[#allocation6 + $0x3d0] sm:$0xff]
    %v4299 = vld [vmem:[#allocation6 + $0x3d8] sm:$0xff]
    %v4300 = vld [vmem:[#allocation6 + $0x3e0] sm:$0xff]
    %v4301 = vld [vmem:[#allocation6 + $0x3e8] sm:$0xff]
    %v4302 = vld [vmem:[#allocation6 + $0x3f0] sm:$0xff]
    %v4303 = vld [vmem:[#allocation6 + $0x3f8] sm:$0xff]
    %v4304 = vld [vmem:[#allocation6 + $0x400] sm:$0xff]
    %v4305 = vld [vmem:[#allocation6 + $0x408] sm:$0xff]
    %v4306 = vld [vmem:[#allocation6 + $0x410] sm:$0xff]
    %v4307 = vld [vmem:[#allocation6 + $0x418] sm:$0xff]
    %v4308 = vld [vmem:[#allocation6 + $0x420] sm:$0xff]
    %v4309 = vld [vmem:[#allocation6 + $0x428] sm:$0xff]
    %v4310 = vld [vmem:[#allocation6 + $0x430] sm:$0xff]
    %v4311 = vld [vmem:[#allocation6 + $0x438] sm:$0xff]
    %v4312 = vld [vmem:[#allocation6 + $0x440] sm:$0xff]
    %v4313 = vld [vmem:[#allocation6 + $0x448] sm:$0xff]
    %v4314 = vld [vmem:[#allocation6 + $0x450] sm:$0xff]
    %v4315 = vld [vmem:[#allocation6 + $0x458] sm:$0xff]
    %v4316 = vld [vmem:[#allocation6 + $0x460] sm:$0xff]
    %v4317 = vld [vmem:[#allocation6 + $0x468] sm:$0xff]
    %v4318 = vld [vmem:[#allocation6 + $0x470] sm:$0xff]
    %v4319 = vld [vmem:[#allocation6 + $0x478] sm:$0xff]
    %v4320 = vld [vmem:[#allocation6 + $0x480] sm:$0xff]
    %v4321 = vld [vmem:[#allocation6 + $0x488] sm:$0xff]
    %v4322 = vld [vmem:[#allocation6 + $0x490] sm:$0xff]
    %v4323 = vld [vmem:[#allocation6 + $0x498] sm:$0xff]
    %v4324 = vld [vmem:[#allocation6 + $0x4a0] sm:$0xff]
    %v4325 = vld [vmem:[#allocation6 + $0x4a8] sm:$0xff]
    %v4326 = vld [vmem:[#allocation6 + $0x4b0] sm:$0xff]
    %v4327 = vld [vmem:[#allocation6 + $0x4b8] sm:$0xff]
    %v4328 = vld [vmem:[#allocation6 + $0x4c0] sm:$0xff]
    %v4329 = vld [vmem:[#allocation6 + $0x4c8] sm:$0xff]
    %v4330 = vld [vmem:[#allocation6 + $0x4d0] sm:$0xff]
    %v4331 = vld [vmem:[#allocation6 + $0x4d8] sm:$0xff]
    %v4332 = vld [vmem:[#allocation6 + $0x4e0] sm:$0xff]
    %v4333 = vld [vmem:[#allocation6 + $0x4e8] sm:$0xff]
    %v4334 = vld [vmem:[#allocation6 + $0x4f0] sm:$0xff]
    %v4335 = vld [vmem:[#allocation6 + $0x4f8] sm:$0xff]
    %v4336 = vld [vmem:[#allocation6 + $0x500] sm:$0xff]
    %v4337 = vld [vmem:[#allocation6 + $0x508] sm:$0xff]
    %v4338 = vld [vmem:[#allocation6 + $0x510] sm:$0xff]
    %v4339 = vld [vmem:[#allocation6 + $0x518] sm:$0xff]
    %v4340 = vld [vmem:[#allocation6 + $0x520] sm:$0xff]
    %v4341 = vld [vmem:[#allocation6 + $0x528] sm:$0xff]
    %v4342 = vld [vmem:[#allocation6 + $0x530] sm:$0xff]
    %v4343 = vld [vmem:[#allocation6 + $0x538] sm:$0xff]
    %v4344 = vld [vmem:[#allocation6 + $0x540] sm:$0xff]
    %v4345 = vld [vmem:[#allocation6 + $0x548] sm:$0xff]
    %v4346 = vld [vmem:[#allocation6 + $0x550] sm:$0xff]
    %v4347 = vld [vmem:[#allocation6 + $0x558] sm:$0xff]
    %v4348 = vld [vmem:[#allocation6 + $0x560] sm:$0xff]
    %v4349 = vld [vmem:[#allocation6 + $0x568] sm:$0xff]
    %v4350 = vld [vmem:[#allocation6 + $0x570] sm:$0xff]
    %v4351 = vld [vmem:[#allocation6 + $0x578] sm:$0xff]
    %v4352 = vld [vmem:[#allocation6 + $0x580] sm:$0xff]
    %v4353 = vld [vmem:[#allocation6 + $0x588] sm:$0xff]
    %v4354 = vld [vmem:[#allocation6 + $0x590] sm:$0xff]
    %v4355 = vld [vmem:[#allocation6 + $0x598] sm:$0xff]
    %v4356 = vld [vmem:[#allocation6 + $0x5a0] sm:$0xff]
    %v4357 = vld [vmem:[#allocation6 + $0x5a8] sm:$0xff]
    %v4358 = vld [vmem:[#allocation6 + $0x5b0] sm:$0xff]
    %v4359 = vld [vmem:[#allocation6 + $0x5b8] sm:$0xff]
    %v4360 = vld [vmem:[#allocation6 + $0x5c0] sm:$0xff]
    %v4361 = vld [vmem:[#allocation6 + $0x5c8] sm:$0xff]
    %v4362 = vld [vmem:[#allocation6 + $0x5d0] sm:$0xff]
    %v4363 = vld [vmem:[#allocation6 + $0x5d8] sm:$0xff]
    %v4364 = vld [vmem:[#allocation6 + $0x5e0] sm:$0xff]
    %v4365 = vld [vmem:[#allocation6 + $0x5e8] sm:$0xff]
    %v4366 = vld [vmem:[#allocation6 + $0x5f0] sm:$0xff]
    %v4367 = vld [vmem:[#allocation6 + $0x5f8] sm:$0xff]
    %v4368 = vld [vmem:[#allocation6 + $0x600] sm:$0xff]
    %v4369 = vld [vmem:[#allocation6 + $0x608] sm:$0xff]
    %v4370 = vld [vmem:[#allocation6 + $0x610] sm:$0xff]
    %v4371 = vld [vmem:[#allocation6 + $0x618] sm:$0xff]
    %v4372 = vld [vmem:[#allocation6 + $0x620] sm:$0xff]
    %v4373 = vld [vmem:[#allocation6 + $0x628] sm:$0xff]
    %v4374 = vld [vmem:[#allocation6 + $0x630] sm:$0xff]
    %v4375 = vld [vmem:[#allocation6 + $0x638] sm:$0xff]
    %v4376 = vld [vmem:[#allocation6 + $0x640] sm:$0xff]
    %v4377 = vld [vmem:[#allocation6 + $0x648] sm:$0xff]
    %v4378 = vld [vmem:[#allocation6 + $0x650] sm:$0xff]
    %v4379 = vld [vmem:[#allocation6 + $0x658] sm:$0xff]
    %v4380 = vld [vmem:[#allocation6 + $0x660] sm:$0xff]
    %v4381 = vld [vmem:[#allocation6 + $0x668] sm:$0xff]
    %v4382 = vld [vmem:[#allocation6 + $0x670] sm:$0xff]
    %v4383 = vld [vmem:[#allocation6 + $0x678] sm:$0xff]
    %v4384 = vld [vmem:[#allocation6 + $0x680] sm:$0xff]
    %v4385 = vld [vmem:[#allocation6 + $0x688] sm:$0xff]
    %v4386 = vld [vmem:[#allocation6 + $0x690] sm:$0xff]
    %v4387 = vld [vmem:[#allocation6 + $0x698] sm:$0xff]
    %v4388 = vld [vmem:[#allocation6 + $0x6a0] sm:$0xff]
    %v4389 = vld [vmem:[#allocation6 + $0x6a8] sm:$0xff]
    %v4390 = vld [vmem:[#allocation6 + $0x6b0] sm:$0xff]
    %v4391 = vld [vmem:[#allocation6 + $0x6b8] sm:$0xff]
    %v4392 = vld [vmem:[#allocation6 + $0x6c0] sm:$0xff]
    %v4393 = vld [vmem:[#allocation6 + $0x6c8] sm:$0xff]
    %v4394 = vld [vmem:[#allocation6 + $0x6d0] sm:$0xff]
    %v4395 = vld [vmem:[#allocation6 + $0x6d8] sm:$0xff]
    %v4396 = vld [vmem:[#allocation6 + $0x6e0] sm:$0xff]
    %v4397 = vld [vmem:[#allocation6 + $0x6e8] sm:$0xff]
    %v4398 = vld [vmem:[#allocation6 + $0x6f0] sm:$0xff]
    %v4399 = vld [vmem:[#allocation6 + $0x6f8] sm:$0xff]
    %v4400 = vld [vmem:[#allocation6 + $0x700] sm:$0xff]
    %v4401 = vld [vmem:[#allocation6 + $0x708] sm:$0xff]
    %v4402 = vld [vmem:[#allocation6 + $0x710] sm:$0xff]
    %v4403 = vld [vmem:[#allocation6 + $0x718] sm:$0xff]
    %v4404 = vld [vmem:[#allocation6 + $0x720] sm:$0xff]
    %v4405 = vld [vmem:[#allocation6 + $0x728] sm:$0xff]
    %v4406 = vld [vmem:[#allocation6 + $0x730] sm:$0xff]
    %v4407 = vld [vmem:[#allocation6 + $0x738] sm:$0xff]
    %v4408 = vld [vmem:[#allocation6 + $0x740] sm:$0xff]
    %v4409 = vld [vmem:[#allocation6 + $0x748] sm:$0xff]
    %v4410 = vld [vmem:[#allocation6 + $0x750] sm:$0xff]
    %v4411 = vld [vmem:[#allocation6 + $0x758] sm:$0xff]
    %v4412 = vld [vmem:[#allocation6 + $0x760] sm:$0xff]
    %v4413 = vld [vmem:[#allocation6 + $0x768] sm:$0xff]
    %v4414 = vld [vmem:[#allocation6 + $0x770] sm:$0xff]
    %v4415 = vld [vmem:[#allocation6 + $0x778] sm:$0xff]
    %v4416 = vld [vmem:[#allocation6 + $0x780] sm:$0xff]
    %v4417 = vld [vmem:[#allocation6 + $0x788] sm:$0xff]
    %v4418 = vld [vmem:[#allocation6 + $0x790] sm:$0xff]
    %v4419 = vld [vmem:[#allocation6 + $0x798] sm:$0xff]
    %v4420 = vld [vmem:[#allocation6 + $0x7a0] sm:$0xff]
    %v4421 = vld [vmem:[#allocation6 + $0x7a8] sm:$0xff]
    %v4422 = vld [vmem:[#allocation6 + $0x7b0] sm:$0xff]
    %v4423 = vld [vmem:[#allocation6 + $0x7b8] sm:$0xff]
    %v4424 = vld [vmem:[#allocation6 + $0x7c0] sm:$0xff]
    %v4425 = vld [vmem:[#allocation6 + $0x7c8] sm:$0xff]
    %v4426 = vld [vmem:[#allocation6 + $0x7d0] sm:$0xff]
    %v4427 = vld [vmem:[#allocation6 + $0x7d8] sm:$0xff]
    %v4428 = vld [vmem:[#allocation6 + $0x7e0] sm:$0xff]
    %v4429 = vld [vmem:[#allocation6 + $0x7e8] sm:$0xff]
    %v4430 = vld [vmem:[#allocation6 + $0x7f0] sm:$0xff]
    %v4431 = vld [vmem:[#allocation6 + $0x7f8] sm:$0xff]
    %v4432 = vld [vmem:[#allocation6 + $0x800] sm:$0xff]
    %v4433 = vld [vmem:[#allocation6 + $0x808] sm:$0xff]
    %v4434 = vld [vmem:[#allocation6 + $0x810] sm:$0xff]
    %v4435 = vld [vmem:[#allocation6 + $0x818] sm:$0xff]
    %v4436 = vld [vmem:[#allocation6 + $0x820] sm:$0xff]
    %v4437 = vld [vmem:[#allocation6 + $0x828] sm:$0xff]
    %v4438 = vld [vmem:[#allocation6 + $0x830] sm:$0xff]
    %v4439 = vld [vmem:[#allocation6 + $0x838] sm:$0xff]
    %v4440 = vld [vmem:[#allocation6 + $0x840] sm:$0xff]
    %v4441 = vld [vmem:[#allocation6 + $0x848] sm:$0xff]
    %v4442 = vld [vmem:[#allocation6 + $0x850] sm:$0xff]
    %v4443 = vld [vmem:[#allocation6 + $0x858] sm:$0xff]
    %v4444 = vld [vmem:[#allocation6 + $0x860] sm:$0xff]
    %v4445 = vld [vmem:[#allocation6 + $0x868] sm:$0xff]
    %v4446 = vld [vmem:[#allocation6 + $0x870] sm:$0xff]
    %v4447 = vld [vmem:[#allocation6 + $0x878] sm:$0xff]
    %v4448 = vld [vmem:[#allocation6 + $0x880] sm:$0xff]
    %v4449 = vld [vmem:[#allocation6 + $0x888] sm:$0xff]
    %v4450 = vld [vmem:[#allocation6 + $0x890] sm:$0xff]
    %v4451 = vld [vmem:[#allocation6 + $0x898] sm:$0xff]
    %v4452 = vld [vmem:[#allocation6 + $0x8a0] sm:$0xff]
    %v4453 = vld [vmem:[#allocation6 + $0x8a8] sm:$0xff]
    %v4454 = vld [vmem:[#allocation6 + $0x8b0] sm:$0xff]
    %v4455 = vld [vmem:[#allocation6 + $0x8b8] sm:$0xff]
    %v4456 = vld [vmem:[#allocation6 + $0x8c0] sm:$0xff]
    %v4457 = vld [vmem:[#allocation6 + $0x8c8] sm:$0xff]
    %v4458 = vld [vmem:[#allocation6 + $0x8d0] sm:$0xff]
    %v4459 = vld [vmem:[#allocation6 + $0x8d8] sm:$0xff]
    %v4460 = vld [vmem:[#allocation6 + $0x8e0] sm:$0xff]
    %v4461 = vld [vmem:[#allocation6 + $0x8e8] sm:$0xff]
    %v4462 = vld [vmem:[#allocation6 + $0x8f0] sm:$0xff]
    %v4463 = vld [vmem:[#allocation6 + $0x8f8] sm:$0xff]
    %v4464 = vld [vmem:[#allocation6 + $0x900] sm:$0xff]
    %v4465 = vld [vmem:[#allocation6 + $0x908] sm:$0xff]
    %v4466 = vld [vmem:[#allocation6 + $0x910] sm:$0xff]
    %v4467 = vld [vmem:[#allocation6 + $0x918] sm:$0xff]
    %v4468 = vld [vmem:[#allocation6 + $0x920] sm:$0xff]
    %v4469 = vld [vmem:[#allocation6 + $0x928] sm:$0xff]
    %v4470 = vld [vmem:[#allocation6 + $0x930] sm:$0xff]
    %v4471 = vld [vmem:[#allocation6 + $0x938] sm:$0xff]
    %v4472 = vld [vmem:[#allocation6 + $0x940] sm:$0xff]
    %v4473 = vld [vmem:[#allocation6 + $0x948] sm:$0xff]
    %v4474 = vld [vmem:[#allocation6 + $0x950] sm:$0xff]
    %v4475 = vld [vmem:[#allocation6 + $0x958] sm:$0xff]
    %v4476 = vld [vmem:[#allocation6 + $0x960] sm:$0xff]
    %v4477 = vld [vmem:[#allocation6 + $0x968] sm:$0xff]
    %v4478 = vld [vmem:[#allocation6 + $0x970] sm:$0xff]
    %v4479 = vld [vmem:[#allocation6 + $0x978] sm:$0xff]
    %v4480 = vld [vmem:[#allocation6 + $0x980] sm:$0xff]
    %v4481 = vld [vmem:[#allocation6 + $0x988] sm:$0xff]
    %v4482 = vld [vmem:[#allocation6 + $0x990] sm:$0xff]
    %v4483 = vld [vmem:[#allocation6 + $0x998] sm:$0xff]
    %v4484 = vld [vmem:[#allocation6 + $0x9a0] sm:$0xff]
    %v4485 = vld [vmem:[#allocation6 + $0x9a8] sm:$0xff]
    %v4486 = vld [vmem:[#allocation6 + $0x9b0] sm:$0xff]
    %v4487 = vld [vmem:[#allocation6 + $0x9b8] sm:$0xff]
    %v4488 = vld [vmem:[#allocation6 + $0x9c0] sm:$0xff]
    %v4489 = vld [vmem:[#allocation6 + $0x9c8] sm:$0xff]
    %v4490 = vld [vmem:[#allocation6 + $0x9d0] sm:$0xff]
    %v4491 = vld [vmem:[#allocation6 + $0x9d8] sm:$0xff]
    %v4492 = vld [vmem:[#allocation6 + $0x9e0] sm:$0xff]
    %v4493 = vld [vmem:[#allocation6 + $0x9e8] sm:$0xff]
    %v4494 = vld [vmem:[#allocation6 + $0x9f0] sm:$0xff]
    %v4495 = vld [vmem:[#allocation6 + $0x9f8] sm:$0xff]
    %v4496 = vld [vmem:[#allocation6 + $0xa00] sm:$0xff]
    %v4497 = vld [vmem:[#allocation6 + $0xa08] sm:$0xff]
    %v4498 = vld [vmem:[#allocation6 + $0xa10] sm:$0xff]
    %v4499 = vld [vmem:[#allocation6 + $0xa18] sm:$0xff]
    %v4500 = vld [vmem:[#allocation6 + $0xa20] sm:$0xff]
    %v4501 = vld [vmem:[#allocation6 + $0xa28] sm:$0xff]
    %v4502 = vld [vmem:[#allocation6 + $0xa30] sm:$0xff]
    %v4503 = vld [vmem:[#allocation6 + $0xa38] sm:$0xff]
    %v4504 = vld [vmem:[#allocation6 + $0xa40] sm:$0xff]
    %v4505 = vld [vmem:[#allocation6 + $0xa48] sm:$0xff]
    %v4506 = vld [vmem:[#allocation6 + $0xa50] sm:$0xff]
    %v4507 = vld [vmem:[#allocation6 + $0xa58] sm:$0xff]
    %v4508 = vld [vmem:[#allocation6 + $0xa60] sm:$0xff]
    %v4509 = vld [vmem:[#allocation6 + $0xa68] sm:$0xff]
    %v4510 = vld [vmem:[#allocation6 + $0xa70] sm:$0xff]
    %v4511 = vld [vmem:[#allocation6 + $0xa78] sm:$0xff]
    %v4512 = vld [vmem:[#allocation6 + $0xa80] sm:$0xff]
    %v4513 = vld [vmem:[#allocation6 + $0xa88] sm:$0xff]
    %v4514 = vld [vmem:[#allocation6 + $0xa90] sm:$0xff]
    %v4515 = vld [vmem:[#allocation6 + $0xa98] sm:$0xff]
    %v4516 = vld [vmem:[#allocation6 + $0xaa0] sm:$0xff]
    %v4517 = vld [vmem:[#allocation6 + $0xaa8] sm:$0xff]
    %v4518 = vld [vmem:[#allocation6 + $0xab0] sm:$0xff]
    %v4519 = vld [vmem:[#allocation6 + $0xab8] sm:$0xff]
    %v4520 = vld [vmem:[#allocation6 + $0xac0] sm:$0xff]
    %v4521 = vld [vmem:[#allocation6 + $0xac8] sm:$0xff]
    %v4522 = vld [vmem:[#allocation6 + $0xad0] sm:$0xff]
    %v4523 = vld [vmem:[#allocation6 + $0xad8] sm:$0xff]
    %v4524 = vld [vmem:[#allocation6 + $0xae0] sm:$0xff]
    %v4525 = vld [vmem:[#allocation6 + $0xae8] sm:$0xff]
    %v4526 = vld [vmem:[#allocation6 + $0xaf0] sm:$0xff]
    %v4527 = vld [vmem:[#allocation6 + $0xaf8] sm:$0xff]
    %v4528 = vld [vmem:[#allocation6 + $0xb00] sm:$0xff]
    %v4529 = vld [vmem:[#allocation6 + $0xb08] sm:$0xff]
    %v4530 = vld [vmem:[#allocation6 + $0xb10] sm:$0xff]
    %v4531 = vld [vmem:[#allocation6 + $0xb18] sm:$0xff]
    %v4532 = vld [vmem:[#allocation6 + $0xb20] sm:$0xff]
    %v4533 = vld [vmem:[#allocation6 + $0xb28] sm:$0xff]
    %v4534 = vld [vmem:[#allocation6 + $0xb30] sm:$0xff]
    %v4535 = vld [vmem:[#allocation6 + $0xb38] sm:$0xff]
    %v4536 = vld [vmem:[#allocation6 + $0xb40] sm:$0xff]
    %v4537 = vld [vmem:[#allocation6 + $0xb48] sm:$0xff]
    %v4538 = vld [vmem:[#allocation6 + $0xb50] sm:$0xff]
    %v4539 = vld [vmem:[#allocation6 + $0xb58] sm:$0xff]
    %v4540 = vld [vmem:[#allocation6 + $0xb60] sm:$0xff]
    %v4541 = vld [vmem:[#allocation6 + $0xb68] sm:$0xff]
    %v4542 = vld [vmem:[#allocation6 + $0xb70] sm:$0xff]
    %v4543 = vld [vmem:[#allocation6 + $0xb78] sm:$0xff]
    %v4544 = vld [vmem:[#allocation6 + $0xb80] sm:$0xff]
    %v4545 = vld [vmem:[#allocation6 + $0xb88] sm:$0xff]
    %v4546 = vld [vmem:[#allocation6 + $0xb90] sm:$0xff]
    %v4547 = vld [vmem:[#allocation6 + $0xb98] sm:$0xff]
    %v4548 = vld [vmem:[#allocation6 + $0xba0] sm:$0xff]
    %v4549 = vld [vmem:[#allocation6 + $0xba8] sm:$0xff]
    %v4550 = vld [vmem:[#allocation6 + $0xbb0] sm:$0xff]
    %v4551 = vld [vmem:[#allocation6 + $0xbb8] sm:$0xff]
    %v4552 = vld [vmem:[#allocation6 + $0xbc0] sm:$0xff]
    %v4553 = vld [vmem:[#allocation6 + $0xbc8] sm:$0xff]
    %v4554 = vld [vmem:[#allocation6 + $0xbd0] sm:$0xff]
    %v4555 = vld [vmem:[#allocation6 + $0xbd8] sm:$0xff]
    %v4556 = vld [vmem:[#allocation6 + $0xbe0] sm:$0xff]
    %v4557 = vld [vmem:[#allocation6 + $0xbe8] sm:$0xff]
    %v4558 = vld [vmem:[#allocation6 + $0xbf0] sm:$0xff]
    %v4559 = vld [vmem:[#allocation6 + $0xbf8] sm:$0xff]
    %v4560 = vld [vmem:[#allocation6 + $0xc00] sm:$0xff]
    %v4561 = vld [vmem:[#allocation6 + $0xc08] sm:$0xff]
    %v4562 = vld [vmem:[#allocation6 + $0xc10] sm:$0xff]
    %v4563 = vld [vmem:[#allocation6 + $0xc18] sm:$0xff]
    %v4564 = vld [vmem:[#allocation6 + $0xc20] sm:$0xff]
    %v4565 = vld [vmem:[#allocation6 + $0xc28] sm:$0xff]
    %v4566 = vld [vmem:[#allocation6 + $0xc30] sm:$0xff]
    %v4567 = vld [vmem:[#allocation6 + $0xc38] sm:$0xff]
    %v4568 = vld [vmem:[#allocation6 + $0xc40] sm:$0xff]
    %v4569 = vld [vmem:[#allocation6 + $0xc48] sm:$0xff]
    %v4570 = vld [vmem:[#allocation6 + $0xc50] sm:$0xff]
    %v4571 = vld [vmem:[#allocation6 + $0xc58] sm:$0xff]
    %v4572 = vld [vmem:[#allocation6 + $0xc60] sm:$0xff]
    %v4573 = vld [vmem:[#allocation6 + $0xc68] sm:$0xff]
    %v4574 = vld [vmem:[#allocation6 + $0xc70] sm:$0xff]
    %v4575 = vld [vmem:[#allocation6 + $0xc78] sm:$0xff]
    %v4576 = vld [vmem:[#allocation6 + $0xc80] sm:$0xff]
    %v4577 = vld [vmem:[#allocation6 + $0xc88] sm:$0xff]
    %v4578 = vld [vmem:[#allocation6 + $0xc90] sm:$0xff]
    %v4579 = vld [vmem:[#allocation6 + $0xc98] sm:$0xff]
    %v4580 = vld [vmem:[#allocation6 + $0xca0] sm:$0xff]
    %v4581 = vld [vmem:[#allocation6 + $0xca8] sm:$0xff]
    %v4582 = vld [vmem:[#allocation6 + $0xcb0] sm:$0xff]
    %v4583 = vld [vmem:[#allocation6 + $0xcb8] sm:$0xff]
    %v4584 = vld [vmem:[#allocation6 + $0xcc0] sm:$0xff]
    %v4585 = vld [vmem:[#allocation6 + $0xcc8] sm:$0xff]
    %v4586 = vld [vmem:[#allocation6 + $0xcd0] sm:$0xff]
    %v4587 = vld [vmem:[#allocation6 + $0xcd8] sm:$0xff]
    %v4588 = vld [vmem:[#allocation6 + $0xce0] sm:$0xff]
    %v4589 = vld [vmem:[#allocation6 + $0xce8] sm:$0xff]
    %v4590 = vld [vmem:[#allocation6 + $0xcf0] sm:$0xff]
    %v4591 = vld [vmem:[#allocation6 + $0xcf8] sm:$0xff]
    %v4592 = vld [vmem:[#allocation6 + $0xd00] sm:$0xff]
    %v4593 = vld [vmem:[#allocation6 + $0xd08] sm:$0xff]
    %v4594 = vld [vmem:[#allocation6 + $0xd10] sm:$0xff]
    %v4595 = vld [vmem:[#allocation6 + $0xd18] sm:$0xff]
    %v4596 = vld [vmem:[#allocation6 + $0xd20] sm:$0xff]
    %v4597 = vld [vmem:[#allocation6 + $0xd28] sm:$0xff]
    %v4598 = vld [vmem:[#allocation6 + $0xd30] sm:$0xff]
    %v4599 = vld [vmem:[#allocation6 + $0xd38] sm:$0xff]
    %v4600 = vld [vmem:[#allocation6 + $0xd40] sm:$0xff]
    %v4601 = vld [vmem:[#allocation6 + $0xd48] sm:$0xff]
    %v4602 = vld [vmem:[#allocation6 + $0xd50] sm:$0xff]
    %v4603 = vld [vmem:[#allocation6 + $0xd58] sm:$0xff]
    %v4604 = vld [vmem:[#allocation6 + $0xd60] sm:$0xff]
    %v4605 = vld [vmem:[#allocation6 + $0xd68] sm:$0xff]
    %v4606 = vld [vmem:[#allocation6 + $0xd70] sm:$0xff]
    %v4607 = vld [vmem:[#allocation6 + $0xd78] sm:$0xff]
    %v4608 = vld [vmem:[#allocation6 + $0xd80] sm:$0xff]
    %v4609 = vld [vmem:[#allocation6 + $0xd88] sm:$0xff]
    %v4610 = vld [vmem:[#allocation6 + $0xd90] sm:$0xff]
    %v4611 = vld [vmem:[#allocation6 + $0xd98] sm:$0xff]
    %v4612 = vld [vmem:[#allocation6 + $0xda0] sm:$0xff]
    %v4613 = vld [vmem:[#allocation6 + $0xda8] sm:$0xff]
    %v4614 = vld [vmem:[#allocation6 + $0xdb0] sm:$0xff]
    %v4615 = vld [vmem:[#allocation6 + $0xdb8] sm:$0xff]
    %v4616 = vld [vmem:[#allocation6 + $0xdc0] sm:$0xff]
    %v4617 = vld [vmem:[#allocation6 + $0xdc8] sm:$0xff]
    %v4618 = vld [vmem:[#allocation6 + $0xdd0] sm:$0xff]
    %v4619 = vld [vmem:[#allocation6 + $0xdd8] sm:$0xff]
    %v4620 = vld [vmem:[#allocation6 + $0xde0] sm:$0xff]
    %v4621 = vld [vmem:[#allocation6 + $0xde8] sm:$0xff]
    %v4622 = vld [vmem:[#allocation6 + $0xdf0] sm:$0xff]
    %v4623 = vld [vmem:[#allocation6 + $0xdf8] sm:$0xff]
    %v4624 = vld [vmem:[#allocation6 + $0xe00] sm:$0xff]
    %v4625 = vld [vmem:[#allocation6 + $0xe08] sm:$0xff]
    %v4626 = vld [vmem:[#allocation6 + $0xe10] sm:$0xff]
    %v4627 = vld [vmem:[#allocation6 + $0xe18] sm:$0xff]
    %v4628 = vld [vmem:[#allocation6 + $0xe20] sm:$0xff]
    %v4629 = vld [vmem:[#allocation6 + $0xe28] sm:$0xff]
    %v4630 = vld [vmem:[#allocation6 + $0xe30] sm:$0xff]
    %v4631 = vld [vmem:[#allocation6 + $0xe38] sm:$0xff]
    %v4632 = vld [vmem:[#allocation6 + $0xe40] sm:$0xff]
    %v4633 = vld [vmem:[#allocation6 + $0xe48] sm:$0xff]
    %v4634 = vld [vmem:[#allocation6 + $0xe50] sm:$0xff]
    %v4635 = vld [vmem:[#allocation6 + $0xe58] sm:$0xff]
    %v4636 = vld [vmem:[#allocation6 + $0xe60] sm:$0xff]
    %v4637 = vld [vmem:[#allocation6 + $0xe68] sm:$0xff]
    %v4638 = vld [vmem:[#allocation6 + $0xe70] sm:$0xff]
    %v4639 = vld [vmem:[#allocation6 + $0xe78] sm:$0xff]
    %v4640 = vld [vmem:[#allocation6 + $0xe80] sm:$0xff]
    %v4641 = vld [vmem:[#allocation6 + $0xe88] sm:$0xff]
    %v4642 = vld [vmem:[#allocation6 + $0xe90] sm:$0xff]
    %v4643 = vld [vmem:[#allocation6 + $0xe98] sm:$0xff]
    %v4644 = vld [vmem:[#allocation6 + $0xea0] sm:$0xff]
    %v4645 = vld [vmem:[#allocation6 + $0xea8] sm:$0xff]
    %v4646 = vld [vmem:[#allocation6 + $0xeb0] sm:$0xff]
    %v4647 = vld [vmem:[#allocation6 + $0xeb8] sm:$0xff]
    %v4648 = vld [vmem:[#allocation6 + $0xec0] sm:$0xff]
    %v4649 = vld [vmem:[#allocation6 + $0xec8] sm:$0xff]
    %v4650 = vld [vmem:[#allocation6 + $0xed0] sm:$0xff]
    %v4651 = vld [vmem:[#allocation6 + $0xed8] sm:$0xff]
    %v4652 = vld [vmem:[#allocation6 + $0xee0] sm:$0xff]
    %v4653 = vld [vmem:[#allocation6 + $0xee8] sm:$0xff]
    %v4654 = vld [vmem:[#allocation6 + $0xef0] sm:$0xff]
    %v4655 = vld [vmem:[#allocation6 + $0xef8] sm:$0xff]
    %v4656 = vld [vmem:[#allocation6 + $0xf00] sm:$0xff]
    %v4657 = vld [vmem:[#allocation6 + $0xf08] sm:$0xff]
    %v4658 = vld [vmem:[#allocation6 + $0xf10] sm:$0xff]
    %v4659 = vld [vmem:[#allocation6 + $0xf18] sm:$0xff]
    %v4660 = vld [vmem:[#allocation6 + $0xf20] sm:$0xff]
    %v4661 = vld [vmem:[#allocation6 + $0xf28] sm:$0xff]
    %v4662 = vld [vmem:[#allocation6 + $0xf30] sm:$0xff]
    %v4663 = vld [vmem:[#allocation6 + $0xf38] sm:$0xff]
    %v4664 = vld [vmem:[#allocation6 + $0xf40] sm:$0xff]
    %v4665 = vld [vmem:[#allocation6 + $0xf48] sm:$0xff]
    %v4666 = vld [vmem:[#allocation6 + $0xf50] sm:$0xff]
    %v4667 = vld [vmem:[#allocation6 + $0xf58] sm:$0xff]
    %v4668 = vld [vmem:[#allocation6 + $0xf60] sm:$0xff]
    %v4669 = vld [vmem:[#allocation6 + $0xf68] sm:$0xff]
    %v4670 = vld [vmem:[#allocation6 + $0xf70] sm:$0xff]
    %v4671 = vld [vmem:[#allocation6 + $0xf78] sm:$0xff]
    %v4672 = vld [vmem:[#allocation6 + $0xf80] sm:$0xff]
    %v4673 = vld [vmem:[#allocation6 + $0xf88] sm:$0xff]
    %v4674 = vld [vmem:[#allocation6 + $0xf90] sm:$0xff]
    %v4675 = vld [vmem:[#allocation6 + $0xf98] sm:$0xff]
    %v4676 = vld [vmem:[#allocation6 + $0xfa0] sm:$0xff]
    %v4677 = vld [vmem:[#allocation6 + $0xfa8] sm:$0xff]
    %v4678 = vld [vmem:[#allocation6 + $0xfb0] sm:$0xff]
    %v4679 = vld [vmem:[#allocation6 + $0xfb8] sm:$0xff]
    %v4680 = vld [vmem:[#allocation6 + $0xfc0] sm:$0xff]
    %v4681 = vld [vmem:[#allocation6 + $0xfc8] sm:$0xff]
    %v4682 = vld [vmem:[#allocation6 + $0xfd0] sm:$0xff]
    %v4683 = vld [vmem:[#allocation6 + $0xfd8] sm:$0xff]
    %v4684 = vld [vmem:[#allocation6 + $0xfe0] sm:$0xff]
    %v4685 = vld [vmem:[#allocation6 + $0xfe8] sm:$0xff]
    %v4686 = vld [vmem:[#allocation6 + $0xff0] sm:$0xff]
    %v4687 = vld [vmem:[#allocation6 + $0xff8] sm:$0xff]
    %v4688 = vld [vmem:[#allocation7] sm:$0xf]
    %v4690 = vperm.slane %v4688, 0
    %v4691 = vperm.slane %v4688, 1
    %v4692 = vperm.slane %v4688, 2
    %v4693 = vperm.slane %v4688, 3
    %v5210 = vunpack.c.l.b16 %v4176
    %v5211 = vunpack.c.h.b16 %v4176
    %v5212 = vunpack.c.l.b16 %v4177
    %v5213 = vunpack.c.h.b16 %v4177
    %v5214 = vunpack.c.l.b16 %v4178
    %v5215 = vunpack.c.h.b16 %v4178
    %v5216 = vunpack.c.l.b16 %v4179
    %v5217 = vunpack.c.h.b16 %v4179
    %v5218 = vunpack.c.l.b16 %v4180
    %v5219 = vunpack.c.h.b16 %v4180
    %v5220 = vunpack.c.l.b16 %v4181
    %v5221 = vunpack.c.h.b16 %v4181
    %v5222 = vunpack.c.l.b16 %v4182
    %v5223 = vunpack.c.h.b16 %v4182
    %v5224 = vunpack.c.l.b16 %v4183
    %v5225 = vunpack.c.h.b16 %v4183
    %v5226 = vunpack.c.l.b16 %v4184
    %v5227 = vunpack.c.h.b16 %v4184
    %v5228 = vunpack.c.l.b16 %v4185
    %v5229 = vunpack.c.h.b16 %v4185
    %v5230 = vunpack.c.l.b16 %v4186
    %v5231 = vunpack.c.h.b16 %v4186
    %v5232 = vunpack.c.l.b16 %v4187
    %v5233 = vunpack.c.h.b16 %v4187
    %v5234 = vunpack.c.l.b16 %v4188
    %v5235 = vunpack.c.h.b16 %v4188
    %v5236 = vunpack.c.l.b16 %v4189
    %v5237 = vunpack.c.h.b16 %v4189
    %v5238 = vunpack.c.l.b16 %v4190
    %v5239 = vunpack.c.h.b16 %v4190
    %v5240 = vunpack.c.l.b16 %v4191
    %v5241 = vunpack.c.h.b16 %v4191
    %v5242 = vunpack.c.l.b16 %v4192
    %v5243 = vunpack.c.h.b16 %v4192
    %v5244 = vunpack.c.l.b16 %v4193
    %v5245 = vunpack.c.h.b16 %v4193
    %v5246 = vunpack.c.l.b16 %v4194
    %v5247 = vunpack.c.h.b16 %v4194
    %v5248 = vunpack.c.l.b16 %v4195
    %v5249 = vunpack.c.h.b16 %v4195
    %v5250 = vunpack.c.l.b16 %v4196
    %v5251 = vunpack.c.h.b16 %v4196
    %v5252 = vunpack.c.l.b16 %v4197
    %v5253 = vunpack.c.h.b16 %v4197
    %v5254 = vunpack.c.l.b16 %v4198
    %v5255 = vunpack.c.h.b16 %v4198
    %v5256 = vunpack.c.l.b16 %v4199
    %v5257 = vunpack.c.h.b16 %v4199
    %v5258 = vunpack.c.l.b16 %v4200
    %v5259 = vunpack.c.h.b16 %v4200
    %v5260 = vunpack.c.l.b16 %v4201
    %v5261 = vunpack.c.h.b16 %v4201
    %v5262 = vunpack.c.l.b16 %v4202
    %v5263 = vunpack.c.h.b16 %v4202
    %v5264 = vunpack.c.l.b16 %v4203
    %v5265 = vunpack.c.h.b16 %v4203
    %v5266 = vunpack.c.l.b16 %v4204
    %v5267 = vunpack.c.h.b16 %v4204
    %v5268 = vunpack.c.l.b16 %v4205
    %v5269 = vunpack.c.h.b16 %v4205
    %v5270 = vunpack.c.l.b16 %v4206
    %v5271 = vunpack.c.h.b16 %v4206
    %v5272 = vunpack.c.l.b16 %v4207
    %v5273 = vunpack.c.h.b16 %v4207
    %v5274 = vunpack.c.l.b16 %v4208
    %v5275 = vunpack.c.h.b16 %v4208
    %v5276 = vunpack.c.l.b16 %v4209
    %v5277 = vunpack.c.h.b16 %v4209
    %v5278 = vunpack.c.l.b16 %v4210
    %v5279 = vunpack.c.h.b16 %v4210
    %v5280 = vunpack.c.l.b16 %v4211
    %v5281 = vunpack.c.h.b16 %v4211
    %v5282 = vunpack.c.l.b16 %v4212
    %v5283 = vunpack.c.h.b16 %v4212
    %v5284 = vunpack.c.l.b16 %v4213
    %v5285 = vunpack.c.h.b16 %v4213
    %v5286 = vunpack.c.l.b16 %v4214
    %v5287 = vunpack.c.h.b16 %v4214
    %v5288 = vunpack.c.l.b16 %v4215
    %v5289 = vunpack.c.h.b16 %v4215
    %v5290 = vunpack.c.l.b16 %v4216
    %v5291 = vunpack.c.h.b16 %v4216
    %v5292 = vunpack.c.l.b16 %v4217
    %v5293 = vunpack.c.h.b16 %v4217
    %v5294 = vunpack.c.l.b16 %v4218
    %v5295 = vunpack.c.h.b16 %v4218
    %v5296 = vunpack.c.l.b16 %v4219
    %v5297 = vunpack.c.h.b16 %v4219
    %v5298 = vunpack.c.l.b16 %v4220
    %v5299 = vunpack.c.h.b16 %v4220
    %v5300 = vunpack.c.l.b16 %v4221
    %v5301 = vunpack.c.h.b16 %v4221
    %v5302 = vunpack.c.l.b16 %v4222
    %v5303 = vunpack.c.h.b16 %v4222
    %v5304 = vunpack.c.l.b16 %v4223
    %v5305 = vunpack.c.h.b16 %v4223
    %v5306 = vunpack.c.l.b16 %v4224
    %v5307 = vunpack.c.h.b16 %v4224
    %v5308 = vunpack.c.l.b16 %v4225
    %v5309 = vunpack.c.h.b16 %v4225
    %v5310 = vunpack.c.l.b16 %v4226
    %v5311 = vunpack.c.h.b16 %v4226
    %v5312 = vunpack.c.l.b16 %v4227
    %v5313 = vunpack.c.h.b16 %v4227
    %v5314 = vunpack.c.l.b16 %v4228
    %v5315 = vunpack.c.h.b16 %v4228
    %v5316 = vunpack.c.l.b16 %v4229
    %v5317 = vunpack.c.h.b16 %v4229
    %v5318 = vunpack.c.l.b16 %v4230
    %v5319 = vunpack.c.h.b16 %v4230
    %v5320 = vunpack.c.l.b16 %v4231
    %v5321 = vunpack.c.h.b16 %v4231
    %v5322 = vunpack.c.l.b16 %v4232
    %v5323 = vunpack.c.h.b16 %v4232
    %v5324 = vunpack.c.l.b16 %v4233
    %v5325 = vunpack.c.h.b16 %v4233
    %v5326 = vunpack.c.l.b16 %v4234
    %v5327 = vunpack.c.h.b16 %v4234
    %v5328 = vunpack.c.l.b16 %v4235
    %v5329 = vunpack.c.h.b16 %v4235
    %v5330 = vunpack.c.l.b16 %v4236
    %v5331 = vunpack.c.h.b16 %v4236
    %v5332 = vunpack.c.l.b16 %v4237
    %v5333 = vunpack.c.h.b16 %v4237
    %v5334 = vunpack.c.l.b16 %v4238
    %v5335 = vunpack.c.h.b16 %v4238
    %v5336 = vunpack.c.l.b16 %v4239
    %v5337 = vunpack.c.h.b16 %v4239
    %v5338 = vunpack.c.l.b16 %v4240
    %v5339 = vunpack.c.h.b16 %v4240
    %v5340 = vunpack.c.l.b16 %v4241
    %v5341 = vunpack.c.h.b16 %v4241
    %v5342 = vunpack.c.l.b16 %v4242
    %v5343 = vunpack.c.h.b16 %v4242
    %v5344 = vunpack.c.l.b16 %v4243
    %v5345 = vunpack.c.h.b16 %v4243
    %v5346 = vunpack.c.l.b16 %v4244
    %v5347 = vunpack.c.h.b16 %v4244
    %v5348 = vunpack.c.l.b16 %v4245
    %v5349 = vunpack.c.h.b16 %v4245
    %v5350 = vunpack.c.l.b16 %v4246
    %v5351 = vunpack.c.h.b16 %v4246
    %v5352 = vunpack.c.l.b16 %v4247
    %v5353 = vunpack.c.h.b16 %v4247
    %v5354 = vunpack.c.l.b16 %v4248
    %v5355 = vunpack.c.h.b16 %v4248
    %v5356 = vunpack.c.l.b16 %v4249
    %v5357 = vunpack.c.h.b16 %v4249
    %v5358 = vunpack.c.l.b16 %v4250
    %v5359 = vunpack.c.h.b16 %v4250
    %v5360 = vunpack.c.l.b16 %v4251
    %v5361 = vunpack.c.h.b16 %v4251
    %v5362 = vunpack.c.l.b16 %v4252
    %v5363 = vunpack.c.h.b16 %v4252
    %v5364 = vunpack.c.l.b16 %v4253
    %v5365 = vunpack.c.h.b16 %v4253
    %v5366 = vunpack.c.l.b16 %v4254
    %v5367 = vunpack.c.h.b16 %v4254
    %v5368 = vunpack.c.l.b16 %v4255
    %v5369 = vunpack.c.h.b16 %v4255
    %v5370 = vunpack.c.l.b16 %v4256
    %v5371 = vunpack.c.h.b16 %v4256
    %v5372 = vunpack.c.l.b16 %v4257
    %v5373 = vunpack.c.h.b16 %v4257
    %v5374 = vunpack.c.l.b16 %v4258
    %v5375 = vunpack.c.h.b16 %v4258
    %v5376 = vunpack.c.l.b16 %v4259
    %v5377 = vunpack.c.h.b16 %v4259
    %v5378 = vunpack.c.l.b16 %v4260
    %v5379 = vunpack.c.h.b16 %v4260
    %v5380 = vunpack.c.l.b16 %v4261
    %v5381 = vunpack.c.h.b16 %v4261
    %v5382 = vunpack.c.l.b16 %v4262
    %v5383 = vunpack.c.h.b16 %v4262
    %v5384 = vunpack.c.l.b16 %v4263
    %v5385 = vunpack.c.h.b16 %v4263
    %v5386 = vunpack.c.l.b16 %v4264
    %v5387 = vunpack.c.h.b16 %v4264
    %v5388 = vunpack.c.l.b16 %v4265
    %v5389 = vunpack.c.h.b16 %v4265
    %v5390 = vunpack.c.l.b16 %v4266
    %v5391 = vunpack.c.h.b16 %v4266
    %v5392 = vunpack.c.l.b16 %v4267
    %v5393 = vunpack.c.h.b16 %v4267
    %v5394 = vunpack.c.l.b16 %v4268
    %v5395 = vunpack.c.h.b16 %v4268
    %v5396 = vunpack.c.l.b16 %v4269
    %v5397 = vunpack.c.h.b16 %v4269
    %v5398 = vunpack.c.l.b16 %v4270
    %v5399 = vunpack.c.h.b16 %v4270
    %v5400 = vunpack.c.l.b16 %v4271
    %v5401 = vunpack.c.h.b16 %v4271
    %v5402 = vunpack.c.l.b16 %v4272
    %v5403 = vunpack.c.h.b16 %v4272
    %v5404 = vunpack.c.l.b16 %v4273
    %v5405 = vunpack.c.h.b16 %v4273
    %v5406 = vunpack.c.l.b16 %v4274
    %v5407 = vunpack.c.h.b16 %v4274
    %v5408 = vunpack.c.l.b16 %v4275
    %v5409 = vunpack.c.h.b16 %v4275
    %v5410 = vunpack.c.l.b16 %v4276
    %v5411 = vunpack.c.h.b16 %v4276
    %v5412 = vunpack.c.l.b16 %v4277
    %v5413 = vunpack.c.h.b16 %v4277
    %v5414 = vunpack.c.l.b16 %v4278
    %v5415 = vunpack.c.h.b16 %v4278
    %v5416 = vunpack.c.l.b16 %v4279
    %v5417 = vunpack.c.h.b16 %v4279
    %v5418 = vunpack.c.l.b16 %v4280
    %v5419 = vunpack.c.h.b16 %v4280
    %v5420 = vunpack.c.l.b16 %v4281
    %v5421 = vunpack.c.h.b16 %v4281
    %v5422 = vunpack.c.l.b16 %v4282
    %v5423 = vunpack.c.h.b16 %v4282
    %v5424 = vunpack.c.l.b16 %v4283
    %v5425 = vunpack.c.h.b16 %v4283
    %v5426 = vunpack.c.l.b16 %v4284
    %v5427 = vunpack.c.h.b16 %v4284
    %v5428 = vunpack.c.l.b16 %v4285
    %v5429 = vunpack.c.h.b16 %v4285
    %v5430 = vunpack.c.l.b16 %v4286
    %v5431 = vunpack.c.h.b16 %v4286
    %v5432 = vunpack.c.l.b16 %v4287
    %v5433 = vunpack.c.h.b16 %v4287
    %v5434 = vunpack.c.l.b16 %v4288
    %v5435 = vunpack.c.h.b16 %v4288
    %v5436 = vunpack.c.l.b16 %v4289
    %v5437 = vunpack.c.h.b16 %v4289
    %v5438 = vunpack.c.l.b16 %v4290
    %v5439 = vunpack.c.h.b16 %v4290
    %v5440 = vunpack.c.l.b16 %v4291
    %v5441 = vunpack.c.h.b16 %v4291
    %v5442 = vunpack.c.l.b16 %v4292
    %v5443 = vunpack.c.h.b16 %v4292
    %v5444 = vunpack.c.l.b16 %v4293
    %v5445 = vunpack.c.h.b16 %v4293
    %v5446 = vunpack.c.l.b16 %v4294
    %v5447 = vunpack.c.h.b16 %v4294
    %v5448 = vunpack.c.l.b16 %v4295
    %v5449 = vunpack.c.h.b16 %v4295
    %v5450 = vunpack.c.l.b16 %v4296
    %v5451 = vunpack.c.h.b16 %v4296
    %v5452 = vunpack.c.l.b16 %v4297
    %v5453 = vunpack.c.h.b16 %v4297
    %v5454 = vunpack.c.l.b16 %v4298
    %v5455 = vunpack.c.h.b16 %v4298
    %v5456 = vunpack.c.l.b16 %v4299
    %v5457 = vunpack.c.h.b16 %v4299
    %v5458 = vunpack.c.l.b16 %v4300
    %v5459 = vunpack.c.h.b16 %v4300
    %v5460 = vunpack.c.l.b16 %v4301
    %v5461 = vunpack.c.h.b16 %v4301
    %v5462 = vunpack.c.l.b16 %v4302
    %v5463 = vunpack.c.h.b16 %v4302
    %v5464 = vunpack.c.l.b16 %v4303
    %v5465 = vunpack.c.h.b16 %v4303
    %v5466 = vunpack.c.l.b16 %v4304
    %v5467 = vunpack.c.h.b16 %v4304
    %v5468 = vunpack.c.l.b16 %v4305
    %v5469 = vunpack.c.h.b16 %v4305
    %v5470 = vunpack.c.l.b16 %v4306
    %v5471 = vunpack.c.h.b16 %v4306
    %v5472 = vunpack.c.l.b16 %v4307
    %v5473 = vunpack.c.h.b16 %v4307
    %v5474 = vunpack.c.l.b16 %v4308
    %v5475 = vunpack.c.h.b16 %v4308
    %v5476 = vunpack.c.l.b16 %v4309
    %v5477 = vunpack.c.h.b16 %v4309
    %v5478 = vunpack.c.l.b16 %v4310
    %v5479 = vunpack.c.h.b16 %v4310
    %v5480 = vunpack.c.l.b16 %v4311
    %v5481 = vunpack.c.h.b16 %v4311
    %v5482 = vunpack.c.l.b16 %v4312
    %v5483 = vunpack.c.h.b16 %v4312
    %v5484 = vunpack.c.l.b16 %v4313
    %v5485 = vunpack.c.h.b16 %v4313
    %v5486 = vunpack.c.l.b16 %v4314
    %v5487 = vunpack.c.h.b16 %v4314
    %v5488 = vunpack.c.l.b16 %v4315
    %v5489 = vunpack.c.h.b16 %v4315
    %v5490 = vunpack.c.l.b16 %v4316
    %v5491 = vunpack.c.h.b16 %v4316
    %v5492 = vunpack.c.l.b16 %v4317
    %v5493 = vunpack.c.h.b16 %v4317
    %v5494 = vunpack.c.l.b16 %v4318
    %v5495 = vunpack.c.h.b16 %v4318
    %v5496 = vunpack.c.l.b16 %v4319
    %v5497 = vunpack.c.h.b16 %v4319
    %v5498 = vunpack.c.l.b16 %v4320
    %v5499 = vunpack.c.h.b16 %v4320
    %v5500 = vunpack.c.l.b16 %v4321
    %v5501 = vunpack.c.h.b16 %v4321
    %v5502 = vunpack.c.l.b16 %v4322
    %v5503 = vunpack.c.h.b16 %v4322
    %v5504 = vunpack.c.l.b16 %v4323
    %v5505 = vunpack.c.h.b16 %v4323
    %v5506 = vunpack.c.l.b16 %v4324
    %v5507 = vunpack.c.h.b16 %v4324
    %v5508 = vunpack.c.l.b16 %v4325
    %v5509 = vunpack.c.h.b16 %v4325
    %v5510 = vunpack.c.l.b16 %v4326
    %v5511 = vunpack.c.h.b16 %v4326
    %v5512 = vunpack.c.l.b16 %v4327
    %v5513 = vunpack.c.h.b16 %v4327
    %v5514 = vunpack.c.l.b16 %v4328
    %v5515 = vunpack.c.h.b16 %v4328
    %v5516 = vunpack.c.l.b16 %v4329
    %v5517 = vunpack.c.h.b16 %v4329
    %v5518 = vunpack.c.l.b16 %v4330
    %v5519 = vunpack.c.h.b16 %v4330
    %v5520 = vunpack.c.l.b16 %v4331
    %v5521 = vunpack.c.h.b16 %v4331
    %v5522 = vunpack.c.l.b16 %v4332
    %v5523 = vunpack.c.h.b16 %v4332
    %v5524 = vunpack.c.l.b16 %v4333
    %v5525 = vunpack.c.h.b16 %v4333
    %v5526 = vunpack.c.l.b16 %v4334
    %v5527 = vunpack.c.h.b16 %v4334
    %v5528 = vunpack.c.l.b16 %v4335
    %v5529 = vunpack.c.h.b16 %v4335
    %v5530 = vunpack.c.l.b16 %v4336
    %v5531 = vunpack.c.h.b16 %v4336
    %v5532 = vunpack.c.l.b16 %v4337
    %v5533 = vunpack.c.h.b16 %v4337
    %v5534 = vunpack.c.l.b16 %v4338
    %v5535 = vunpack.c.h.b16 %v4338
    %v5536 = vunpack.c.l.b16 %v4339
    %v5537 = vunpack.c.h.b16 %v4339
    %v5538 = vunpack.c.l.b16 %v4340
    %v5539 = vunpack.c.h.b16 %v4340
    %v5540 = vunpack.c.l.b16 %v4341
    %v5541 = vunpack.c.h.b16 %v4341
    %v5542 = vunpack.c.l.b16 %v4342
    %v5543 = vunpack.c.h.b16 %v4342
    %v5544 = vunpack.c.l.b16 %v4343
    %v5545 = vunpack.c.h.b16 %v4343
    %v5546 = vunpack.c.l.b16 %v4344
    %v5547 = vunpack.c.h.b16 %v4344
    %v5548 = vunpack.c.l.b16 %v4345
    %v5549 = vunpack.c.h.b16 %v4345
    %v5550 = vunpack.c.l.b16 %v4346
    %v5551 = vunpack.c.h.b16 %v4346
    %v5552 = vunpack.c.l.b16 %v4347
    %v5553 = vunpack.c.h.b16 %v4347
    %v5554 = vunpack.c.l.b16 %v4348
    %v5555 = vunpack.c.h.b16 %v4348
    %v5556 = vunpack.c.l.b16 %v4349
    %v5557 = vunpack.c.h.b16 %v4349
    %v5558 = vunpack.c.l.b16 %v4350
    %v5559 = vunpack.c.h.b16 %v4350
    %v5560 = vunpack.c.l.b16 %v4351
    %v5561 = vunpack.c.h.b16 %v4351
    %v5562 = vunpack.c.l.b16 %v4352
    %v5563 = vunpack.c.h.b16 %v4352
    %v5564 = vunpack.c.l.b16 %v4353
    %v5565 = vunpack.c.h.b16 %v4353
    %v5566 = vunpack.c.l.b16 %v4354
    %v5567 = vunpack.c.h.b16 %v4354
    %v5568 = vunpack.c.l.b16 %v4355
    %v5569 = vunpack.c.h.b16 %v4355
    %v5570 = vunpack.c.l.b16 %v4356
    %v5571 = vunpack.c.h.b16 %v4356
    %v5572 = vunpack.c.l.b16 %v4357
    %v5573 = vunpack.c.h.b16 %v4357
    %v5574 = vunpack.c.l.b16 %v4358
    %v5575 = vunpack.c.h.b16 %v4358
    %v5576 = vunpack.c.l.b16 %v4359
    %v5577 = vunpack.c.h.b16 %v4359
    %v5578 = vunpack.c.l.b16 %v4360
    %v5579 = vunpack.c.h.b16 %v4360
    %v5580 = vunpack.c.l.b16 %v4361
    %v5581 = vunpack.c.h.b16 %v4361
    %v5582 = vunpack.c.l.b16 %v4362
    %v5583 = vunpack.c.h.b16 %v4362
    %v5584 = vunpack.c.l.b16 %v4363
    %v5585 = vunpack.c.h.b16 %v4363
    %v5586 = vunpack.c.l.b16 %v4364
    %v5587 = vunpack.c.h.b16 %v4364
    %v5588 = vunpack.c.l.b16 %v4365
    %v5589 = vunpack.c.h.b16 %v4365
    %v5590 = vunpack.c.l.b16 %v4366
    %v5591 = vunpack.c.h.b16 %v4366
    %v5592 = vunpack.c.l.b16 %v4367
    %v5593 = vunpack.c.h.b16 %v4367
    %v5594 = vunpack.c.l.b16 %v4368
    %v5595 = vunpack.c.h.b16 %v4368
    %v5596 = vunpack.c.l.b16 %v4369
    %v5597 = vunpack.c.h.b16 %v4369
    %v5598 = vunpack.c.l.b16 %v4370
    %v5599 = vunpack.c.h.b16 %v4370
    %v5600 = vunpack.c.l.b16 %v4371
    %v5601 = vunpack.c.h.b16 %v4371
    %v5602 = vunpack.c.l.b16 %v4372
    %v5603 = vunpack.c.h.b16 %v4372
    %v5604 = vunpack.c.l.b16 %v4373
    %v5605 = vunpack.c.h.b16 %v4373
    %v5606 = vunpack.c.l.b16 %v4374
    %v5607 = vunpack.c.h.b16 %v4374
    %v5608 = vunpack.c.l.b16 %v4375
    %v5609 = vunpack.c.h.b16 %v4375
    %v5610 = vunpack.c.l.b16 %v4376
    %v5611 = vunpack.c.h.b16 %v4376
    %v5612 = vunpack.c.l.b16 %v4377
    %v5613 = vunpack.c.h.b16 %v4377
    %v5614 = vunpack.c.l.b16 %v4378
    %v5615 = vunpack.c.h.b16 %v4378
    %v5616 = vunpack.c.l.b16 %v4379
    %v5617 = vunpack.c.h.b16 %v4379
    %v5618 = vunpack.c.l.b16 %v4380
    %v5619 = vunpack.c.h.b16 %v4380
    %v5620 = vunpack.c.l.b16 %v4381
    %v5621 = vunpack.c.h.b16 %v4381
    %v5622 = vunpack.c.l.b16 %v4382
    %v5623 = vunpack.c.h.b16 %v4382
    %v5624 = vunpack.c.l.b16 %v4383
    %v5625 = vunpack.c.h.b16 %v4383
    %v5626 = vunpack.c.l.b16 %v4384
    %v5627 = vunpack.c.h.b16 %v4384
    %v5628 = vunpack.c.l.b16 %v4385
    %v5629 = vunpack.c.h.b16 %v4385
    %v5630 = vunpack.c.l.b16 %v4386
    %v5631 = vunpack.c.h.b16 %v4386
    %v5632 = vunpack.c.l.b16 %v4387
    %v5633 = vunpack.c.h.b16 %v4387
    %v5634 = vunpack.c.l.b16 %v4388
    %v5635 = vunpack.c.h.b16 %v4388
    %v5636 = vunpack.c.l.b16 %v4389
    %v5637 = vunpack.c.h.b16 %v4389
    %v5638 = vunpack.c.l.b16 %v4390
    %v5639 = vunpack.c.h.b16 %v4390
    %v5640 = vunpack.c.l.b16 %v4391
    %v5641 = vunpack.c.h.b16 %v4391
    %v5642 = vunpack.c.l.b16 %v4392
    %v5643 = vunpack.c.h.b16 %v4392
    %v5644 = vunpack.c.l.b16 %v4393
    %v5645 = vunpack.c.h.b16 %v4393
    %v5646 = vunpack.c.l.b16 %v4394
    %v5647 = vunpack.c.h.b16 %v4394
    %v5648 = vunpack.c.l.b16 %v4395
    %v5649 = vunpack.c.h.b16 %v4395
    %v5650 = vunpack.c.l.b16 %v4396
    %v5651 = vunpack.c.h.b16 %v4396
    %v5652 = vunpack.c.l.b16 %v4397
    %v5653 = vunpack.c.h.b16 %v4397
    %v5654 = vunpack.c.l.b16 %v4398
    %v5655 = vunpack.c.h.b16 %v4398
    %v5656 = vunpack.c.l.b16 %v4399
    %v5657 = vunpack.c.h.b16 %v4399
    %v5658 = vunpack.c.l.b16 %v4400
    %v5659 = vunpack.c.h.b16 %v4400
    %v5660 = vunpack.c.l.b16 %v4401
    %v5661 = vunpack.c.h.b16 %v4401
    %v5662 = vunpack.c.l.b16 %v4402
    %v5663 = vunpack.c.h.b16 %v4402
    %v5664 = vunpack.c.l.b16 %v4403
    %v5665 = vunpack.c.h.b16 %v4403
    %v5666 = vunpack.c.l.b16 %v4404
    %v5667 = vunpack.c.h.b16 %v4404
    %v5668 = vunpack.c.l.b16 %v4405
    %v5669 = vunpack.c.h.b16 %v4405
    %v5670 = vunpack.c.l.b16 %v4406
    %v5671 = vunpack.c.h.b16 %v4406
    %v5672 = vunpack.c.l.b16 %v4407
    %v5673 = vunpack.c.h.b16 %v4407
    %v5674 = vunpack.c.l.b16 %v4408
    %v5675 = vunpack.c.h.b16 %v4408
    %v5676 = vunpack.c.l.b16 %v4409
    %v5677 = vunpack.c.h.b16 %v4409
    %v5678 = vunpack.c.l.b16 %v4410
    %v5679 = vunpack.c.h.b16 %v4410
    %v5680 = vunpack.c.l.b16 %v4411
    %v5681 = vunpack.c.h.b16 %v4411
    %v5682 = vunpack.c.l.b16 %v4412
    %v5683 = vunpack.c.h.b16 %v4412
    %v5684 = vunpack.c.l.b16 %v4413
    %v5685 = vunpack.c.h.b16 %v4413
    %v5686 = vunpack.c.l.b16 %v4414
    %v5687 = vunpack.c.h.b16 %v4414
    %v5688 = vunpack.c.l.b16 %v4415
    %v5689 = vunpack.c.h.b16 %v4415
    %v5690 = vunpack.c.l.b16 %v4416
    %v5691 = vunpack.c.h.b16 %v4416
    %v5692 = vunpack.c.l.b16 %v4417
    %v5693 = vunpack.c.h.b16 %v4417
    %v5694 = vunpack.c.l.b16 %v4418
    %v5695 = vunpack.c.h.b16 %v4418
    %v5696 = vunpack.c.l.b16 %v4419
    %v5697 = vunpack.c.h.b16 %v4419
    %v5698 = vunpack.c.l.b16 %v4420
    %v5699 = vunpack.c.h.b16 %v4420
    %v5700 = vunpack.c.l.b16 %v4421
    %v5701 = vunpack.c.h.b16 %v4421
    %v5702 = vunpack.c.l.b16 %v4422
    %v5703 = vunpack.c.h.b16 %v4422
    %v5704 = vunpack.c.l.b16 %v4423
    %v5705 = vunpack.c.h.b16 %v4423
    %v5706 = vunpack.c.l.b16 %v4424
    %v5707 = vunpack.c.h.b16 %v4424
    %v5708 = vunpack.c.l.b16 %v4425
    %v5709 = vunpack.c.h.b16 %v4425
    %v5710 = vunpack.c.l.b16 %v4426
    %v5711 = vunpack.c.h.b16 %v4426
    %v5712 = vunpack.c.l.b16 %v4427
    %v5713 = vunpack.c.h.b16 %v4427
    %v5714 = vunpack.c.l.b16 %v4428
    %v5715 = vunpack.c.h.b16 %v4428
    %v5716 = vunpack.c.l.b16 %v4429
    %v5717 = vunpack.c.h.b16 %v4429
    %v5718 = vunpack.c.l.b16 %v4430
    %v5719 = vunpack.c.h.b16 %v4430
    %v5720 = vunpack.c.l.b16 %v4431
    %v5721 = vunpack.c.h.b16 %v4431
    %v5722 = vunpack.c.l.b16 %v4432
    %v5723 = vunpack.c.h.b16 %v4432
    %v5724 = vunpack.c.l.b16 %v4433
    %v5725 = vunpack.c.h.b16 %v4433
    %v5726 = vunpack.c.l.b16 %v4434
    %v5727 = vunpack.c.h.b16 %v4434
    %v5728 = vunpack.c.l.b16 %v4435
    %v5729 = vunpack.c.h.b16 %v4435
    %v5730 = vunpack.c.l.b16 %v4436
    %v5731 = vunpack.c.h.b16 %v4436
    %v5732 = vunpack.c.l.b16 %v4437
    %v5733 = vunpack.c.h.b16 %v4437
    %v5734 = vunpack.c.l.b16 %v4438
    %v5735 = vunpack.c.h.b16 %v4438
    %v5736 = vunpack.c.l.b16 %v4439
    %v5737 = vunpack.c.h.b16 %v4439
    %v5738 = vunpack.c.l.b16 %v4440
    %v5739 = vunpack.c.h.b16 %v4440
    %v5740 = vunpack.c.l.b16 %v4441
    %v5741 = vunpack.c.h.b16 %v4441
    %v5742 = vunpack.c.l.b16 %v4442
    %v5743 = vunpack.c.h.b16 %v4442
    %v5744 = vunpack.c.l.b16 %v4443
    %v5745 = vunpack.c.h.b16 %v4443
    %v5746 = vunpack.c.l.b16 %v4444
    %v5747 = vunpack.c.h.b16 %v4444
    %v5748 = vunpack.c.l.b16 %v4445
    %v5749 = vunpack.c.h.b16 %v4445
    %v5750 = vunpack.c.l.b16 %v4446
    %v5751 = vunpack.c.h.b16 %v4446
    %v5752 = vunpack.c.l.b16 %v4447
    %v5753 = vunpack.c.h.b16 %v4447
    %v5754 = vunpack.c.l.b16 %v4448
    %v5755 = vunpack.c.h.b16 %v4448
    %v5756 = vunpack.c.l.b16 %v4449
    %v5757 = vunpack.c.h.b16 %v4449
    %v5758 = vunpack.c.l.b16 %v4450
    %v5759 = vunpack.c.h.b16 %v4450
    %v5760 = vunpack.c.l.b16 %v4451
    %v5761 = vunpack.c.h.b16 %v4451
    %v5762 = vunpack.c.l.b16 %v4452
    %v5763 = vunpack.c.h.b16 %v4452
    %v5764 = vunpack.c.l.b16 %v4453
    %v5765 = vunpack.c.h.b16 %v4453
    %v5766 = vunpack.c.l.b16 %v4454
    %v5767 = vunpack.c.h.b16 %v4454
    %v5768 = vunpack.c.l.b16 %v4455
    %v5769 = vunpack.c.h.b16 %v4455
    %v5770 = vunpack.c.l.b16 %v4456
    %v5771 = vunpack.c.h.b16 %v4456
    %v5772 = vunpack.c.l.b16 %v4457
    %v5773 = vunpack.c.h.b16 %v4457
    %v5774 = vunpack.c.l.b16 %v4458
    %v5775 = vunpack.c.h.b16 %v4458
    %v5776 = vunpack.c.l.b16 %v4459
    %v5777 = vunpack.c.h.b16 %v4459
    %v5778 = vunpack.c.l.b16 %v4460
    %v5779 = vunpack.c.h.b16 %v4460
    %v5780 = vunpack.c.l.b16 %v4461
    %v5781 = vunpack.c.h.b16 %v4461
    %v5782 = vunpack.c.l.b16 %v4462
    %v5783 = vunpack.c.h.b16 %v4462
    %v5784 = vunpack.c.l.b16 %v4463
    %v5785 = vunpack.c.h.b16 %v4463
    %v5786 = vunpack.c.l.b16 %v4464
    %v5787 = vunpack.c.h.b16 %v4464
    %v5788 = vunpack.c.l.b16 %v4465
    %v5789 = vunpack.c.h.b16 %v4465
    %v5790 = vunpack.c.l.b16 %v4466
    %v5791 = vunpack.c.h.b16 %v4466
    %v5792 = vunpack.c.l.b16 %v4467
    %v5793 = vunpack.c.h.b16 %v4467
    %v5794 = vunpack.c.l.b16 %v4468
    %v5795 = vunpack.c.h.b16 %v4468
    %v5796 = vunpack.c.l.b16 %v4469
    %v5797 = vunpack.c.h.b16 %v4469
    %v5798 = vunpack.c.l.b16 %v4470
    %v5799 = vunpack.c.h.b16 %v4470
    %v5800 = vunpack.c.l.b16 %v4471
    %v5801 = vunpack.c.h.b16 %v4471
    %v5802 = vunpack.c.l.b16 %v4472
    %v5803 = vunpack.c.h.b16 %v4472
    %v5804 = vunpack.c.l.b16 %v4473
    %v5805 = vunpack.c.h.b16 %v4473
    %v5806 = vunpack.c.l.b16 %v4474
    %v5807 = vunpack.c.h.b16 %v4474
    %v5808 = vunpack.c.l.b16 %v4475
    %v5809 = vunpack.c.h.b16 %v4475
    %v5810 = vunpack.c.l.b16 %v4476
    %v5811 = vunpack.c.h.b16 %v4476
    %v5812 = vunpack.c.l.b16 %v4477
    %v5813 = vunpack.c.h.b16 %v4477
    %v5814 = vunpack.c.l.b16 %v4478
    %v5815 = vunpack.c.h.b16 %v4478
    %v5816 = vunpack.c.l.b16 %v4479
    %v5817 = vunpack.c.h.b16 %v4479
    %v5818 = vunpack.c.l.b16 %v4480
    %v5819 = vunpack.c.h.b16 %v4480
    %v5820 = vunpack.c.l.b16 %v4481
    %v5821 = vunpack.c.h.b16 %v4481
    %v5822 = vunpack.c.l.b16 %v4482
    %v5823 = vunpack.c.h.b16 %v4482
    %v5824 = vunpack.c.l.b16 %v4483
    %v5825 = vunpack.c.h.b16 %v4483
    %v5826 = vunpack.c.l.b16 %v4484
    %v5827 = vunpack.c.h.b16 %v4484
    %v5828 = vunpack.c.l.b16 %v4485
    %v5829 = vunpack.c.h.b16 %v4485
    %v5830 = vunpack.c.l.b16 %v4486
    %v5831 = vunpack.c.h.b16 %v4486
    %v5832 = vunpack.c.l.b16 %v4487
    %v5833 = vunpack.c.h.b16 %v4487
    %v5834 = vunpack.c.l.b16 %v4488
    %v5835 = vunpack.c.h.b16 %v4488
    %v5836 = vunpack.c.l.b16 %v4489
    %v5837 = vunpack.c.h.b16 %v4489
    %v5838 = vunpack.c.l.b16 %v4490
    %v5839 = vunpack.c.h.b16 %v4490
    %v5840 = vunpack.c.l.b16 %v4491
    %v5841 = vunpack.c.h.b16 %v4491
    %v5842 = vunpack.c.l.b16 %v4492
    %v5843 = vunpack.c.h.b16 %v4492
    %v5844 = vunpack.c.l.b16 %v4493
    %v5845 = vunpack.c.h.b16 %v4493
    %v5846 = vunpack.c.l.b16 %v4494
    %v5847 = vunpack.c.h.b16 %v4494
    %v5848 = vunpack.c.l.b16 %v4495
    %v5849 = vunpack.c.h.b16 %v4495
    %v5850 = vunpack.c.l.b16 %v4496
    %v5851 = vunpack.c.h.b16 %v4496
    %v5852 = vunpack.c.l.b16 %v4497
    %v5853 = vunpack.c.h.b16 %v4497
    %v5854 = vunpack.c.l.b16 %v4498
    %v5855 = vunpack.c.h.b16 %v4498
    %v5856 = vunpack.c.l.b16 %v4499
    %v5857 = vunpack.c.h.b16 %v4499
    %v5858 = vunpack.c.l.b16 %v4500
    %v5859 = vunpack.c.h.b16 %v4500
    %v5860 = vunpack.c.l.b16 %v4501
    %v5861 = vunpack.c.h.b16 %v4501
    %v5862 = vunpack.c.l.b16 %v4502
    %v5863 = vunpack.c.h.b16 %v4502
    %v5864 = vunpack.c.l.b16 %v4503
    %v5865 = vunpack.c.h.b16 %v4503
    %v5866 = vunpack.c.l.b16 %v4504
    %v5867 = vunpack.c.h.b16 %v4504
    %v5868 = vunpack.c.l.b16 %v4505
    %v5869 = vunpack.c.h.b16 %v4505
    %v5870 = vunpack.c.l.b16 %v4506
    %v5871 = vunpack.c.h.b16 %v4506
    %v5872 = vunpack.c.l.b16 %v4507
    %v5873 = vunpack.c.h.b16 %v4507
    %v5874 = vunpack.c.l.b16 %v4508
    %v5875 = vunpack.c.h.b16 %v4508
    %v5876 = vunpack.c.l.b16 %v4509
    %v5877 = vunpack.c.h.b16 %v4509
    %v5878 = vunpack.c.l.b16 %v4510
    %v5879 = vunpack.c.h.b16 %v4510
    %v5880 = vunpack.c.l.b16 %v4511
    %v5881 = vunpack.c.h.b16 %v4511
    %v5882 = vunpack.c.l.b16 %v4512
    %v5883 = vunpack.c.h.b16 %v4512
    %v5884 = vunpack.c.l.b16 %v4513
    %v5885 = vunpack.c.h.b16 %v4513
    %v5886 = vunpack.c.l.b16 %v4514
    %v5887 = vunpack.c.h.b16 %v4514
    %v5888 = vunpack.c.l.b16 %v4515
    %v5889 = vunpack.c.h.b16 %v4515
    %v5890 = vunpack.c.l.b16 %v4516
    %v5891 = vunpack.c.h.b16 %v4516
    %v5892 = vunpack.c.l.b16 %v4517
    %v5893 = vunpack.c.h.b16 %v4517
    %v5894 = vunpack.c.l.b16 %v4518
    %v5895 = vunpack.c.h.b16 %v4518
    %v5896 = vunpack.c.l.b16 %v4519
    %v5897 = vunpack.c.h.b16 %v4519
    %v5898 = vunpack.c.l.b16 %v4520
    %v5899 = vunpack.c.h.b16 %v4520
    %v5900 = vunpack.c.l.b16 %v4521
    %v5901 = vunpack.c.h.b16 %v4521
    %v5902 = vunpack.c.l.b16 %v4522
    %v5903 = vunpack.c.h.b16 %v4522
    %v5904 = vunpack.c.l.b16 %v4523
    %v5905 = vunpack.c.h.b16 %v4523
    %v5906 = vunpack.c.l.b16 %v4524
    %v5907 = vunpack.c.h.b16 %v4524
    %v5908 = vunpack.c.l.b16 %v4525
    %v5909 = vunpack.c.h.b16 %v4525
    %v5910 = vunpack.c.l.b16 %v4526
    %v5911 = vunpack.c.h.b16 %v4526
    %v5912 = vunpack.c.l.b16 %v4527
    %v5913 = vunpack.c.h.b16 %v4527
    %v5914 = vunpack.c.l.b16 %v4528
    %v5915 = vunpack.c.h.b16 %v4528
    %v5916 = vunpack.c.l.b16 %v4529
    %v5917 = vunpack.c.h.b16 %v4529
    %v5918 = vunpack.c.l.b16 %v4530
    %v5919 = vunpack.c.h.b16 %v4530
    %v5920 = vunpack.c.l.b16 %v4531
    %v5921 = vunpack.c.h.b16 %v4531
    %v5922 = vunpack.c.l.b16 %v4532
    %v5923 = vunpack.c.h.b16 %v4532
    %v5924 = vunpack.c.l.b16 %v4533
    %v5925 = vunpack.c.h.b16 %v4533
    %v5926 = vunpack.c.l.b16 %v4534
    %v5927 = vunpack.c.h.b16 %v4534
    %v5928 = vunpack.c.l.b16 %v4535
    %v5929 = vunpack.c.h.b16 %v4535
    %v5930 = vunpack.c.l.b16 %v4536
    %v5931 = vunpack.c.h.b16 %v4536
    %v5932 = vunpack.c.l.b16 %v4537
    %v5933 = vunpack.c.h.b16 %v4537
    %v5934 = vunpack.c.l.b16 %v4538
    %v5935 = vunpack.c.h.b16 %v4538
    %v5936 = vunpack.c.l.b16 %v4539
    %v5937 = vunpack.c.h.b16 %v4539
    %v5938 = vunpack.c.l.b16 %v4540
    %v5939 = vunpack.c.h.b16 %v4540
    %v5940 = vunpack.c.l.b16 %v4541
    %v5941 = vunpack.c.h.b16 %v4541
    %v5942 = vunpack.c.l.b16 %v4542
    %v5943 = vunpack.c.h.b16 %v4542
    %v5944 = vunpack.c.l.b16 %v4543
    %v5945 = vunpack.c.h.b16 %v4543
    %v5946 = vunpack.c.l.b16 %v4544
    %v5947 = vunpack.c.h.b16 %v4544
    %v5948 = vunpack.c.l.b16 %v4545
    %v5949 = vunpack.c.h.b16 %v4545
    %v5950 = vunpack.c.l.b16 %v4546
    %v5951 = vunpack.c.h.b16 %v4546
    %v5952 = vunpack.c.l.b16 %v4547
    %v5953 = vunpack.c.h.b16 %v4547
    %v5954 = vunpack.c.l.b16 %v4548
    %v5955 = vunpack.c.h.b16 %v4548
    %v5956 = vunpack.c.l.b16 %v4549
    %v5957 = vunpack.c.h.b16 %v4549
    %v5958 = vunpack.c.l.b16 %v4550
    %v5959 = vunpack.c.h.b16 %v4550
    %v5960 = vunpack.c.l.b16 %v4551
    %v5961 = vunpack.c.h.b16 %v4551
    %v5962 = vunpack.c.l.b16 %v4552
    %v5963 = vunpack.c.h.b16 %v4552
    %v5964 = vunpack.c.l.b16 %v4553
    %v5965 = vunpack.c.h.b16 %v4553
    %v5966 = vunpack.c.l.b16 %v4554
    %v5967 = vunpack.c.h.b16 %v4554
    %v5968 = vunpack.c.l.b16 %v4555
    %v5969 = vunpack.c.h.b16 %v4555
    %v5970 = vunpack.c.l.b16 %v4556
    %v5971 = vunpack.c.h.b16 %v4556
    %v5972 = vunpack.c.l.b16 %v4557
    %v5973 = vunpack.c.h.b16 %v4557
    %v5974 = vunpack.c.l.b16 %v4558
    %v5975 = vunpack.c.h.b16 %v4558
    %v5976 = vunpack.c.l.b16 %v4559
    %v5977 = vunpack.c.h.b16 %v4559
    %v5978 = vunpack.c.l.b16 %v4560
    %v5979 = vunpack.c.h.b16 %v4560
    %v5980 = vunpack.c.l.b16 %v4561
    %v5981 = vunpack.c.h.b16 %v4561
    %v5982 = vunpack.c.l.b16 %v4562
    %v5983 = vunpack.c.h.b16 %v4562
    %v5984 = vunpack.c.l.b16 %v4563
    %v5985 = vunpack.c.h.b16 %v4563
    %v5986 = vunpack.c.l.b16 %v4564
    %v5987 = vunpack.c.h.b16 %v4564
    %v5988 = vunpack.c.l.b16 %v4565
    %v5989 = vunpack.c.h.b16 %v4565
    %v5990 = vunpack.c.l.b16 %v4566
    %v5991 = vunpack.c.h.b16 %v4566
    %v5992 = vunpack.c.l.b16 %v4567
    %v5993 = vunpack.c.h.b16 %v4567
    %v5994 = vunpack.c.l.b16 %v4568
    %v5995 = vunpack.c.h.b16 %v4568
    %v5996 = vunpack.c.l.b16 %v4569
    %v5997 = vunpack.c.h.b16 %v4569
    %v5998 = vunpack.c.l.b16 %v4570
    %v5999 = vunpack.c.h.b16 %v4570
    %v6000 = vunpack.c.l.b16 %v4571
    %v6001 = vunpack.c.h.b16 %v4571
    %v6002 = vunpack.c.l.b16 %v4572
    %v6003 = vunpack.c.h.b16 %v4572
    %v6004 = vunpack.c.l.b16 %v4573
    %v6005 = vunpack.c.h.b16 %v4573
    %v6006 = vunpack.c.l.b16 %v4574
    %v6007 = vunpack.c.h.b16 %v4574
    %v6008 = vunpack.c.l.b16 %v4575
    %v6009 = vunpack.c.h.b16 %v4575
    %v6010 = vunpack.c.l.b16 %v4576
    %v6011 = vunpack.c.h.b16 %v4576
    %v6012 = vunpack.c.l.b16 %v4577
    %v6013 = vunpack.c.h.b16 %v4577
    %v6014 = vunpack.c.l.b16 %v4578
    %v6015 = vunpack.c.h.b16 %v4578
    %v6016 = vunpack.c.l.b16 %v4579
    %v6017 = vunpack.c.h.b16 %v4579
    %v6018 = vunpack.c.l.b16 %v4580
    %v6019 = vunpack.c.h.b16 %v4580
    %v6020 = vunpack.c.l.b16 %v4581
    %v6021 = vunpack.c.h.b16 %v4581
    %v6022 = vunpack.c.l.b16 %v4582
    %v6023 = vunpack.c.h.b16 %v4582
    %v6024 = vunpack.c.l.b16 %v4583
    %v6025 = vunpack.c.h.b16 %v4583
    %v6026 = vunpack.c.l.b16 %v4584
    %v6027 = vunpack.c.h.b16 %v4584
    %v6028 = vunpack.c.l.b16 %v4585
    %v6029 = vunpack.c.h.b16 %v4585
    %v6030 = vunpack.c.l.b16 %v4586
    %v6031 = vunpack.c.h.b16 %v4586
    %v6032 = vunpack.c.l.b16 %v4587
    %v6033 = vunpack.c.h.b16 %v4587
    %v6034 = vunpack.c.l.b16 %v4588
    %v6035 = vunpack.c.h.b16 %v4588
    %v6036 = vunpack.c.l.b16 %v4589
    %v6037 = vunpack.c.h.b16 %v4589
    %v6038 = vunpack.c.l.b16 %v4590
    %v6039 = vunpack.c.h.b16 %v4590
    %v6040 = vunpack.c.l.b16 %v4591
    %v6041 = vunpack.c.h.b16 %v4591
    %v6042 = vunpack.c.l.b16 %v4592
    %v6043 = vunpack.c.h.b16 %v4592
    %v6044 = vunpack.c.l.b16 %v4593
    %v6045 = vunpack.c.h.b16 %v4593
    %v6046 = vunpack.c.l.b16 %v4594
    %v6047 = vunpack.c.h.b16 %v4594
    %v6048 = vunpack.c.l.b16 %v4595
    %v6049 = vunpack.c.h.b16 %v4595
    %v6050 = vunpack.c.l.b16 %v4596
    %v6051 = vunpack.c.h.b16 %v4596
    %v6052 = vunpack.c.l.b16 %v4597
    %v6053 = vunpack.c.h.b16 %v4597
    %v6054 = vunpack.c.l.b16 %v4598
    %v6055 = vunpack.c.h.b16 %v4598
    %v6056 = vunpack.c.l.b16 %v4599
    %v6057 = vunpack.c.h.b16 %v4599
    %v6058 = vunpack.c.l.b16 %v4600
    %v6059 = vunpack.c.h.b16 %v4600
    %v6060 = vunpack.c.l.b16 %v4601
    %v6061 = vunpack.c.h.b16 %v4601
    %v6062 = vunpack.c.l.b16 %v4602
    %v6063 = vunpack.c.h.b16 %v4602
    %v6064 = vunpack.c.l.b16 %v4603
    %v6065 = vunpack.c.h.b16 %v4603
    %v6066 = vunpack.c.l.b16 %v4604
    %v6067 = vunpack.c.h.b16 %v4604
    %v6068 = vunpack.c.l.b16 %v4605
    %v6069 = vunpack.c.h.b16 %v4605
    %v6070 = vunpack.c.l.b16 %v4606
    %v6071 = vunpack.c.h.b16 %v4606
    %v6072 = vunpack.c.l.b16 %v4607
    %v6073 = vunpack.c.h.b16 %v4607
    %v6074 = vunpack.c.l.b16 %v4608
    %v6075 = vunpack.c.h.b16 %v4608
    %v6076 = vunpack.c.l.b16 %v4609
    %v6077 = vunpack.c.h.b16 %v4609
    %v6078 = vunpack.c.l.b16 %v4610
    %v6079 = vunpack.c.h.b16 %v4610
    %v6080 = vunpack.c.l.b16 %v4611
    %v6081 = vunpack.c.h.b16 %v4611
    %v6082 = vunpack.c.l.b16 %v4612
    %v6083 = vunpack.c.h.b16 %v4612
    %v6084 = vunpack.c.l.b16 %v4613
    %v6085 = vunpack.c.h.b16 %v4613
    %v6086 = vunpack.c.l.b16 %v4614
    %v6087 = vunpack.c.h.b16 %v4614
    %v6088 = vunpack.c.l.b16 %v4615
    %v6089 = vunpack.c.h.b16 %v4615
    %v6090 = vunpack.c.l.b16 %v4616
    %v6091 = vunpack.c.h.b16 %v4616
    %v6092 = vunpack.c.l.b16 %v4617
    %v6093 = vunpack.c.h.b16 %v4617
    %v6094 = vunpack.c.l.b16 %v4618
    %v6095 = vunpack.c.h.b16 %v4618
    %v6096 = vunpack.c.l.b16 %v4619
    %v6097 = vunpack.c.h.b16 %v4619
    %v6098 = vunpack.c.l.b16 %v4620
    %v6099 = vunpack.c.h.b16 %v4620
    %v6100 = vunpack.c.l.b16 %v4621
    %v6101 = vunpack.c.h.b16 %v4621
    %v6102 = vunpack.c.l.b16 %v4622
    %v6103 = vunpack.c.h.b16 %v4622
    %v6104 = vunpack.c.l.b16 %v4623
    %v6105 = vunpack.c.h.b16 %v4623
    %v6106 = vunpack.c.l.b16 %v4624
    %v6107 = vunpack.c.h.b16 %v4624
    %v6108 = vunpack.c.l.b16 %v4625
    %v6109 = vunpack.c.h.b16 %v4625
    %v6110 = vunpack.c.l.b16 %v4626
    %v6111 = vunpack.c.h.b16 %v4626
    %v6112 = vunpack.c.l.b16 %v4627
    %v6113 = vunpack.c.h.b16 %v4627
    %v6114 = vunpack.c.l.b16 %v4628
    %v6115 = vunpack.c.h.b16 %v4628
    %v6116 = vunpack.c.l.b16 %v4629
    %v6117 = vunpack.c.h.b16 %v4629
    %v6118 = vunpack.c.l.b16 %v4630
    %v6119 = vunpack.c.h.b16 %v4630
    %v6120 = vunpack.c.l.b16 %v4631
    %v6121 = vunpack.c.h.b16 %v4631
    %v6122 = vunpack.c.l.b16 %v4632
    %v6123 = vunpack.c.h.b16 %v4632
    %v6124 = vunpack.c.l.b16 %v4633
    %v6125 = vunpack.c.h.b16 %v4633
    %v6126 = vunpack.c.l.b16 %v4634
    %v6127 = vunpack.c.h.b16 %v4634
    %v6128 = vunpack.c.l.b16 %v4635
    %v6129 = vunpack.c.h.b16 %v4635
    %v6130 = vunpack.c.l.b16 %v4636
    %v6131 = vunpack.c.h.b16 %v4636
    %v6132 = vunpack.c.l.b16 %v4637
    %v6133 = vunpack.c.h.b16 %v4637
    %v6134 = vunpack.c.l.b16 %v4638
    %v6135 = vunpack.c.h.b16 %v4638
    %v6136 = vunpack.c.l.b16 %v4639
    %v6137 = vunpack.c.h.b16 %v4639
    %v6138 = vunpack.c.l.b16 %v4640
    %v6139 = vunpack.c.h.b16 %v4640
    %v6140 = vunpack.c.l.b16 %v4641
    %v6141 = vunpack.c.h.b16 %v4641
    %v6142 = vunpack.c.l.b16 %v4642
    %v6143 = vunpack.c.h.b16 %v4642
    %v6144 = vunpack.c.l.b16 %v4643
    %v6145 = vunpack.c.h.b16 %v4643
    %v6146 = vunpack.c.l.b16 %v4644
    %v6147 = vunpack.c.h.b16 %v4644
    %v6148 = vunpack.c.l.b16 %v4645
    %v6149 = vunpack.c.h.b16 %v4645
    %v6150 = vunpack.c.l.b16 %v4646
    %v6151 = vunpack.c.h.b16 %v4646
    %v6152 = vunpack.c.l.b16 %v4647
    %v6153 = vunpack.c.h.b16 %v4647
    %v6154 = vunpack.c.l.b16 %v4648
    %v6155 = vunpack.c.h.b16 %v4648
    %v6156 = vunpack.c.l.b16 %v4649
    %v6157 = vunpack.c.h.b16 %v4649
    %v6158 = vunpack.c.l.b16 %v4650
    %v6159 = vunpack.c.h.b16 %v4650
    %v6160 = vunpack.c.l.b16 %v4651
    %v6161 = vunpack.c.h.b16 %v4651
    %v6162 = vunpack.c.l.b16 %v4652
    %v6163 = vunpack.c.h.b16 %v4652
    %v6164 = vunpack.c.l.b16 %v4653
    %v6165 = vunpack.c.h.b16 %v4653
    %v6166 = vunpack.c.l.b16 %v4654
    %v6167 = vunpack.c.h.b16 %v4654
    %v6168 = vunpack.c.l.b16 %v4655
    %v6169 = vunpack.c.h.b16 %v4655
    %v6170 = vunpack.c.l.b16 %v4656
    %v6171 = vunpack.c.h.b16 %v4656
    %v6172 = vunpack.c.l.b16 %v4657
    %v6173 = vunpack.c.h.b16 %v4657
    %v6174 = vunpack.c.l.b16 %v4658
    %v6175 = vunpack.c.h.b16 %v4658
    %v6176 = vunpack.c.l.b16 %v4659
    %v6177 = vunpack.c.h.b16 %v4659
    %v6178 = vunpack.c.l.b16 %v4660
    %v6179 = vunpack.c.h.b16 %v4660
    %v6180 = vunpack.c.l.b16 %v4661
    %v6181 = vunpack.c.h.b16 %v4661
    %v6182 = vunpack.c.l.b16 %v4662
    %v6183 = vunpack.c.h.b16 %v4662
    %v6184 = vunpack.c.l.b16 %v4663
    %v6185 = vunpack.c.h.b16 %v4663
    %v6186 = vunpack.c.l.b16 %v4664
    %v6187 = vunpack.c.h.b16 %v4664
    %v6188 = vunpack.c.l.b16 %v4665
    %v6189 = vunpack.c.h.b16 %v4665
    %v6190 = vunpack.c.l.b16 %v4666
    %v6191 = vunpack.c.h.b16 %v4666
    %v6192 = vunpack.c.l.b16 %v4667
    %v6193 = vunpack.c.h.b16 %v4667
    %v6194 = vunpack.c.l.b16 %v4668
    %v6195 = vunpack.c.h.b16 %v4668
    %v6196 = vunpack.c.l.b16 %v4669
    %v6197 = vunpack.c.h.b16 %v4669
    %v6198 = vunpack.c.l.b16 %v4670
    %v6199 = vunpack.c.h.b16 %v4670
    %v6200 = vunpack.c.l.b16 %v4671
    %v6201 = vunpack.c.h.b16 %v4671
    %v6202 = vunpack.c.l.b16 %v4672
    %v6203 = vunpack.c.h.b16 %v4672
    %v6204 = vunpack.c.l.b16 %v4673
    %v6205 = vunpack.c.h.b16 %v4673
    %v6206 = vunpack.c.l.b16 %v4674
    %v6207 = vunpack.c.h.b16 %v4674
    %v6208 = vunpack.c.l.b16 %v4675
    %v6209 = vunpack.c.h.b16 %v4675
    %v6210 = vunpack.c.l.b16 %v4676
    %v6211 = vunpack.c.h.b16 %v4676
    %v6212 = vunpack.c.l.b16 %v4677
    %v6213 = vunpack.c.h.b16 %v4677
    %v6214 = vunpack.c.l.b16 %v4678
    %v6215 = vunpack.c.h.b16 %v4678
    %v6216 = vunpack.c.l.b16 %v4679
    %v6217 = vunpack.c.h.b16 %v4679
    %v6218 = vunpack.c.l.b16 %v4680
    %v6219 = vunpack.c.h.b16 %v4680
    %v6220 = vunpack.c.l.b16 %v4681
    %v6221 = vunpack.c.h.b16 %v4681
    %v6222 = vunpack.c.l.b16 %v4682
    %v6223 = vunpack.c.h.b16 %v4682
    %v6224 = vunpack.c.l.b16 %v4683
    %v6225 = vunpack.c.h.b16 %v4683
    %v6226 = vunpack.c.l.b16 %v4684
    %v6227 = vunpack.c.h.b16 %v4684
    %v6228 = vunpack.c.l.b16 %v4685
    %v6229 = vunpack.c.h.b16 %v4685
    %v6230 = vunpack.c.l.b16 %v4686
    %v6231 = vunpack.c.h.b16 %v4686
    %v6232 = vunpack.c.l.b16 %v4687
    %v6233 = vunpack.c.h.b16 %v4687
    %v6234 = vpack.c.b16 %v5214, %v5210
    %v6235 = vpack.c.b16 %v5215, %v5211
    %v6236 = vpack.c.b16 %v5216, %v5212
    %v6237 = vpack.c.b16 %v5217, %v5213
    %v6238 = vpack.c.b16 %v5222, %v5218
    %v6239 = vpack.c.b16 %v5223, %v5219
    %v6240 = vpack.c.b16 %v5224, %v5220
    %v6241 = vpack.c.b16 %v5225, %v5221
    %v6242 = vpack.c.b16 %v5230, %v5226
    %v6243 = vpack.c.b16 %v5231, %v5227
    %v6244 = vpack.c.b16 %v5232, %v5228
    %v6245 = vpack.c.b16 %v5233, %v5229
    %v6246 = vpack.c.b16 %v5238, %v5234
    %v6247 = vpack.c.b16 %v5239, %v5235
    %v6248 = vpack.c.b16 %v5240, %v5236
    %v6249 = vpack.c.b16 %v5241, %v5237
    %v6250 = vpack.c.b16 %v5246, %v5242
    %v6251 = vpack.c.b16 %v5247, %v5243
    %v6252 = vpack.c.b16 %v5248, %v5244
    %v6253 = vpack.c.b16 %v5249, %v5245
    %v6254 = vpack.c.b16 %v5254, %v5250
    %v6255 = vpack.c.b16 %v5255, %v5251
    %v6256 = vpack.c.b16 %v5256, %v5252
    %v6257 = vpack.c.b16 %v5257, %v5253
    %v6258 = vpack.c.b16 %v5262, %v5258
    %v6259 = vpack.c.b16 %v5263, %v5259
    %v6260 = vpack.c.b16 %v5264, %v5260
    %v6261 = vpack.c.b16 %v5265, %v5261
    %v6262 = vpack.c.b16 %v5270, %v5266
    %v6263 = vpack.c.b16 %v5271, %v5267
    %v6264 = vpack.c.b16 %v5272, %v5268
    %v6265 = vpack.c.b16 %v5273, %v5269
    %v6266 = vpack.c.b16 %v5278, %v5274
    %v6267 = vpack.c.b16 %v5279, %v5275
    %v6268 = vpack.c.b16 %v5280, %v5276
    %v6269 = vpack.c.b16 %v5281, %v5277
    %v6270 = vpack.c.b16 %v5286, %v5282
    %v6271 = vpack.c.b16 %v5287, %v5283
    %v6272 = vpack.c.b16 %v5288, %v5284
    %v6273 = vpack.c.b16 %v5289, %v5285
    %v6274 = vpack.c.b16 %v5294, %v5290
    %v6275 = vpack.c.b16 %v5295, %v5291
    %v6276 = vpack.c.b16 %v5296, %v5292
    %v6277 = vpack.c.b16 %v5297, %v5293
    %v6278 = vpack.c.b16 %v5302, %v5298
    %v6279 = vpack.c.b16 %v5303, %v5299
    %v6280 = vpack.c.b16 %v5304, %v5300
    %v6281 = vpack.c.b16 %v5305, %v5301
    %v6282 = vpack.c.b16 %v5310, %v5306
    %v6283 = vpack.c.b16 %v5311, %v5307
    %v6284 = vpack.c.b16 %v5312, %v5308
    %v6285 = vpack.c.b16 %v5313, %v5309
    %v6286 = vpack.c.b16 %v5318, %v5314
    %v6287 = vpack.c.b16 %v5319, %v5315
    %v6288 = vpack.c.b16 %v5320, %v5316
    %v6289 = vpack.c.b16 %v5321, %v5317
    %v6290 = vpack.c.b16 %v5326, %v5322
    %v6291 = vpack.c.b16 %v5327, %v5323
    %v6292 = vpack.c.b16 %v5328, %v5324
    %v6293 = vpack.c.b16 %v5329, %v5325
    %v6294 = vpack.c.b16 %v5334, %v5330
    %v6295 = vpack.c.b16 %v5335, %v5331
    %v6296 = vpack.c.b16 %v5336, %v5332
    %v6297 = vpack.c.b16 %v5337, %v5333
    %v6298 = vpack.c.b16 %v5342, %v5338
    %v6299 = vpack.c.b16 %v5343, %v5339
    %v6300 = vpack.c.b16 %v5344, %v5340
    %v6301 = vpack.c.b16 %v5345, %v5341
    %v6302 = vpack.c.b16 %v5350, %v5346
    %v6303 = vpack.c.b16 %v5351, %v5347
    %v6304 = vpack.c.b16 %v5352, %v5348
    %v6305 = vpack.c.b16 %v5353, %v5349
    %v6306 = vpack.c.b16 %v5358, %v5354
    %v6307 = vpack.c.b16 %v5359, %v5355
    %v6308 = vpack.c.b16 %v5360, %v5356
    %v6309 = vpack.c.b16 %v5361, %v5357
    %v6310 = vpack.c.b16 %v5366, %v5362
    %v6311 = vpack.c.b16 %v5367, %v5363
    %v6312 = vpack.c.b16 %v5368, %v5364
    %v6313 = vpack.c.b16 %v5369, %v5365
    %v6314 = vpack.c.b16 %v5374, %v5370
    %v6315 = vpack.c.b16 %v5375, %v5371
    %v6316 = vpack.c.b16 %v5376, %v5372
    %v6317 = vpack.c.b16 %v5377, %v5373
    %v6318 = vpack.c.b16 %v5382, %v5378
    %v6319 = vpack.c.b16 %v5383, %v5379
    %v6320 = vpack.c.b16 %v5384, %v5380
    %v6321 = vpack.c.b16 %v5385, %v5381
    %v6322 = vpack.c.b16 %v5390, %v5386
    %v6323 = vpack.c.b16 %v5391, %v5387
    %v6324 = vpack.c.b16 %v5392, %v5388
    %v6325 = vpack.c.b16 %v5393, %v5389
    %v6326 = vpack.c.b16 %v5398, %v5394
    %v6327 = vpack.c.b16 %v5399, %v5395
    %v6328 = vpack.c.b16 %v5400, %v5396
    %v6329 = vpack.c.b16 %v5401, %v5397
    %v6330 = vpack.c.b16 %v5406, %v5402
    %v6331 = vpack.c.b16 %v5407, %v5403
    %v6332 = vpack.c.b16 %v5408, %v5404
    %v6333 = vpack.c.b16 %v5409, %v5405
    %v6334 = vpack.c.b16 %v5414, %v5410
    %v6335 = vpack.c.b16 %v5415, %v5411
    %v6336 = vpack.c.b16 %v5416, %v5412
    %v6337 = vpack.c.b16 %v5417, %v5413
    %v6338 = vpack.c.b16 %v5422, %v5418
    %v6339 = vpack.c.b16 %v5423, %v5419
    %v6340 = vpack.c.b16 %v5424, %v5420
    %v6341 = vpack.c.b16 %v5425, %v5421
    %v6342 = vpack.c.b16 %v5430, %v5426
    %v6343 = vpack.c.b16 %v5431, %v5427
    %v6344 = vpack.c.b16 %v5432, %v5428
    %v6345 = vpack.c.b16 %v5433, %v5429
    %v6346 = vpack.c.b16 %v5438, %v5434
    %v6347 = vpack.c.b16 %v5439, %v5435
    %v6348 = vpack.c.b16 %v5440, %v5436
    %v6349 = vpack.c.b16 %v5441, %v5437
    %v6350 = vpack.c.b16 %v5446, %v5442
    %v6351 = vpack.c.b16 %v5447, %v5443
    %v6352 = vpack.c.b16 %v5448, %v5444
    %v6353 = vpack.c.b16 %v5449, %v5445
    %v6354 = vpack.c.b16 %v5454, %v5450
    %v6355 = vpack.c.b16 %v5455, %v5451
    %v6356 = vpack.c.b16 %v5456, %v5452
    %v6357 = vpack.c.b16 %v5457, %v5453
    %v6358 = vpack.c.b16 %v5462, %v5458
    %v6359 = vpack.c.b16 %v5463, %v5459
    %v6360 = vpack.c.b16 %v5464, %v5460
    %v6361 = vpack.c.b16 %v5465, %v5461
    %v6362 = vpack.c.b16 %v5470, %v5466
    %v6363 = vpack.c.b16 %v5471, %v5467
    %v6364 = vpack.c.b16 %v5472, %v5468
    %v6365 = vpack.c.b16 %v5473, %v5469
    %v6366 = vpack.c.b16 %v5478, %v5474
    %v6367 = vpack.c.b16 %v5479, %v5475
    %v6368 = vpack.c.b16 %v5480, %v5476
    %v6369 = vpack.c.b16 %v5481, %v5477
    %v6370 = vpack.c.b16 %v5486, %v5482
    %v6371 = vpack.c.b16 %v5487, %v5483
    %v6372 = vpack.c.b16 %v5488, %v5484
    %v6373 = vpack.c.b16 %v5489, %v5485
    %v6374 = vpack.c.b16 %v5494, %v5490
    %v6375 = vpack.c.b16 %v5495, %v5491
    %v6376 = vpack.c.b16 %v5496, %v5492
    %v6377 = vpack.c.b16 %v5497, %v5493
    %v6378 = vpack.c.b16 %v5502, %v5498
    %v6379 = vpack.c.b16 %v5503, %v5499
    %v6380 = vpack.c.b16 %v5504, %v5500
    %v6381 = vpack.c.b16 %v5505, %v5501
    %v6382 = vpack.c.b16 %v5510, %v5506
    %v6383 = vpack.c.b16 %v5511, %v5507
    %v6384 = vpack.c.b16 %v5512, %v5508
    %v6385 = vpack.c.b16 %v5513, %v5509
    %v6386 = vpack.c.b16 %v5518, %v5514
    %v6387 = vpack.c.b16 %v5519, %v5515
    %v6388 = vpack.c.b16 %v5520, %v5516
    %v6389 = vpack.c.b16 %v5521, %v5517
    %v6390 = vpack.c.b16 %v5526, %v5522
    %v6391 = vpack.c.b16 %v5527, %v5523
    %v6392 = vpack.c.b16 %v5528, %v5524
    %v6393 = vpack.c.b16 %v5529, %v5525
    %v6394 = vpack.c.b16 %v5534, %v5530
    %v6395 = vpack.c.b16 %v5535, %v5531
    %v6396 = vpack.c.b16 %v5536, %v5532
    %v6397 = vpack.c.b16 %v5537, %v5533
    %v6398 = vpack.c.b16 %v5542, %v5538
    %v6399 = vpack.c.b16 %v5543, %v5539
    %v6400 = vpack.c.b16 %v5544, %v5540
    %v6401 = vpack.c.b16 %v5545, %v5541
    %v6402 = vpack.c.b16 %v5550, %v5546
    %v6403 = vpack.c.b16 %v5551, %v5547
    %v6404 = vpack.c.b16 %v5552, %v5548
    %v6405 = vpack.c.b16 %v5553, %v5549
    %v6406 = vpack.c.b16 %v5558, %v5554
    %v6407 = vpack.c.b16 %v5559, %v5555
    %v6408 = vpack.c.b16 %v5560, %v5556
    %v6409 = vpack.c.b16 %v5561, %v5557
    %v6410 = vpack.c.b16 %v5566, %v5562
    %v6411 = vpack.c.b16 %v5567, %v5563
    %v6412 = vpack.c.b16 %v5568, %v5564
    %v6413 = vpack.c.b16 %v5569, %v5565
    %v6414 = vpack.c.b16 %v5574, %v5570
    %v6415 = vpack.c.b16 %v5575, %v5571
    %v6416 = vpack.c.b16 %v5576, %v5572
    %v6417 = vpack.c.b16 %v5577, %v5573
    %v6418 = vpack.c.b16 %v5582, %v5578
    %v6419 = vpack.c.b16 %v5583, %v5579
    %v6420 = vpack.c.b16 %v5584, %v5580
    %v6421 = vpack.c.b16 %v5585, %v5581
    %v6422 = vpack.c.b16 %v5590, %v5586
    %v6423 = vpack.c.b16 %v5591, %v5587
    %v6424 = vpack.c.b16 %v5592, %v5588
    %v6425 = vpack.c.b16 %v5593, %v5589
    %v6426 = vpack.c.b16 %v5598, %v5594
    %v6427 = vpack.c.b16 %v5599, %v5595
    %v6428 = vpack.c.b16 %v5600, %v5596
    %v6429 = vpack.c.b16 %v5601, %v5597
    %v6430 = vpack.c.b16 %v5606, %v5602
    %v6431 = vpack.c.b16 %v5607, %v5603
    %v6432 = vpack.c.b16 %v5608, %v5604
    %v6433 = vpack.c.b16 %v5609, %v5605
    %v6434 = vpack.c.b16 %v5614, %v5610
    %v6435 = vpack.c.b16 %v5615, %v5611
    %v6436 = vpack.c.b16 %v5616, %v5612
    %v6437 = vpack.c.b16 %v5617, %v5613
    %v6438 = vpack.c.b16 %v5622, %v5618
    %v6439 = vpack.c.b16 %v5623, %v5619
    %v6440 = vpack.c.b16 %v5624, %v5620
    %v6441 = vpack.c.b16 %v5625, %v5621
    %v6442 = vpack.c.b16 %v5630, %v5626
    %v6443 = vpack.c.b16 %v5631, %v5627
    %v6444 = vpack.c.b16 %v5632, %v5628
    %v6445 = vpack.c.b16 %v5633, %v5629
    %v6446 = vpack.c.b16 %v5638, %v5634
    %v6447 = vpack.c.b16 %v5639, %v5635
    %v6448 = vpack.c.b16 %v5640, %v5636
    %v6449 = vpack.c.b16 %v5641, %v5637
    %v6450 = vpack.c.b16 %v5646, %v5642
    %v6451 = vpack.c.b16 %v5647, %v5643
    %v6452 = vpack.c.b16 %v5648, %v5644
    %v6453 = vpack.c.b16 %v5649, %v5645
    %v6454 = vpack.c.b16 %v5654, %v5650
    %v6455 = vpack.c.b16 %v5655, %v5651
    %v6456 = vpack.c.b16 %v5656, %v5652
    %v6457 = vpack.c.b16 %v5657, %v5653
    %v6458 = vpack.c.b16 %v5662, %v5658
    %v6459 = vpack.c.b16 %v5663, %v5659
    %v6460 = vpack.c.b16 %v5664, %v5660
    %v6461 = vpack.c.b16 %v5665, %v5661
    %v6462 = vpack.c.b16 %v5670, %v5666
    %v6463 = vpack.c.b16 %v5671, %v5667
    %v6464 = vpack.c.b16 %v5672, %v5668
    %v6465 = vpack.c.b16 %v5673, %v5669
    %v6466 = vpack.c.b16 %v5678, %v5674
    %v6467 = vpack.c.b16 %v5679, %v5675
    %v6468 = vpack.c.b16 %v5680, %v5676
    %v6469 = vpack.c.b16 %v5681, %v5677
    %v6470 = vpack.c.b16 %v5686, %v5682
    %v6471 = vpack.c.b16 %v5687, %v5683
    %v6472 = vpack.c.b16 %v5688, %v5684
    %v6473 = vpack.c.b16 %v5689, %v5685
    %v6474 = vpack.c.b16 %v5694, %v5690
    %v6475 = vpack.c.b16 %v5695, %v5691
    %v6476 = vpack.c.b16 %v5696, %v5692
    %v6477 = vpack.c.b16 %v5697, %v5693
    %v6478 = vpack.c.b16 %v5702, %v5698
    %v6479 = vpack.c.b16 %v5703, %v5699
    %v6480 = vpack.c.b16 %v5704, %v5700
    %v6481 = vpack.c.b16 %v5705, %v5701
    %v6482 = vpack.c.b16 %v5710, %v5706
    %v6483 = vpack.c.b16 %v5711, %v5707
    %v6484 = vpack.c.b16 %v5712, %v5708
    %v6485 = vpack.c.b16 %v5713, %v5709
    %v6486 = vpack.c.b16 %v5718, %v5714
    %v6487 = vpack.c.b16 %v5719, %v5715
    %v6488 = vpack.c.b16 %v5720, %v5716
    %v6489 = vpack.c.b16 %v5721, %v5717
    %v6490 = vpack.c.b16 %v5726, %v5722
    %v6491 = vpack.c.b16 %v5727, %v5723
    %v6492 = vpack.c.b16 %v5728, %v5724
    %v6493 = vpack.c.b16 %v5729, %v5725
    %v6494 = vpack.c.b16 %v5734, %v5730
    %v6495 = vpack.c.b16 %v5735, %v5731
    %v6496 = vpack.c.b16 %v5736, %v5732
    %v6497 = vpack.c.b16 %v5737, %v5733
    %v6498 = vpack.c.b16 %v5742, %v5738
    %v6499 = vpack.c.b16 %v5743, %v5739
    %v6500 = vpack.c.b16 %v5744, %v5740
    %v6501 = vpack.c.b16 %v5745, %v5741
    %v6502 = vpack.c.b16 %v5750, %v5746
    %v6503 = vpack.c.b16 %v5751, %v5747
    %v6504 = vpack.c.b16 %v5752, %v5748
    %v6505 = vpack.c.b16 %v5753, %v5749
    %v6506 = vpack.c.b16 %v5758, %v5754
    %v6507 = vpack.c.b16 %v5759, %v5755
    %v6508 = vpack.c.b16 %v5760, %v5756
    %v6509 = vpack.c.b16 %v5761, %v5757
    %v6510 = vpack.c.b16 %v5766, %v5762
    %v6511 = vpack.c.b16 %v5767, %v5763
    %v6512 = vpack.c.b16 %v5768, %v5764
    %v6513 = vpack.c.b16 %v5769, %v5765
    %v6514 = vpack.c.b16 %v5774, %v5770
    %v6515 = vpack.c.b16 %v5775, %v5771
    %v6516 = vpack.c.b16 %v5776, %v5772
    %v6517 = vpack.c.b16 %v5777, %v5773
    %v6518 = vpack.c.b16 %v5782, %v5778
    %v6519 = vpack.c.b16 %v5783, %v5779
    %v6520 = vpack.c.b16 %v5784, %v5780
    %v6521 = vpack.c.b16 %v5785, %v5781
    %v6522 = vpack.c.b16 %v5790, %v5786
    %v6523 = vpack.c.b16 %v5791, %v5787
    %v6524 = vpack.c.b16 %v5792, %v5788
    %v6525 = vpack.c.b16 %v5793, %v5789
    %v6526 = vpack.c.b16 %v5798, %v5794
    %v6527 = vpack.c.b16 %v5799, %v5795
    %v6528 = vpack.c.b16 %v5800, %v5796
    %v6529 = vpack.c.b16 %v5801, %v5797
    %v6530 = vpack.c.b16 %v5806, %v5802
    %v6531 = vpack.c.b16 %v5807, %v5803
    %v6532 = vpack.c.b16 %v5808, %v5804
    %v6533 = vpack.c.b16 %v5809, %v5805
    %v6534 = vpack.c.b16 %v5814, %v5810
    %v6535 = vpack.c.b16 %v5815, %v5811
    %v6536 = vpack.c.b16 %v5816, %v5812
    %v6537 = vpack.c.b16 %v5817, %v5813
    %v6538 = vpack.c.b16 %v5822, %v5818
    %v6539 = vpack.c.b16 %v5823, %v5819
    %v6540 = vpack.c.b16 %v5824, %v5820
    %v6541 = vpack.c.b16 %v5825, %v5821
    %v6542 = vpack.c.b16 %v5830, %v5826
    %v6543 = vpack.c.b16 %v5831, %v5827
    %v6544 = vpack.c.b16 %v5832, %v5828
    %v6545 = vpack.c.b16 %v5833, %v5829
    %v6546 = vpack.c.b16 %v5838, %v5834
    %v6547 = vpack.c.b16 %v5839, %v5835
    %v6548 = vpack.c.b16 %v5840, %v5836
    %v6549 = vpack.c.b16 %v5841, %v5837
    %v6550 = vpack.c.b16 %v5846, %v5842
    %v6551 = vpack.c.b16 %v5847, %v5843
    %v6552 = vpack.c.b16 %v5848, %v5844
    %v6553 = vpack.c.b16 %v5849, %v5845
    %v6554 = vpack.c.b16 %v5854, %v5850
    %v6555 = vpack.c.b16 %v5855, %v5851
    %v6556 = vpack.c.b16 %v5856, %v5852
    %v6557 = vpack.c.b16 %v5857, %v5853
    %v6558 = vpack.c.b16 %v5862, %v5858
    %v6559 = vpack.c.b16 %v5863, %v5859
    %v6560 = vpack.c.b16 %v5864, %v5860
    %v6561 = vpack.c.b16 %v5865, %v5861
    %v6562 = vpack.c.b16 %v5870, %v5866
    %v6563 = vpack.c.b16 %v5871, %v5867
    %v6564 = vpack.c.b16 %v5872, %v5868
    %v6565 = vpack.c.b16 %v5873, %v5869
    %v6566 = vpack.c.b16 %v5878, %v5874
    %v6567 = vpack.c.b16 %v5879, %v5875
    %v6568 = vpack.c.b16 %v5880, %v5876
    %v6569 = vpack.c.b16 %v5881, %v5877
    %v6570 = vpack.c.b16 %v5886, %v5882
    %v6571 = vpack.c.b16 %v5887, %v5883
    %v6572 = vpack.c.b16 %v5888, %v5884
    %v6573 = vpack.c.b16 %v5889, %v5885
    %v6574 = vpack.c.b16 %v5894, %v5890
    %v6575 = vpack.c.b16 %v5895, %v5891
    %v6576 = vpack.c.b16 %v5896, %v5892
    %v6577 = vpack.c.b16 %v5897, %v5893
    %v6578 = vpack.c.b16 %v5902, %v5898
    %v6579 = vpack.c.b16 %v5903, %v5899
    %v6580 = vpack.c.b16 %v5904, %v5900
    %v6581 = vpack.c.b16 %v5905, %v5901
    %v6582 = vpack.c.b16 %v5910, %v5906
    %v6583 = vpack.c.b16 %v5911, %v5907
    %v6584 = vpack.c.b16 %v5912, %v5908
    %v6585 = vpack.c.b16 %v5913, %v5909
    %v6586 = vpack.c.b16 %v5918, %v5914
    %v6587 = vpack.c.b16 %v5919, %v5915
    %v6588 = vpack.c.b16 %v5920, %v5916
    %v6589 = vpack.c.b16 %v5921, %v5917
    %v6590 = vpack.c.b16 %v5926, %v5922
    %v6591 = vpack.c.b16 %v5927, %v5923
    %v6592 = vpack.c.b16 %v5928, %v5924
    %v6593 = vpack.c.b16 %v5929, %v5925
    %v6594 = vpack.c.b16 %v5934, %v5930
    %v6595 = vpack.c.b16 %v5935, %v5931
    %v6596 = vpack.c.b16 %v5936, %v5932
    %v6597 = vpack.c.b16 %v5937, %v5933
    %v6598 = vpack.c.b16 %v5942, %v5938
    %v6599 = vpack.c.b16 %v5943, %v5939
    %v6600 = vpack.c.b16 %v5944, %v5940
    %v6601 = vpack.c.b16 %v5945, %v5941
    %v6602 = vpack.c.b16 %v5950, %v5946
    %v6603 = vpack.c.b16 %v5951, %v5947
    %v6604 = vpack.c.b16 %v5952, %v5948
    %v6605 = vpack.c.b16 %v5953, %v5949
    %v6606 = vpack.c.b16 %v5958, %v5954
    %v6607 = vpack.c.b16 %v5959, %v5955
    %v6608 = vpack.c.b16 %v5960, %v5956
    %v6609 = vpack.c.b16 %v5961, %v5957
    %v6610 = vpack.c.b16 %v5966, %v5962
    %v6611 = vpack.c.b16 %v5967, %v5963
    %v6612 = vpack.c.b16 %v5968, %v5964
    %v6613 = vpack.c.b16 %v5969, %v5965
    %v6614 = vpack.c.b16 %v5974, %v5970
    %v6615 = vpack.c.b16 %v5975, %v5971
    %v6616 = vpack.c.b16 %v5976, %v5972
    %v6617 = vpack.c.b16 %v5977, %v5973
    %v6618 = vpack.c.b16 %v5982, %v5978
    %v6619 = vpack.c.b16 %v5983, %v5979
    %v6620 = vpack.c.b16 %v5984, %v5980
    %v6621 = vpack.c.b16 %v5985, %v5981
    %v6622 = vpack.c.b16 %v5990, %v5986
    %v6623 = vpack.c.b16 %v5991, %v5987
    %v6624 = vpack.c.b16 %v5992, %v5988
    %v6625 = vpack.c.b16 %v5993, %v5989
    %v6626 = vpack.c.b16 %v5998, %v5994
    %v6627 = vpack.c.b16 %v5999, %v5995
    %v6628 = vpack.c.b16 %v6000, %v5996
    %v6629 = vpack.c.b16 %v6001, %v5997
    %v6630 = vpack.c.b16 %v6006, %v6002
    %v6631 = vpack.c.b16 %v6007, %v6003
    %v6632 = vpack.c.b16 %v6008, %v6004
    %v6633 = vpack.c.b16 %v6009, %v6005
    %v6634 = vpack.c.b16 %v6014, %v6010
    %v6635 = vpack.c.b16 %v6015, %v6011
    %v6636 = vpack.c.b16 %v6016, %v6012
    %v6637 = vpack.c.b16 %v6017, %v6013
    %v6638 = vpack.c.b16 %v6022, %v6018
    %v6639 = vpack.c.b16 %v6023, %v6019
    %v6640 = vpack.c.b16 %v6024, %v6020
    %v6641 = vpack.c.b16 %v6025, %v6021
    %v6642 = vpack.c.b16 %v6030, %v6026
    %v6643 = vpack.c.b16 %v6031, %v6027
    %v6644 = vpack.c.b16 %v6032, %v6028
    %v6645 = vpack.c.b16 %v6033, %v6029
    %v6646 = vpack.c.b16 %v6038, %v6034
    %v6647 = vpack.c.b16 %v6039, %v6035
    %v6648 = vpack.c.b16 %v6040, %v6036
    %v6649 = vpack.c.b16 %v6041, %v6037
    %v6650 = vpack.c.b16 %v6046, %v6042
    %v6651 = vpack.c.b16 %v6047, %v6043
    %v6652 = vpack.c.b16 %v6048, %v6044
    %v6653 = vpack.c.b16 %v6049, %v6045
    %v6654 = vpack.c.b16 %v6054, %v6050
    %v6655 = vpack.c.b16 %v6055, %v6051
    %v6656 = vpack.c.b16 %v6056, %v6052
    %v6657 = vpack.c.b16 %v6057, %v6053
    %v6658 = vpack.c.b16 %v6062, %v6058
    %v6659 = vpack.c.b16 %v6063, %v6059
    %v6660 = vpack.c.b16 %v6064, %v6060
    %v6661 = vpack.c.b16 %v6065, %v6061
    %v6662 = vpack.c.b16 %v6070, %v6066
    %v6663 = vpack.c.b16 %v6071, %v6067
    %v6664 = vpack.c.b16 %v6072, %v6068
    %v6665 = vpack.c.b16 %v6073, %v6069
    %v6666 = vpack.c.b16 %v6078, %v6074
    %v6667 = vpack.c.b16 %v6079, %v6075
    %v6668 = vpack.c.b16 %v6080, %v6076
    %v6669 = vpack.c.b16 %v6081, %v6077
    %v6670 = vpack.c.b16 %v6086, %v6082
    %v6671 = vpack.c.b16 %v6087, %v6083
    %v6672 = vpack.c.b16 %v6088, %v6084
    %v6673 = vpack.c.b16 %v6089, %v6085
    %v6674 = vpack.c.b16 %v6094, %v6090
    %v6675 = vpack.c.b16 %v6095, %v6091
    %v6676 = vpack.c.b16 %v6096, %v6092
    %v6677 = vpack.c.b16 %v6097, %v6093
    %v6678 = vpack.c.b16 %v6102, %v6098
    %v6679 = vpack.c.b16 %v6103, %v6099
    %v6680 = vpack.c.b16 %v6104, %v6100
    %v6681 = vpack.c.b16 %v6105, %v6101
    %v6682 = vpack.c.b16 %v6110, %v6106
    %v6683 = vpack.c.b16 %v6111, %v6107
    %v6684 = vpack.c.b16 %v6112, %v6108
    %v6685 = vpack.c.b16 %v6113, %v6109
    %v6686 = vpack.c.b16 %v6118, %v6114
    %v6687 = vpack.c.b16 %v6119, %v6115
    %v6688 = vpack.c.b16 %v6120, %v6116
    %v6689 = vpack.c.b16 %v6121, %v6117
    %v6690 = vpack.c.b16 %v6126, %v6122
    %v6691 = vpack.c.b16 %v6127, %v6123
    %v6692 = vpack.c.b16 %v6128, %v6124
    %v6693 = vpack.c.b16 %v6129, %v6125
    %v6694 = vpack.c.b16 %v6134, %v6130
    %v6695 = vpack.c.b16 %v6135, %v6131
    %v6696 = vpack.c.b16 %v6136, %v6132
    %v6697 = vpack.c.b16 %v6137, %v6133
    %v6698 = vpack.c.b16 %v6142, %v6138
    %v6699 = vpack.c.b16 %v6143, %v6139
    %v6700 = vpack.c.b16 %v6144, %v6140
    %v6701 = vpack.c.b16 %v6145, %v6141
    %v6702 = vpack.c.b16 %v6150, %v6146
    %v6703 = vpack.c.b16 %v6151, %v6147
    %v6704 = vpack.c.b16 %v6152, %v6148
    %v6705 = vpack.c.b16 %v6153, %v6149
    %v6706 = vpack.c.b16 %v6158, %v6154
    %v6707 = vpack.c.b16 %v6159, %v6155
    %v6708 = vpack.c.b16 %v6160, %v6156
    %v6709 = vpack.c.b16 %v6161, %v6157
    %v6710 = vpack.c.b16 %v6166, %v6162
    %v6711 = vpack.c.b16 %v6167, %v6163
    %v6712 = vpack.c.b16 %v6168, %v6164
    %v6713 = vpack.c.b16 %v6169, %v6165
    %v6714 = vpack.c.b16 %v6174, %v6170
    %v6715 = vpack.c.b16 %v6175, %v6171
    %v6716 = vpack.c.b16 %v6176, %v6172
    %v6717 = vpack.c.b16 %v6177, %v6173
    %v6718 = vpack.c.b16 %v6182, %v6178
    %v6719 = vpack.c.b16 %v6183, %v6179
    %v6720 = vpack.c.b16 %v6184, %v6180
    %v6721 = vpack.c.b16 %v6185, %v6181
    %v6722 = vpack.c.b16 %v6190, %v6186
    %v6723 = vpack.c.b16 %v6191, %v6187
    %v6724 = vpack.c.b16 %v6192, %v6188
    %v6725 = vpack.c.b16 %v6193, %v6189
    %v6726 = vpack.c.b16 %v6198, %v6194
    %v6727 = vpack.c.b16 %v6199, %v6195
    %v6728 = vpack.c.b16 %v6200, %v6196
    %v6729 = vpack.c.b16 %v6201, %v6197
    %v6730 = vpack.c.b16 %v6206, %v6202
    %v6731 = vpack.c.b16 %v6207, %v6203
    %v6732 = vpack.c.b16 %v6208, %v6204
    %v6733 = vpack.c.b16 %v6209, %v6205
    %v6734 = vpack.c.b16 %v6214, %v6210
    %v6735 = vpack.c.b16 %v6215, %v6211
    %v6736 = vpack.c.b16 %v6216, %v6212
    %v6737 = vpack.c.b16 %v6217, %v6213
    %v6738 = vpack.c.b16 %v6222, %v6218
    %v6739 = vpack.c.b16 %v6223, %v6219
    %v6740 = vpack.c.b16 %v6224, %v6220
    %v6741 = vpack.c.b16 %v6225, %v6221
    %v6742 = vpack.c.b16 %v6230, %v6226
    %v6743 = vpack.c.b16 %v6231, %v6227
    %v6744 = vpack.c.b16 %v6232, %v6228
    %v6745 = vpack.c.b16 %v6233, %v6229
    %7258 = vmatpush.bf16.msra.mxu0 %v6262
    %7259 = vmatpush.bf16.msra.mxu0 %v6258
    %7260 = vmatpush.bf16.msra.mxu0 %v6254
    %7261 = vmatpush.bf16.msra.mxu0 %v6250
    %7262 = vmatpush.bf16.msra.mxu0 %v6246
    %7263 = vmatpush.bf16.msra.mxu0 %v6242
    %7264 = vmatpush.bf16.msra.mxu0 %v6238
    %7265 = vmatpush.bf16.msra.mxu0 %v6234
    %7266 = vmatmul.bf16.gmra.mxu0 %v4160
    %v7267 = vpop.f32.mrf.mxu0
    %v7268 = vadd.f32 %v4690, %v7267
    %v7269 = vpop.f32.mrf.mxu0
    %v7270 = vadd.f32 %v4690, %v7269
    %7271 = vdwg.mxu0
    %7272 = vmatpush.bf16.msra.mxu0 %v6294
    %7273 = vmatpush.bf16.msra.mxu0 %v6290
    %7274 = vmatpush.bf16.msra.mxu0 %v6286
    %7275 = vmatpush.bf16.msra.mxu0 %v6282
    %7276 = vmatpush.bf16.msra.mxu0 %v6278
    %7277 = vmatpush.bf16.msra.mxu0 %v6274
    %7278 = vmatpush.bf16.msra.mxu0 %v6270
    %7279 = vmatpush.bf16.msra.mxu0 %v6266
    %7280 = vmatmul.bf16.gmra.mxu0 %v4161
    %v7281 = vpop.f32.mrf.mxu0
    %v7282 = vadd.f32 %v7268, %v7281
    %v7283 = vpop.f32.mrf.mxu0
    %v7284 = vadd.f32 %v7270, %v7283
    %7285 = vdwg.mxu0
    %7286 = vmatpush.bf16.msra.mxu0 %v6326
    %7287 = vmatpush.bf16.msra.mxu0 %v6322
    %7288 = vmatpush.bf16.msra.mxu0 %v6318
    %7289 = vmatpush.bf16.msra.mxu0 %v6314
    %7290 = vmatpush.bf16.msra.mxu0 %v6310
    %7291 = vmatpush.bf16.msra.mxu0 %v6306
    %7292 = vmatpush.bf16.msra.mxu0 %v6302
    %7293 = vmatpush.bf16.msra.mxu0 %v6298
    %7294 = vmatmul.bf16.gmra.mxu0 %v4162
    %v7295 = vpop.f32.mrf.mxu0
    %v7296 = vadd.f32 %v7282, %v7295
    %v7297 = vpop.f32.mrf.mxu0
    %v7298 = vadd.f32 %v7284, %v7297
    %7299 = vdwg.mxu0
    %7300 = vmatpush.bf16.msra.mxu0 %v6358
    %7301 = vmatpush.bf16.msra.mxu0 %v6354
    %7302 = vmatpush.bf16.msra.mxu0 %v6350
    %7303 = vmatpush.bf16.msra.mxu0 %v6346
    %7304 = vmatpush.bf16.msra.mxu0 %v6342
    %7305 = vmatpush.bf16.msra.mxu0 %v6338
    %7306 = vmatpush.bf16.msra.mxu0 %v6334
    %7307 = vmatpush.bf16.msra.mxu0 %v6330
    %7308 = vmatmul.bf16.gmra.mxu0 %v4163
    %v7309 = vpop.f32.mrf.mxu0
    %v7310 = vadd.f32 %v7296, %v7309
    %v7311 = vpop.f32.mrf.mxu0
    %v7312 = vadd.f32 %v7298, %v7311
    %7313 = vdwg.mxu0
    %7314 = vmatpush.bf16.msra.mxu0 %v6390
    %7315 = vmatpush.bf16.msra.mxu0 %v6386
    %7316 = vmatpush.bf16.msra.mxu0 %v6382
    %7317 = vmatpush.bf16.msra.mxu0 %v6378
    %7318 = vmatpush.bf16.msra.mxu0 %v6374
    %7319 = vmatpush.bf16.msra.mxu0 %v6370
    %7320 = vmatpush.bf16.msra.mxu0 %v6366
    %7321 = vmatpush.bf16.msra.mxu0 %v6362
    %7322 = vmatmul.bf16.gmra.mxu0 %v4164
    %v7323 = vpop.f32.mrf.mxu0
    %v7324 = vadd.f32 %v7310, %v7323
    %v7325 = vpop.f32.mrf.mxu0
    %v7326 = vadd.f32 %v7312, %v7325
    %7327 = vdwg.mxu0
    %7328 = vmatpush.bf16.msra.mxu0 %v6422
    %7329 = vmatpush.bf16.msra.mxu0 %v6418
    %7330 = vmatpush.bf16.msra.mxu0 %v6414
    %7331 = vmatpush.bf16.msra.mxu0 %v6410
    %7332 = vmatpush.bf16.msra.mxu0 %v6406
    %7333 = vmatpush.bf16.msra.mxu0 %v6402
    %7334 = vmatpush.bf16.msra.mxu0 %v6398
    %7335 = vmatpush.bf16.msra.mxu0 %v6394
    %7336 = vmatmul.bf16.gmra.mxu0 %v4165
    %v7337 = vpop.f32.mrf.mxu0
    %v7338 = vadd.f32 %v7324, %v7337
    %v7339 = vpop.f32.mrf.mxu0
    %v7340 = vadd.f32 %v7326, %v7339
    %7341 = vdwg.mxu0
    %7342 = vmatpush.bf16.msra.mxu0 %v6454
    %7343 = vmatpush.bf16.msra.mxu0 %v6450
    %7344 = vmatpush.bf16.msra.mxu0 %v6446
    %7345 = vmatpush.bf16.msra.mxu0 %v6442
    %7346 = vmatpush.bf16.msra.mxu0 %v6438
    %7347 = vmatpush.bf16.msra.mxu0 %v6434
    %7348 = vmatpush.bf16.msra.mxu0 %v6430
    %7349 = vmatpush.bf16.msra.mxu0 %v6426
    %7350 = vmatmul.bf16.gmra.mxu0 %v4166
    %v7351 = vpop.f32.mrf.mxu0
    %v7352 = vadd.f32 %v7338, %v7351
    %v7353 = vpop.f32.mrf.mxu0
    %v7354 = vadd.f32 %v7340, %v7353
    %7355 = vdwg.mxu0
    %7356 = vmatpush.bf16.msra.mxu0 %v6486
    %7357 = vmatpush.bf16.msra.mxu0 %v6482
    %7358 = vmatpush.bf16.msra.mxu0 %v6478
    %7359 = vmatpush.bf16.msra.mxu0 %v6474
    %7360 = vmatpush.bf16.msra.mxu0 %v6470
    %7361 = vmatpush.bf16.msra.mxu0 %v6466
    %7362 = vmatpush.bf16.msra.mxu0 %v6462
    %7363 = vmatpush.bf16.msra.mxu0 %v6458
    %7364 = vmatmul.bf16.gmra.mxu0 %v4167
    %v7365 = vpop.f32.mrf.mxu0
    %v7366 = vadd.f32 %v7352, %v7365
    %v7367 = vpop.f32.mrf.mxu0
    %v7368 = vadd.f32 %v7354, %v7367
    %7369 = vdwg.mxu0
    %7370 = vmatpush.bf16.msra.mxu0 %v6518
    %7371 = vmatpush.bf16.msra.mxu0 %v6514
    %7372 = vmatpush.bf16.msra.mxu0 %v6510
    %7373 = vmatpush.bf16.msra.mxu0 %v6506
    %7374 = vmatpush.bf16.msra.mxu0 %v6502
    %7375 = vmatpush.bf16.msra.mxu0 %v6498
    %7376 = vmatpush.bf16.msra.mxu0 %v6494
    %7377 = vmatpush.bf16.msra.mxu0 %v6490
    %7378 = vmatmul.bf16.gmra.mxu0 %v4168
    %v7379 = vpop.f32.mrf.mxu0
    %v7380 = vadd.f32 %v7366, %v7379
    %v7381 = vpop.f32.mrf.mxu0
    %v7382 = vadd.f32 %v7368, %v7381
    %7383 = vdwg.mxu0
    %7384 = vmatpush.bf16.msra.mxu0 %v6550
    %7385 = vmatpush.bf16.msra.mxu0 %v6546
    %7386 = vmatpush.bf16.msra.mxu0 %v6542
    %7387 = vmatpush.bf16.msra.mxu0 %v6538
    %7388 = vmatpush.bf16.msra.mxu0 %v6534
    %7389 = vmatpush.bf16.msra.mxu0 %v6530
    %7390 = vmatpush.bf16.msra.mxu0 %v6526
    %7391 = vmatpush.bf16.msra.mxu0 %v6522
    %7392 = vmatmul.bf16.gmra.mxu0 %v4169
    %v7393 = vpop.f32.mrf.mxu0
    %v7394 = vadd.f32 %v7380, %v7393
    %v7395 = vpop.f32.mrf.mxu0
    %v7396 = vadd.f32 %v7382, %v7395
    %7397 = vdwg.mxu0
    %7398 = vmatpush.bf16.msra.mxu0 %v6582
    %7399 = vmatpush.bf16.msra.mxu0 %v6578
    %7400 = vmatpush.bf16.msra.mxu0 %v6574
    %7401 = vmatpush.bf16.msra.mxu0 %v6570
    %7402 = vmatpush.bf16.msra.mxu0 %v6566
    %7403 = vmatpush.bf16.msra.mxu0 %v6562
    %7404 = vmatpush.bf16.msra.mxu0 %v6558
    %7405 = vmatpush.bf16.msra.mxu0 %v6554
    %7406 = vmatmul.bf16.gmra.mxu0 %v4170
    %v7407 = vpop.f32.mrf.mxu0
    %v7408 = vadd.f32 %v7394, %v7407
    %v7409 = vpop.f32.mrf.mxu0
    %v7410 = vadd.f32 %v7396, %v7409
    %7411 = vdwg.mxu0
    %7412 = vmatpush.bf16.msra.mxu0 %v6614
    %7413 = vmatpush.bf16.msra.mxu0 %v6610
    %7414 = vmatpush.bf16.msra.mxu0 %v6606
    %7415 = vmatpush.bf16.msra.mxu0 %v6602
    %7416 = vmatpush.bf16.msra.mxu0 %v6598
    %7417 = vmatpush.bf16.msra.mxu0 %v6594
    %7418 = vmatpush.bf16.msra.mxu0 %v6590
    %7419 = vmatpush.bf16.msra.mxu0 %v6586
    %7420 = vmatmul.bf16.gmra.mxu0 %v4171
    %v7421 = vpop.f32.mrf.mxu0
    %v7422 = vadd.f32 %v7408, %v7421
    %v7423 = vpop.f32.mrf.mxu0
    %v7424 = vadd.f32 %v7410, %v7423
    %7425 = vdwg.mxu0
    %7426 = vmatpush.bf16.msra.mxu0 %v6646
    %7427 = vmatpush.bf16.msra.mxu0 %v6642
    %7428 = vmatpush.bf16.msra.mxu0 %v6638
    %7429 = vmatpush.bf16.msra.mxu0 %v6634
    %7430 = vmatpush.bf16.msra.mxu0 %v6630
    %7431 = vmatpush.bf16.msra.mxu0 %v6626
    %7432 = vmatpush.bf16.msra.mxu0 %v6622
    %7433 = vmatpush.bf16.msra.mxu0 %v6618
    %7434 = vmatmul.bf16.gmra.mxu0 %v4172
    %v7435 = vpop.f32.mrf.mxu0
    %v7436 = vadd.f32 %v7422, %v7435
    %v7437 = vpop.f32.mrf.mxu0
    %v7438 = vadd.f32 %v7424, %v7437
    %7439 = vdwg.mxu0
    %7440 = vmatpush.bf16.msra.mxu0 %v6678
    %7441 = vmatpush.bf16.msra.mxu0 %v6674
    %7442 = vmatpush.bf16.msra.mxu0 %v6670
    %7443 = vmatpush.bf16.msra.mxu0 %v6666
    %7444 = vmatpush.bf16.msra.mxu0 %v6662
    %7445 = vmatpush.bf16.msra.mxu0 %v6658
    %7446 = vmatpush.bf16.msra.mxu0 %v6654
    %7447 = vmatpush.bf16.msra.mxu0 %v6650
    %7448 = vmatmul.bf16.gmra.mxu0 %v4173
    %v7449 = vpop.f32.mrf.mxu0
    %v7450 = vadd.f32 %v7436, %v7449
    %v7451 = vpop.f32.mrf.mxu0
    %v7452 = vadd.f32 %v7438, %v7451
    %7453 = vdwg.mxu0
    %7454 = vmatpush.bf16.msra.mxu0 %v6710
    %7455 = vmatpush.bf16.msra.mxu0 %v6706
    %7456 = vmatpush.bf16.msra.mxu0 %v6702
    %7457 = vmatpush.bf16.msra.mxu0 %v6698
    %7458 = vmatpush.bf16.msra.mxu0 %v6694
    %7459 = vmatpush.bf16.msra.mxu0 %v6690
    %7460 = vmatpush.bf16.msra.mxu0 %v6686
    %7461 = vmatpush.bf16.msra.mxu0 %v6682
    %7462 = vmatmul.bf16.gmra.mxu0 %v4174
    %v7463 = vpop.f32.mrf.mxu0
    %v7464 = vadd.f32 %v7450, %v7463
    %v7465 = vpop.f32.mrf.mxu0
    %v7466 = vadd.f32 %v7452, %v7465
    %7467 = vdwg.mxu0
    %7468 = vmatpush.bf16.msra.mxu0 %v6742
    %7469 = vmatpush.bf16.msra.mxu0 %v6738
    %7470 = vmatpush.bf16.msra.mxu0 %v6734
    %7471 = vmatpush.bf16.msra.mxu0 %v6730
    %7472 = vmatpush.bf16.msra.mxu0 %v6726
    %7473 = vmatpush.bf16.msra.mxu0 %v6722
    %7474 = vmatpush.bf16.msra.mxu0 %v6718
    %7475 = vmatpush.bf16.msra.mxu0 %v6714
    %7476 = vmatmul.bf16.gmra.mxu0 %v4175
    %v7477 = vpop.f32.mrf.mxu0
    %v7478 = vadd.f32 %v7464, %v7477
    %v7479 = vpop.f32.mrf.mxu0
    %v7480 = vadd.f32 %v7466, %v7479
    %7481 = vdwg.mxu0
    %7482 = vmatpush.bf16.msra.mxu0 %v6263
    %7483 = vmatpush.bf16.msra.mxu0 %v6259
    %7484 = vmatpush.bf16.msra.mxu0 %v6255
    %7485 = vmatpush.bf16.msra.mxu0 %v6251
    %7486 = vmatpush.bf16.msra.mxu0 %v6247
    %7487 = vmatpush.bf16.msra.mxu0 %v6243
    %7488 = vmatpush.bf16.msra.mxu0 %v6239
    %7489 = vmatpush.bf16.msra.mxu0 %v6235
    %7490 = vmatmul.bf16.gmra.mxu0 %v4160
    %v7491 = vpop.f32.mrf.mxu0
    %v7492 = vadd.f32 %v4691, %v7491
    %v7493 = vpop.f32.mrf.mxu0
    %v7494 = vadd.f32 %v4691, %v7493
    %7495 = vdwg.mxu0
    %7496 = vmatpush.bf16.msra.mxu0 %v6295
    %7497 = vmatpush.bf16.msra.mxu0 %v6291
    %7498 = vmatpush.bf16.msra.mxu0 %v6287
    %7499 = vmatpush.bf16.msra.mxu0 %v6283
    %7500 = vmatpush.bf16.msra.mxu0 %v6279
    %7501 = vmatpush.bf16.msra.mxu0 %v6275
    %7502 = vmatpush.bf16.msra.mxu0 %v6271
    %7503 = vmatpush.bf16.msra.mxu0 %v6267
    %7504 = vmatmul.bf16.gmra.mxu0 %v4161
    %v7505 = vpop.f32.mrf.mxu0
    %v7506 = vadd.f32 %v7492, %v7505
    %v7507 = vpop.f32.mrf.mxu0
    %v7508 = vadd.f32 %v7494, %v7507
    %7509 = vdwg.mxu0
    %7510 = vmatpush.bf16.msra.mxu0 %v6327
    %7511 = vmatpush.bf16.msra.mxu0 %v6323
    %7512 = vmatpush.bf16.msra.mxu0 %v6319
    %7513 = vmatpush.bf16.msra.mxu0 %v6315
    %7514 = vmatpush.bf16.msra.mxu0 %v6311
    %7515 = vmatpush.bf16.msra.mxu0 %v6307
    %7516 = vmatpush.bf16.msra.mxu0 %v6303
    %7517 = vmatpush.bf16.msra.mxu0 %v6299
    %7518 = vmatmul.bf16.gmra.mxu0 %v4162
    %v7519 = vpop.f32.mrf.mxu0
    %v7520 = vadd.f32 %v7506, %v7519
    %v7521 = vpop.f32.mrf.mxu0
    %v7522 = vadd.f32 %v7508, %v7521
    %7523 = vdwg.mxu0
    %7524 = vmatpush.bf16.msra.mxu0 %v6359
    %7525 = vmatpush.bf16.msra.mxu0 %v6355
    %7526 = vmatpush.bf16.msra.mxu0 %v6351
    %7527 = vmatpush.bf16.msra.mxu0 %v6347
    %7528 = vmatpush.bf16.msra.mxu0 %v6343
    %7529 = vmatpush.bf16.msra.mxu0 %v6339
    %7530 = vmatpush.bf16.msra.mxu0 %v6335
    %7531 = vmatpush.bf16.msra.mxu0 %v6331
    %7532 = vmatmul.bf16.gmra.mxu0 %v4163
    %v7533 = vpop.f32.mrf.mxu0
    %v7534 = vadd.f32 %v7520, %v7533
    %v7535 = vpop.f32.mrf.mxu0
    %v7536 = vadd.f32 %v7522, %v7535
    %7537 = vdwg.mxu0
    %7538 = vmatpush.bf16.msra.mxu0 %v6391
    %7539 = vmatpush.bf16.msra.mxu0 %v6387
    %7540 = vmatpush.bf16.msra.mxu0 %v6383
    %7541 = vmatpush.bf16.msra.mxu0 %v6379
    %7542 = vmatpush.bf16.msra.mxu0 %v6375
    %7543 = vmatpush.bf16.msra.mxu0 %v6371
    %7544 = vmatpush.bf16.msra.mxu0 %v6367
    %7545 = vmatpush.bf16.msra.mxu0 %v6363
    %7546 = vmatmul.bf16.gmra.mxu0 %v4164
    %v7547 = vpop.f32.mrf.mxu0
    %v7548 = vadd.f32 %v7534, %v7547
    %v7549 = vpop.f32.mrf.mxu0
    %v7550 = vadd.f32 %v7536, %v7549
    %7551 = vdwg.mxu0
    %7552 = vmatpush.bf16.msra.mxu0 %v6423
    %7553 = vmatpush.bf16.msra.mxu0 %v6419
    %7554 = vmatpush.bf16.msra.mxu0 %v6415
    %7555 = vmatpush.bf16.msra.mxu0 %v6411
    %7556 = vmatpush.bf16.msra.mxu0 %v6407
    %7557 = vmatpush.bf16.msra.mxu0 %v6403
    %7558 = vmatpush.bf16.msra.mxu0 %v6399
    %7559 = vmatpush.bf16.msra.mxu0 %v6395
    %7560 = vmatmul.bf16.gmra.mxu0 %v4165
    %v7561 = vpop.f32.mrf.mxu0
    %v7562 = vadd.f32 %v7548, %v7561
    %v7563 = vpop.f32.mrf.mxu0
    %v7564 = vadd.f32 %v7550, %v7563
    %7565 = vdwg.mxu0
    %7566 = vmatpush.bf16.msra.mxu0 %v6455
    %7567 = vmatpush.bf16.msra.mxu0 %v6451
    %7568 = vmatpush.bf16.msra.mxu0 %v6447
    %7569 = vmatpush.bf16.msra.mxu0 %v6443
    %7570 = vmatpush.bf16.msra.mxu0 %v6439
    %7571 = vmatpush.bf16.msra.mxu0 %v6435
    %7572 = vmatpush.bf16.msra.mxu0 %v6431
    %7573 = vmatpush.bf16.msra.mxu0 %v6427
    %7574 = vmatmul.bf16.gmra.mxu0 %v4166
    %v7575 = vpop.f32.mrf.mxu0
    %v7576 = vadd.f32 %v7562, %v7575
    %v7577 = vpop.f32.mrf.mxu0
    %v7578 = vadd.f32 %v7564, %v7577
    %7579 = vdwg.mxu0
    %7580 = vmatpush.bf16.msra.mxu0 %v6487
    %7581 = vmatpush.bf16.msra.mxu0 %v6483
    %7582 = vmatpush.bf16.msra.mxu0 %v6479
    %7583 = vmatpush.bf16.msra.mxu0 %v6475
    %7584 = vmatpush.bf16.msra.mxu0 %v6471
    %7585 = vmatpush.bf16.msra.mxu0 %v6467
    %7586 = vmatpush.bf16.msra.mxu0 %v6463
    %7587 = vmatpush.bf16.msra.mxu0 %v6459
    %7588 = vmatmul.bf16.gmra.mxu0 %v4167
    %v7589 = vpop.f32.mrf.mxu0
    %v7590 = vadd.f32 %v7576, %v7589
    %v7591 = vpop.f32.mrf.mxu0
    %v7592 = vadd.f32 %v7578, %v7591
    %7593 = vdwg.mxu0
    %7594 = vmatpush.bf16.msra.mxu0 %v6519
    %7595 = vmatpush.bf16.msra.mxu0 %v6515
    %7596 = vmatpush.bf16.msra.mxu0 %v6511
    %7597 = vmatpush.bf16.msra.mxu0 %v6507
    %7598 = vmatpush.bf16.msra.mxu0 %v6503
    %7599 = vmatpush.bf16.msra.mxu0 %v6499
    %7600 = vmatpush.bf16.msra.mxu0 %v6495
    %7601 = vmatpush.bf16.msra.mxu0 %v6491
    %7602 = vmatmul.bf16.gmra.mxu0 %v4168
    %v7603 = vpop.f32.mrf.mxu0
    %v7604 = vadd.f32 %v7590, %v7603
    %v7605 = vpop.f32.mrf.mxu0
    %v7606 = vadd.f32 %v7592, %v7605
    %7607 = vdwg.mxu0
    %7608 = vmatpush.bf16.msra.mxu0 %v6551
    %7609 = vmatpush.bf16.msra.mxu0 %v6547
    %7610 = vmatpush.bf16.msra.mxu0 %v6543
    %7611 = vmatpush.bf16.msra.mxu0 %v6539
    %7612 = vmatpush.bf16.msra.mxu0 %v6535
    %7613 = vmatpush.bf16.msra.mxu0 %v6531
    %7614 = vmatpush.bf16.msra.mxu0 %v6527
    %7615 = vmatpush.bf16.msra.mxu0 %v6523
    %7616 = vmatmul.bf16.gmra.mxu0 %v4169
    %v7617 = vpop.f32.mrf.mxu0
    %v7618 = vadd.f32 %v7604, %v7617
    %v7619 = vpop.f32.mrf.mxu0
    %v7620 = vadd.f32 %v7606, %v7619
    %7621 = vdwg.mxu0
    %7622 = vmatpush.bf16.msra.mxu0 %v6583
    %7623 = vmatpush.bf16.msra.mxu0 %v6579
    %7624 = vmatpush.bf16.msra.mxu0 %v6575
    %7625 = vmatpush.bf16.msra.mxu0 %v6571
    %7626 = vmatpush.bf16.msra.mxu0 %v6567
    %7627 = vmatpush.bf16.msra.mxu0 %v6563
    %7628 = vmatpush.bf16.msra.mxu0 %v6559
    %7629 = vmatpush.bf16.msra.mxu0 %v6555
    %7630 = vmatmul.bf16.gmra.mxu0 %v4170
    %v7631 = vpop.f32.mrf.mxu0
    %v7632 = vadd.f32 %v7618, %v7631
    %v7633 = vpop.f32.mrf.mxu0
    %v7634 = vadd.f32 %v7620, %v7633
    %7635 = vdwg.mxu0
    %7636 = vmatpush.bf16.msra.mxu0 %v6615
    %7637 = vmatpush.bf16.msra.mxu0 %v6611
    %7638 = vmatpush.bf16.msra.mxu0 %v6607
    %7639 = vmatpush.bf16.msra.mxu0 %v6603
    %7640 = vmatpush.bf16.msra.mxu0 %v6599
    %7641 = vmatpush.bf16.msra.mxu0 %v6595
    %7642 = vmatpush.bf16.msra.mxu0 %v6591
    %7643 = vmatpush.bf16.msra.mxu0 %v6587
    %7644 = vmatmul.bf16.gmra.mxu0 %v4171
    %v7645 = vpop.f32.mrf.mxu0
    %v7646 = vadd.f32 %v7632, %v7645
    %v7647 = vpop.f32.mrf.mxu0
    %v7648 = vadd.f32 %v7634, %v7647
    %7649 = vdwg.mxu0
    %7650 = vmatpush.bf16.msra.mxu0 %v6647
    %7651 = vmatpush.bf16.msra.mxu0 %v6643
    %7652 = vmatpush.bf16.msra.mxu0 %v6639
    %7653 = vmatpush.bf16.msra.mxu0 %v6635
    %7654 = vmatpush.bf16.msra.mxu0 %v6631
    %7655 = vmatpush.bf16.msra.mxu0 %v6627
    %7656 = vmatpush.bf16.msra.mxu0 %v6623
    %7657 = vmatpush.bf16.msra.mxu0 %v6619
    %7658 = vmatmul.bf16.gmra.mxu0 %v4172
    %v7659 = vpop.f32.mrf.mxu0
    %v7660 = vadd.f32 %v7646, %v7659
    %v7661 = vpop.f32.mrf.mxu0
    %v7662 = vadd.f32 %v7648, %v7661
    %7663 = vdwg.mxu0
    %7664 = vmatpush.bf16.msra.mxu0 %v6679
    %7665 = vmatpush.bf16.msra.mxu0 %v6675
    %7666 = vmatpush.bf16.msra.mxu0 %v6671
    %7667 = vmatpush.bf16.msra.mxu0 %v6667
    %7668 = vmatpush.bf16.msra.mxu0 %v6663
    %7669 = vmatpush.bf16.msra.mxu0 %v6659
    %7670 = vmatpush.bf16.msra.mxu0 %v6655
    %7671 = vmatpush.bf16.msra.mxu0 %v6651
    %7672 = vmatmul.bf16.gmra.mxu0 %v4173
    %v7673 = vpop.f32.mrf.mxu0
    %v7674 = vadd.f32 %v7660, %v7673
    %v7675 = vpop.f32.mrf.mxu0
    %v7676 = vadd.f32 %v7662, %v7675
    %7677 = vdwg.mxu0
    %7678 = vmatpush.bf16.msra.mxu0 %v6711
    %7679 = vmatpush.bf16.msra.mxu0 %v6707
    %7680 = vmatpush.bf16.msra.mxu0 %v6703
    %7681 = vmatpush.bf16.msra.mxu0 %v6699
    %7682 = vmatpush.bf16.msra.mxu0 %v6695
    %7683 = vmatpush.bf16.msra.mxu0 %v6691
    %7684 = vmatpush.bf16.msra.mxu0 %v6687
    %7685 = vmatpush.bf16.msra.mxu0 %v6683
    %7686 = vmatmul.bf16.gmra.mxu0 %v4174
    %v7687 = vpop.f32.mrf.mxu0
    %v7688 = vadd.f32 %v7674, %v7687
    %v7689 = vpop.f32.mrf.mxu0
    %v7690 = vadd.f32 %v7676, %v7689
    %7691 = vdwg.mxu0
    %7692 = vmatpush.bf16.msra.mxu0 %v6743
    %7693 = vmatpush.bf16.msra.mxu0 %v6739
    %7694 = vmatpush.bf16.msra.mxu0 %v6735
    %7695 = vmatpush.bf16.msra.mxu0 %v6731
    %7696 = vmatpush.bf16.msra.mxu0 %v6727
    %7697 = vmatpush.bf16.msra.mxu0 %v6723
    %7698 = vmatpush.bf16.msra.mxu0 %v6719
    %7699 = vmatpush.bf16.msra.mxu0 %v6715
    %7700 = vmatmul.bf16.gmra.mxu0 %v4175
    %v7701 = vpop.f32.mrf.mxu0
    %v7702 = vadd.f32 %v7688, %v7701
    %v7703 = vpop.f32.mrf.mxu0
    %v7704 = vadd.f32 %v7690, %v7703
    %7705 = vdwg.mxu0
    %7706 = vmatpush.bf16.msra.mxu0 %v6264
    %7707 = vmatpush.bf16.msra.mxu0 %v6260
    %7708 = vmatpush.bf16.msra.mxu0 %v6256
    %7709 = vmatpush.bf16.msra.mxu0 %v6252
    %7710 = vmatpush.bf16.msra.mxu0 %v6248
    %7711 = vmatpush.bf16.msra.mxu0 %v6244
    %7712 = vmatpush.bf16.msra.mxu0 %v6240
    %7713 = vmatpush.bf16.msra.mxu0 %v6236
    %7714 = vmatmul.bf16.gmra.mxu0 %v4160
    %v7715 = vpop.f32.mrf.mxu0
    %v7716 = vadd.f32 %v4692, %v7715
    %v7717 = vpop.f32.mrf.mxu0
    %v7718 = vadd.f32 %v4692, %v7717
    %7719 = vdwg.mxu0
    %7720 = vmatpush.bf16.msra.mxu0 %v6296
    %7721 = vmatpush.bf16.msra.mxu0 %v6292
    %7722 = vmatpush.bf16.msra.mxu0 %v6288
    %7723 = vmatpush.bf16.msra.mxu0 %v6284
    %7724 = vmatpush.bf16.msra.mxu0 %v6280
    %7725 = vmatpush.bf16.msra.mxu0 %v6276
    %7726 = vmatpush.bf16.msra.mxu0 %v6272
    %7727 = vmatpush.bf16.msra.mxu0 %v6268
    %7728 = vmatmul.bf16.gmra.mxu0 %v4161
    %v7729 = vpop.f32.mrf.mxu0
    %v7730 = vadd.f32 %v7716, %v7729
    %v7731 = vpop.f32.mrf.mxu0
    %v7732 = vadd.f32 %v7718, %v7731
    %7733 = vdwg.mxu0
    %7734 = vmatpush.bf16.msra.mxu0 %v6328
    %7735 = vmatpush.bf16.msra.mxu0 %v6324
    %7736 = vmatpush.bf16.msra.mxu0 %v6320
    %7737 = vmatpush.bf16.msra.mxu0 %v6316
    %7738 = vmatpush.bf16.msra.mxu0 %v6312
    %7739 = vmatpush.bf16.msra.mxu0 %v6308
    %7740 = vmatpush.bf16.msra.mxu0 %v6304
    %7741 = vmatpush.bf16.msra.mxu0 %v6300
    %7742 = vmatmul.bf16.gmra.mxu0 %v4162
    %v7743 = vpop.f32.mrf.mxu0
    %v7744 = vadd.f32 %v7730, %v7743
    %v7745 = vpop.f32.mrf.mxu0
    %v7746 = vadd.f32 %v7732, %v7745
    %7747 = vdwg.mxu0
    %7748 = vmatpush.bf16.msra.mxu0 %v6360
    %7749 = vmatpush.bf16.msra.mxu0 %v6356
    %7750 = vmatpush.bf16.msra.mxu0 %v6352
    %7751 = vmatpush.bf16.msra.mxu0 %v6348
    %7752 = vmatpush.bf16.msra.mxu0 %v6344
    %7753 = vmatpush.bf16.msra.mxu0 %v6340
    %7754 = vmatpush.bf16.msra.mxu0 %v6336
    %7755 = vmatpush.bf16.msra.mxu0 %v6332
    %7756 = vmatmul.bf16.gmra.mxu0 %v4163
    %v7757 = vpop.f32.mrf.mxu0
    %v7758 = vadd.f32 %v7744, %v7757
    %v7759 = vpop.f32.mrf.mxu0
    %v7760 = vadd.f32 %v7746, %v7759
    %7761 = vdwg.mxu0
    %7762 = vmatpush.bf16.msra.mxu0 %v6392
    %7763 = vmatpush.bf16.msra.mxu0 %v6388
    %7764 = vmatpush.bf16.msra.mxu0 %v6384
    %7765 = vmatpush.bf16.msra.mxu0 %v6380
    %7766 = vmatpush.bf16.msra.mxu0 %v6376
    %7767 = vmatpush.bf16.msra.mxu0 %v6372
    %7768 = vmatpush.bf16.msra.mxu0 %v6368
    %7769 = vmatpush.bf16.msra.mxu0 %v6364
    %7770 = vmatmul.bf16.gmra.mxu0 %v4164
    %v7771 = vpop.f32.mrf.mxu0
    %v7772 = vadd.f32 %v7758, %v7771
    %v7773 = vpop.f32.mrf.mxu0
    %v7774 = vadd.f32 %v7760, %v7773
    %7775 = vdwg.mxu0
    %7776 = vmatpush.bf16.msra.mxu0 %v6424
    %7777 = vmatpush.bf16.msra.mxu0 %v6420
    %7778 = vmatpush.bf16.msra.mxu0 %v6416
    %7779 = vmatpush.bf16.msra.mxu0 %v6412
    %7780 = vmatpush.bf16.msra.mxu0 %v6408
    %7781 = vmatpush.bf16.msra.mxu0 %v6404
    %7782 = vmatpush.bf16.msra.mxu0 %v6400
    %7783 = vmatpush.bf16.msra.mxu0 %v6396
    %7784 = vmatmul.bf16.gmra.mxu0 %v4165
    %v7785 = vpop.f32.mrf.mxu0
    %v7786 = vadd.f32 %v7772, %v7785
    %v7787 = vpop.f32.mrf.mxu0
    %v7788 = vadd.f32 %v7774, %v7787
    %7789 = vdwg.mxu0
    %7790 = vmatpush.bf16.msra.mxu0 %v6456
    %7791 = vmatpush.bf16.msra.mxu0 %v6452
    %7792 = vmatpush.bf16.msra.mxu0 %v6448
    %7793 = vmatpush.bf16.msra.mxu0 %v6444
    %7794 = vmatpush.bf16.msra.mxu0 %v6440
    %7795 = vmatpush.bf16.msra.mxu0 %v6436
    %7796 = vmatpush.bf16.msra.mxu0 %v6432
    %7797 = vmatpush.bf16.msra.mxu0 %v6428
    %7798 = vmatmul.bf16.gmra.mxu0 %v4166
    %v7799 = vpop.f32.mrf.mxu0
    %v7800 = vadd.f32 %v7786, %v7799
    %v7801 = vpop.f32.mrf.mxu0
    %v7802 = vadd.f32 %v7788, %v7801
    %7803 = vdwg.mxu0
    %7804 = vmatpush.bf16.msra.mxu0 %v6488
    %7805 = vmatpush.bf16.msra.mxu0 %v6484
    %7806 = vmatpush.bf16.msra.mxu0 %v6480
    %7807 = vmatpush.bf16.msra.mxu0 %v6476
    %7808 = vmatpush.bf16.msra.mxu0 %v6472
    %7809 = vmatpush.bf16.msra.mxu0 %v6468
    %7810 = vmatpush.bf16.msra.mxu0 %v6464
    %7811 = vmatpush.bf16.msra.mxu0 %v6460
    %7812 = vmatmul.bf16.gmra.mxu0 %v4167
    %v7813 = vpop.f32.mrf.mxu0
    %v7814 = vadd.f32 %v7800, %v7813
    %v7815 = vpop.f32.mrf.mxu0
    %v7816 = vadd.f32 %v7802, %v7815
    %7817 = vdwg.mxu0
    %7818 = vmatpush.bf16.msra.mxu0 %v6520
    %7819 = vmatpush.bf16.msra.mxu0 %v6516
    %7820 = vmatpush.bf16.msra.mxu0 %v6512
    %7821 = vmatpush.bf16.msra.mxu0 %v6508
    %7822 = vmatpush.bf16.msra.mxu0 %v6504
    %7823 = vmatpush.bf16.msra.mxu0 %v6500
    %7824 = vmatpush.bf16.msra.mxu0 %v6496
    %7825 = vmatpush.bf16.msra.mxu0 %v6492
    %7826 = vmatmul.bf16.gmra.mxu0 %v4168
    %v7827 = vpop.f32.mrf.mxu0
    %v7828 = vadd.f32 %v7814, %v7827
    %v7829 = vpop.f32.mrf.mxu0
    %v7830 = vadd.f32 %v7816, %v7829
    %7831 = vdwg.mxu0
    %7832 = vmatpush.bf16.msra.mxu0 %v6552
    %7833 = vmatpush.bf16.msra.mxu0 %v6548
    %7834 = vmatpush.bf16.msra.mxu0 %v6544
    %7835 = vmatpush.bf16.msra.mxu0 %v6540
    %7836 = vmatpush.bf16.msra.mxu0 %v6536
    %7837 = vmatpush.bf16.msra.mxu0 %v6532
    %7838 = vmatpush.bf16.msra.mxu0 %v6528
    %7839 = vmatpush.bf16.msra.mxu0 %v6524
    %7840 = vmatmul.bf16.gmra.mxu0 %v4169
    %v7841 = vpop.f32.mrf.mxu0
    %v7842 = vadd.f32 %v7828, %v7841
    %v7843 = vpop.f32.mrf.mxu0
    %v7844 = vadd.f32 %v7830, %v7843
    %7845 = vdwg.mxu0
    %7846 = vmatpush.bf16.msra.mxu0 %v6584
    %7847 = vmatpush.bf16.msra.mxu0 %v6580
    %7848 = vmatpush.bf16.msra.mxu0 %v6576
    %7849 = vmatpush.bf16.msra.mxu0 %v6572
    %7850 = vmatpush.bf16.msra.mxu0 %v6568
    %7851 = vmatpush.bf16.msra.mxu0 %v6564
    %7852 = vmatpush.bf16.msra.mxu0 %v6560
    %7853 = vmatpush.bf16.msra.mxu0 %v6556
    %7854 = vmatmul.bf16.gmra.mxu0 %v4170
    %v7855 = vpop.f32.mrf.mxu0
    %v7856 = vadd.f32 %v7842, %v7855
    %v7857 = vpop.f32.mrf.mxu0
    %v7858 = vadd.f32 %v7844, %v7857
    %7859 = vdwg.mxu0
    %7860 = vmatpush.bf16.msra.mxu0 %v6616
    %7861 = vmatpush.bf16.msra.mxu0 %v6612
    %7862 = vmatpush.bf16.msra.mxu0 %v6608
    %7863 = vmatpush.bf16.msra.mxu0 %v6604
    %7864 = vmatpush.bf16.msra.mxu0 %v6600
    %7865 = vmatpush.bf16.msra.mxu0 %v6596
    %7866 = vmatpush.bf16.msra.mxu0 %v6592
    %7867 = vmatpush.bf16.msra.mxu0 %v6588
    %7868 = vmatmul.bf16.gmra.mxu0 %v4171
    %v7869 = vpop.f32.mrf.mxu0
    %v7870 = vadd.f32 %v7856, %v7869
    %v7871 = vpop.f32.mrf.mxu0
    %v7872 = vadd.f32 %v7858, %v7871
    %7873 = vdwg.mxu0
    %7874 = vmatpush.bf16.msra.mxu0 %v6648
    %7875 = vmatpush.bf16.msra.mxu0 %v6644
    %7876 = vmatpush.bf16.msra.mxu0 %v6640
    %7877 = vmatpush.bf16.msra.mxu0 %v6636
    %7878 = vmatpush.bf16.msra.mxu0 %v6632
    %7879 = vmatpush.bf16.msra.mxu0 %v6628
    %7880 = vmatpush.bf16.msra.mxu0 %v6624
    %7881 = vmatpush.bf16.msra.mxu0 %v6620
    %7882 = vmatmul.bf16.gmra.mxu0 %v4172
    %v7883 = vpop.f32.mrf.mxu0
    %v7884 = vadd.f32 %v7870, %v7883
    %v7885 = vpop.f32.mrf.mxu0
    %v7886 = vadd.f32 %v7872, %v7885
    %7887 = vdwg.mxu0
    %7888 = vmatpush.bf16.msra.mxu0 %v6680
    %7889 = vmatpush.bf16.msra.mxu0 %v6676
    %7890 = vmatpush.bf16.msra.mxu0 %v6672
    %7891 = vmatpush.bf16.msra.mxu0 %v6668
    %7892 = vmatpush.bf16.msra.mxu0 %v6664
    %7893 = vmatpush.bf16.msra.mxu0 %v6660
    %7894 = vmatpush.bf16.msra.mxu0 %v6656
    %7895 = vmatpush.bf16.msra.mxu0 %v6652
    %7896 = vmatmul.bf16.gmra.mxu0 %v4173
    %v7897 = vpop.f32.mrf.mxu0
    %v7898 = vadd.f32 %v7884, %v7897
    %v7899 = vpop.f32.mrf.mxu0
    %v7900 = vadd.f32 %v7886, %v7899
    %7901 = vdwg.mxu0
    %7902 = vmatpush.bf16.msra.mxu0 %v6712
    %7903 = vmatpush.bf16.msra.mxu0 %v6708
    %7904 = vmatpush.bf16.msra.mxu0 %v6704
    %7905 = vmatpush.bf16.msra.mxu0 %v6700
    %7906 = vmatpush.bf16.msra.mxu0 %v6696
    %7907 = vmatpush.bf16.msra.mxu0 %v6692
    %7908 = vmatpush.bf16.msra.mxu0 %v6688
    %7909 = vmatpush.bf16.msra.mxu0 %v6684
    %7910 = vmatmul.bf16.gmra.mxu0 %v4174
    %v7911 = vpop.f32.mrf.mxu0
    %v7912 = vadd.f32 %v7898, %v7911
    %v7913 = vpop.f32.mrf.mxu0
    %v7914 = vadd.f32 %v7900, %v7913
    %7915 = vdwg.mxu0
    %7916 = vmatpush.bf16.msra.mxu0 %v6744
    %7917 = vmatpush.bf16.msra.mxu0 %v6740
    %7918 = vmatpush.bf16.msra.mxu0 %v6736
    %7919 = vmatpush.bf16.msra.mxu0 %v6732
    %7920 = vmatpush.bf16.msra.mxu0 %v6728
    %7921 = vmatpush.bf16.msra.mxu0 %v6724
    %7922 = vmatpush.bf16.msra.mxu0 %v6720
    %7923 = vmatpush.bf16.msra.mxu0 %v6716
    %7924 = vmatmul.bf16.gmra.mxu0 %v4175
    %v7925 = vpop.f32.mrf.mxu0
    %v7926 = vadd.f32 %v7912, %v7925
    %v7927 = vpop.f32.mrf.mxu0
    %v7928 = vadd.f32 %v7914, %v7927
    %7929 = vdwg.mxu0
    %7930 = vmatpush.bf16.msra.mxu0 %v6265
    %7931 = vmatpush.bf16.msra.mxu0 %v6261
    %7932 = vmatpush.bf16.msra.mxu0 %v6257
    %7933 = vmatpush.bf16.msra.mxu0 %v6253
    %7934 = vmatpush.bf16.msra.mxu0 %v6249
    %7935 = vmatpush.bf16.msra.mxu0 %v6245
    %7936 = vmatpush.bf16.msra.mxu0 %v6241
    %7937 = vmatpush.bf16.msra.mxu0 %v6237
    %7938 = vmatmul.bf16.gmra.mxu0 %v4160
    %v7939 = vpop.f32.mrf.mxu0
    %v7940 = vadd.f32 %v4693, %v7939
    %v7941 = vpop.f32.mrf.mxu0
    %v7942 = vadd.f32 %v4693, %v7941
    %7943 = vdwg.mxu0
    %7944 = vmatpush.bf16.msra.mxu0 %v6297
    %7945 = vmatpush.bf16.msra.mxu0 %v6293
    %7946 = vmatpush.bf16.msra.mxu0 %v6289
    %7947 = vmatpush.bf16.msra.mxu0 %v6285
    %7948 = vmatpush.bf16.msra.mxu0 %v6281
    %7949 = vmatpush.bf16.msra.mxu0 %v6277
    %7950 = vmatpush.bf16.msra.mxu0 %v6273
    %7951 = vmatpush.bf16.msra.mxu0 %v6269
    %7952 = vmatmul.bf16.gmra.mxu0 %v4161
    %v7953 = vpop.f32.mrf.mxu0
    %v7954 = vadd.f32 %v7940, %v7953
    %v7955 = vpop.f32.mrf.mxu0
    %v7956 = vadd.f32 %v7942, %v7955
    %7957 = vdwg.mxu0
    %7958 = vmatpush.bf16.msra.mxu0 %v6329
    %7959 = vmatpush.bf16.msra.mxu0 %v6325
    %7960 = vmatpush.bf16.msra.mxu0 %v6321
    %7961 = vmatpush.bf16.msra.mxu0 %v6317
    %7962 = vmatpush.bf16.msra.mxu0 %v6313
    %7963 = vmatpush.bf16.msra.mxu0 %v6309
    %7964 = vmatpush.bf16.msra.mxu0 %v6305
    %7965 = vmatpush.bf16.msra.mxu0 %v6301
    %7966 = vmatmul.bf16.gmra.mxu0 %v4162
    %v7967 = vpop.f32.mrf.mxu0
    %v7968 = vadd.f32 %v7954, %v7967
    %v7969 = vpop.f32.mrf.mxu0
    %v7970 = vadd.f32 %v7956, %v7969
    %7971 = vdwg.mxu0
    %7972 = vmatpush.bf16.msra.mxu0 %v6361
    %7973 = vmatpush.bf16.msra.mxu0 %v6357
    %7974 = vmatpush.bf16.msra.mxu0 %v6353
    %7975 = vmatpush.bf16.msra.mxu0 %v6349
    %7976 = vmatpush.bf16.msra.mxu0 %v6345
    %7977 = vmatpush.bf16.msra.mxu0 %v6341
    %7978 = vmatpush.bf16.msra.mxu0 %v6337
    %7979 = vmatpush.bf16.msra.mxu0 %v6333
    %7980 = vmatmul.bf16.gmra.mxu0 %v4163
    %v7981 = vpop.f32.mrf.mxu0
    %v7982 = vadd.f32 %v7968, %v7981
    %v7983 = vpop.f32.mrf.mxu0
    %v7984 = vadd.f32 %v7970, %v7983
    %7985 = vdwg.mxu0
    %7986 = vmatpush.bf16.msra.mxu0 %v6393
    %7987 = vmatpush.bf16.msra.mxu0 %v6389
    %7988 = vmatpush.bf16.msra.mxu0 %v6385
    %7989 = vmatpush.bf16.msra.mxu0 %v6381
    %7990 = vmatpush.bf16.msra.mxu0 %v6377
    %7991 = vmatpush.bf16.msra.mxu0 %v6373
    %7992 = vmatpush.bf16.msra.mxu0 %v6369
    %7993 = vmatpush.bf16.msra.mxu0 %v6365
    %7994 = vmatmul.bf16.gmra.mxu0 %v4164
    %v7995 = vpop.f32.mrf.mxu0
    %v7996 = vadd.f32 %v7982, %v7995
    %v7997 = vpop.f32.mrf.mxu0
    %v7998 = vadd.f32 %v7984, %v7997
    %7999 = vdwg.mxu0
    %8000 = vmatpush.bf16.msra.mxu0 %v6425
    %8001 = vmatpush.bf16.msra.mxu0 %v6421
    %8002 = vmatpush.bf16.msra.mxu0 %v6417
    %8003 = vmatpush.bf16.msra.mxu0 %v6413
    %8004 = vmatpush.bf16.msra.mxu0 %v6409
    %8005 = vmatpush.bf16.msra.mxu0 %v6405
    %8006 = vmatpush.bf16.msra.mxu0 %v6401
    %8007 = vmatpush.bf16.msra.mxu0 %v6397
    %8008 = vmatmul.bf16.gmra.mxu0 %v4165
    %v8009 = vpop.f32.mrf.mxu0
    %v8010 = vadd.f32 %v7996, %v8009
    %v8011 = vpop.f32.mrf.mxu0
    %v8012 = vadd.f32 %v7998, %v8011
    %8013 = vdwg.mxu0
    %8014 = vmatpush.bf16.msra.mxu0 %v6457
    %8015 = vmatpush.bf16.msra.mxu0 %v6453
    %8016 = vmatpush.bf16.msra.mxu0 %v6449
    %8017 = vmatpush.bf16.msra.mxu0 %v6445
    %8018 = vmatpush.bf16.msra.mxu0 %v6441
    %8019 = vmatpush.bf16.msra.mxu0 %v6437
    %8020 = vmatpush.bf16.msra.mxu0 %v6433
    %8021 = vmatpush.bf16.msra.mxu0 %v6429
    %8022 = vmatmul.bf16.gmra.mxu0 %v4166
    %v8023 = vpop.f32.mrf.mxu0
    %v8024 = vadd.f32 %v8010, %v8023
    %v8025 = vpop.f32.mrf.mxu0
    %v8026 = vadd.f32 %v8012, %v8025
    %8027 = vdwg.mxu0
    %8028 = vmatpush.bf16.msra.mxu0 %v6489
    %8029 = vmatpush.bf16.msra.mxu0 %v6485
    %8030 = vmatpush.bf16.msra.mxu0 %v6481
    %8031 = vmatpush.bf16.msra.mxu0 %v6477
    %8032 = vmatpush.bf16.msra.mxu0 %v6473
    %8033 = vmatpush.bf16.msra.mxu0 %v6469
    %8034 = vmatpush.bf16.msra.mxu0 %v6465
    %8035 = vmatpush.bf16.msra.mxu0 %v6461
    %8036 = vmatmul.bf16.gmra.mxu0 %v4167
    %v8037 = vpop.f32.mrf.mxu0
    %v8038 = vadd.f32 %v8024, %v8037
    %v8039 = vpop.f32.mrf.mxu0
    %v8040 = vadd.f32 %v8026, %v8039
    %8041 = vdwg.mxu0
    %8042 = vmatpush.bf16.msra.mxu0 %v6521
    %8043 = vmatpush.bf16.msra.mxu0 %v6517
    %8044 = vmatpush.bf16.msra.mxu0 %v6513
    %8045 = vmatpush.bf16.msra.mxu0 %v6509
    %8046 = vmatpush.bf16.msra.mxu0 %v6505
    %8047 = vmatpush.bf16.msra.mxu0 %v6501
    %8048 = vmatpush.bf16.msra.mxu0 %v6497
    %8049 = vmatpush.bf16.msra.mxu0 %v6493
    %8050 = vmatmul.bf16.gmra.mxu0 %v4168
    %v8051 = vpop.f32.mrf.mxu0
    %v8052 = vadd.f32 %v8038, %v8051
    %v8053 = vpop.f32.mrf.mxu0
    %v8054 = vadd.f32 %v8040, %v8053
    %8055 = vdwg.mxu0
    %8056 = vmatpush.bf16.msra.mxu0 %v6553
    %8057 = vmatpush.bf16.msra.mxu0 %v6549
    %8058 = vmatpush.bf16.msra.mxu0 %v6545
    %8059 = vmatpush.bf16.msra.mxu0 %v6541
    %8060 = vmatpush.bf16.msra.mxu0 %v6537
    %8061 = vmatpush.bf16.msra.mxu0 %v6533
    %8062 = vmatpush.bf16.msra.mxu0 %v6529
    %8063 = vmatpush.bf16.msra.mxu0 %v6525
    %8064 = vmatmul.bf16.gmra.mxu0 %v4169
    %v8065 = vpop.f32.mrf.mxu0
    %v8066 = vadd.f32 %v8052, %v8065
    %v8067 = vpop.f32.mrf.mxu0
    %v8068 = vadd.f32 %v8054, %v8067
    %8069 = vdwg.mxu0
    %8070 = vmatpush.bf16.msra.mxu0 %v6585
    %8071 = vmatpush.bf16.msra.mxu0 %v6581
    %8072 = vmatpush.bf16.msra.mxu0 %v6577
    %8073 = vmatpush.bf16.msra.mxu0 %v6573
    %8074 = vmatpush.bf16.msra.mxu0 %v6569
    %8075 = vmatpush.bf16.msra.mxu0 %v6565
    %8076 = vmatpush.bf16.msra.mxu0 %v6561
    %8077 = vmatpush.bf16.msra.mxu0 %v6557
    %8078 = vmatmul.bf16.gmra.mxu0 %v4170
    %v8079 = vpop.f32.mrf.mxu0
    %v8080 = vadd.f32 %v8066, %v8079
    %v8081 = vpop.f32.mrf.mxu0
    %v8082 = vadd.f32 %v8068, %v8081
    %8083 = vdwg.mxu0
    %8084 = vmatpush.bf16.msra.mxu0 %v6617
    %8085 = vmatpush.bf16.msra.mxu0 %v6613
    %8086 = vmatpush.bf16.msra.mxu0 %v6609
    %8087 = vmatpush.bf16.msra.mxu0 %v6605
    %8088 = vmatpush.bf16.msra.mxu0 %v6601
    %8089 = vmatpush.bf16.msra.mxu0 %v6597
    %8090 = vmatpush.bf16.msra.mxu0 %v6593
    %8091 = vmatpush.bf16.msra.mxu0 %v6589
    %8092 = vmatmul.bf16.gmra.mxu0 %v4171
    %v8093 = vpop.f32.mrf.mxu0
    %v8094 = vadd.f32 %v8080, %v8093
    %v8095 = vpop.f32.mrf.mxu0
    %v8096 = vadd.f32 %v8082, %v8095
    %8097 = vdwg.mxu0
    %8098 = vmatpush.bf16.msra.mxu0 %v6649
    %8099 = vmatpush.bf16.msra.mxu0 %v6645
    %8100 = vmatpush.bf16.msra.mxu0 %v6641
    %8101 = vmatpush.bf16.msra.mxu0 %v6637
    %8102 = vmatpush.bf16.msra.mxu0 %v6633
    %8103 = vmatpush.bf16.msra.mxu0 %v6629
    %8104 = vmatpush.bf16.msra.mxu0 %v6625
    %8105 = vmatpush.bf16.msra.mxu0 %v6621
    %8106 = vmatmul.bf16.gmra.mxu0 %v4172
    %v8107 = vpop.f32.mrf.mxu0
    %v8108 = vadd.f32 %v8094, %v8107
    %v8109 = vpop.f32.mrf.mxu0
    %v8110 = vadd.f32 %v8096, %v8109
    %8111 = vdwg.mxu0
    %8112 = vmatpush.bf16.msra.mxu0 %v6681
    %8113 = vmatpush.bf16.msra.mxu0 %v6677
    %8114 = vmatpush.bf16.msra.mxu0 %v6673
    %8115 = vmatpush.bf16.msra.mxu0 %v6669
    %8116 = vmatpush.bf16.msra.mxu0 %v6665
    %8117 = vmatpush.bf16.msra.mxu0 %v6661
    %8118 = vmatpush.bf16.msra.mxu0 %v6657
    %8119 = vmatpush.bf16.msra.mxu0 %v6653
    %8120 = vmatmul.bf16.gmra.mxu0 %v4173
    %v8121 = vpop.f32.mrf.mxu0
    %v8122 = vadd.f32 %v8108, %v8121
    %v8123 = vpop.f32.mrf.mxu0
    %v8124 = vadd.f32 %v8110, %v8123
    %8125 = vdwg.mxu0
    %8126 = vmatpush.bf16.msra.mxu0 %v6713
    %8127 = vmatpush.bf16.msra.mxu0 %v6709
    %8128 = vmatpush.bf16.msra.mxu0 %v6705
    %8129 = vmatpush.bf16.msra.mxu0 %v6701
    %8130 = vmatpush.bf16.msra.mxu0 %v6697
    %8131 = vmatpush.bf16.msra.mxu0 %v6693
    %8132 = vmatpush.bf16.msra.mxu0 %v6689
    %8133 = vmatpush.bf16.msra.mxu0 %v6685
    %8134 = vmatmul.bf16.gmra.mxu0 %v4174
    %v8135 = vpop.f32.mrf.mxu0
    %v8136 = vadd.f32 %v8122, %v8135
    %v8137 = vpop.f32.mrf.mxu0
    %v8138 = vadd.f32 %v8124, %v8137
    %8139 = vdwg.mxu0
    %8140 = vmatpush.bf16.msra.mxu0 %v6745
    %8141 = vmatpush.bf16.msra.mxu0 %v6741
    %8142 = vmatpush.bf16.msra.mxu0 %v6737
    %8143 = vmatpush.bf16.msra.mxu0 %v6733
    %8144 = vmatpush.bf16.msra.mxu0 %v6729
    %8145 = vmatpush.bf16.msra.mxu0 %v6725
    %8146 = vmatpush.bf16.msra.mxu0 %v6721
    %8147 = vmatpush.bf16.msra.mxu0 %v6717
    %8148 = vmatmul.bf16.gmra.mxu0 %v4175
    %v8149 = vpop.f32.mrf.mxu0
    %v8150 = vadd.f32 %v8136, %v8149
    %v8151 = vpop.f32.mrf.mxu0
    %v8152 = vadd.f32 %v8138, %v8151
    %8153 = vdwg.mxu0
    %v8154 = vadd.f32 %v7478, %v112
    %v8155 = vadd.f32 %v7702, %v113
    %v8156 = vadd.f32 %v7926, %v114
    %v8157 = vadd.f32 %v8150, %v115
    %v8158 = vadd.f32 %v7480, %v116
    %v8159 = vadd.f32 %v7704, %v117
    %v8160 = vadd.f32 %v7928, %v118
    %v8161 = vadd.f32 %v8152, %v119
    %v8162 = vld [vmem:[#allocation9] sm:$0xf]
    %v8163 = vld [vmem:[#allocation10] sm:$0xf]
    %v8164 = vadd.f32 %v8154, %v8155
    %v8165 = vadd.f32 %v8164, %v8156
    %v8166 = vadd.f32 %v8165, %v8157
    %8167 = vadd.xlane.f32.xlu0 %v8166
    %v8168 = vpop.xlane.xlu0 %8167
    %v8169 = vadd.f32 %v8158, %v8159
    %v8170 = vadd.f32 %v8169, %v8160
    %v8171 = vadd.f32 %v8170, %v8161
    %8172 = vadd.xlane.f32.xlu0 %v8171
    %v8173 = vpop.xlane.xlu0 %8172
    %v8174 = vrcp.pop 512.0
    %v8175 = vmul.f32 512.0, %v8174
    %v8176 = vsub.f32 1.0, %v8175
    %v8177 = vmul.f32 %v8174, %v8176
    %v8178 = vadd.f32 %v8174, %v8177
    %vm8179 = vweird.f32 %v8174
    %v8180 = vsel %vm8179, %v8174, %v8178
    %v8181 = vmul.f32 %v8168, %v8180
    %v8182 = vmul.f32 %v8173, %v8180
    %v8183 = vsub.f32 %v8154, %v8181
    %v8184 = vsub.f32 %v8155, %v8181
    %v8185 = vsub.f32 %v8156, %v8181
    %v8186 = vsub.f32 %v8157, %v8181
    %v8187 = vsub.f32 %v8158, %v8182
    %v8188 = vsub.f32 %v8159, %v8182
    %v8189 = vsub.f32 %v8160, %v8182
    %v8190 = vsub.f32 %v8161, %v8182
    %v8191 = vmul.f32 %v8183, %v8183
    %v8192 = vmul.f32 %v8184, %v8184
    %v8193 = vmul.f32 %v8185, %v8185
    %v8194 = vmul.f32 %v8186, %v8186
    %v8195 = vmul.f32 %v8187, %v8187
    %v8196 = vmul.f32 %v8188, %v8188
    %v8197 = vmul.f32 %v8189, %v8189
    %v8198 = vmul.f32 %v8190, %v8190
    %v8199 = vadd.f32 %v8191, %v8192
    %v8200 = vadd.f32 %v8199, %v8193
    %v8201 = vadd.f32 %v8200, %v8194
    %8202 = vadd.xlane.f32.xlu0 %v8201
    %v8203 = vpop.xlane.xlu0 %8202
    %v8204 = vadd.f32 %v8195, %v8196
    %v8205 = vadd.f32 %v8204, %v8197
    %v8206 = vadd.f32 %v8205, %v8198
    %8207 = vadd.xlane.f32.xlu0 %v8206
    %v8208 = vpop.xlane.xlu0 %8207
    %v8209 = vmul.f32 %v8203, %v8180
    %v8210 = vmul.f32 %v8208, %v8180
    %v8211 = vadd.f32 %v8209, 1e-05
    %v8212 = vadd.f32 %v8210, 1e-05
    %v8213 = vrsqrt.pop %v8211
    %v8214 = vmul.f32 %v8213, %v8211
    %v8215 = vmul.f32 %v8214, %v8213
    %v8216 = vmul.f32 0.5, %v8215
    %v8217 = vsub.f32 1.5, %v8216
    %v8218 = vmul.f32 %v8213, %v8217
    %vm8219 = vweird.f32 %v8211
    %vm8220 = vweird.f32 %v8213
    %vm8221 = vmor %vm8219, %vm8220
    %v8222 = vsel %vm8221, %v8213, %v8218
    %v8223 = vrsqrt.pop %v8212
    %v8224 = vmul.f32 %v8223, %v8212
    %v8225 = vmul.f32 %v8224, %v8223
    %v8226 = vmul.f32 0.5, %v8225
    %v8227 = vsub.f32 1.5, %v8226
    %v8228 = vmul.f32 %v8223, %v8227
    %vm8229 = vweird.f32 %v8212
    %vm8230 = vweird.f32 %v8223
    %vm8231 = vmor %vm8229, %vm8230
    %v8232 = vsel %vm8231, %v8223, %v8228
    %v8233 = vmul.f32 %v8183, %v8222
    %v8234 = vmul.f32 %v8184, %v8222
    %v8235 = vmul.f32 %v8185, %v8222
    %v8236 = vmul.f32 %v8186, %v8222
    %v8237 = vmul.f32 %v8187, %v8232
    %v8238 = vmul.f32 %v8188, %v8232
    %v8239 = vmul.f32 %v8189, %v8232
    %v8240 = vmul.f32 %v8190, %v8232
    %v8242 = vperm.slane %v8162, 0
    %v8243 = vperm.slane %v8162, 1
    %v8244 = vperm.slane %v8162, 2
    %v8245 = vperm.slane %v8162, 3
    %v8250 = vmul.f32 %v8233, %v8242
    %v8251 = vmul.f32 %v8234, %v8243
    %v8252 = vmul.f32 %v8235, %v8244
    %v8253 = vmul.f32 %v8236, %v8245
    %v8254 = vmul.f32 %v8237, %v8242
    %v8255 = vmul.f32 %v8238, %v8243
    %v8256 = vmul.f32 %v8239, %v8244
    %v8257 = vmul.f32 %v8240, %v8245
    %v8259 = vperm.slane %v8163, 0
    %v8260 = vperm.slane %v8163, 1
    %v8261 = vperm.slane %v8163, 2
    %v8262 = vperm.slane %v8163, 3
    %v8267 = vadd.f32 %v8250, %v8259
    %v8268 = vadd.f32 %v8251, %v8260
    %v8269 = vadd.f32 %v8252, %v8261
    %v8270 = vadd.f32 %v8253, %v8262
    %v8271 = vadd.f32 %v8254, %v8259
    %v8272 = vadd.f32 %v8255, %v8260
    %v8273 = vadd.f32 %v8256, %v8261
    %v8274 = vadd.f32 %v8257, %v8262
    %8275 = vst [vmem:[%s7] sm:$0xff] %v8267
    %8276 = vst [vmem:[%s7 + $0x8] sm:$0xff] %v8268
    %8277 = vst [vmem:[%s7 + $0x10] sm:$0xff] %v8269
    %8278 = vst [vmem:[%s7 + $0x18] sm:$0xff] %v8270
    %8279 = vst [vmem:[%s7 + $0x20] sm:$0xff] %v8271
    %8280 = vst [vmem:[%s7 + $0x28] sm:$0xff] %v8272
    %8281 = vst [vmem:[%s7 + $0x30] sm:$0xff] %v8273
    %8282 = vst [vmem:[%s7 + $0x38] sm:$0xff] %v8274
    // Predicated region
    $region54: #{encoder_forward.27} parent=1 // pred_check
      _
    $region55: #{encoder_forward.27} parent=1 // pred_check_branch
      %8284 = sbr.rel (0) target = $region57
    $region56: #{encoder_forward.27} parent=1 // pred_region
      _
    $region57: #{encoder_forward.27} parent=1 // pred_fallthru
      _
    // Predicated region
    $region58: #{encoder_forward.27} parent=1 // pred_check
      _
    $region59: #{encoder_forward.27} parent=1 // pred_check_branch
      %8286 = sbr.rel (0) target = $region61
    $region60: #{encoder_forward.27} parent=1 // pred_region
      _
    $region61: #{encoder_forward.27} parent=1 // pred_fallthru
      _
    %8287 = vsyncpa [#allocation3], 1
    %8288 = vsyncpa [#allocation5], 1
    %8289 = vsyncpa [#allocation8], 1
    %8290 = vsyncpa [#allocation11], 1

</llo_original>
